<compile_context>
chip_gen: v5e
topology: v5e:2x2
jax: 0.10.0
libtpu: 0.0.40
codegen_flags: <defaults>
</compile_context>

<pallas_src>
import functools

import jax
import jax.numpy as jnp
from jax.experimental import pallas as pl
from jax.experimental.pallas import tpu as pltpu

BN_EPS = 1e-5
LEAKY_SLOPE = 0.1
LANE = 128


def _round_up(x, m):
    return ((x + m - 1) // m) * m


def _pad_c(c):
    return _round_up(c, LANE)


# ---------------- generation-keyed VMEM budget (v5e/v6e: 128 MiB, v7x: 64 MiB) ----

def _vmem_capacity_bytes():
    try:
        cap = int(getattr(pltpu.get_tpu_info(), "vmem_capacity_bytes", 0))
        if cap > 0:
            return cap
    except Exception:
        pass
    return 64 * 1024 * 1024              # conservative fallback (v7x-sized)


_VMEM_PHYS = _vmem_capacity_bytes()
if _VMEM_PHYS >= 96 * 1024 * 1024:       # v5e / v6e: 128 MiB physical VMEM
    VMEM_LIMIT_BYTES = 100 * 1024 * 1024
    VMEM_TILE_BUDGET = 80 * 1024 * 1024
    TM_CAP = 1024
else:                                    # v7x: 64 MiB physical VMEM
    VMEM_LIMIT_BYTES = 48 * 1024 * 1024
    VMEM_TILE_BUDGET = 36 * 1024 * 1024
    TM_CAP = 512


# ---------------- optional single-buffering of constant-index-map operands -------

def _probe_kernel(x_ref, o_ref):
    o_ref[...] = x_ref[...] + 1.0


@functools.lru_cache(maxsize=None)
def _single_buffer_supported():
    """Probe whether BlockSpec(pipeline_mode=pl.Buffered(1)) works on this JAX."""
    try:
        out = pl.pallas_call(
            _probe_kernel,
            grid=(2,),
            in_specs=[pl.BlockSpec((8, LANE), lambda i: (0, 0),
                                   pipeline_mode=pl.Buffered(1))],
            out_specs=pl.BlockSpec((8, LANE), lambda i: (0, 0)),
            out_shape=jax.ShapeDtypeStruct((8, LANE), jnp.float32),
        )(jnp.zeros((8, LANE), jnp.float32))
        jax.block_until_ready(out)
        return True
    except Exception:
        return False


def _const_spec(shape):
    """BlockSpec for an operand whose block never changes across the grid
    (weights, BN scale/shift, bias): single-buffer it when supported."""
    index_map = lambda i: (0,) * len(shape)
    if _single_buffer_supported():
        return pl.BlockSpec(shape, index_map, pipeline_mode=pl.Buffered(1))
    return pl.BlockSpec(shape, index_map)


def _choose_tm(m, k, npad, bytes_a=2, bytes_out=2, n_f32_temps=3):
    """Largest M-tile (multiple of 8, <= TM_CAP) whose double-buffered A/out tiles,
    weight block and f32 kernel temporaries fit the generation-keyed VMEM budget."""
    w_buffers = 1 if _single_buffer_supported() else 2
    fixed = w_buffers * k * npad * 2 + (1 << 20)          # bf16 weight block + slack
    avail = max(VMEM_TILE_BUDGET - fixed, 2 * 1024 * 1024)
    per_row = 2 * k * bytes_a + 2 * npad * bytes_out + n_f32_temps * npad * 4
    tm = avail // per_row
    tm = max(8, min(TM_CAP, (tm // 8) * 8))
    tm = min(tm, _round_up(m, 8))
    # Keep >=2 grid steps whenever possible so both of v7x's TensorCores get work.
    if tm >= m and m > 8:
        tm = _round_up((m + 1) // 2, 8)
    return int(tm)


def _compiler_params():
    return pltpu.CompilerParams(dimension_semantics=("parallel",),
                                vmem_limit_bytes=VMEM_LIMIT_BYTES)


# ---------------- Pallas kernels (the hot path) ----------------

def _conv_stats_kernel(a_ref, w_ref, y_ref, stats_ref, *, tm, m_true):
    """bf16 MXU matmul (f32 accumulation) -> bf16 raw conv output + per-tile
    mean-centred BatchNorm partial statistics (sum, sum of squared deviations)."""
    acc = jnp.dot(a_ref[...], w_ref[...], preferred_element_type=jnp.float32)
    y_ref[...] = acc.astype(y_ref.dtype)

    # Mask M-padding rows out of the batch statistics.
    base = pl.program_id(0) * tm
    row = jax.lax.broadcasted_iota(jnp.int32, (tm, 1), 0) + base
    mask = row < m_true
    cnt = jnp.maximum(jnp.minimum(m_true - base, tm), 1).astype(jnp.float32)
    accm = jnp.where(mask, acc, 0.0)
    s = jnp.sum(accm, axis=0, keepdims=True)                  # (1, Np)
    mean_t = s / cnt
    dev = jnp.where(mask, acc - mean_t, 0.0)
    stats_ref[0, 0:1, :] = s
    stats_ref[0, 1:2, :] = jnp.sum(dev * dev, axis=0, keepdims=True)


def _bn_act_kernel(y_ref, scale_ref, shift_ref, o_ref):
    """Fused BatchNorm affine + LeakyReLU(0.1), applied once per element."""
    y = y_ref[...].astype(jnp.float32) * scale_ref[...] + shift_ref[...]
    o_ref[...] = jnp.where(y > 0, y, LEAKY_SLOPE * y).astype(o_ref.dtype)


def _head_kernel(a_ref, w_ref, b_ref, o_ref):
    """Final plain 1x1 conv with bias (nn.Conv2d)."""
    acc = jnp.dot(a_ref[...], w_ref[...], preferred_element_type=jnp.float32)
    o_ref[...] = acc + b_ref[...]


# ---------------- pallas_call wrappers ----------------

def conv_matmul_stats(a, w2d):
    """a:(M,K) bf16, w2d:(K,Np) bf16 -> raw conv out (M_pad,Np) bf16 and per-tile
    partial stats (grid_m, 2, Np) f32 [sum, sum((x - tile_mean)^2)]."""
    m, k = a.shape
    npad = w2d.shape[1]
    tm = _choose_tm(m, k, npad)
    m_pad = _round_up(m, tm)
    if m_pad > m:
        a = jnp.pad(a, ((0, m_pad - m), (0, 0)))
    grid_m = m_pad // tm

    kernel = functools.partial(_conv_stats_kernel, tm=tm, m_true=m)
    cost = pl.CostEstimate(
        flops=2 * m_pad * k * npad,
        transcendentals=0,
        bytes_accessed=int(m_pad * k * 2 + k * npad * 2 + m_pad * npad * 2
                           + grid_m * 2 * npad * 4))
    y, stats = pl.pallas_call(
        kernel,
        grid=(grid_m,),
        in_specs=[pl.BlockSpec((tm, k), lambda i: (i, 0)),
                  _const_spec((k, npad))],
        out_specs=(pl.BlockSpec((tm, npad), lambda i: (i, 0)),
                   pl.BlockSpec((1, 2, npad), lambda i: (i, 0, 0))),
        out_shape=(jax.ShapeDtypeStruct((m_pad, npad), jnp.bfloat16),
                   jax.ShapeDtypeStruct((grid_m, 2, npad), jnp.float32)),
        compiler_params=_compiler_params(),
        cost_estimate=cost,
    )(a, w2d)
    return y, stats, tm


def bn_leaky(y_raw, scale, shift, tm):
    """Per-element fused BN affine + LeakyReLU (lane-dense bf16 in / bf16 out)."""
    m_pad, npad = y_raw.shape
    grid_m = m_pad // tm
    cost = pl.CostEstimate(
        flops=3 * m_pad * npad, transcendentals=0,
        bytes_accessed=int(2 * m_pad * npad * 2 + 2 * npad * 4))
    return pl.pallas_call(
        _bn_act_kernel,
        grid=(grid_m,),
        in_specs=[pl.BlockSpec((tm, npad), lambda i: (i, 0)),
                  _const_spec((1, npad)),
                  _const_spec((1, npad))],
        out_specs=pl.BlockSpec((tm, npad), lambda i: (i, 0)),
        out_shape=jax.ShapeDtypeStruct((m_pad, npad), jnp.bfloat16),
        compiler_params=_compiler_params(),
        cost_estimate=cost,
    )(y_raw, scale.reshape(1, npad), shift.reshape(1, npad))


def matmul_head(a, w2d, bias):
    """Final 1x1 conv (bias=True) as a bf16 MXU matmul, f32 output."""
    m, k = a.shape
    npad = w2d.shape[1]
    tm = _choose_tm(m, k, npad, bytes_out=4, n_f32_temps=1)
    m_pad = _round_up(m, tm)
    if m_pad > m:
        a = jnp.pad(a, ((0, m_pad - m), (0, 0)))
    grid_m = m_pad // tm
    cost = pl.CostEstimate(
        flops=2 * m_pad * k * npad, transcendentals=0,
        bytes_accessed=int(m_pad * k * 2 + k * npad * 2 + m_pad * npad * 4))
    return pl.pallas_call(
        _head_kernel,
        grid=(grid_m,),
        in_specs=[pl.BlockSpec((tm, k), lambda i: (i, 0)),
                  _const_spec((k, npad)),
                  _const_spec((1, npad))],
        out_specs=pl.BlockSpec((tm, npad), lambda i: (i, 0)),
        out_shape=jax.ShapeDtypeStruct((m_pad, npad), jnp.float32),
        compiler_params=_compiler_params(),
        cost_estimate=cost,
    )(a, w2d, bias.reshape(1, npad))


# ---------------- JAX glue (layout + tiny per-channel math only) ----------------

def bn_affine(sums, m2s, counts, m_true, gamma, beta):
    """Merge per-tile mean-centred partial stats (Chan's parallel algorithm) into a
    training-mode BatchNorm (biased variance, like PyTorch) per-channel affine."""
    total = jnp.float32(m_true)
    mean = jnp.sum(sums, axis=0) / total
    means_t = sums / counts[:, None]
    var = (jnp.sum(m2s, axis=0)
           + jnp.sum(counts[:, None] * (means_t - mean) ** 2, axis=0)) / total
    var = jnp.maximum(var, 0.0)
    scale = gamma * jax.lax.rsqrt(var + BN_EPS)
    shift = beta - mean * scale
    return scale, shift


def im2col(x, kh, kw, stride, pad):
    """NHWC -> (B*Hout*Wout, kh*kw*C), K ordered (kh, kw, C); zero spatial padding
    of the post-activation feature (exact reference semantics)."""
    # TODO(synk): fold this (plus upsample/concat) into the conv kernels via halo'd
    # BlockSpecs / manual DMA to remove the ~(kh*kw)x patch-matrix HBM traffic.
    b, h, w, c = x.shape
    xp = jnp.pad(x, ((0, 0), (pad, pad), (pad, pad), (0, 0))) if pad > 0 else x
    hout = (h + 2 * pad - kh) // stride + 1
    wout = (w + 2 * pad - kw) // stride + 1
    cols = []
    for i in range(kh):
        for j in range(kw):
            cols.append(xp[:, i:i + stride * (hout - 1) + 1:stride,
                           j:j + stride * (wout - 1) + 1:stride, :])
    a = cols[0] if len(cols) == 1 else jnp.concatenate(cols, axis=-1)
    return a.reshape(b * hout * wout, kh * kw * c), (b, hout, wout)


def conv2d_unit(x, layer, stride, pad, cout):
    """Conv2dUnit: conv (no bias) -> BatchNorm2d (training-mode batch stats) ->
    LeakyReLU(0.1).  x / return value: NHWC bfloat16 with REAL channel counts."""
    w, gamma, beta = layer['w'], layer['gamma'], layer['beta']
    kh, kw, cin, npad = w.shape
    a, (b, hout, wout) = im2col(x, kh, kw, stride, pad)
    m = b * hout * wout
    y_raw, stats, tm = conv_matmul_stats(a, w.reshape(kh * kw * cin, npad))
    grid_m = stats.shape[0]
    counts = jnp.clip(m - jnp.arange(grid_m) * tm, 0, tm).astype(jnp.float32)
    scale, shift = bn_affine(stats[:, 0, :], stats[:, 1, :], counts, m, gamma, beta)
    y_act = bn_leaky(y_raw, scale, shift, tm)
    return y_act[:m, :cout].reshape(b, hout, wout, cout)


def conv2d_head(x, w, bias, cout_true):
    """Final plain nn.Conv2d(1x1, bias=True) of yolo_head3."""
    _, _, cin, npad = w.shape
    b, h, ww, _ = x.shape
    m = b * h * ww
    y = matmul_head(x.reshape(m, cin), w.reshape(cin, npad), bias)
    return y[:m, :cout_true].reshape(b, h, ww, cout_true)


def upsample2x(x):
    # nn.Upsample(scale_factor=2, mode='nearest') on NHWC.
    return jnp.repeat(jnp.repeat(x, 2, axis=1), 2, axis=2)


# ---------------- deterministic parameter init + TPU-layout prep ----------------

def init_params(key, initial_filters=8, in_channels=3):
    f = initial_filters
    i32, i64, i128, i256, i512, i1024 = f, 2 * f, 4 * f, 8 * f, 16 * f, 32 * f
    cfgs = {
        'conv1': (in_channels, i32, 3),
        'conv2': (i32, i64, 3),
        'conv3': (i64, i128, 3),
        'conv4': (i128, i256, 3),
        'conv5': (i256, i512, 3),
        'conv6': (i512, i1024, 3),
        'conv7': (i1024, i512, 1),
        'conv8': (i1024, i256, 1),      # input = cat(upsample(conv7), ds16)
        'head0': (i512, i256, 3),       # input = cat(upsample(conv8), ds8)
    }
    params = {}
    for name, (cin, cout, k) in cfgs.items():
        key, k1, k2, k3 = jax.random.split(key, 4)
        fan_in = k * k * cin
        params[name] = {
            'w': jax.random.normal(k1, (k, k, cin, cout), jnp.float32) / jnp.sqrt(fan_in),
            'gamma': 1.0 + 0.1 * jax.random.normal(k2, (cout,), jnp.float32),
            'beta': 0.1 * jax.random.normal(k3, (cout,), jnp.float32),
        }
    key, k1, k2 = jax.random.split(key, 3)
    params['head1_w'] = (jax.random.normal(k1, (1, 1, i256, 15), jnp.float32)
                         / jnp.sqrt(i256))
    params['head1_b'] = 0.1 * jax.random.normal(k2, (15,), jnp.float32)
    return params


def prepare_params(params):
    """Zero-pad ONLY the out-channel dims to multiples of 128 (lane-dense out_specs)
    and cast matmul weights to bfloat16; BN params / bias stay float32.  Activations
    keep their real channel count (no K inflation)."""
    _single_buffer_supported()           # warm the Buffered(1) probe outside of jit
    prepped = {}
    for name in ('conv1', 'conv2', 'conv3', 'conv4', 'conv5', 'conv6',
                 'conv7', 'conv8', 'head0'):
        p = params[name]
        cout = p['w'].shape[3]
        cout_p = _pad_c(cout)
        prepped[name] = {
            'w': jnp.pad(p['w'], ((0, 0), (0, 0), (0, 0),
                                  (0, cout_p - cout))).astype(jnp.bfloat16),
            'gamma': jnp.pad(p['gamma'], (0, cout_p - cout)),
            'beta': jnp.pad(p['beta'], (0, cout_p - cout)),
        }
    cout_p = _pad_c(15)
    prepped['head1_w'] = jnp.pad(params['head1_w'],
                                 ((0, 0), (0, 0), (0, 0),
                                  (0, cout_p - 15))).astype(jnp.bfloat16)
    prepped['head1_b'] = jnp.pad(params['head1_b'], (0, cout_p - 15))
    return prepped


# ---------------- Darknet10 forward ----------------

def darknet10_forward(x_nchw, prepped, initial_filters=8):
    f = initial_filters
    i32, i64, i128, i256, i512, i1024 = f, 2 * f, 4 * f, 8 * f, 16 * f, 32 * f
    x = jnp.transpose(x_nchw, (0, 2, 3, 1)).astype(jnp.bfloat16)     # NCHW -> NHWC
    x = conv2d_unit(x, prepped['conv1'], 1, 1, i32)
    x = conv2d_unit(x, prepped['conv2'], 2, 1, i64)
    x = conv2d_unit(x, prepped['conv3'], 2, 1, i128)
    feat_ds8 = conv2d_unit(x, prepped['conv4'], 2, 1, i256)
    feat_ds16 = conv2d_unit(feat_ds8, prepped['conv5'], 2, 1, i512)
    feat_ds32 = conv2d_unit(feat_ds16, prepped['conv6'], 2, 1, i1024)
    x = conv2d_unit(feat_ds32, prepped['conv7'], 1, 0, i512)
    x = upsample2x(x)
    # torch.cat(dim=1) == channel concat in NHWC.
    # TODO(synk): feed both concat sources straight into conv8/head0 via separate
    # input refs (own index maps) instead of materializing the concat in HBM.
    ds16 = jnp.concatenate([x, feat_ds16], axis=-1)
    x = conv2d_unit(ds16, prepped['conv8'], 1, 0, i256)
    x = upsample2x(x)
    ds8 = jnp.concatenate([x, feat_ds8], axis=-1)
    x = conv2d_unit(ds8, prepped['head0'], 1, 1, i256)
    y = conv2d_head(x, prepped['head1_w'], prepped['head1_b'], 15)
    b, h, w, _ = y.shape
    # PyTorch: view(B,3,5,H,W).permute(0,1,3,4,2) -> (B,3,H,W,5)
    return jnp.transpose(y.reshape(b, h, w, 3, 5), (0, 3, 1, 2, 4))


if __name__ == "__main__":
    key = jax.random.PRNGKey(0)
    kx, kp = jax.random.split(key)
    # small shapes: batch=2, in_channels=3, spatial=32, initial_filters=8
    x = jax.random.normal(kx, (2, 3, 32, 32), jnp.float32)
    params = init_params(kp, initial_filters=8, in_channels=3)
    prepped = prepare_params(params)

    fwd = jax.jit(functools.partial(darknet10_forward, initial_filters=8))
    y3 = fwd(x, prepped)
    jax.block_until_ready(y3)
    assert y3.shape == (2, 3, 4, 4, 5), y3.shape
    assert y3.dtype == jnp.float32
    print("KERNEL_OK")
</pallas_src>

<mosaic_0001>
module attributes {stable_mosaic.version = 11 : i64} {
  func.func @_probe_kernel(%arg0: i32, %arg1: memref<8x128xf32, #tpu.memory_space<vmem>>, %arg2: memref<8x128xf32, #tpu.memory_space<vmem>>) attributes {dimension_semantics = [#tpu.dimension_semantics<arbitrary>], iteration_bounds = array<i64: 2>, scalar_prefetch = 0 : i64, scratch_operands = 0 : i64, tpu.core_type = #tpu.core_type<tc>, window_params = [{pipeline_mode = #tpu.pipeline_mode<synchronous>, transform_indices = @transform_0, window_bounds = array<i64: 8, 128>}, {pipeline_mode = #tpu.pipeline_mode<synchronous>, transform_indices = @transform_1, window_bounds = array<i64: 8, 128>}]} {
    %c0 = arith.constant 0 : index
    %c0_0 = arith.constant 0 : index
    %0 = vector.load %arg1[%c0, %c0_0] : memref<8x128xf32, #tpu.memory_space<vmem>>, vector<8x128xf32>
    %cst = arith.constant 1.000000e+00 : f32
    %1 = vector.broadcast %cst : f32 to vector<8x128xf32>
    %2 = arith.addf %0, %1 : vector<8x128xf32>
    %c0_1 = arith.constant 0 : index
    %c0_2 = arith.constant 0 : index
    %3 = vector.load %arg2[%c0_1, %c0_2] : memref<8x128xf32, #tpu.memory_space<vmem>>, vector<8x128xf32>
    tpu.vector_store %arg2[%c0_1, %c0_2], %2 {strides = array<i32>} : memref<8x128xf32, #tpu.memory_space<vmem>>, vector<8x128xf32>,
    return
  }
  func.func @transform_0(%arg0: i32) -> (i32, i32) {
    %c0_i32 = arith.constant 0 : i32
    %c0_i32_0 = arith.constant 0 : i32
    %c0_i32_1 = arith.constant 0 : i32
    return %c0_i32, %c0_i32_0 : i32, i32
  }
  func.func @transform_1(%arg0: i32) -> (i32, i32) {
    %c0_i32 = arith.constant 0 : i32
    %c0_i32_0 = arith.constant 0 : i32
    %c0_i32_1 = arith.constant 0 : i32
    return %c0_i32, %c0_i32_0 : i32, i32
  }
}

module attributes {stable_mosaic.version = 11 : i64} {
  func.func @_conv_stats_kernel(%arg0: i32, %arg1: memref<512x27xbf16, #tpu.memory_space<vmem>>, %arg2: memref<27x128xbf16, #tpu.memory_space<vmem>>, %arg3: memref<512x128xbf16, #tpu.memory_space<vmem>>, %arg4: memref<1x2x128xf32, #tpu.memory_space<vmem>>) attributes {dimension_semantics = [#tpu.dimension_semantics<parallel>], iteration_bounds = array<i64: 4>, scalar_prefetch = 0 : i64, scratch_operands = 0 : i64, tpu.core_type = #tpu.core_type<tc>, window_params = [{transform_indices = @transform_0, window_bounds = array<i64: 512, 27>}, {pipeline_mode = #tpu.pipeline_mode<synchronous>, transform_indices = @transform_1, window_bounds = array<i64: 27, 128>}, {transform_indices = @transform_2, window_bounds = array<i64: 512, 128>}, {transform_indices = @transform_3, window_bounds = array<i64: 1, 2, 128>}]} {
    %c0 = arith.constant 0 : index
    %c0_0 = arith.constant 0 : index
    %0 = vector.load %arg1[%c0, %c0_0] : memref<512x27xbf16, #tpu.memory_space<vmem>>, vector<512x27xbf16>
    %c0_1 = arith.constant 0 : index
    %c0_2 = arith.constant 0 : index
    %1 = vector.load %arg2[%c0_1, %c0_2] : memref<27x128xbf16, #tpu.memory_space<vmem>>, vector<27x128xbf16>
    %cst = arith.constant dense<0.000000e+00> : vector<512x128xf32>
    %2 = tpu.matmul %0, %1, %cst {dimension_numbers = #tpu.dot_dimension_numbers<[1], [0], [0], [1], [0, 0, 1, 1], [], []>} : vector<512x27xbf16>, vector<27x128xbf16>, vector<512x128xf32> -> vector<512x128xf32>
    %3 = arith.truncf %2 : vector<512x128xf32> to vector<512x128xbf16>
    %c0_3 = arith.constant 0 : index
    %c0_4 = arith.constant 0 : index
    %4 = vector.load %arg3[%c0_3, %c0_4] : memref<512x128xbf16, #tpu.memory_space<vmem>>, vector<512x128xbf16>
    tpu.vector_store %arg3[%c0_3, %c0_4], %3 {strides = array<i32>} : memref<512x128xbf16, #tpu.memory_space<vmem>>, vector<512x128xbf16>,
    %c512_i32 = arith.constant 512 : i32
    %5 = arith.muli %arg0, %c512_i32 : i32
    %6 = tpu.iota {dimensions = array<i32: 0>} : vector<512x1xi32>
    %7 = vector.broadcast %5 : i32 to vector<512x1xi32>
    %8 = arith.addi %6, %7 : vector<512x1xi32>
    %c2048_i32 = arith.constant 2048 : i32
    %9 = vector.broadcast %c2048_i32 : i32 to vector<512x1xi32>
    %10 = arith.cmpi slt, %8, %9 : vector<512x1xi32>
    %c2048_i32_5 = arith.constant 2048 : i32
    %11 = arith.subi %c2048_i32_5, %5 : i32
    %c512_i32_6 = arith.constant 512 : i32
    %12 = arith.minsi %11, %c512_i32_6 : i32
    %c1_i32 = arith.constant 1 : i32
    %13 = arith.maxsi %12, %c1_i32 : i32
    %14 = arith.sitofp %13 : i32 to f32
    %cst_7 = arith.constant 0.000000e+00 : f32
    %15 = vector.shape_cast %10 : vector<512x1xi1> to vector<512x1xi1>
    %16 = vector.broadcast %15 : vector<512x1xi1> to vector<512x128xi1>
    %17 = vector.broadcast %cst_7 : f32 to vector<512x128xf32>
    %18 = arith.select %16, %2, %17 : vector<512x128xi1>, vector<512x128xf32>
    %cst_8 = arith.constant dense<0.000000e+00> : vector<128xf32>
    %19 = vector.multi_reduction <add>, %18, %cst_8 [0] : vector<512x128xf32> to vector<128xf32>
    %20 = vector.shape_cast %19 : vector<128xf32> to vector<1x128xf32>
    %21 = vector.broadcast %14 : f32 to vector<1x128xf32>
    %22 = arith.divf %20, %21 : vector<1x128xf32>
    %23 = vector.broadcast %22 : vector<1x128xf32> to vector<512x128xf32>
    %24 = arith.subf %2, %23 : vector<512x128xf32>
    %cst_9 = arith.constant 0.000000e+00 : f32
    %25 = vector.shape_cast %10 : vector<512x1xi1> to vector<512x1xi1>
    %26 = vector.broadcast %25 : vector<512x1xi1> to vector<512x128xi1>
    %27 = vector.broadcast %cst_9 : f32 to vector<512x128xf32>
    %28 = arith.select %26, %24, %27 : vector<512x128xi1>, vector<512x128xf32>
    %c0_10 = arith.constant 0 : index
    %c0_11 = arith.constant 0 : index
    %c0_12 = arith.constant 0 : index
    %29 = vector.load %arg4[%c0_10, %c0_11, %c0_12] : memref<1x2x128xf32, #tpu.memory_space<vmem>>, vector<1x1x128xf32>
    %30 = vector.shape_cast %29 : vector<1x1x128xf32> to vector<1x128xf32>
    %31 = vector.shape_cast %20 : vector<1x128xf32> to vector<1x1x128xf32>
    tpu.vector_store %arg4[%c0_10, %c0_11, %c0_12], %31 {strides = array<i32>} : memref<1x2x128xf32, #tpu.memory_space<vmem>>, vector<1x1x128xf32>,
    %32 = arith.mulf %28, %28 : vector<512x128xf32>
    %cst_13 = arith.constant dense<0.000000e+00> : vector<128xf32>
    %33 = vector.multi_reduction <add>, %32, %cst_13 [0] : vector<512x128xf32> to vector<128xf32>
    %34 = vector.shape_cast %33 : vector<128xf32> to vector<1x128xf32>
    %c0_14 = arith.constant 0 : index
    %c1 = arith.constant 1 : index
    %c0_15 = arith.constant 0 : index
    %35 = vector.load %arg4[%c0_14, %c1, %c0_15] : memref<1x2x128xf32, #tpu.memory_space<vmem>>, vector<1x1x128xf32>
    %36 = vector.shape_cast %35 : vector<1x1x128xf32> to vector<1x128xf32>
    %37 = vector.shape_cast %34 : vector<1x128xf32> to vector<1x1x128xf32>
    tpu.vector_store %arg4[%c0_14, %c1, %c0_15], %37 {strides = array<i32>} : memref<1x2x128xf32, #tpu.memory_space<vmem>>, vector<1x1x128xf32>,
    return
  }
  func.func @transform_0(%arg0: i32) -> (i32, i32) {
    %c0_i32 = arith.constant 0 : i32
    %c0_i32_0 = arith.constant 0 : i32
    return %arg0, %c0_i32 : i32, i32
  }
  func.func @transform_1(%arg0: i32) -> (i32, i32) {
    %c0_i32 = arith.constant 0 : i32
    %c0_i32_0 = arith.constant 0 : i32
    %c0_i32_1 = arith.constant 0 : i32
    return %c0_i32, %c0_i32_0 : i32, i32
  }
  func.func @transform_2(%arg0: i32) -> (i32, i32) {
    %c0_i32 = arith.constant 0 : i32
    %c0_i32_0 = arith.constant 0 : i32
    return %arg0, %c0_i32 : i32, i32
  }
  func.func @transform_3(%arg0: i32) -> (i32, i32, i32) {
    %c0_i32 = arith.constant 0 : i32
    %c0_i32_0 = arith.constant 0 : i32
    %c0_i32_1 = arith.constant 0 : i32
    return %arg0, %c0_i32, %c0_i32_0 : i32, i32, i32
  }
}

module attributes {stable_mosaic.version = 11 : i64} {
  func.func @_bn_act_kernel(%arg0: i32, %arg1: memref<512x128xbf16, #tpu.memory_space<vmem>>, %arg2: memref<1x128xf32, #tpu.memory_space<vmem>>, %arg3: memref<1x128xf32, #tpu.memory_space<vmem>>, %arg4: memref<512x128xbf16, #tpu.memory_space<vmem>>) attributes {dimension_semantics = [#tpu.dimension_semantics<parallel>], iteration_bounds = array<i64: 4>, scalar_prefetch = 0 : i64, scratch_operands = 0 : i64, tpu.core_type = #tpu.core_type<tc>, window_params = [{transform_indices = @transform_0, window_bounds = array<i64: 512, 128>}, {pipeline_mode = #tpu.pipeline_mode<synchronous>, transform_indices = @transform_1, window_bounds = array<i64: 1, 128>}, {pipeline_mode = #tpu.pipeline_mode<synchronous>, transform_indices = @transform_2, window_bounds = array<i64: 1, 128>}, {transform_indices = @transform_3, window_bounds = array<i64: 512, 128>}]} {
    %c0 = arith.constant 0 : index
    %c0_0 = arith.constant 0 : index
    %0 = vector.load %arg1[%c0, %c0_0] : memref<512x128xbf16, #tpu.memory_space<vmem>>, vector<512x128xbf16>
    %1 = arith.extf %0 : vector<512x128xbf16> to vector<512x128xf32>
    %c0_1 = arith.constant 0 : index
    %c0_2 = arith.constant 0 : index
    %2 = vector.load %arg2[%c0_1, %c0_2] : memref<1x128xf32, #tpu.memory_space<vmem>>, vector<1x128xf32>
    %3 = vector.broadcast %2 : vector<1x128xf32> to vector<512x128xf32>
    %4 = arith.mulf %1, %3 : vector<512x128xf32>
    %c0_3 = arith.constant 0 : index
    %c0_4 = arith.constant 0 : index
    %5 = vector.load %arg3[%c0_3, %c0_4] : memref<1x128xf32, #tpu.memory_space<vmem>>, vector<1x128xf32>
    %6 = vector.broadcast %5 : vector<1x128xf32> to vector<512x128xf32>
    %7 = arith.addf %4, %6 : vector<512x128xf32>
    %cst = arith.constant 0.000000e+00 : f32
    %8 = vector.broadcast %cst : f32 to vector<512x128xf32>
    %9 = arith.cmpf ogt, %7, %8 : vector<512x128xf32>
    %cst_5 = arith.constant 1.000000e-01 : f32
    %10 = vector.broadcast %cst_5 : f32 to vector<512x128xf32>
    %11 = arith.mulf %10, %7 : vector<512x128xf32>
    %12 = arith.select %9, %7, %11 : vector<512x128xi1>, vector<512x128xf32>
    %13 = arith.truncf %12 : vector<512x128xf32> to vector<512x128xbf16>
    %c0_6 = arith.constant 0 : index
    %c0_7 = arith.constant 0 : index
    %14 = vector.load %arg4[%c0_6, %c0_7] : memref<512x128xbf16, #tpu.memory_space<vmem>>, vector<512x128xbf16>
    tpu.vector_store %arg4[%c0_6, %c0_7], %13 {strides = array<i32>} : memref<512x128xbf16, #tpu.memory_space<vmem>>, vector<512x128xbf16>,
    return
  }
  func.func @transform_0(%arg0: i32) -> (i32, i32) {
    %c0_i32 = arith.constant 0 : i32
    %c0_i32_0 = arith.constant 0 : i32
    return %arg0, %c0_i32 : i32, i32
  }
  func.func @transform_1(%arg0: i32) -> (i32, i32) {
    %c0_i32 = arith.constant 0 : i32
    %c0_i32_0 = arith.constant 0 : i32
    %c0_i32_1 = arith.constant 0 : i32
    return %c0_i32, %c0_i32_0 : i32, i32
  }
  func.func @transform_2(%arg0: i32) -> (i32, i32) {
    %c0_i32 = arith.constant 0 : i32
    %c0_i32_0 = arith.constant 0 : i32
    %c0_i32_1 = arith.constant 0 : i32
    return %c0_i32, %c0_i32_0 : i32, i32
  }
  func.func @transform_3(%arg0: i32) -> (i32, i32) {
    %c0_i32 = arith.constant 0 : i32
    %c0_i32_0 = arith.constant 0 : i32
    return %arg0, %c0_i32 : i32, i32
  }
}

module attributes {stable_mosaic.version = 11 : i64} {
  func.func @_conv_stats_kernel(%arg0: i32, %arg1: memref<256x72xbf16, #tpu.memory_space<vmem>>, %arg2: memref<72x128xbf16, #tpu.memory_space<vmem>>, %arg3: memref<256x128xbf16, #tpu.memory_space<vmem>>, %arg4: memref<1x2x128xf32, #tpu.memory_space<vmem>>) attributes {dimension_semantics = [#tpu.dimension_semantics<parallel>], iteration_bounds = array<i64: 2>, scalar_prefetch = 0 : i64, scratch_operands = 0 : i64, tpu.core_type = #tpu.core_type<tc>, window_params = [{transform_indices = @transform_0, window_bounds = array<i64: 256, 72>}, {pipeline_mode = #tpu.pipeline_mode<synchronous>, transform_indices = @transform_1, window_bounds = array<i64: 72, 128>}, {transform_indices = @transform_2, window_bounds = array<i64: 256, 128>}, {transform_indices = @transform_3, window_bounds = array<i64: 1, 2, 128>}]} {
    %c0 = arith.constant 0 : index
    %c0_0 = arith.constant 0 : index
    %0 = vector.load %arg1[%c0, %c0_0] : memref<256x72xbf16, #tpu.memory_space<vmem>>, vector<256x72xbf16>
    %c0_1 = arith.constant 0 : index
    %c0_2 = arith.constant 0 : index
    %1 = vector.load %arg2[%c0_1, %c0_2] : memref<72x128xbf16, #tpu.memory_space<vmem>>, vector<72x128xbf16>
    %cst = arith.constant dense<0.000000e+00> : vector<256x128xf32>
    %2 = tpu.matmul %0, %1, %cst {dimension_numbers = #tpu.dot_dimension_numbers<[1], [0], [0], [1], [0, 0, 1, 1], [], []>} : vector<256x72xbf16>, vector<72x128xbf16>, vector<256x128xf32> -> vector<256x128xf32>
    %3 = arith.truncf %2 : vector<256x128xf32> to vector<256x128xbf16>
    %c0_3 = arith.constant 0 : index
    %c0_4 = arith.constant 0 : index
    %4 = vector.load %arg3[%c0_3, %c0_4] : memref<256x128xbf16, #tpu.memory_space<vmem>>, vector<256x128xbf16>
    tpu.vector_store %arg3[%c0_3, %c0_4], %3 {strides = array<i32>} : memref<256x128xbf16, #tpu.memory_space<vmem>>, vector<256x128xbf16>,
    %c256_i32 = arith.constant 256 : i32
    %5 = arith.muli %arg0, %c256_i32 : i32
    %6 = tpu.iota {dimensions = array<i32: 0>} : vector<256x1xi32>
    %7 = vector.broadcast %5 : i32 to vector<256x1xi32>
    %8 = arith.addi %6, %7 : vector<256x1xi32>
    %c512_i32 = arith.constant 512 : i32
    %9 = vector.broadcast %c512_i32 : i32 to vector<256x1xi32>
    %10 = arith.cmpi slt, %8, %9 : vector<256x1xi32>
    %c512_i32_5 = arith.constant 512 : i32
    %11 = arith.subi %c512_i32_5, %5 : i32
    %c256_i32_6 = arith.constant 256 : i32
    %12 = arith.minsi %11, %c256_i32_6 : i32
    %c1_i32 = arith.constant 1 : i32
    %13 = arith.maxsi %12, %c1_i32 : i32
    %14 = arith.sitofp %13 : i32 to f32
    %cst_7 = arith.constant 0.000000e+00 : f32
    %15 = vector.shape_cast %10 : vector<256x1xi1> to vector<256x1xi1>
    %16 = vector.broadcast %15 : vector<256x1xi1> to vector<256x128xi1>
    %17 = vector.broadcast %cst_7 : f32 to vector<256x128xf32>
    %18 = arith.select %16, %2, %17 : vector<256x128xi1>, vector<256x128xf32>
    %cst_8 = arith.constant dense<0.000000e+00> : vector<128xf32>
    %19 = vector.multi_reduction <add>, %18, %cst_8 [0] : vector<256x128xf32> to vector<128xf32>
    %20 = vector.shape_cast %19 : vector<128xf32> to vector<1x128xf32>
    %21 = vector.broadcast %14 : f32 to vector<1x128xf32>
    %22 = arith.divf %20, %21 : vector<1x128xf32>
    %23 = vector.broadcast %22 : vector<1x128xf32> to vector<256x128xf32>
    %24 = arith.subf %2, %23 : vector<256x128xf32>
    %cst_9 = arith.constant 0.000000e+00 : f32
    %25 = vector.shape_cast %10 : vector<256x1xi1> to vector<256x1xi1>
    %26 = vector.broadcast %25 : vector<256x1xi1> to vector<256x128xi1>
    %27 = vector.broadcast %cst_9 : f32 to vector<256x128xf32>
    %28 = arith.select %26, %24, %27 : vector<256x128xi1>, vector<256x128xf32>
    %c0_10 = arith.constant 0 : index
    %c0_11 = arith.constant 0 : index
    %c0_12 = arith.constant 0 : index
    %29 = vector.load %arg4[%c0_10, %c0_11, %c0_12] : memref<1x2x128xf32, #tpu.memory_space<vmem>>, vector<1x1x128xf32>
    %30 = vector.shape_cast %29 : vector<1x1x128xf32> to vector<1x128xf32>
    %31 = vector.shape_cast %20 : vector<1x128xf32> to vector<1x1x128xf32>
    tpu.vector_store %arg4[%c0_10, %c0_11, %c0_12], %31 {strides = array<i32>} : memref<1x2x128xf32, #tpu.memory_space<vmem>>, vector<1x1x128xf32>,
    %32 = arith.mulf %28, %28 : vector<256x128xf32>
    %cst_13 = arith.constant dense<0.000000e+00> : vector<128xf32>
    %33 = vector.multi_reduction <add>, %32, %cst_13 [0] : vector<256x128xf32> to vector<128xf32>
    %34 = vector.shape_cast %33 : vector<128xf32> to vector<1x128xf32>
    %c0_14 = arith.constant 0 : index
    %c1 = arith.constant 1 : index
    %c0_15 = arith.constant 0 : index
    %35 = vector.load %arg4[%c0_14, %c1, %c0_15] : memref<1x2x128xf32, #tpu.memory_space<vmem>>, vector<1x1x128xf32>
    %36 = vector.shape_cast %35 : vector<1x1x128xf32> to vector<1x128xf32>
    %37 = vector.shape_cast %34 : vector<1x128xf32> to vector<1x1x128xf32>
    tpu.vector_store %arg4[%c0_14, %c1, %c0_15], %37 {strides = array<i32>} : memref<1x2x128xf32, #tpu.memory_space<vmem>>, vector<1x1x128xf32>,
    return
  }
  func.func @transform_0(%arg0: i32) -> (i32, i32) {
    %c0_i32 = arith.constant 0 : i32
    %c0_i32_0 = arith.constant 0 : i32
    return %arg0, %c0_i32 : i32, i32
  }
  func.func @transform_1(%arg0: i32) -> (i32, i32) {
    %c0_i32 = arith.constant 0 : i32
    %c0_i32_0 = arith.constant 0 : i32
    %c0_i32_1 = arith.constant 0 : i32
    return %c0_i32, %c0_i32_0 : i32, i32
  }
  func.func @transform_2(%arg0: i32) -> (i32, i32) {
    %c0_i32 = arith.constant 0 : i32
    %c0_i32_0 = arith.constant 0 : i32
    return %arg0, %c0_i32 : i32, i32
  }
  func.func @transform_3(%arg0: i32) -> (i32, i32, i32) {
    %c0_i32 = arith.constant 0 : i32
    %c0_i32_0 = arith.constant 0 : i32
    %c0_i32_1 = arith.constant 0 : i32
    return %arg0, %c0_i32, %c0_i32_0 : i32, i32, i32
  }
}

module attributes {stable_mosaic.version = 11 : i64} {
  func.func @_bn_act_kernel(%arg0: i32, %arg1: memref<256x128xbf16, #tpu.memory_space<vmem>>, %arg2: memref<1x128xf32, #tpu.memory_space<vmem>>, %arg3: memref<1x128xf32, #tpu.memory_space<vmem>>, %arg4: memref<256x128xbf16, #tpu.memory_space<vmem>>) attributes {dimension_semantics = [#tpu.dimension_semantics<parallel>], iteration_bounds = array<i64: 2>, scalar_prefetch = 0 : i64, scratch_operands = 0 : i64, tpu.core_type = #tpu.core_type<tc>, window_params = [{transform_indices = @transform_0, window_bounds = array<i64: 256, 128>}, {pipeline_mode = #tpu.pipeline_mode<synchronous>, transform_indices = @transform_1, window_bounds = array<i64: 1, 128>}, {pipeline_mode = #tpu.pipeline_mode<synchronous>, transform_indices = @transform_2, window_bounds = array<i64: 1, 128>}, {transform_indices = @transform_3, window_bounds = array<i64: 256, 128>}]} {
    %c0 = arith.constant 0 : index
    %c0_0 = arith.constant 0 : index
    %0 = vector.load %arg1[%c0, %c0_0] : memref<256x128xbf16, #tpu.memory_space<vmem>>, vector<256x128xbf16>
    %1 = arith.extf %0 : vector<256x128xbf16> to vector<256x128xf32>
    %c0_1 = arith.constant 0 : index
    %c0_2 = arith.constant 0 : index
    %2 = vector.load %arg2[%c0_1, %c0_2] : memref<1x128xf32, #tpu.memory_space<vmem>>, vector<1x128xf32>
    %3 = vector.broadcast %2 : vector<1x128xf32> to vector<256x128xf32>
    %4 = arith.mulf %1, %3 : vector<256x128xf32>
    %c0_3 = arith.constant 0 : index
    %c0_4 = arith.constant 0 : index
    %5 = vector.load %arg3[%c0_3, %c0_4] : memref<1x128xf32, #tpu.memory_space<vmem>>, vector<1x128xf32>
    %6 = vector.broadcast %5 : vector<1x128xf32> to vector<256x128xf32>
    %7 = arith.addf %4, %6 : vector<256x128xf32>
    %cst = arith.constant 0.000000e+00 : f32
    %8 = vector.broadcast %cst : f32 to vector<256x128xf32>
    %9 = arith.cmpf ogt, %7, %8 : vector<256x128xf32>
    %cst_5 = arith.constant 1.000000e-01 : f32
    %10 = vector.broadcast %cst_5 : f32 to vector<256x128xf32>
    %11 = arith.mulf %10, %7 : vector<256x128xf32>
    %12 = arith.select %9, %7, %11 : vector<256x128xi1>, vector<256x128xf32>
    %13 = arith.truncf %12 : vector<256x128xf32> to vector<256x128xbf16>
    %c0_6 = arith.constant 0 : index
    %c0_7 = arith.constant 0 : index
    %14 = vector.load %arg4[%c0_6, %c0_7] : memref<256x128xbf16, #tpu.memory_space<vmem>>, vector<256x128xbf16>
    tpu.vector_store %arg4[%c0_6, %c0_7], %13 {strides = array<i32>} : memref<256x128xbf16, #tpu.memory_space<vmem>>, vector<256x128xbf16>,
    return
  }
  func.func @transform_0(%arg0: i32) -> (i32, i32) {
    %c0_i32 = arith.constant 0 : i32
    %c0_i32_0 = arith.constant 0 : i32
    return %arg0, %c0_i32 : i32, i32
  }
  func.func @transform_1(%arg0: i32) -> (i32, i32) {
    %c0_i32 = arith.constant 0 : i32
    %c0_i32_0 = arith.constant 0 : i32
    %c0_i32_1 = arith.constant 0 : i32
    return %c0_i32, %c0_i32_0 : i32, i32
  }
  func.func @transform_2(%arg0: i32) -> (i32, i32) {
    %c0_i32 = arith.constant 0 : i32
    %c0_i32_0 = arith.constant 0 : i32
    %c0_i32_1 = arith.constant 0 : i32
    return %c0_i32, %c0_i32_0 : i32, i32
  }
  func.func @transform_3(%arg0: i32) -> (i32, i32) {
    %c0_i32 = arith.constant 0 : i32
    %c0_i32_0 = arith.constant 0 : i32
    return %arg0, %c0_i32 : i32, i32
  }
}

module attributes {stable_mosaic.version = 11 : i64} {
  func.func @_conv_stats_kernel(%arg0: i32, %arg1: memref<64x144xbf16, #tpu.memory_space<vmem>>, %arg2: memref<144x128xbf16, #tpu.memory_space<vmem>>, %arg3: memref<64x128xbf16, #tpu.memory_space<vmem>>, %arg4: memref<1x2x128xf32, #tpu.memory_space<vmem>>) attributes {dimension_semantics = [#tpu.dimension_semantics<parallel>], iteration_bounds = array<i64: 2>, scalar_prefetch = 0 : i64, scratch_operands = 0 : i64, tpu.core_type = #tpu.core_type<tc>, window_params = [{transform_indices = @transform_0, window_bounds = array<i64: 64, 144>}, {pipeline_mode = #tpu.pipeline_mode<synchronous>, transform_indices = @transform_1, window_bounds = array<i64: 144, 128>}, {transform_indices = @transform_2, window_bounds = array<i64: 64, 128>}, {transform_indices = @transform_3, window_bounds = array<i64: 1, 2, 128>}]} {
    %c0 = arith.constant 0 : index
    %c0_0 = arith.constant 0 : index
    %0 = vector.load %arg1[%c0, %c0_0] : memref<64x144xbf16, #tpu.memory_space<vmem>>, vector<64x144xbf16>
    %c0_1 = arith.constant 0 : index
    %c0_2 = arith.constant 0 : index
    %1 = vector.load %arg2[%c0_1, %c0_2] : memref<144x128xbf16, #tpu.memory_space<vmem>>, vector<144x128xbf16>
    %cst = arith.constant dense<0.000000e+00> : vector<64x128xf32>
    %2 = tpu.matmul %0, %1, %cst {dimension_numbers = #tpu.dot_dimension_numbers<[1], [0], [0], [1], [0, 0, 1, 1], [], []>} : vector<64x144xbf16>, vector<144x128xbf16>, vector<64x128xf32> -> vector<64x128xf32>
    %3 = arith.truncf %2 : vector<64x128xf32> to vector<64x128xbf16>
    %c0_3 = arith.constant 0 : index
    %c0_4 = arith.constant 0 : index
    %4 = vector.load %arg3[%c0_3, %c0_4] : memref<64x128xbf16, #tpu.memory_space<vmem>>, vector<64x128xbf16>
    tpu.vector_store %arg3[%c0_3, %c0_4], %3 {strides = array<i32>} : memref<64x128xbf16, #tpu.memory_space<vmem>>, vector<64x128xbf16>,
    %c64_i32 = arith.constant 64 : i32
    %5 = arith.muli %arg0, %c64_i32 : i32
    %6 = tpu.iota {dimensions = array<i32: 0>} : vector<64x1xi32>
    %7 = vector.broadcast %5 : i32 to vector<64x1xi32>
    %8 = arith.addi %6, %7 : vector<64x1xi32>
    %c128_i32 = arith.constant 128 : i32
    %9 = vector.broadcast %c128_i32 : i32 to vector<64x1xi32>
    %10 = arith.cmpi slt, %8, %9 : vector<64x1xi32>
    %c128_i32_5 = arith.constant 128 : i32
    %11 = arith.subi %c128_i32_5, %5 : i32
    %c64_i32_6 = arith.constant 64 : i32
    %12 = arith.minsi %11, %c64_i32_6 : i32
    %c1_i32 = arith.constant 1 : i32
    %13 = arith.maxsi %12, %c1_i32 : i32
    %14 = arith.sitofp %13 : i32 to f32
    %cst_7 = arith.constant 0.000000e+00 : f32
    %15 = vector.shape_cast %10 : vector<64x1xi1> to vector<64x1xi1>
    %16 = vector.broadcast %15 : vector<64x1xi1> to vector<64x128xi1>
    %17 = vector.broadcast %cst_7 : f32 to vector<64x128xf32>
    %18 = arith.select %16, %2, %17 : vector<64x128xi1>, vector<64x128xf32>
    %cst_8 = arith.constant dense<0.000000e+00> : vector<128xf32>
    %19 = vector.multi_reduction <add>, %18, %cst_8 [0] : vector<64x128xf32> to vector<128xf32>
    %20 = vector.shape_cast %19 : vector<128xf32> to vector<1x128xf32>
    %21 = vector.broadcast %14 : f32 to vector<1x128xf32>
    %22 = arith.divf %20, %21 : vector<1x128xf32>
    %23 = vector.broadcast %22 : vector<1x128xf32> to vector<64x128xf32>
    %24 = arith.subf %2, %23 : vector<64x128xf32>
    %cst_9 = arith.constant 0.000000e+00 : f32
    %25 = vector.shape_cast %10 : vector<64x1xi1> to vector<64x1xi1>
    %26 = vector.broadcast %25 : vector<64x1xi1> to vector<64x128xi1>
    %27 = vector.broadcast %cst_9 : f32 to vector<64x128xf32>
    %28 = arith.select %26, %24, %27 : vector<64x128xi1>, vector<64x128xf32>
    %c0_10 = arith.constant 0 : index
    %c0_11 = arith.constant 0 : index
    %c0_12 = arith.constant 0 : index
    %29 = vector.load %arg4[%c0_10, %c0_11, %c0_12] : memref<1x2x128xf32, #tpu.memory_space<vmem>>, vector<1x1x128xf32>
    %30 = vector.shape_cast %29 : vector<1x1x128xf32> to vector<1x128xf32>
    %31 = vector.shape_cast %20 : vector<1x128xf32> to vector<1x1x128xf32>
    tpu.vector_store %arg4[%c0_10, %c0_11, %c0_12], %31 {strides = array<i32>} : memref<1x2x128xf32, #tpu.memory_space<vmem>>, vector<1x1x128xf32>,
    %32 = arith.mulf %28, %28 : vector<64x128xf32>
    %cst_13 = arith.constant dense<0.000000e+00> : vector<128xf32>
    %33 = vector.multi_reduction <add>, %32, %cst_13 [0] : vector<64x128xf32> to vector<128xf32>
    %34 = vector.shape_cast %33 : vector<128xf32> to vector<1x128xf32>
    %c0_14 = arith.constant 0 : index
    %c1 = arith.constant 1 : index
    %c0_15 = arith.constant 0 : index
    %35 = vector.load %arg4[%c0_14, %c1, %c0_15] : memref<1x2x128xf32, #tpu.memory_space<vmem>>, vector<1x1x128xf32>
    %36 = vector.shape_cast %35 : vector<1x1x128xf32> to vector<1x128xf32>
    %37 = vector.shape_cast %34 : vector<1x128xf32> to vector<1x1x128xf32>
    tpu.vector_store %arg4[%c0_14, %c1, %c0_15], %37 {strides = array<i32>} : memref<1x2x128xf32, #tpu.memory_space<vmem>>, vector<1x1x128xf32>,
    return
  }
  func.func @transform_0(%arg0: i32) -> (i32, i32) {
    %c0_i32 = arith.constant 0 : i32
    %c0_i32_0 = arith.constant 0 : i32
    return %arg0, %c0_i32 : i32, i32
  }
  func.func @transform_1(%arg0: i32) -> (i32, i32) {
    %c0_i32 = arith.constant 0 : i32
    %c0_i32_0 = arith.constant 0 : i32
    %c0_i32_1 = arith.constant 0 : i32
    return %c0_i32, %c0_i32_0 : i32, i32
  }
  func.func @transform_2(%arg0: i32) -> (i32, i32) {
    %c0_i32 = arith.constant 0 : i32
    %c0_i32_0 = arith.constant 0 : i32
    return %arg0, %c0_i32 : i32, i32
  }
  func.func @transform_3(%arg0: i32) -> (i32, i32, i32) {
    %c0_i32 = arith.constant 0 : i32
    %c0_i32_0 = arith.constant 0 : i32
    %c0_i32_1 = arith.constant 0 : i32
    return %arg0, %c0_i32, %c0_i32_0 : i32, i32, i32
  }
}

module attributes {stable_mosaic.version = 11 : i64} {
  func.func @_bn_act_kernel(%arg0: i32, %arg1: memref<64x128xbf16, #tpu.memory_space<vmem>>, %arg2: memref<1x128xf32, #tpu.memory_space<vmem>>, %arg3: memref<1x128xf32, #tpu.memory_space<vmem>>, %arg4: memref<64x128xbf16, #tpu.memory_space<vmem>>) attributes {dimension_semantics = [#tpu.dimension_semantics<parallel>], iteration_bounds = array<i64: 2>, scalar_prefetch = 0 : i64, scratch_operands = 0 : i64, tpu.core_type = #tpu.core_type<tc>, window_params = [{transform_indices = @transform_0, window_bounds = array<i64: 64, 128>}, {pipeline_mode = #tpu.pipeline_mode<synchronous>, transform_indices = @transform_1, window_bounds = array<i64: 1, 128>}, {pipeline_mode = #tpu.pipeline_mode<synchronous>, transform_indices = @transform_2, window_bounds = array<i64: 1, 128>}, {transform_indices = @transform_3, window_bounds = array<i64: 64, 128>}]} {
    %c0 = arith.constant 0 : index
    %c0_0 = arith.constant 0 : index
    %0 = vector.load %arg1[%c0, %c0_0] : memref<64x128xbf16, #tpu.memory_space<vmem>>, vector<64x128xbf16>
    %1 = arith.extf %0 : vector<64x128xbf16> to vector<64x128xf32>
    %c0_1 = arith.constant 0 : index
    %c0_2 = arith.constant 0 : index
    %2 = vector.load %arg2[%c0_1, %c0_2] : memref<1x128xf32, #tpu.memory_space<vmem>>, vector<1x128xf32>
    %3 = vector.broadcast %2 : vector<1x128xf32> to vector<64x128xf32>
    %4 = arith.mulf %1, %3 : vector<64x128xf32>
    %c0_3 = arith.constant 0 : index
    %c0_4 = arith.constant 0 : index
    %5 = vector.load %arg3[%c0_3, %c0_4] : memref<1x128xf32, #tpu.memory_space<vmem>>, vector<1x128xf32>
    %6 = vector.broadcast %5 : vector<1x128xf32> to vector<64x128xf32>
    %7 = arith.addf %4, %6 : vector<64x128xf32>
    %cst = arith.constant 0.000000e+00 : f32
    %8 = vector.broadcast %cst : f32 to vector<64x128xf32>
    %9 = arith.cmpf ogt, %7, %8 : vector<64x128xf32>
    %cst_5 = arith.constant 1.000000e-01 : f32
    %10 = vector.broadcast %cst_5 : f32 to vector<64x128xf32>
    %11 = arith.mulf %10, %7 : vector<64x128xf32>
    %12 = arith.select %9, %7, %11 : vector<64x128xi1>, vector<64x128xf32>
    %13 = arith.truncf %12 : vector<64x128xf32> to vector<64x128xbf16>
    %c0_6 = arith.constant 0 : index
    %c0_7 = arith.constant 0 : index
    %14 = vector.load %arg4[%c0_6, %c0_7] : memref<64x128xbf16, #tpu.memory_space<vmem>>, vector<64x128xbf16>
    tpu.vector_store %arg4[%c0_6, %c0_7], %13 {strides = array<i32>} : memref<64x128xbf16, #tpu.memory_space<vmem>>, vector<64x128xbf16>,
    return
  }
  func.func @transform_0(%arg0: i32) -> (i32, i32) {
    %c0_i32 = arith.constant 0 : i32
    %c0_i32_0 = arith.constant 0 : i32
    return %arg0, %c0_i32 : i32, i32
  }
  func.func @transform_1(%arg0: i32) -> (i32, i32) {
    %c0_i32 = arith.constant 0 : i32
    %c0_i32_0 = arith.constant 0 : i32
    %c0_i32_1 = arith.constant 0 : i32
    return %c0_i32, %c0_i32_0 : i32, i32
  }
  func.func @transform_2(%arg0: i32) -> (i32, i32) {
    %c0_i32 = arith.constant 0 : i32
    %c0_i32_0 = arith.constant 0 : i32
    %c0_i32_1 = arith.constant 0 : i32
    return %c0_i32, %c0_i32_0 : i32, i32
  }
  func.func @transform_3(%arg0: i32) -> (i32, i32) {
    %c0_i32 = arith.constant 0 : i32
    %c0_i32_0 = arith.constant 0 : i32
    return %arg0, %c0_i32 : i32, i32
  }
}

module attributes {stable_mosaic.version = 11 : i64} {
  func.func @_conv_stats_kernel(%arg0: i32, %arg1: memref<16x288xbf16, #tpu.memory_space<vmem>>, %arg2: memref<288x128xbf16, #tpu.memory_space<vmem>>, %arg3: memref<16x128xbf16, #tpu.memory_space<vmem>>, %arg4: memref<1x2x128xf32, #tpu.memory_space<vmem>>) attributes {dimension_semantics = [#tpu.dimension_semantics<parallel>], iteration_bounds = array<i64: 2>, scalar_prefetch = 0 : i64, scratch_operands = 0 : i64, tpu.core_type = #tpu.core_type<tc>, window_params = [{transform_indices = @transform_0, window_bounds = array<i64: 16, 288>}, {pipeline_mode = #tpu.pipeline_mode<synchronous>, transform_indices = @transform_1, window_bounds = array<i64: 288, 128>}, {transform_indices = @transform_2, window_bounds = array<i64: 16, 128>}, {transform_indices = @transform_3, window_bounds = array<i64: 1, 2, 128>}]} {
    %c0 = arith.constant 0 : index
    %c0_0 = arith.constant 0 : index
    %0 = vector.load %arg1[%c0, %c0_0] : memref<16x288xbf16, #tpu.memory_space<vmem>>, vector<16x288xbf16>
    %c0_1 = arith.constant 0 : index
    %c0_2 = arith.constant 0 : index
    %1 = vector.load %arg2[%c0_1, %c0_2] : memref<288x128xbf16, #tpu.memory_space<vmem>>, vector<288x128xbf16>
    %cst = arith.constant dense<0.000000e+00> : vector<16x128xf32>
    %2 = tpu.matmul %0, %1, %cst {dimension_numbers = #tpu.dot_dimension_numbers<[1], [0], [0], [1], [0, 0, 1, 1], [], []>} : vector<16x288xbf16>, vector<288x128xbf16>, vector<16x128xf32> -> vector<16x128xf32>
    %3 = arith.truncf %2 : vector<16x128xf32> to vector<16x128xbf16>
    %c0_3 = arith.constant 0 : index
    %c0_4 = arith.constant 0 : index
    %4 = vector.load %arg3[%c0_3, %c0_4] : memref<16x128xbf16, #tpu.memory_space<vmem>>, vector<16x128xbf16>
    tpu.vector_store %arg3[%c0_3, %c0_4], %3 {strides = array<i32>} : memref<16x128xbf16, #tpu.memory_space<vmem>>, vector<16x128xbf16>,
    %c16_i32 = arith.constant 16 : i32
    %5 = arith.muli %arg0, %c16_i32 : i32
    %6 = tpu.iota {dimensions = array<i32: 0>} : vector<16x1xi32>
    %7 = vector.broadcast %5 : i32 to vector<16x1xi32>
    %8 = arith.addi %6, %7 : vector<16x1xi32>
    %c32_i32 = arith.constant 32 : i32
    %9 = vector.broadcast %c32_i32 : i32 to vector<16x1xi32>
    %10 = arith.cmpi slt, %8, %9 : vector<16x1xi32>
    %c32_i32_5 = arith.constant 32 : i32
    %11 = arith.subi %c32_i32_5, %5 : i32
    %c16_i32_6 = arith.constant 16 : i32
    %12 = arith.minsi %11, %c16_i32_6 : i32
    %c1_i32 = arith.constant 1 : i32
    %13 = arith.maxsi %12, %c1_i32 : i32
    %14 = arith.sitofp %13 : i32 to f32
    %cst_7 = arith.constant 0.000000e+00 : f32
    %15 = vector.shape_cast %10 : vector<16x1xi1> to vector<16x1xi1>
    %16 = vector.broadcast %15 : vector<16x1xi1> to vector<16x128xi1>
    %17 = vector.broadcast %cst_7 : f32 to vector<16x128xf32>
    %18 = arith.select %16, %2, %17 : vector<16x128xi1>, vector<16x128xf32>
    %cst_8 = arith.constant dense<0.000000e+00> : vector<128xf32>
    %19 = vector.multi_reduction <add>, %18, %cst_8 [0] : vector<16x128xf32> to vector<128xf32>
    %20 = vector.shape_cast %19 : vector<128xf32> to vector<1x128xf32>
    %21 = vector.broadcast %14 : f32 to vector<1x128xf32>
    %22 = arith.divf %20, %21 : vector<1x128xf32>
    %23 = vector.broadcast %22 : vector<1x128xf32> to vector<16x128xf32>
    %24 = arith.subf %2, %23 : vector<16x128xf32>
    %cst_9 = arith.constant 0.000000e+00 : f32
    %25 = vector.shape_cast %10 : vector<16x1xi1> to vector<16x1xi1>
    %26 = vector.broadcast %25 : vector<16x1xi1> to vector<16x128xi1>
    %27 = vector.broadcast %cst_9 : f32 to vector<16x128xf32>
    %28 = arith.select %26, %24, %27 : vector<16x128xi1>, vector<16x128xf32>
    %c0_10 = arith.constant 0 : index
    %c0_11 = arith.constant 0 : index
    %c0_12 = arith.constant 0 : index
    %29 = vector.load %arg4[%c0_10, %c0_11, %c0_12] : memref<1x2x128xf32, #tpu.memory_space<vmem>>, vector<1x1x128xf32>
    %30 = vector.shape_cast %29 : vector<1x1x128xf32> to vector<1x128xf32>
    %31 = vector.shape_cast %20 : vector<1x128xf32> to vector<1x1x128xf32>
    tpu.vector_store %arg4[%c0_10, %c0_11, %c0_12], %31 {strides = array<i32>} : memref<1x2x128xf32, #tpu.memory_space<vmem>>, vector<1x1x128xf32>,
    %32 = arith.mulf %28, %28 : vector<16x128xf32>
    %cst_13 = arith.constant dense<0.000000e+00> : vector<128xf32>
    %33 = vector.multi_reduction <add>, %32, %cst_13 [0] : vector<16x128xf32> to vector<128xf32>
    %34 = vector.shape_cast %33 : vector<128xf32> to vector<1x128xf32>
    %c0_14 = arith.constant 0 : index
    %c1 = arith.constant 1 : index
    %c0_15 = arith.constant 0 : index
    %35 = vector.load %arg4[%c0_14, %c1, %c0_15] : memref<1x2x128xf32, #tpu.memory_space<vmem>>, vector<1x1x128xf32>
    %36 = vector.shape_cast %35 : vector<1x1x128xf32> to vector<1x128xf32>
    %37 = vector.shape_cast %34 : vector<1x128xf32> to vector<1x1x128xf32>
    tpu.vector_store %arg4[%c0_14, %c1, %c0_15], %37 {strides = array<i32>} : memref<1x2x128xf32, #tpu.memory_space<vmem>>, vector<1x1x128xf32>,
    return
  }
  func.func @transform_0(%arg0: i32) -> (i32, i32) {
    %c0_i32 = arith.constant 0 : i32
    %c0_i32_0 = arith.constant 0 : i32
    return %arg0, %c0_i32 : i32, i32
  }
  func.func @transform_1(%arg0: i32) -> (i32, i32) {
    %c0_i32 = arith.constant 0 : i32
    %c0_i32_0 = arith.constant 0 : i32
    %c0_i32_1 = arith.constant 0 : i32
    return %c0_i32, %c0_i32_0 : i32, i32
  }
  func.func @transform_2(%arg0: i32) -> (i32, i32) {
    %c0_i32 = arith.constant 0 : i32
    %c0_i32_0 = arith.constant 0 : i32
    return %arg0, %c0_i32 : i32, i32
  }
  func.func @transform_3(%arg0: i32) -> (i32, i32, i32) {
    %c0_i32 = arith.constant 0 : i32
    %c0_i32_0 = arith.constant 0 : i32
    %c0_i32_1 = arith.constant 0 : i32
    return %arg0, %c0_i32, %c0_i32_0 : i32, i32, i32
  }
}

module attributes {stable_mosaic.version = 11 : i64} {
  func.func @_bn_act_kernel(%arg0: i32, %arg1: memref<16x128xbf16, #tpu.memory_space<vmem>>, %arg2: memref<1x128xf32, #tpu.memory_space<vmem>>, %arg3: memref<1x128xf32, #tpu.memory_space<vmem>>, %arg4: memref<16x128xbf16, #tpu.memory_space<vmem>>) attributes {dimension_semantics = [#tpu.dimension_semantics<parallel>], iteration_bounds = array<i64: 2>, scalar_prefetch = 0 : i64, scratch_operands = 0 : i64, tpu.core_type = #tpu.core_type<tc>, window_params = [{transform_indices = @transform_0, window_bounds = array<i64: 16, 128>}, {pipeline_mode = #tpu.pipeline_mode<synchronous>, transform_indices = @transform_1, window_bounds = array<i64: 1, 128>}, {pipeline_mode = #tpu.pipeline_mode<synchronous>, transform_indices = @transform_2, window_bounds = array<i64: 1, 128>}, {transform_indices = @transform_3, window_bounds = array<i64: 16, 128>}]} {
    %c0 = arith.constant 0 : index
    %c0_0 = arith.constant 0 : index
    %0 = vector.load %arg1[%c0, %c0_0] : memref<16x128xbf16, #tpu.memory_space<vmem>>, vector<16x128xbf16>
    %1 = arith.extf %0 : vector<16x128xbf16> to vector<16x128xf32>
    %c0_1 = arith.constant 0 : index
    %c0_2 = arith.constant 0 : index
    %2 = vector.load %arg2[%c0_1, %c0_2] : memref<1x128xf32, #tpu.memory_space<vmem>>, vector<1x128xf32>
    %3 = vector.broadcast %2 : vector<1x128xf32> to vector<16x128xf32>
    %4 = arith.mulf %1, %3 : vector<16x128xf32>
    %c0_3 = arith.constant 0 : index
    %c0_4 = arith.constant 0 : index
    %5 = vector.load %arg3[%c0_3, %c0_4] : memref<1x128xf32, #tpu.memory_space<vmem>>, vector<1x128xf32>
    %6 = vector.broadcast %5 : vector<1x128xf32> to vector<16x128xf32>
    %7 = arith.addf %4, %6 : vector<16x128xf32>
    %cst = arith.constant 0.000000e+00 : f32
    %8 = vector.broadcast %cst : f32 to vector<16x128xf32>
    %9 = arith.cmpf ogt, %7, %8 : vector<16x128xf32>
    %cst_5 = arith.constant 1.000000e-01 : f32
    %10 = vector.broadcast %cst_5 : f32 to vector<16x128xf32>
    %11 = arith.mulf %10, %7 : vector<16x128xf32>
    %12 = arith.select %9, %7, %11 : vector<16x128xi1>, vector<16x128xf32>
    %13 = arith.truncf %12 : vector<16x128xf32> to vector<16x128xbf16>
    %c0_6 = arith.constant 0 : index
    %c0_7 = arith.constant 0 : index
    %14 = vector.load %arg4[%c0_6, %c0_7] : memref<16x128xbf16, #tpu.memory_space<vmem>>, vector<16x128xbf16>
    tpu.vector_store %arg4[%c0_6, %c0_7], %13 {strides = array<i32>} : memref<16x128xbf16, #tpu.memory_space<vmem>>, vector<16x128xbf16>,
    return
  }
  func.func @transform_0(%arg0: i32) -> (i32, i32) {
    %c0_i32 = arith.constant 0 : i32
    %c0_i32_0 = arith.constant 0 : i32
    return %arg0, %c0_i32 : i32, i32
  }
  func.func @transform_1(%arg0: i32) -> (i32, i32) {
    %c0_i32 = arith.constant 0 : i32
    %c0_i32_0 = arith.constant 0 : i32
    %c0_i32_1 = arith.constant 0 : i32
    return %c0_i32, %c0_i32_0 : i32, i32
  }
  func.func @transform_2(%arg0: i32) -> (i32, i32) {
    %c0_i32 = arith.constant 0 : i32
    %c0_i32_0 = arith.constant 0 : i32
    %c0_i32_1 = arith.constant 0 : i32
    return %c0_i32, %c0_i32_0 : i32, i32
  }
  func.func @transform_3(%arg0: i32) -> (i32, i32) {
    %c0_i32 = arith.constant 0 : i32
    %c0_i32_0 = arith.constant 0 : i32
    return %arg0, %c0_i32 : i32, i32
  }
}

module attributes {stable_mosaic.version = 11 : i64} {
  func.func @_bn_act_kernel(%arg0: i32, %arg1: memref<8x128xbf16, #tpu.memory_space<vmem>>, %arg2: memref<1x128xf32, #tpu.memory_space<vmem>>, %arg3: memref<1x128xf32, #tpu.memory_space<vmem>>, %arg4: memref<8x128xbf16, #tpu.memory_space<vmem>>) attributes {dimension_semantics = [#tpu.dimension_semantics<parallel>], iteration_bounds = array<i64: 1>, scalar_prefetch = 0 : i64, scratch_operands = 0 : i64, tpu.core_type = #tpu.core_type<tc>, window_params = [{transform_indices = @transform_0, window_bounds = array<i64: 8, 128>}, {pipeline_mode = #tpu.pipeline_mode<synchronous>, transform_indices = @transform_1, window_bounds = array<i64: 1, 128>}, {pipeline_mode = #tpu.pipeline_mode<synchronous>, transform_indices = @transform_2, window_bounds = array<i64: 1, 128>}, {transform_indices = @transform_3, window_bounds = array<i64: 8, 128>}]} {
    %c0 = arith.constant 0 : index
    %c0_0 = arith.constant 0 : index
    %0 = vector.load %arg1[%c0, %c0_0] : memref<8x128xbf16, #tpu.memory_space<vmem>>, vector<8x128xbf16>
    %1 = arith.extf %0 : vector<8x128xbf16> to vector<8x128xf32>
    %c0_1 = arith.constant 0 : index
    %c0_2 = arith.constant 0 : index
    %2 = vector.load %arg2[%c0_1, %c0_2] : memref<1x128xf32, #tpu.memory_space<vmem>>, vector<1x128xf32>
    %3 = vector.broadcast %2 : vector<1x128xf32> to vector<8x128xf32>
    %4 = arith.mulf %1, %3 : vector<8x128xf32>
    %c0_3 = arith.constant 0 : index
    %c0_4 = arith.constant 0 : index
    %5 = vector.load %arg3[%c0_3, %c0_4] : memref<1x128xf32, #tpu.memory_space<vmem>>, vector<1x128xf32>
    %6 = vector.broadcast %5 : vector<1x128xf32> to vector<8x128xf32>
    %7 = arith.addf %4, %6 : vector<8x128xf32>
    %cst = arith.constant 0.000000e+00 : f32
    %8 = vector.broadcast %cst : f32 to vector<8x128xf32>
    %9 = arith.cmpf ogt, %7, %8 : vector<8x128xf32>
    %cst_5 = arith.constant 1.000000e-01 : f32
    %10 = vector.broadcast %cst_5 : f32 to vector<8x128xf32>
    %11 = arith.mulf %10, %7 : vector<8x128xf32>
    %12 = arith.select %9, %7, %11 : vector<8x128xi1>, vector<8x128xf32>
    %13 = arith.truncf %12 : vector<8x128xf32> to vector<8x128xbf16>
    %c0_6 = arith.constant 0 : index
    %c0_7 = arith.constant 0 : index
    %14 = vector.load %arg4[%c0_6, %c0_7] : memref<8x128xbf16, #tpu.memory_space<vmem>>, vector<8x128xbf16>
    tpu.vector_store %arg4[%c0_6, %c0_7], %13 {strides = array<i32>} : memref<8x128xbf16, #tpu.memory_space<vmem>>, vector<8x128xbf16>,
    return
  }
  func.func @transform_0(%arg0: i32) -> (i32, i32) {
    %c0_i32 = arith.constant 0 : i32
    %c0_i32_0 = arith.constant 0 : i32
    return %arg0, %c0_i32 : i32, i32
  }
  func.func @transform_1(%arg0: i32) -> (i32, i32) {
    %c0_i32 = arith.constant 0 : i32
    %c0_i32_0 = arith.constant 0 : i32
    %c0_i32_1 = arith.constant 0 : i32
    return %c0_i32, %c0_i32_0 : i32, i32
  }
  func.func @transform_2(%arg0: i32) -> (i32, i32) {
    %c0_i32 = arith.constant 0 : i32
    %c0_i32_0 = arith.constant 0 : i32
    %c0_i32_1 = arith.constant 0 : i32
    return %c0_i32, %c0_i32_0 : i32, i32
  }
  func.func @transform_3(%arg0: i32) -> (i32, i32) {
    %c0_i32 = arith.constant 0 : i32
    %c0_i32_0 = arith.constant 0 : i32
    return %arg0, %c0_i32 : i32, i32
  }
}

module attributes {stable_mosaic.version = 11 : i64} {
  func.func @_conv_stats_kernel(%arg0: i32, %arg1: memref<8x576xbf16, #tpu.memory_space<vmem>>, %arg2: memref<576x128xbf16, #tpu.memory_space<vmem>>, %arg3: memref<8x128xbf16, #tpu.memory_space<vmem>>, %arg4: memref<1x2x128xf32, #tpu.memory_space<vmem>>) attributes {dimension_semantics = [#tpu.dimension_semantics<parallel>], iteration_bounds = array<i64: 1>, scalar_prefetch = 0 : i64, scratch_operands = 0 : i64, tpu.core_type = #tpu.core_type<tc>, window_params = [{transform_indices = @transform_0, window_bounds = array<i64: 8, 576>}, {pipeline_mode = #tpu.pipeline_mode<synchronous>, transform_indices = @transform_1, window_bounds = array<i64: 576, 128>}, {transform_indices = @transform_2, window_bounds = array<i64: 8, 128>}, {transform_indices = @transform_3, window_bounds = array<i64: 1, 2, 128>}]} {
    %c0 = arith.constant 0 : index
    %c0_0 = arith.constant 0 : index
    %0 = vector.load %arg1[%c0, %c0_0] : memref<8x576xbf16, #tpu.memory_space<vmem>>, vector<8x576xbf16>
    %c0_1 = arith.constant 0 : index
    %c0_2 = arith.constant 0 : index
    %1 = vector.load %arg2[%c0_1, %c0_2] : memref<576x128xbf16, #tpu.memory_space<vmem>>, vector<576x128xbf16>
    %cst = arith.constant dense<0.000000e+00> : vector<8x128xf32>
    %2 = tpu.matmul %0, %1, %cst {dimension_numbers = #tpu.dot_dimension_numbers<[1], [0], [0], [1], [0, 0, 1, 1], [], []>} : vector<8x576xbf16>, vector<576x128xbf16>, vector<8x128xf32> -> vector<8x128xf32>
    %3 = arith.truncf %2 : vector<8x128xf32> to vector<8x128xbf16>
    %c0_3 = arith.constant 0 : index
    %c0_4 = arith.constant 0 : index
    %4 = vector.load %arg3[%c0_3, %c0_4] : memref<8x128xbf16, #tpu.memory_space<vmem>>, vector<8x128xbf16>
    tpu.vector_store %arg3[%c0_3, %c0_4], %3 {strides = array<i32>} : memref<8x128xbf16, #tpu.memory_space<vmem>>, vector<8x128xbf16>,
    %c8_i32 = arith.constant 8 : i32
    %5 = arith.muli %arg0, %c8_i32 : i32
    %6 = tpu.iota {dimensions = array<i32: 0>} : vector<8x1xi32>
    %7 = vector.broadcast %5 : i32 to vector<8x1xi32>
    %8 = arith.addi %6, %7 : vector<8x1xi32>
    %c8_i32_5 = arith.constant 8 : i32
    %9 = vector.broadcast %c8_i32_5 : i32 to vector<8x1xi32>
    %10 = arith.cmpi slt, %8, %9 : vector<8x1xi32>
    %c8_i32_6 = arith.constant 8 : i32
    %11 = arith.subi %c8_i32_6, %5 : i32
    %c8_i32_7 = arith.constant 8 : i32
    %12 = arith.minsi %11, %c8_i32_7 : i32
    %c1_i32 = arith.constant 1 : i32
    %13 = arith.maxsi %12, %c1_i32 : i32
    %14 = arith.sitofp %13 : i32 to f32
    %cst_8 = arith.constant 0.000000e+00 : f32
    %15 = vector.shape_cast %10 : vector<8x1xi1> to vector<8x1xi1>
    %16 = vector.broadcast %15 : vector<8x1xi1> to vector<8x128xi1>
    %17 = vector.broadcast %cst_8 : f32 to vector<8x128xf32>
    %18 = arith.select %16, %2, %17 : vector<8x128xi1>, vector<8x128xf32>
    %cst_9 = arith.constant dense<0.000000e+00> : vector<128xf32>
    %19 = vector.multi_reduction <add>, %18, %cst_9 [0] : vector<8x128xf32> to vector<128xf32>
    %20 = vector.shape_cast %19 : vector<128xf32> to vector<1x128xf32>
    %21 = vector.broadcast %14 : f32 to vector<1x128xf32>
    %22 = arith.divf %20, %21 : vector<1x128xf32>
    %23 = vector.broadcast %22 : vector<1x128xf32> to vector<8x128xf32>
    %24 = arith.subf %2, %23 : vector<8x128xf32>
    %cst_10 = arith.constant 0.000000e+00 : f32
    %25 = vector.shape_cast %10 : vector<8x1xi1> to vector<8x1xi1>
    %26 = vector.broadcast %25 : vector<8x1xi1> to vector<8x128xi1>
    %27 = vector.broadcast %cst_10 : f32 to vector<8x128xf32>
    %28 = arith.select %26, %24, %27 : vector<8x128xi1>, vector<8x128xf32>
    %c0_11 = arith.constant 0 : index
    %c0_12 = arith.constant 0 : index
    %c0_13 = arith.constant 0 : index
    %29 = vector.load %arg4[%c0_11, %c0_12, %c0_13] : memref<1x2x128xf32, #tpu.memory_space<vmem>>, vector<1x1x128xf32>
    %30 = vector.shape_cast %29 : vector<1x1x128xf32> to vector<1x128xf32>
    %31 = vector.shape_cast %20 : vector<1x128xf32> to vector<1x1x128xf32>
    tpu.vector_store %arg4[%c0_11, %c0_12, %c0_13], %31 {strides = array<i32>} : memref<1x2x128xf32, #tpu.memory_space<vmem>>, vector<1x1x128xf32>,
    %32 = arith.mulf %28, %28 : vector<8x128xf32>
    %cst_14 = arith.constant dense<0.000000e+00> : vector<128xf32>
    %33 = vector.multi_reduction <add>, %32, %cst_14 [0] : vector<8x128xf32> to vector<128xf32>
    %34 = vector.shape_cast %33 : vector<128xf32> to vector<1x128xf32>
    %c0_15 = arith.constant 0 : index
    %c1 = arith.constant 1 : index
    %c0_16 = arith.constant 0 : index
    %35 = vector.load %arg4[%c0_15, %c1, %c0_16] : memref<1x2x128xf32, #tpu.memory_space<vmem>>, vector<1x1x128xf32>
    %36 = vector.shape_cast %35 : vector<1x1x128xf32> to vector<1x128xf32>
    %37 = vector.shape_cast %34 : vector<1x128xf32> to vector<1x1x128xf32>
    tpu.vector_store %arg4[%c0_15, %c1, %c0_16], %37 {strides = array<i32>} : memref<1x2x128xf32, #tpu.memory_space<vmem>>, vector<1x1x128xf32>,
    return
  }
  func.func @transform_0(%arg0: i32) -> (i32, i32) {
    %c0_i32 = arith.constant 0 : i32
    %c0_i32_0 = arith.constant 0 : i32
    return %arg0, %c0_i32 : i32, i32
  }
  func.func @transform_1(%arg0: i32) -> (i32, i32) {
    %c0_i32 = arith.constant 0 : i32
    %c0_i32_0 = arith.constant 0 : i32
    %c0_i32_1 = arith.constant 0 : i32
    return %c0_i32, %c0_i32_0 : i32, i32
  }
  func.func @transform_2(%arg0: i32) -> (i32, i32) {
    %c0_i32 = arith.constant 0 : i32
    %c0_i32_0 = arith.constant 0 : i32
    return %arg0, %c0_i32 : i32, i32
  }
  func.func @transform_3(%arg0: i32) -> (i32, i32, i32) {
    %c0_i32 = arith.constant 0 : i32
    %c0_i32_0 = arith.constant 0 : i32
    %c0_i32_1 = arith.constant 0 : i32
    return %arg0, %c0_i32, %c0_i32_0 : i32, i32, i32
  }
}

module attributes {stable_mosaic.version = 11 : i64} {
  func.func @_conv_stats_kernel(%arg0: i32, %arg1: memref<8x1152xbf16, #tpu.memory_space<vmem>>, %arg2: memref<1152x256xbf16, #tpu.memory_space<vmem>>, %arg3: memref<8x256xbf16, #tpu.memory_space<vmem>>, %arg4: memref<1x2x256xf32, #tpu.memory_space<vmem>>) attributes {dimension_semantics = [#tpu.dimension_semantics<parallel>], iteration_bounds = array<i64: 1>, scalar_prefetch = 0 : i64, scratch_operands = 0 : i64, tpu.core_type = #tpu.core_type<tc>, window_params = [{transform_indices = @transform_0, window_bounds = array<i64: 8, 1152>}, {pipeline_mode = #tpu.pipeline_mode<synchronous>, transform_indices = @transform_1, window_bounds = array<i64: 1152, 256>}, {transform_indices = @transform_2, window_bounds = array<i64: 8, 256>}, {transform_indices = @transform_3, window_bounds = array<i64: 1, 2, 256>}]} {
    %c0 = arith.constant 0 : index
    %c0_0 = arith.constant 0 : index
    %0 = vector.load %arg1[%c0, %c0_0] : memref<8x1152xbf16, #tpu.memory_space<vmem>>, vector<8x1152xbf16>
    %c0_1 = arith.constant 0 : index
    %c0_2 = arith.constant 0 : index
    %1 = vector.load %arg2[%c0_1, %c0_2] : memref<1152x256xbf16, #tpu.memory_space<vmem>>, vector<1152x256xbf16>
    %cst = arith.constant dense<0.000000e+00> : vector<8x256xf32>
    %2 = tpu.matmul %0, %1, %cst {dimension_numbers = #tpu.dot_dimension_numbers<[1], [0], [0], [1], [0, 0, 1, 1], [], []>} : vector<8x1152xbf16>, vector<1152x256xbf16>, vector<8x256xf32> -> vector<8x256xf32>
    %3 = arith.truncf %2 : vector<8x256xf32> to vector<8x256xbf16>
    %c0_3 = arith.constant 0 : index
    %c0_4 = arith.constant 0 : index
    %4 = vector.load %arg3[%c0_3, %c0_4] : memref<8x256xbf16, #tpu.memory_space<vmem>>, vector<8x256xbf16>
    tpu.vector_store %arg3[%c0_3, %c0_4], %3 {strides = array<i32>} : memref<8x256xbf16, #tpu.memory_space<vmem>>, vector<8x256xbf16>,
    %c8_i32 = arith.constant 8 : i32
    %5 = arith.muli %arg0, %c8_i32 : i32
    %6 = tpu.iota {dimensions = array<i32: 0>} : vector<8x1xi32>
    %7 = vector.broadcast %5 : i32 to vector<8x1xi32>
    %8 = arith.addi %6, %7 : vector<8x1xi32>
    %c2_i32 = arith.constant 2 : i32
    %9 = vector.broadcast %c2_i32 : i32 to vector<8x1xi32>
    %10 = arith.cmpi slt, %8, %9 : vector<8x1xi32>
    %c2_i32_5 = arith.constant 2 : i32
    %11 = arith.subi %c2_i32_5, %5 : i32
    %c8_i32_6 = arith.constant 8 : i32
    %12 = arith.minsi %11, %c8_i32_6 : i32
    %c1_i32 = arith.constant 1 : i32
    %13 = arith.maxsi %12, %c1_i32 : i32
    %14 = arith.sitofp %13 : i32 to f32
    %cst_7 = arith.constant 0.000000e+00 : f32
    %15 = vector.shape_cast %10 : vector<8x1xi1> to vector<8x1xi1>
    %16 = vector.broadcast %15 : vector<8x1xi1> to vector<8x256xi1>
    %17 = vector.broadcast %cst_7 : f32 to vector<8x256xf32>
    %18 = arith.select %16, %2, %17 : vector<8x256xi1>, vector<8x256xf32>
    %cst_8 = arith.constant dense<0.000000e+00> : vector<256xf32>
    %19 = vector.multi_reduction <add>, %18, %cst_8 [0] : vector<8x256xf32> to vector<256xf32>
    %20 = vector.shape_cast %19 : vector<256xf32> to vector<1x256xf32>
    %21 = vector.broadcast %14 : f32 to vector<1x256xf32>
    %22 = arith.divf %20, %21 : vector<1x256xf32>
    %23 = vector.broadcast %22 : vector<1x256xf32> to vector<8x256xf32>
    %24 = arith.subf %2, %23 : vector<8x256xf32>
    %cst_9 = arith.constant 0.000000e+00 : f32
    %25 = vector.shape_cast %10 : vector<8x1xi1> to vector<8x1xi1>
    %26 = vector.broadcast %25 : vector<8x1xi1> to vector<8x256xi1>
    %27 = vector.broadcast %cst_9 : f32 to vector<8x256xf32>
    %28 = arith.select %26, %24, %27 : vector<8x256xi1>, vector<8x256xf32>
    %c0_10 = arith.constant 0 : index
    %c0_11 = arith.constant 0 : index
    %c0_12 = arith.constant 0 : index
    %29 = vector.load %arg4[%c0_10, %c0_11, %c0_12] : memref<1x2x256xf32, #tpu.memory_space<vmem>>, vector<1x1x256xf32>
    %30 = vector.shape_cast %29 : vector<1x1x256xf32> to vector<1x256xf32>
    %31 = vector.shape_cast %20 : vector<1x256xf32> to vector<1x1x256xf32>
    tpu.vector_store %arg4[%c0_10, %c0_11, %c0_12], %31 {strides = array<i32>} : memref<1x2x256xf32, #tpu.memory_space<vmem>>, vector<1x1x256xf32>,
    %32 = arith.mulf %28, %28 : vector<8x256xf32>
    %cst_13 = arith.constant dense<0.000000e+00> : vector<256xf32>
    %33 = vector.multi_reduction <add>, %32, %cst_13 [0] : vector<8x256xf32> to vector<256xf32>
    %34 = vector.shape_cast %33 : vector<256xf32> to vector<1x256xf32>
    %c0_14 = arith.constant 0 : index
    %c1 = arith.constant 1 : index
    %c0_15 = arith.constant 0 : index
    %35 = vector.load %arg4[%c0_14, %c1, %c0_15] : memref<1x2x256xf32, #tpu.memory_space<vmem>>, vector<1x1x256xf32>
    %36 = vector.shape_cast %35 : vector<1x1x256xf32> to vector<1x256xf32>
    %37 = vector.shape_cast %34 : vector<1x256xf32> to vector<1x1x256xf32>
    tpu.vector_store %arg4[%c0_14, %c1, %c0_15], %37 {strides = array<i32>} : memref<1x2x256xf32, #tpu.memory_space<vmem>>, vector<1x1x256xf32>,
    return
  }
  func.func @transform_0(%arg0: i32) -> (i32, i32) {
    %c0_i32 = arith.constant 0 : i32
    %c0_i32_0 = arith.constant 0 : i32
    return %arg0, %c0_i32 : i32, i32
  }
  func.func @transform_1(%arg0: i32) -> (i32, i32) {
    %c0_i32 = arith.constant 0 : i32
    %c0_i32_0 = arith.constant 0 : i32
    %c0_i32_1 = arith.constant 0 : i32
    return %c0_i32, %c0_i32_0 : i32, i32
  }
  func.func @transform_2(%arg0: i32) -> (i32, i32) {
    %c0_i32 = arith.constant 0 : i32
    %c0_i32_0 = arith.constant 0 : i32
    return %arg0, %c0_i32 : i32, i32
  }
  func.func @transform_3(%arg0: i32) -> (i32, i32, i32) {
    %c0_i32 = arith.constant 0 : i32
    %c0_i32_0 = arith.constant 0 : i32
    %c0_i32_1 = arith.constant 0 : i32
    return %arg0, %c0_i32, %c0_i32_0 : i32, i32, i32
  }
}

module attributes {stable_mosaic.version = 11 : i64} {
  func.func @_bn_act_kernel(%arg0: i32, %arg1: memref<8x256xbf16, #tpu.memory_space<vmem>>, %arg2: memref<1x256xf32, #tpu.memory_space<vmem>>, %arg3: memref<1x256xf32, #tpu.memory_space<vmem>>, %arg4: memref<8x256xbf16, #tpu.memory_space<vmem>>) attributes {dimension_semantics = [#tpu.dimension_semantics<parallel>], iteration_bounds = array<i64: 1>, scalar_prefetch = 0 : i64, scratch_operands = 0 : i64, tpu.core_type = #tpu.core_type<tc>, window_params = [{transform_indices = @transform_0, window_bounds = array<i64: 8, 256>}, {pipeline_mode = #tpu.pipeline_mode<synchronous>, transform_indices = @transform_1, window_bounds = array<i64: 1, 256>}, {pipeline_mode = #tpu.pipeline_mode<synchronous>, transform_indices = @transform_2, window_bounds = array<i64: 1, 256>}, {transform_indices = @transform_3, window_bounds = array<i64: 8, 256>}]} {
    %c0 = arith.constant 0 : index
    %c0_0 = arith.constant 0 : index
    %0 = vector.load %arg1[%c0, %c0_0] : memref<8x256xbf16, #tpu.memory_space<vmem>>, vector<8x256xbf16>
    %1 = arith.extf %0 : vector<8x256xbf16> to vector<8x256xf32>
    %c0_1 = arith.constant 0 : index
    %c0_2 = arith.constant 0 : index
    %2 = vector.load %arg2[%c0_1, %c0_2] : memref<1x256xf32, #tpu.memory_space<vmem>>, vector<1x256xf32>
    %3 = vector.broadcast %2 : vector<1x256xf32> to vector<8x256xf32>
    %4 = arith.mulf %1, %3 : vector<8x256xf32>
    %c0_3 = arith.constant 0 : index
    %c0_4 = arith.constant 0 : index
    %5 = vector.load %arg3[%c0_3, %c0_4] : memref<1x256xf32, #tpu.memory_space<vmem>>, vector<1x256xf32>
    %6 = vector.broadcast %5 : vector<1x256xf32> to vector<8x256xf32>
    %7 = arith.addf %4, %6 : vector<8x256xf32>
    %cst = arith.constant 0.000000e+00 : f32
    %8 = vector.broadcast %cst : f32 to vector<8x256xf32>
    %9 = arith.cmpf ogt, %7, %8 : vector<8x256xf32>
    %cst_5 = arith.constant 1.000000e-01 : f32
    %10 = vector.broadcast %cst_5 : f32 to vector<8x256xf32>
    %11 = arith.mulf %10, %7 : vector<8x256xf32>
    %12 = arith.select %9, %7, %11 : vector<8x256xi1>, vector<8x256xf32>
    %13 = arith.truncf %12 : vector<8x256xf32> to vector<8x256xbf16>
    %c0_6 = arith.constant 0 : index
    %c0_7 = arith.constant 0 : index
    %14 = vector.load %arg4[%c0_6, %c0_7] : memref<8x256xbf16, #tpu.memory_space<vmem>>, vector<8x256xbf16>
    tpu.vector_store %arg4[%c0_6, %c0_7], %13 {strides = array<i32>} : memref<8x256xbf16, #tpu.memory_space<vmem>>, vector<8x256xbf16>,
    return
  }
  func.func @transform_0(%arg0: i32) -> (i32, i32) {
    %c0_i32 = arith.constant 0 : i32
    %c0_i32_0 = arith.constant 0 : i32
    return %arg0, %c0_i32 : i32, i32
  }
  func.func @transform_1(%arg0: i32) -> (i32, i32) {
    %c0_i32 = arith.constant 0 : i32
    %c0_i32_0 = arith.constant 0 : i32
    %c0_i32_1 = arith.constant 0 : i32
    return %c0_i32, %c0_i32_0 : i32, i32
  }
  func.func @transform_2(%arg0: i32) -> (i32, i32) {
    %c0_i32 = arith.constant 0 : i32
    %c0_i32_0 = arith.constant 0 : i32
    %c0_i32_1 = arith.constant 0 : i32
    return %c0_i32, %c0_i32_0 : i32, i32
  }
  func.func @transform_3(%arg0: i32) -> (i32, i32) {
    %c0_i32 = arith.constant 0 : i32
    %c0_i32_0 = arith.constant 0 : i32
    return %arg0, %c0_i32 : i32, i32
  }
}

module attributes {stable_mosaic.version = 11 : i64} {
  func.func @_conv_stats_kernel(%arg0: i32, %arg1: memref<8x256xbf16, #tpu.memory_space<vmem>>, %arg2: memref<256x128xbf16, #tpu.memory_space<vmem>>, %arg3: memref<8x128xbf16, #tpu.memory_space<vmem>>, %arg4: memref<1x2x128xf32, #tpu.memory_space<vmem>>) attributes {dimension_semantics = [#tpu.dimension_semantics<parallel>], iteration_bounds = array<i64: 1>, scalar_prefetch = 0 : i64, scratch_operands = 0 : i64, tpu.core_type = #tpu.core_type<tc>, window_params = [{transform_indices = @transform_0, window_bounds = array<i64: 8, 256>}, {pipeline_mode = #tpu.pipeline_mode<synchronous>, transform_indices = @transform_1, window_bounds = array<i64: 256, 128>}, {transform_indices = @transform_2, window_bounds = array<i64: 8, 128>}, {transform_indices = @transform_3, window_bounds = array<i64: 1, 2, 128>}]} {
    %c0 = arith.constant 0 : index
    %c0_0 = arith.constant 0 : index
    %0 = vector.load %arg1[%c0, %c0_0] : memref<8x256xbf16, #tpu.memory_space<vmem>>, vector<8x256xbf16>
    %c0_1 = arith.constant 0 : index
    %c0_2 = arith.constant 0 : index
    %1 = vector.load %arg2[%c0_1, %c0_2] : memref<256x128xbf16, #tpu.memory_space<vmem>>, vector<256x128xbf16>
    %cst = arith.constant dense<0.000000e+00> : vector<8x128xf32>
    %2 = tpu.matmul %0, %1, %cst {dimension_numbers = #tpu.dot_dimension_numbers<[1], [0], [0], [1], [0, 0, 1, 1], [], []>} : vector<8x256xbf16>, vector<256x128xbf16>, vector<8x128xf32> -> vector<8x128xf32>
    %3 = arith.truncf %2 : vector<8x128xf32> to vector<8x128xbf16>
    %c0_3 = arith.constant 0 : index
    %c0_4 = arith.constant 0 : index
    %4 = vector.load %arg3[%c0_3, %c0_4] : memref<8x128xbf16, #tpu.memory_space<vmem>>, vector<8x128xbf16>
    tpu.vector_store %arg3[%c0_3, %c0_4], %3 {strides = array<i32>} : memref<8x128xbf16, #tpu.memory_space<vmem>>, vector<8x128xbf16>,
    %c8_i32 = arith.constant 8 : i32
    %5 = arith.muli %arg0, %c8_i32 : i32
    %6 = tpu.iota {dimensions = array<i32: 0>} : vector<8x1xi32>
    %7 = vector.broadcast %5 : i32 to vector<8x1xi32>
    %8 = arith.addi %6, %7 : vector<8x1xi32>
    %c2_i32 = arith.constant 2 : i32
    %9 = vector.broadcast %c2_i32 : i32 to vector<8x1xi32>
    %10 = arith.cmpi slt, %8, %9 : vector<8x1xi32>
    %c2_i32_5 = arith.constant 2 : i32
    %11 = arith.subi %c2_i32_5, %5 : i32
    %c8_i32_6 = arith.constant 8 : i32
    %12 = arith.minsi %11, %c8_i32_6 : i32
    %c1_i32 = arith.constant 1 : i32
    %13 = arith.maxsi %12, %c1_i32 : i32
    %14 = arith.sitofp %13 : i32 to f32
    %cst_7 = arith.constant 0.000000e+00 : f32
    %15 = vector.shape_cast %10 : vector<8x1xi1> to vector<8x1xi1>
    %16 = vector.broadcast %15 : vector<8x1xi1> to vector<8x128xi1>
    %17 = vector.broadcast %cst_7 : f32 to vector<8x128xf32>
    %18 = arith.select %16, %2, %17 : vector<8x128xi1>, vector<8x128xf32>
    %cst_8 = arith.constant dense<0.000000e+00> : vector<128xf32>
    %19 = vector.multi_reduction <add>, %18, %cst_8 [0] : vector<8x128xf32> to vector<128xf32>
    %20 = vector.shape_cast %19 : vector<128xf32> to vector<1x128xf32>
    %21 = vector.broadcast %14 : f32 to vector<1x128xf32>
    %22 = arith.divf %20, %21 : vector<1x128xf32>
    %23 = vector.broadcast %22 : vector<1x128xf32> to vector<8x128xf32>
    %24 = arith.subf %2, %23 : vector<8x128xf32>
    %cst_9 = arith.constant 0.000000e+00 : f32
    %25 = vector.shape_cast %10 : vector<8x1xi1> to vector<8x1xi1>
    %26 = vector.broadcast %25 : vector<8x1xi1> to vector<8x128xi1>
    %27 = vector.broadcast %cst_9 : f32 to vector<8x128xf32>
    %28 = arith.select %26, %24, %27 : vector<8x128xi1>, vector<8x128xf32>
    %c0_10 = arith.constant 0 : index
    %c0_11 = arith.constant 0 : index
    %c0_12 = arith.constant 0 : index
    %29 = vector.load %arg4[%c0_10, %c0_11, %c0_12] : memref<1x2x128xf32, #tpu.memory_space<vmem>>, vector<1x1x128xf32>
    %30 = vector.shape_cast %29 : vector<1x1x128xf32> to vector<1x128xf32>
    %31 = vector.shape_cast %20 : vector<1x128xf32> to vector<1x1x128xf32>
    tpu.vector_store %arg4[%c0_10, %c0_11, %c0_12], %31 {strides = array<i32>} : memref<1x2x128xf32, #tpu.memory_space<vmem>>, vector<1x1x128xf32>,
    %32 = arith.mulf %28, %28 : vector<8x128xf32>
    %cst_13 = arith.constant dense<0.000000e+00> : vector<128xf32>
    %33 = vector.multi_reduction <add>, %32, %cst_13 [0] : vector<8x128xf32> to vector<128xf32>
    %34 = vector.shape_cast %33 : vector<128xf32> to vector<1x128xf32>
    %c0_14 = arith.constant 0 : index
    %c1 = arith.constant 1 : index
    %c0_15 = arith.constant 0 : index
    %35 = vector.load %arg4[%c0_14, %c1, %c0_15] : memref<1x2x128xf32, #tpu.memory_space<vmem>>, vector<1x1x128xf32>
    %36 = vector.shape_cast %35 : vector<1x1x128xf32> to vector<1x128xf32>
    %37 = vector.shape_cast %34 : vector<1x128xf32> to vector<1x1x128xf32>
    tpu.vector_store %arg4[%c0_14, %c1, %c0_15], %37 {strides = array<i32>} : memref<1x2x128xf32, #tpu.memory_space<vmem>>, vector<1x1x128xf32>,
    return
  }
  func.func @transform_0(%arg0: i32) -> (i32, i32) {
    %c0_i32 = arith.constant 0 : i32
    %c0_i32_0 = arith.constant 0 : i32
    return %arg0, %c0_i32 : i32, i32
  }
  func.func @transform_1(%arg0: i32) -> (i32, i32) {
    %c0_i32 = arith.constant 0 : i32
    %c0_i32_0 = arith.constant 0 : i32
    %c0_i32_1 = arith.constant 0 : i32
    return %c0_i32, %c0_i32_0 : i32, i32
  }
  func.func @transform_2(%arg0: i32) -> (i32, i32) {
    %c0_i32 = arith.constant 0 : i32
    %c0_i32_0 = arith.constant 0 : i32
    return %arg0, %c0_i32 : i32, i32
  }
  func.func @transform_3(%arg0: i32) -> (i32, i32, i32) {
    %c0_i32 = arith.constant 0 : i32
    %c0_i32_0 = arith.constant 0 : i32
    %c0_i32_1 = arith.constant 0 : i32
    return %arg0, %c0_i32, %c0_i32_0 : i32, i32, i32
  }
}

module attributes {stable_mosaic.version = 11 : i64} {
  func.func @_conv_stats_kernel(%arg0: i32, %arg1: memref<8x256xbf16, #tpu.memory_space<vmem>>, %arg2: memref<256x128xbf16, #tpu.memory_space<vmem>>, %arg3: memref<8x128xbf16, #tpu.memory_space<vmem>>, %arg4: memref<1x2x128xf32, #tpu.memory_space<vmem>>) attributes {dimension_semantics = [#tpu.dimension_semantics<parallel>], iteration_bounds = array<i64: 1>, scalar_prefetch = 0 : i64, scratch_operands = 0 : i64, tpu.core_type = #tpu.core_type<tc>, window_params = [{transform_indices = @transform_0, window_bounds = array<i64: 8, 256>}, {pipeline_mode = #tpu.pipeline_mode<synchronous>, transform_indices = @transform_1, window_bounds = array<i64: 256, 128>}, {transform_indices = @transform_2, window_bounds = array<i64: 8, 128>}, {transform_indices = @transform_3, window_bounds = array<i64: 1, 2, 128>}]} {
    %c0 = arith.constant 0 : index
    %c0_0 = arith.constant 0 : index
    %0 = vector.load %arg1[%c0, %c0_0] : memref<8x256xbf16, #tpu.memory_space<vmem>>, vector<8x256xbf16>
    %c0_1 = arith.constant 0 : index
    %c0_2 = arith.constant 0 : index
    %1 = vector.load %arg2[%c0_1, %c0_2] : memref<256x128xbf16, #tpu.memory_space<vmem>>, vector<256x128xbf16>
    %cst = arith.constant dense<0.000000e+00> : vector<8x128xf32>
    %2 = tpu.matmul %0, %1, %cst {dimension_numbers = #tpu.dot_dimension_numbers<[1], [0], [0], [1], [0, 0, 1, 1], [], []>} : vector<8x256xbf16>, vector<256x128xbf16>, vector<8x128xf32> -> vector<8x128xf32>
    %3 = arith.truncf %2 : vector<8x128xf32> to vector<8x128xbf16>
    %c0_3 = arith.constant 0 : index
    %c0_4 = arith.constant 0 : index
    %4 = vector.load %arg3[%c0_3, %c0_4] : memref<8x128xbf16, #tpu.memory_space<vmem>>, vector<8x128xbf16>
    tpu.vector_store %arg3[%c0_3, %c0_4], %3 {strides = array<i32>} : memref<8x128xbf16, #tpu.memory_space<vmem>>, vector<8x128xbf16>,
    %c8_i32 = arith.constant 8 : i32
    %5 = arith.muli %arg0, %c8_i32 : i32
    %6 = tpu.iota {dimensions = array<i32: 0>} : vector<8x1xi32>
    %7 = vector.broadcast %5 : i32 to vector<8x1xi32>
    %8 = arith.addi %6, %7 : vector<8x1xi32>
    %c8_i32_5 = arith.constant 8 : i32
    %9 = vector.broadcast %c8_i32_5 : i32 to vector<8x1xi32>
    %10 = arith.cmpi slt, %8, %9 : vector<8x1xi32>
    %c8_i32_6 = arith.constant 8 : i32
    %11 = arith.subi %c8_i32_6, %5 : i32
    %c8_i32_7 = arith.constant 8 : i32
    %12 = arith.minsi %11, %c8_i32_7 : i32
    %c1_i32 = arith.constant 1 : i32
    %13 = arith.maxsi %12, %c1_i32 : i32
    %14 = arith.sitofp %13 : i32 to f32
    %cst_8 = arith.constant 0.000000e+00 : f32
    %15 = vector.shape_cast %10 : vector<8x1xi1> to vector<8x1xi1>
    %16 = vector.broadcast %15 : vector<8x1xi1> to vector<8x128xi1>
    %17 = vector.broadcast %cst_8 : f32 to vector<8x128xf32>
    %18 = arith.select %16, %2, %17 : vector<8x128xi1>, vector<8x128xf32>
    %cst_9 = arith.constant dense<0.000000e+00> : vector<128xf32>
    %19 = vector.multi_reduction <add>, %18, %cst_9 [0] : vector<8x128xf32> to vector<128xf32>
    %20 = vector.shape_cast %19 : vector<128xf32> to vector<1x128xf32>
    %21 = vector.broadcast %14 : f32 to vector<1x128xf32>
    %22 = arith.divf %20, %21 : vector<1x128xf32>
    %23 = vector.broadcast %22 : vector<1x128xf32> to vector<8x128xf32>
    %24 = arith.subf %2, %23 : vector<8x128xf32>
    %cst_10 = arith.constant 0.000000e+00 : f32
    %25 = vector.shape_cast %10 : vector<8x1xi1> to vector<8x1xi1>
    %26 = vector.broadcast %25 : vector<8x1xi1> to vector<8x128xi1>
    %27 = vector.broadcast %cst_10 : f32 to vector<8x128xf32>
    %28 = arith.select %26, %24, %27 : vector<8x128xi1>, vector<8x128xf32>
    %c0_11 = arith.constant 0 : index
    %c0_12 = arith.constant 0 : index
    %c0_13 = arith.constant 0 : index
    %29 = vector.load %arg4[%c0_11, %c0_12, %c0_13] : memref<1x2x128xf32, #tpu.memory_space<vmem>>, vector<1x1x128xf32>
    %30 = vector.shape_cast %29 : vector<1x1x128xf32> to vector<1x128xf32>
    %31 = vector.shape_cast %20 : vector<1x128xf32> to vector<1x1x128xf32>
    tpu.vector_store %arg4[%c0_11, %c0_12, %c0_13], %31 {strides = array<i32>} : memref<1x2x128xf32, #tpu.memory_space<vmem>>, vector<1x1x128xf32>,
    %32 = arith.mulf %28, %28 : vector<8x128xf32>
    %cst_14 = arith.constant dense<0.000000e+00> : vector<128xf32>
    %33 = vector.multi_reduction <add>, %32, %cst_14 [0] : vector<8x128xf32> to vector<128xf32>
    %34 = vector.shape_cast %33 : vector<128xf32> to vector<1x128xf32>
    %c0_15 = arith.constant 0 : index
    %c1 = arith.constant 1 : index
    %c0_16 = arith.constant 0 : index
    %35 = vector.load %arg4[%c0_15, %c1, %c0_16] : memref<1x2x128xf32, #tpu.memory_space<vmem>>, vector<1x1x128xf32>
    %36 = vector.shape_cast %35 : vector<1x1x128xf32> to vector<1x128xf32>
    %37 = vector.shape_cast %34 : vector<1x128xf32> to vector<1x1x128xf32>
    tpu.vector_store %arg4[%c0_15, %c1, %c0_16], %37 {strides = array<i32>} : memref<1x2x128xf32, #tpu.memory_space<vmem>>, vector<1x1x128xf32>,
    return
  }
  func.func @transform_0(%arg0: i32) -> (i32, i32) {
    %c0_i32 = arith.constant 0 : i32
    %c0_i32_0 = arith.constant 0 : i32
    return %arg0, %c0_i32 : i32, i32
  }
  func.func @transform_1(%arg0: i32) -> (i32, i32) {
    %c0_i32 = arith.constant 0 : i32
    %c0_i32_0 = arith.constant 0 : i32
    %c0_i32_1 = arith.constant 0 : i32
    return %c0_i32, %c0_i32_0 : i32, i32
  }
  func.func @transform_2(%arg0: i32) -> (i32, i32) {
    %c0_i32 = arith.constant 0 : i32
    %c0_i32_0 = arith.constant 0 : i32
    return %arg0, %c0_i32 : i32, i32
  }
  func.func @transform_3(%arg0: i32) -> (i32, i32, i32) {
    %c0_i32 = arith.constant 0 : i32
    %c0_i32_0 = arith.constant 0 : i32
    %c0_i32_1 = arith.constant 0 : i32
    return %arg0, %c0_i32, %c0_i32_0 : i32, i32, i32
  }
}

module attributes {stable_mosaic.version = 11 : i64} {
  func.func @_head_kernel(%arg0: i32, %arg1: memref<16x64xbf16, #tpu.memory_space<vmem>>, %arg2: memref<64x128xbf16, #tpu.memory_space<vmem>>, %arg3: memref<1x128xf32, #tpu.memory_space<vmem>>, %arg4: memref<16x128xf32, #tpu.memory_space<vmem>>) attributes {dimension_semantics = [#tpu.dimension_semantics<parallel>], iteration_bounds = array<i64: 2>, scalar_prefetch = 0 : i64, scratch_operands = 0 : i64, tpu.core_type = #tpu.core_type<tc>, window_params = [{transform_indices = @transform_0, window_bounds = array<i64: 16, 64>}, {pipeline_mode = #tpu.pipeline_mode<synchronous>, transform_indices = @transform_1, window_bounds = array<i64: 64, 128>}, {pipeline_mode = #tpu.pipeline_mode<synchronous>, transform_indices = @transform_2, window_bounds = array<i64: 1, 128>}, {transform_indices = @transform_3, window_bounds = array<i64: 16, 128>}]} {
    %c0 = arith.constant 0 : index
    %c0_0 = arith.constant 0 : index
    %0 = vector.load %arg1[%c0, %c0_0] : memref<16x64xbf16, #tpu.memory_space<vmem>>, vector<16x64xbf16>
    %c0_1 = arith.constant 0 : index
    %c0_2 = arith.constant 0 : index
    %1 = vector.load %arg2[%c0_1, %c0_2] : memref<64x128xbf16, #tpu.memory_space<vmem>>, vector<64x128xbf16>
    %cst = arith.constant dense<0.000000e+00> : vector<16x128xf32>
    %2 = tpu.matmul %0, %1, %cst {dimension_numbers = #tpu.dot_dimension_numbers<[1], [0], [0], [1], [0, 0, 1, 1], [], []>} : vector<16x64xbf16>, vector<64x128xbf16>, vector<16x128xf32> -> vector<16x128xf32>
    %c0_3 = arith.constant 0 : index
    %c0_4 = arith.constant 0 : index
    %3 = vector.load %arg3[%c0_3, %c0_4] : memref<1x128xf32, #tpu.memory_space<vmem>>, vector<1x128xf32>
    %4 = vector.broadcast %3 : vector<1x128xf32> to vector<16x128xf32>
    %5 = arith.addf %2, %4 : vector<16x128xf32>
    %c0_5 = arith.constant 0 : index
    %c0_6 = arith.constant 0 : index
    %6 = vector.load %arg4[%c0_5, %c0_6] : memref<16x128xf32, #tpu.memory_space<vmem>>, vector<16x128xf32>
    tpu.vector_store %arg4[%c0_5, %c0_6], %5 {strides = array<i32>} : memref<16x128xf32, #tpu.memory_space<vmem>>, vector<16x128xf32>,
    return
  }
  func.func @transform_0(%arg0: i32) -> (i32, i32) {
    %c0_i32 = arith.constant 0 : i32
    %c0_i32_0 = arith.constant 0 : i32
    return %arg0, %c0_i32 : i32, i32
  }
  func.func @transform_1(%arg0: i32) -> (i32, i32) {
    %c0_i32 = arith.constant 0 : i32
    %c0_i32_0 = arith.constant 0 : i32
    %c0_i32_1 = arith.constant 0 : i32
    return %c0_i32, %c0_i32_0 : i32, i32
  }
  func.func @transform_2(%arg0: i32) -> (i32, i32) {
    %c0_i32 = arith.constant 0 : i32
    %c0_i32_0 = arith.constant 0 : i32
    %c0_i32_1 = arith.constant 0 : i32
    return %c0_i32, %c0_i32_0 : i32, i32
  }
  func.func @transform_3(%arg0: i32) -> (i32, i32) {
    %c0_i32 = arith.constant 0 : i32
    %c0_i32_0 = arith.constant 0 : i32
    return %arg0, %c0_i32 : i32, i32
  }
}

module attributes {stable_mosaic.version = 11 : i64} {
  func.func @_conv_stats_kernel(%arg0: i32, %arg1: memref<16x1152xbf16, #tpu.memory_space<vmem>>, %arg2: memref<1152x128xbf16, #tpu.memory_space<vmem>>, %arg3: memref<16x128xbf16, #tpu.memory_space<vmem>>, %arg4: memref<1x2x128xf32, #tpu.memory_space<vmem>>) attributes {dimension_semantics = [#tpu.dimension_semantics<parallel>], iteration_bounds = array<i64: 2>, scalar_prefetch = 0 : i64, scratch_operands = 0 : i64, tpu.core_type = #tpu.core_type<tc>, window_params = [{transform_indices = @transform_0, window_bounds = array<i64: 16, 1152>}, {pipeline_mode = #tpu.pipeline_mode<synchronous>, transform_indices = @transform_1, window_bounds = array<i64: 1152, 128>}, {transform_indices = @transform_2, window_bounds = array<i64: 16, 128>}, {transform_indices = @transform_3, window_bounds = array<i64: 1, 2, 128>}]} {
    %c0 = arith.constant 0 : index
    %c0_0 = arith.constant 0 : index
    %0 = vector.load %arg1[%c0, %c0_0] : memref<16x1152xbf16, #tpu.memory_space<vmem>>, vector<16x1152xbf16>
    %c0_1 = arith.constant 0 : index
    %c0_2 = arith.constant 0 : index
    %1 = vector.load %arg2[%c0_1, %c0_2] : memref<1152x128xbf16, #tpu.memory_space<vmem>>, vector<1152x128xbf16>
    %cst = arith.constant dense<0.000000e+00> : vector<16x128xf32>
    %2 = tpu.matmul %0, %1, %cst {dimension_numbers = #tpu.dot_dimension_numbers<[1], [0], [0], [1], [0, 0, 1, 1], [], []>} : vector<16x1152xbf16>, vector<1152x128xbf16>, vector<16x128xf32> -> vector<16x128xf32>
    %3 = arith.truncf %2 : vector<16x128xf32> to vector<16x128xbf16>
    %c0_3 = arith.constant 0 : index
    %c0_4 = arith.constant 0 : index
    %4 = vector.load %arg3[%c0_3, %c0_4] : memref<16x128xbf16, #tpu.memory_space<vmem>>, vector<16x128xbf16>
    tpu.vector_store %arg3[%c0_3, %c0_4], %3 {strides = array<i32>} : memref<16x128xbf16, #tpu.memory_space<vmem>>, vector<16x128xbf16>,
    %c16_i32 = arith.constant 16 : i32
    %5 = arith.muli %arg0, %c16_i32 : i32
    %6 = tpu.iota {dimensions = array<i32: 0>} : vector<16x1xi32>
    %7 = vector.broadcast %5 : i32 to vector<16x1xi32>
    %8 = arith.addi %6, %7 : vector<16x1xi32>
    %c32_i32 = arith.constant 32 : i32
    %9 = vector.broadcast %c32_i32 : i32 to vector<16x1xi32>
    %10 = arith.cmpi slt, %8, %9 : vector<16x1xi32>
    %c32_i32_5 = arith.constant 32 : i32
    %11 = arith.subi %c32_i32_5, %5 : i32
    %c16_i32_6 = arith.constant 16 : i32
    %12 = arith.minsi %11, %c16_i32_6 : i32
    %c1_i32 = arith.constant 1 : i32
    %13 = arith.maxsi %12, %c1_i32 : i32
    %14 = arith.sitofp %13 : i32 to f32
    %cst_7 = arith.constant 0.000000e+00 : f32
    %15 = vector.shape_cast %10 : vector<16x1xi1> to vector<16x1xi1>
    %16 = vector.broadcast %15 : vector<16x1xi1> to vector<16x128xi1>
    %17 = vector.broadcast %cst_7 : f32 to vector<16x128xf32>
    %18 = arith.select %16, %2, %17 : vector<16x128xi1>, vector<16x128xf32>
    %cst_8 = arith.constant dense<0.000000e+00> : vector<128xf32>
    %19 = vector.multi_reduction <add>, %18, %cst_8 [0] : vector<16x128xf32> to vector<128xf32>
    %20 = vector.shape_cast %19 : vector<128xf32> to vector<1x128xf32>
    %21 = vector.broadcast %14 : f32 to vector<1x128xf32>
    %22 = arith.divf %20, %21 : vector<1x128xf32>
    %23 = vector.broadcast %22 : vector<1x128xf32> to vector<16x128xf32>
    %24 = arith.subf %2, %23 : vector<16x128xf32>
    %cst_9 = arith.constant 0.000000e+00 : f32
    %25 = vector.shape_cast %10 : vector<16x1xi1> to vector<16x1xi1>
    %26 = vector.broadcast %25 : vector<16x1xi1> to vector<16x128xi1>
    %27 = vector.broadcast %cst_9 : f32 to vector<16x128xf32>
    %28 = arith.select %26, %24, %27 : vector<16x128xi1>, vector<16x128xf32>
    %c0_10 = arith.constant 0 : index
    %c0_11 = arith.constant 0 : index
    %c0_12 = arith.constant 0 : index
    %29 = vector.load %arg4[%c0_10, %c0_11, %c0_12] : memref<1x2x128xf32, #tpu.memory_space<vmem>>, vector<1x1x128xf32>
    %30 = vector.shape_cast %29 : vector<1x1x128xf32> to vector<1x128xf32>
    %31 = vector.shape_cast %20 : vector<1x128xf32> to vector<1x1x128xf32>
    tpu.vector_store %arg4[%c0_10, %c0_11, %c0_12], %31 {strides = array<i32>} : memref<1x2x128xf32, #tpu.memory_space<vmem>>, vector<1x1x128xf32>,
    %32 = arith.mulf %28, %28 : vector<16x128xf32>
    %cst_13 = arith.constant dense<0.000000e+00> : vector<128xf32>
    %33 = vector.multi_reduction <add>, %32, %cst_13 [0] : vector<16x128xf32> to vector<128xf32>
    %34 = vector.shape_cast %33 : vector<128xf32> to vector<1x128xf32>
    %c0_14 = arith.constant 0 : index
    %c1 = arith.constant 1 : index
    %c0_15 = arith.constant 0 : index
    %35 = vector.load %arg4[%c0_14, %c1, %c0_15] : memref<1x2x128xf32, #tpu.memory_space<vmem>>, vector<1x1x128xf32>
    %36 = vector.shape_cast %35 : vector<1x1x128xf32> to vector<1x128xf32>
    %37 = vector.shape_cast %34 : vector<1x128xf32> to vector<1x1x128xf32>
    tpu.vector_store %arg4[%c0_14, %c1, %c0_15], %37 {strides = array<i32>} : memref<1x2x128xf32, #tpu.memory_space<vmem>>, vector<1x1x128xf32>,
    return
  }
  func.func @transform_0(%arg0: i32) -> (i32, i32) {
    %c0_i32 = arith.constant 0 : i32
    %c0_i32_0 = arith.constant 0 : i32
    return %arg0, %c0_i32 : i32, i32
  }
  func.func @transform_1(%arg0: i32) -> (i32, i32) {
    %c0_i32 = arith.constant 0 : i32
    %c0_i32_0 = arith.constant 0 : i32
    %c0_i32_1 = arith.constant 0 : i32
    return %c0_i32, %c0_i32_0 : i32, i32
  }
  func.func @transform_2(%arg0: i32) -> (i32, i32) {
    %c0_i32 = arith.constant 0 : i32
    %c0_i32_0 = arith.constant 0 : i32
    return %arg0, %c0_i32 : i32, i32
  }
  func.func @transform_3(%arg0: i32) -> (i32, i32, i32) {
    %c0_i32 = arith.constant 0 : i32
    %c0_i32_0 = arith.constant 0 : i32
    %c0_i32_1 = arith.constant 0 : i32
    return %arg0, %c0_i32, %c0_i32_0 : i32, i32, i32
  }
}

</mosaic_0001>

<llo_original>
// kernel: tpu_custom_call.1
$region0: #{tpu_custom_call.1}
  #allocation0 [shape = 'u32[]', space=smem, size = 0x4, offset = 0x4, fixed_abs, tag = 'smem constant byte address 0x4 - core index']
  #allocation1 [shape = 'u32[72,128]{1,0:T(1,128)}', space=vmem, size = 0x9000, scoped, tag = 'internal scratch']
  %s0 = inlined_call_operand.hbm [shape: f32[8,128], index: 0, kind: input, shape index: {}]
  %s1 = inlined_call_operand.hbm [shape: f32[8,128], index: 1, kind: output, shape index: {}]
  %s2 = sld [smem:[#allocation0]]
  $region41: #{tpu_custom_call.1} parent=0
    _
  %s4 = ssub.s32 1, %s2
  %s5 = scalar_select 0, %s4, %s2
  $region1: #{tpu_custom_call.1} parent=0
    #allocation2 [shape = 'u8[4096]{0}', space=vmem, size = 0x1000, scoped, tag = 'input window, operand 0, single buffered']
    #allocation3 [shape = 's32[2]{0}', space=sflag, size = 0x8, scoped, tag = 'scoped memory for tpu_custom_call.1']
    #allocation4 [shape = 's32[2]{0}', space=sflag, size = 0x8, scoped, tag = 'scoped memory for tpu_custom_call.1']
    #allocation5 [shape = 'u8[4096]{0}', space=vmem, size = 0x1000, scoped, tag = 'output window, operand 0, single buffered']
    %6 = vsyncpa [#allocation3], 0
    %7 = vsyncpa [#allocation4], 0
    loop: start=0, step=1, limit=4
    $region2: #{tpu_custom_call.1} parent=1 // loop_pre_header
      _
    $region3: #{tpu_custom_call.1} parent=1 // loop_header
      %s9 = sphi 0, %s13
      %p10 = scmp.ge.s32.totalorder %s9, 4
      %s17 = sphi 0, %s17
      %s19 = sphi 0, %s17
      %s20 = sphi 0, %s19
      %s34 = sphi 0, %s20
      %s38 = sphi 0, %s38
      %s40 = sphi 0, %s38
      %s41 = sphi 0, %s40
      %s55 = sphi 0, %s41
    $region4: #{tpu_custom_call.1} parent=1 // loop_header_branch
      %12 = sbr.rel (%p10) target = $region8
    $region5: #{tpu_custom_call.1} parent=1 // loop_body
      %s14 = ssub.s32 %s9, 1
      %s15 = ssub.s32 %s9, 2
      %s16 = sadd.s32 %s9, 1
      %s18 = sadd.s32 %s17, 1
      %p21 = scmp.eq.s32.totalorder %s9, 1
      %p22 = scmp.ne.s32.totalorder %s17, %s19
      %p23 = scmp.eq.s32.totalorder %s9, 0
      %p24 = por %p22, %p23
      %p25 = scmp.ne.s32.totalorder %s17, %s19
      %p26 = scmp.eq.s32.totalorder %s14, 1
      %p27 = por %p25, %p26
      %p28 = scmp.ne.s32.totalorder %s19, %s20
      %p29 = scmp.eq.s32.totalorder %s14, 0
      %p30 = por %p28, %p29
      %p31 = scmp.ne.s32.totalorder %s19, %s20
      %p32 = scmp.eq.s32.totalorder %s15, 1
      %p33 = por %p31, %p32
      %p35 = scmp.ne.s32.totalorder %s20, %s34
      %p36 = scmp.eq.s32.totalorder %s15, 0
      %p37 = por %p35, %p36
      %s39 = sadd.s32 %s38, 1
      %p42 = scmp.eq.s32.totalorder %s9, 1
      %p43 = scmp.ne.s32.totalorder %s38, %s40
      %p44 = scmp.eq.s32.totalorder %s9, 0
      %p45 = por %p43, %p44
      %p46 = scmp.ne.s32.totalorder %s38, %s40
      %p47 = scmp.eq.s32.totalorder %s14, 1
      %p48 = por %p46, %p47
      %p49 = scmp.ne.s32.totalorder %s40, %s41
      %p50 = scmp.eq.s32.totalorder %s14, 0
      %p51 = por %p49, %p50
      %p52 = scmp.ne.s32.totalorder %s40, %s41
      %p53 = scmp.eq.s32.totalorder %s15, 1
      %p54 = por %p52, %p53
      %p56 = scmp.ne.s32.totalorder %s41, %s55
      %p57 = scmp.eq.s32.totalorder %s15, 0
      %p58 = por %p56, %p57
      %p59 = scmp.le.s32.totalorder 1, %s9
      %p60 = scmp.lt.s32.totalorder %s9, 3
      %p61 = pnand %p59, %p60
      %p62 = pneg %p61
      // Predicated region
      $region9: #{tpu_custom_call.1} parent=5 // pred_check
        _
      $region10: #{tpu_custom_call.1} parent=5 // pred_check_branch
        %64 = sbr.rel (%p61) target = $region12
      $region11: #{tpu_custom_call.1} parent=5 // pred_region
        %s65 = ssub.s32 %s9, 1
        // Predicated region
        $region13: #{tpu_custom_call.1} parent=11 // pred_check
          %p66 = pneg %p30
        $region14: #{tpu_custom_call.1} parent=11 // pred_check_branch
          %68 = sbr.rel (%p66) target = $region16
        $region15: #{tpu_custom_call.1} parent=11 // pred_region
          %70 = vsyncadd [#allocation3], 0
          %s72 = sshll.u32 %s0, 4
          %s73 = int_to_ptr.hbm [resolvable:$true] %s72
          %s74 = sshll.u32 [#allocation2], 4
          %s75 = int_to_ptr.vmem [resolvable:$true] %s74
          %77 = dma.hbm_to_vmem [thread:$0]  %s73, 128, %s75, [#allocation3]
        $region16: #{tpu_custom_call.1} parent=11 // pred_fallthru
          _
      $region12: #{tpu_custom_call.1} parent=5 // pred_fallthru
        _
      %p78 = scmp.lt.s32.totalorder %s9, 2
      // Predicated region
      $region17: #{tpu_custom_call.1} parent=5 // pred_check
        %p79 = pneg %p78
      $region18: #{tpu_custom_call.1} parent=5 // pred_check_branch
        %81 = sbr.rel (%p79) target = $region20
      $region19: #{tpu_custom_call.1} parent=5 // pred_region
        _
      $region20: #{tpu_custom_call.1} parent=5 // pred_fallthru
        _
      %p82 = scmp.le.s32.totalorder 1, %s9
      %p83 = scmp.lt.s32.totalorder %s9, 3
      %p84 = pnand %p82, %p83
      %p85 = pneg %p84
      // Predicated region
      $region21: #{tpu_custom_call.1} parent=5 // pred_check
        _
      $region22: #{tpu_custom_call.1} parent=5 // pred_check_branch
        %87 = sbr.rel (%p84) target = $region24
      $region23: #{tpu_custom_call.1} parent=5 // pred_region
        %s88 = ssub.s32 %s9, 1
        // Predicated region
        $region25: #{tpu_custom_call.1} parent=23 // pred_check
          %p89 = pneg %p30
        $region26: #{tpu_custom_call.1} parent=23 // pred_check_branch
          %91 = sbr.rel (%p89) target = $region28
        $region27: #{tpu_custom_call.1} parent=23 // pred_region
          %93 = dma.done [#allocation3], 128
        $region28: #{tpu_custom_call.1} parent=23 // pred_fallthru
          _
        %p94 = pneg %p30
        %p95 = pneg %p27
        %p96 = pneg %p51
        %p97 = pneg %p48
        %v98 = vld [vmem:[#allocation2] sm:$0xff]
        %v99 = vadd.f32 %v98, 1.0
        %100 = vst [vmem:[#allocation5] sm:$0xff] %v99
        // Predicated region
        $region29: #{tpu_custom_call.1} parent=23 // pred_check
          %p101 = pneg %p48
        $region30: #{tpu_custom_call.1} parent=23 // pred_check_branch
          %103 = sbr.rel (%p101) target = $region32
        $region31: #{tpu_custom_call.1} parent=23 // pred_region
          %105 = vsyncadd [#allocation4], 0
          %s107 = sshll.u32 [#allocation5], 4
          %s108 = int_to_ptr.vmem [resolvable:$true] %s107
          %s109 = sshll.u32 %s1, 4
          %s110 = int_to_ptr.hbm [resolvable:$true] %s109
          %112 = dma.vmem_to_hbm [thread:$0]  %s108, 128, %s110, [#allocation4]
        $region32: #{tpu_custom_call.1} parent=23 // pred_fallthru
          _
        // Predicated region
        $region33: #{tpu_custom_call.1} parent=23 // pred_check
          %p113 = pneg %p48
        $region34: #{tpu_custom_call.1} parent=23 // pred_check_branch
          %115 = sbr.rel (%p113) target = $region36
        $region35: #{tpu_custom_call.1} parent=23 // pred_region
          %117 = dma.done [#allocation4], 128
        $region36: #{tpu_custom_call.1} parent=23 // pred_fallthru
          _
      $region24: #{tpu_custom_call.1} parent=5 // pred_fallthru
        _
      %p118 = scmp.le.s32.totalorder 2, %s9
      // Predicated region
      $region37: #{tpu_custom_call.1} parent=5 // pred_check
        %p119 = pneg %p118
      $region38: #{tpu_custom_call.1} parent=5 // pred_check_branch
        %121 = sbr.rel (%p119) target = $region40
      $region39: #{tpu_custom_call.1} parent=5 // pred_region
        %s122 = ssub.s32 %s9, 2
      $region40: #{tpu_custom_call.1} parent=5 // pred_fallthru
        _
    $region6: #{tpu_custom_call.1} parent=1 // loop_footer
      %s13 = sadd.s32 1, %s9
    $region7: #{tpu_custom_call.1} parent=1 // loop_footer_branch
      %8 = sbr.rel target = $region3
    $region8: #{tpu_custom_call.1} parent=1 // loop_exit
      _
    %123 = vsyncpa [#allocation3], 1
    %s124 = scalar_lea.sflag [#allocation3], 1
    %125 = vsyncpa %s124, 1
    %126 = vsyncpa [#allocation4], 1
    %s127 = scalar_lea.sflag [#allocation4], 1
    %128 = vsyncpa %s127, 1

// kernel: darknet10_forward.20
$region0: #{darknet10_forward.20}
  #allocation0 [shape = 'u32[]', space=smem, size = 0x4, offset = 0x4, fixed_abs, tag = 'smem constant byte address 0x4 - core index']
  #allocation1 [shape = 'u32[72,128]{1,0:T(1,128)}', space=vmem, size = 0x9000, scoped, tag = 'internal scratch']
  %s0 = inlined_call_operand.vmem [shape: bf16[2048,128], index: 0, kind: input, shape index: {}]
  %s1 = inlined_call_operand.vmem [shape: f32[1,128], index: 1, kind: input, shape index: {}]
  %s2 = inlined_call_operand.vmem [shape: f32[1,128], index: 2, kind: input, shape index: {}]
  %s3 = inlined_call_operand.vmem [shape: bf16[2048,128], index: 3, kind: output, shape index: {}]
  %s4 = sld [smem:[#allocation0]]
  $region45: #{darknet10_forward.20} parent=0
    _
  %s6 = ssub.s32 1, %s4
  %s7 = scalar_select 0, %s6, %s4
  loop: start=0, step=1, limit=6
  $region2: #{darknet10_forward.20} parent=0 // loop_pre_header
    _
  $region3: #{darknet10_forward.20} parent=0 // loop_header
    %s9 = sphi 0, %s13
    %p10 = scmp.ge.s32.totalorder %s9, 6
    %s19 = sphi 0, %s21
    %s22 = sphi 0, %s19
    %s23 = sphi 0, %s22
    %s39 = sphi 0, %s23
    %s43 = sphi 0, %s43
    %s45 = sphi 0, %s43
    %s46 = sphi 0, %s45
    %s60 = sphi 0, %s46
    %s64 = sphi 0, %s64
    %s66 = sphi 0, %s64
    %s67 = sphi 0, %s66
    %s81 = sphi 0, %s67
    %s87 = sphi 0, %s89
    %s90 = sphi 0, %s87
    %s91 = sphi 0, %s90
    %s107 = sphi 0, %s91
  $region4: #{darknet10_forward.20} parent=0 // loop_header_branch
    %12 = sbr.rel (%p10) target = $region8
  $region5: #{darknet10_forward.20} parent=0 // loop_body
    %s14 = ssub.s32 %s9, 1
    %s15 = ssub.s32 %s9, 2
    %s16 = sadd.s32 %s9, 1
    %s17 = ssub.s32 %s9, %s16
    %p18 = scmp.eq.s32.totalorder %s17, 0
    %s20 = sadd.s32 %s19, 1
    %s21 = scalar_select %p18, %s19, %s20
    %p24 = pneg %p18
    %p25 = scmp.eq.s32.totalorder %s9, 3
    %p26 = por %p24, %p25
    %p27 = scmp.ne.s32.totalorder %s19, %s22
    %p28 = scmp.eq.s32.totalorder %s9, 0
    %p29 = por %p27, %p28
    %p30 = scmp.ne.s32.totalorder %s19, %s22
    %p31 = scmp.eq.s32.totalorder %s14, 3
    %p32 = por %p30, %p31
    %p33 = scmp.ne.s32.totalorder %s22, %s23
    %p34 = scmp.eq.s32.totalorder %s14, 0
    %p35 = por %p33, %p34
    %p36 = scmp.ne.s32.totalorder %s22, %s23
    %p37 = scmp.eq.s32.totalorder %s15, 3
    %p38 = por %p36, %p37
    %p40 = scmp.ne.s32.totalorder %s23, %s39
    %p41 = scmp.eq.s32.totalorder %s15, 0
    %p42 = por %p40, %p41
    %s44 = sadd.s32 %s43, 1
    %p47 = scmp.eq.s32.totalorder %s9, 3
    %p48 = scmp.ne.s32.totalorder %s43, %s45
    %p49 = scmp.eq.s32.totalorder %s9, 0
    %p50 = por %p48, %p49
    %p51 = scmp.ne.s32.totalorder %s43, %s45
    %p52 = scmp.eq.s32.totalorder %s14, 3
    %p53 = por %p51, %p52
    %p54 = scmp.ne.s32.totalorder %s45, %s46
    %p55 = scmp.eq.s32.totalorder %s14, 0
    %p56 = por %p54, %p55
    %p57 = scmp.ne.s32.totalorder %s45, %s46
    %p58 = scmp.eq.s32.totalorder %s15, 3
    %p59 = por %p57, %p58
    %p61 = scmp.ne.s32.totalorder %s46, %s60
    %p62 = scmp.eq.s32.totalorder %s15, 0
    %p63 = por %p61, %p62
    %s65 = sadd.s32 %s64, 1
    %p68 = scmp.eq.s32.totalorder %s9, 3
    %p69 = scmp.ne.s32.totalorder %s64, %s66
    %p70 = scmp.eq.s32.totalorder %s9, 0
    %p71 = por %p69, %p70
    %p72 = scmp.ne.s32.totalorder %s64, %s66
    %p73 = scmp.eq.s32.totalorder %s14, 3
    %p74 = por %p72, %p73
    %p75 = scmp.ne.s32.totalorder %s66, %s67
    %p76 = scmp.eq.s32.totalorder %s14, 0
    %p77 = por %p75, %p76
    %p78 = scmp.ne.s32.totalorder %s66, %s67
    %p79 = scmp.eq.s32.totalorder %s15, 3
    %p80 = por %p78, %p79
    %p82 = scmp.ne.s32.totalorder %s67, %s81
    %p83 = scmp.eq.s32.totalorder %s15, 0
    %p84 = por %p82, %p83
    %s85 = ssub.s32 %s9, %s16
    %p86 = scmp.eq.s32.totalorder %s85, 0
    %s88 = sadd.s32 %s87, 1
    %s89 = scalar_select %p86, %s87, %s88
    %p92 = pneg %p86
    %p93 = scmp.eq.s32.totalorder %s9, 3
    %p94 = por %p92, %p93
    %p95 = scmp.ne.s32.totalorder %s87, %s90
    %p96 = scmp.eq.s32.totalorder %s9, 0
    %p97 = por %p95, %p96
    %p98 = scmp.ne.s32.totalorder %s87, %s90
    %p99 = scmp.eq.s32.totalorder %s14, 3
    %p100 = por %p98, %p99
    %p101 = scmp.ne.s32.totalorder %s90, %s91
    %p102 = scmp.eq.s32.totalorder %s14, 0
    %p103 = por %p101, %p102
    %p104 = scmp.ne.s32.totalorder %s90, %s91
    %p105 = scmp.eq.s32.totalorder %s15, 3
    %p106 = por %p104, %p105
    %p108 = scmp.ne.s32.totalorder %s91, %s107
    %p109 = scmp.eq.s32.totalorder %s15, 0
    %p110 = por %p108, %p109
    %p111 = scmp.le.s32.totalorder 1, %s9
    %p112 = scmp.lt.s32.totalorder %s9, 5
    %p113 = pnand %p111, %p112
    %p114 = pneg %p113
    // Predicated region
    $region9: #{darknet10_forward.20} parent=5 // pred_check
      _
    $region10: #{darknet10_forward.20} parent=5 // pred_check_branch
      %116 = sbr.rel (%p113) target = $region12
    $region11: #{darknet10_forward.20} parent=5 // pred_region
      %s117 = ssub.s32 %s9, 1
      // Predicated region
      $region13: #{darknet10_forward.20} parent=11 // pred_check
        %p118 = pneg %p56
      $region14: #{darknet10_forward.20} parent=11 // pred_check_branch
        %120 = sbr.rel (%p118) target = $region16
      $region15: #{darknet10_forward.20} parent=11 // pred_region
        _
      $region16: #{darknet10_forward.20} parent=11 // pred_fallthru
        _
      // Predicated region
      $region17: #{darknet10_forward.20} parent=11 // pred_check
        %p121 = pneg %p77
      $region18: #{darknet10_forward.20} parent=11 // pred_check_branch
        %123 = sbr.rel (%p121) target = $region20
      $region19: #{darknet10_forward.20} parent=11 // pred_region
        _
      $region20: #{darknet10_forward.20} parent=11 // pred_fallthru
        _
    $region12: #{darknet10_forward.20} parent=5 // pred_fallthru
      _
    %p124 = scmp.lt.s32.totalorder %s9, 4
    // Predicated region
    $region21: #{darknet10_forward.20} parent=5 // pred_check
      %p125 = pneg %p124
    $region22: #{darknet10_forward.20} parent=5 // pred_check_branch
      %127 = sbr.rel (%p125) target = $region24
    $region23: #{darknet10_forward.20} parent=5 // pred_region
      // Predicated region
      $region25: #{darknet10_forward.20} parent=23 // pred_check
        %p128 = pneg %p29
      $region26: #{darknet10_forward.20} parent=23 // pred_check_branch
        %130 = sbr.rel (%p128) target = $region28
      $region27: #{darknet10_forward.20} parent=23 // pred_region
        %s131 = smul.u32 64, %s9
        %p132 = scmp.lt.s32.totalorder %s131, 255
        %s133 = scalar_select %p132, %s131, 255
        %s134 = smul.addr %s133, 4
        %s135 = scalar_lea.vmem %s0, %s134
        %s136 = smul.u32 64, %s9
      $region28: #{darknet10_forward.20} parent=23 // pred_fallthru
        _
    $region24: #{darknet10_forward.20} parent=5 // pred_fallthru
      _
    %p137 = scmp.le.s32.totalorder 1, %s9
    %p138 = scmp.lt.s32.totalorder %s9, 5
    %p139 = pnand %p137, %p138
    %p140 = pneg %p139
    // Predicated region
    $region29: #{darknet10_forward.20} parent=5 // pred_check
      _
    $region30: #{darknet10_forward.20} parent=5 // pred_check_branch
      %142 = sbr.rel (%p139) target = $region32
    $region31: #{darknet10_forward.20} parent=5 // pred_region
      %s143 = ssub.s32 %s9, 1
      %s144 = smul.u32 64, %s14
      %p145 = scmp.lt.s32.totalorder %s144, 255
      %s146 = scalar_select %p145, %s144, 255
      %s147 = smul.addr %s146, 4
      %s148 = scalar_lea.vmem %s0, %s147
      %p149 = pneg %p35
      %p150 = pneg %p32
      %p151 = pneg %p56
      %p152 = pneg %p53
      %p153 = pneg %p77
      %p154 = pneg %p74
      %p155 = pneg %p103
      %p156 = pneg %p100
      %s157 = smul.u32 64, %s14
      %p158 = scmp.lt.s32.totalorder %s157, 255
      %s159 = scalar_select %p158, %s157, 255
      %s160 = smul.addr %s159, 4
      %s161 = scalar_lea.vmem %s3, %s160
      %s162 = smul.u32 64, %s14
      %p163 = scmp.lt.s32.totalorder %s162, 255
      %s164 = scalar_select %p163, %s162, 255
      %s165 = smul.addr %s164, 4
      %s166 = scalar_lea.vmem %s0, %s165
      %s167 = smul.u32 64, %s14
      %s168 = smul.u32 64, %s14
      %p169 = scmp.lt.s32.totalorder %s168, 255
      %s170 = scalar_select %p169, %s168, 255
      %s171 = smul.addr %s170, 4
      %s172 = scalar_lea.vmem %s3, %s171
      %s173 = smul.u32 64, %s14
      %v174 = vld [vmem:[%s166] sm:$0xf]
      %v175 = vld [vmem:[%s166 + $0x4] sm:$0xf]
      %v176 = vld [vmem:[%s166 + $0x8] sm:$0xf]
      %v177 = vld [vmem:[%s166 + $0xc] sm:$0xf]
      %v178 = vld [vmem:[%s166 + $0x10] sm:$0xf]
      %v179 = vld [vmem:[%s166 + $0x14] sm:$0xf]
      %v180 = vld [vmem:[%s166 + $0x18] sm:$0xf]
      %v181 = vld [vmem:[%s166 + $0x1c] sm:$0xf]
      %v182 = vld [vmem:[%s166 + $0x20] sm:$0xf]
      %v183 = vld [vmem:[%s166 + $0x24] sm:$0xf]
      %v184 = vld [vmem:[%s166 + $0x28] sm:$0xf]
      %v185 = vld [vmem:[%s166 + $0x2c] sm:$0xf]
      %v186 = vld [vmem:[%s166 + $0x30] sm:$0xf]
      %v187 = vld [vmem:[%s166 + $0x34] sm:$0xf]
      %v188 = vld [vmem:[%s166 + $0x38] sm:$0xf]
      %v189 = vld [vmem:[%s166 + $0x3c] sm:$0xf]
      %v190 = vld [vmem:[%s166 + $0x40] sm:$0xf]
      %v191 = vld [vmem:[%s166 + $0x44] sm:$0xf]
      %v192 = vld [vmem:[%s166 + $0x48] sm:$0xf]
      %v193 = vld [vmem:[%s166 + $0x4c] sm:$0xf]
      %v194 = vld [vmem:[%s166 + $0x50] sm:$0xf]
      %v195 = vld [vmem:[%s166 + $0x54] sm:$0xf]
      %v196 = vld [vmem:[%s166 + $0x58] sm:$0xf]
      %v197 = vld [vmem:[%s166 + $0x5c] sm:$0xf]
      %v198 = vld [vmem:[%s166 + $0x60] sm:$0xf]
      %v199 = vld [vmem:[%s166 + $0x64] sm:$0xf]
      %v200 = vld [vmem:[%s166 + $0x68] sm:$0xf]
      %v201 = vld [vmem:[%s166 + $0x6c] sm:$0xf]
      %v202 = vld [vmem:[%s166 + $0x70] sm:$0xf]
      %v203 = vld [vmem:[%s166 + $0x74] sm:$0xf]
      %v204 = vld [vmem:[%s166 + $0x78] sm:$0xf]
      %v205 = vld [vmem:[%s166 + $0x7c] sm:$0xf]
      %v206 = vld [vmem:[%s166 + $0x80] sm:$0xf]
      %v207 = vld [vmem:[%s166 + $0x84] sm:$0xf]
      %v208 = vld [vmem:[%s166 + $0x88] sm:$0xf]
      %v209 = vld [vmem:[%s166 + $0x8c] sm:$0xf]
      %v210 = vld [vmem:[%s166 + $0x90] sm:$0xf]
      %v211 = vld [vmem:[%s166 + $0x94] sm:$0xf]
      %v212 = vld [vmem:[%s166 + $0x98] sm:$0xf]
      %v213 = vld [vmem:[%s166 + $0x9c] sm:$0xf]
      %v214 = vld [vmem:[%s166 + $0xa0] sm:$0xf]
      %v215 = vld [vmem:[%s166 + $0xa4] sm:$0xf]
      %v216 = vld [vmem:[%s166 + $0xa8] sm:$0xf]
      %v217 = vld [vmem:[%s166 + $0xac] sm:$0xf]
      %v218 = vld [vmem:[%s166 + $0xb0] sm:$0xf]
      %v219 = vld [vmem:[%s166 + $0xb4] sm:$0xf]
      %v220 = vld [vmem:[%s166 + $0xb8] sm:$0xf]
      %v221 = vld [vmem:[%s166 + $0xbc] sm:$0xf]
      %v222 = vld [vmem:[%s166 + $0xc0] sm:$0xf]
      %v223 = vld [vmem:[%s166 + $0xc4] sm:$0xf]
      %v224 = vld [vmem:[%s166 + $0xc8] sm:$0xf]
      %v225 = vld [vmem:[%s166 + $0xcc] sm:$0xf]
      %v226 = vld [vmem:[%s166 + $0xd0] sm:$0xf]
      %v227 = vld [vmem:[%s166 + $0xd4] sm:$0xf]
      %v228 = vld [vmem:[%s166 + $0xd8] sm:$0xf]
      %v229 = vld [vmem:[%s166 + $0xdc] sm:$0xf]
      %v230 = vld [vmem:[%s166 + $0xe0] sm:$0xf]
      %v231 = vld [vmem:[%s166 + $0xe4] sm:$0xf]
      %v232 = vld [vmem:[%s166 + $0xe8] sm:$0xf]
      %v233 = vld [vmem:[%s166 + $0xec] sm:$0xf]
      %v234 = vld [vmem:[%s166 + $0xf0] sm:$0xf]
      %v235 = vld [vmem:[%s166 + $0xf4] sm:$0xf]
      %v236 = vld [vmem:[%s166 + $0xf8] sm:$0xf]
      %v237 = vld [vmem:[%s166 + $0xfc] sm:$0xf]
      %v238 = vunpack.c.l.bf16 %v174
      %v239 = vunpack.c.l.bf16 %v175
      %v240 = vunpack.c.l.bf16 %v176
      %v241 = vunpack.c.l.bf16 %v177
      %v242 = vunpack.c.l.bf16 %v178
      %v243 = vunpack.c.l.bf16 %v179
      %v244 = vunpack.c.l.bf16 %v180
      %v245 = vunpack.c.l.bf16 %v181
      %v246 = vunpack.c.l.bf16 %v182
      %v247 = vunpack.c.l.bf16 %v183
      %v248 = vunpack.c.l.bf16 %v184
      %v249 = vunpack.c.l.bf16 %v185
      %v250 = vunpack.c.l.bf16 %v186
      %v251 = vunpack.c.l.bf16 %v187
      %v252 = vunpack.c.l.bf16 %v188
      %v253 = vunpack.c.l.bf16 %v189
      %v254 = vunpack.c.l.bf16 %v190
      %v255 = vunpack.c.l.bf16 %v191
      %v256 = vunpack.c.l.bf16 %v192
      %v257 = vunpack.c.l.bf16 %v193
      %v258 = vunpack.c.l.bf16 %v194
      %v259 = vunpack.c.l.bf16 %v195
      %v260 = vunpack.c.l.bf16 %v196
      %v261 = vunpack.c.l.bf16 %v197
      %v262 = vunpack.c.l.bf16 %v198
      %v263 = vunpack.c.l.bf16 %v199
      %v264 = vunpack.c.l.bf16 %v200
      %v265 = vunpack.c.l.bf16 %v201
      %v266 = vunpack.c.l.bf16 %v202
      %v267 = vunpack.c.l.bf16 %v203
      %v268 = vunpack.c.l.bf16 %v204
      %v269 = vunpack.c.l.bf16 %v205
      %v270 = vunpack.c.l.bf16 %v206
      %v271 = vunpack.c.l.bf16 %v207
      %v272 = vunpack.c.l.bf16 %v208
      %v273 = vunpack.c.l.bf16 %v209
      %v274 = vunpack.c.l.bf16 %v210
      %v275 = vunpack.c.l.bf16 %v211
      %v276 = vunpack.c.l.bf16 %v212
      %v277 = vunpack.c.l.bf16 %v213
      %v278 = vunpack.c.l.bf16 %v214
      %v279 = vunpack.c.l.bf16 %v215
      %v280 = vunpack.c.l.bf16 %v216
      %v281 = vunpack.c.l.bf16 %v217
      %v282 = vunpack.c.l.bf16 %v218
      %v283 = vunpack.c.l.bf16 %v219
      %v284 = vunpack.c.l.bf16 %v220
      %v285 = vunpack.c.l.bf16 %v221
      %v286 = vunpack.c.l.bf16 %v222
      %v287 = vunpack.c.l.bf16 %v223
      %v288 = vunpack.c.l.bf16 %v224
      %v289 = vunpack.c.l.bf16 %v225
      %v290 = vunpack.c.l.bf16 %v226
      %v291 = vunpack.c.l.bf16 %v227
      %v292 = vunpack.c.l.bf16 %v228
      %v293 = vunpack.c.l.bf16 %v229
      %v294 = vunpack.c.l.bf16 %v230
      %v295 = vunpack.c.l.bf16 %v231
      %v296 = vunpack.c.l.bf16 %v232
      %v297 = vunpack.c.l.bf16 %v233
      %v298 = vunpack.c.l.bf16 %v234
      %v299 = vunpack.c.l.bf16 %v235
      %v300 = vunpack.c.l.bf16 %v236
      %v301 = vunpack.c.l.bf16 %v237
      %v302 = vld [vmem:[%s1] sm:$0x1]
      %v304 = vperm.slane %v302, 0
      %v306 = vmul.f32 %v238, %v304
      %v307 = vmul.f32 %v239, %v304
      %v308 = vmul.f32 %v240, %v304
      %v309 = vmul.f32 %v241, %v304
      %v310 = vmul.f32 %v242, %v304
      %v311 = vmul.f32 %v243, %v304
      %v312 = vmul.f32 %v244, %v304
      %v313 = vmul.f32 %v245, %v304
      %v314 = vmul.f32 %v246, %v304
      %v315 = vmul.f32 %v247, %v304
      %v316 = vmul.f32 %v248, %v304
      %v317 = vmul.f32 %v249, %v304
      %v318 = vmul.f32 %v250, %v304
      %v319 = vmul.f32 %v251, %v304
      %v320 = vmul.f32 %v252, %v304
      %v321 = vmul.f32 %v253, %v304
      %v322 = vmul.f32 %v254, %v304
      %v323 = vmul.f32 %v255, %v304
      %v324 = vmul.f32 %v256, %v304
      %v325 = vmul.f32 %v257, %v304
      %v326 = vmul.f32 %v258, %v304
      %v327 = vmul.f32 %v259, %v304
      %v328 = vmul.f32 %v260, %v304
      %v329 = vmul.f32 %v261, %v304
      %v330 = vmul.f32 %v262, %v304
      %v331 = vmul.f32 %v263, %v304
      %v332 = vmul.f32 %v264, %v304
      %v333 = vmul.f32 %v265, %v304
      %v334 = vmul.f32 %v266, %v304
      %v335 = vmul.f32 %v267, %v304
      %v336 = vmul.f32 %v268, %v304
      %v337 = vmul.f32 %v269, %v304
      %v338 = vmul.f32 %v270, %v304
      %v339 = vmul.f32 %v271, %v304
      %v340 = vmul.f32 %v272, %v304
      %v341 = vmul.f32 %v273, %v304
      %v342 = vmul.f32 %v274, %v304
      %v343 = vmul.f32 %v275, %v304
      %v344 = vmul.f32 %v276, %v304
      %v345 = vmul.f32 %v277, %v304
      %v346 = vmul.f32 %v278, %v304
      %v347 = vmul.f32 %v279, %v304
      %v348 = vmul.f32 %v280, %v304
      %v349 = vmul.f32 %v281, %v304
      %v350 = vmul.f32 %v282, %v304
      %v351 = vmul.f32 %v283, %v304
      %v352 = vmul.f32 %v284, %v304
      %v353 = vmul.f32 %v285, %v304
      %v354 = vmul.f32 %v286, %v304
      %v355 = vmul.f32 %v287, %v304
      %v356 = vmul.f32 %v288, %v304
      %v357 = vmul.f32 %v289, %v304
      %v358 = vmul.f32 %v290, %v304
      %v359 = vmul.f32 %v291, %v304
      %v360 = vmul.f32 %v292, %v304
      %v361 = vmul.f32 %v293, %v304
      %v362 = vmul.f32 %v294, %v304
      %v363 = vmul.f32 %v295, %v304
      %v364 = vmul.f32 %v296, %v304
      %v365 = vmul.f32 %v297, %v304
      %v366 = vmul.f32 %v298, %v304
      %v367 = vmul.f32 %v299, %v304
      %v368 = vmul.f32 %v300, %v304
      %v369 = vmul.f32 %v301, %v304
      %v370 = vld [vmem:[%s2] sm:$0x1]
      %v372 = vperm.slane %v370, 0
      %v374 = vadd.f32 %v306, %v372
      %v375 = vadd.f32 %v307, %v372
      %v376 = vadd.f32 %v308, %v372
      %v377 = vadd.f32 %v309, %v372
      %v378 = vadd.f32 %v310, %v372
      %v379 = vadd.f32 %v311, %v372
      %v380 = vadd.f32 %v312, %v372
      %v381 = vadd.f32 %v313, %v372
      %v382 = vadd.f32 %v314, %v372
      %v383 = vadd.f32 %v315, %v372
      %v384 = vadd.f32 %v316, %v372
      %v385 = vadd.f32 %v317, %v372
      %v386 = vadd.f32 %v318, %v372
      %v387 = vadd.f32 %v319, %v372
      %v388 = vadd.f32 %v320, %v372
      %v389 = vadd.f32 %v321, %v372
      %v390 = vadd.f32 %v322, %v372
      %v391 = vadd.f32 %v323, %v372
      %v392 = vadd.f32 %v324, %v372
      %v393 = vadd.f32 %v325, %v372
      %v394 = vadd.f32 %v326, %v372
      %v395 = vadd.f32 %v327, %v372
      %v396 = vadd.f32 %v328, %v372
      %v397 = vadd.f32 %v329, %v372
      %v398 = vadd.f32 %v330, %v372
      %v399 = vadd.f32 %v331, %v372
      %v400 = vadd.f32 %v332, %v372
      %v401 = vadd.f32 %v333, %v372
      %v402 = vadd.f32 %v334, %v372
      %v403 = vadd.f32 %v335, %v372
      %v404 = vadd.f32 %v336, %v372
      %v405 = vadd.f32 %v337, %v372
      %v406 = vadd.f32 %v338, %v372
      %v407 = vadd.f32 %v339, %v372
      %v408 = vadd.f32 %v340, %v372
      %v409 = vadd.f32 %v341, %v372
      %v410 = vadd.f32 %v342, %v372
      %v411 = vadd.f32 %v343, %v372
      %v412 = vadd.f32 %v344, %v372
      %v413 = vadd.f32 %v345, %v372
      %v414 = vadd.f32 %v346, %v372
      %v415 = vadd.f32 %v347, %v372
      %v416 = vadd.f32 %v348, %v372
      %v417 = vadd.f32 %v349, %v372
      %v418 = vadd.f32 %v350, %v372
      %v419 = vadd.f32 %v351, %v372
      %v420 = vadd.f32 %v352, %v372
      %v421 = vadd.f32 %v353, %v372
      %v422 = vadd.f32 %v354, %v372
      %v423 = vadd.f32 %v355, %v372
      %v424 = vadd.f32 %v356, %v372
      %v425 = vadd.f32 %v357, %v372
      %v426 = vadd.f32 %v358, %v372
      %v427 = vadd.f32 %v359, %v372
      %v428 = vadd.f32 %v360, %v372
      %v429 = vadd.f32 %v361, %v372
      %v430 = vadd.f32 %v362, %v372
      %v431 = vadd.f32 %v363, %v372
      %v432 = vadd.f32 %v364, %v372
      %v433 = vadd.f32 %v365, %v372
      %v434 = vadd.f32 %v366, %v372
      %v435 = vadd.f32 %v367, %v372
      %v436 = vadd.f32 %v368, %v372
      %v437 = vadd.f32 %v369, %v372
      %vm438 = vcmp.gt.f32.partialorder %v374, 0.0
      %vm439 = vcmp.gt.f32.partialorder %v375, 0.0
      %vm440 = vcmp.gt.f32.partialorder %v376, 0.0
      %vm441 = vcmp.gt.f32.partialorder %v377, 0.0
      %vm442 = vcmp.gt.f32.partialorder %v378, 0.0
      %vm443 = vcmp.gt.f32.partialorder %v379, 0.0
      %vm444 = vcmp.gt.f32.partialorder %v380, 0.0
      %vm445 = vcmp.gt.f32.partialorder %v381, 0.0
      %vm446 = vcmp.gt.f32.partialorder %v382, 0.0
      %vm447 = vcmp.gt.f32.partialorder %v383, 0.0
      %vm448 = vcmp.gt.f32.partialorder %v384, 0.0
      %vm449 = vcmp.gt.f32.partialorder %v385, 0.0
      %vm450 = vcmp.gt.f32.partialorder %v386, 0.0
      %vm451 = vcmp.gt.f32.partialorder %v387, 0.0
      %vm452 = vcmp.gt.f32.partialorder %v388, 0.0
      %vm453 = vcmp.gt.f32.partialorder %v389, 0.0
      %vm454 = vcmp.gt.f32.partialorder %v390, 0.0
      %vm455 = vcmp.gt.f32.partialorder %v391, 0.0
      %vm456 = vcmp.gt.f32.partialorder %v392, 0.0
      %vm457 = vcmp.gt.f32.partialorder %v393, 0.0
      %vm458 = vcmp.gt.f32.partialorder %v394, 0.0
      %vm459 = vcmp.gt.f32.partialorder %v395, 0.0
      %vm460 = vcmp.gt.f32.partialorder %v396, 0.0
      %vm461 = vcmp.gt.f32.partialorder %v397, 0.0
      %vm462 = vcmp.gt.f32.partialorder %v398, 0.0
      %vm463 = vcmp.gt.f32.partialorder %v399, 0.0
      %vm464 = vcmp.gt.f32.partialorder %v400, 0.0
      %vm465 = vcmp.gt.f32.partialorder %v401, 0.0
      %vm466 = vcmp.gt.f32.partialorder %v402, 0.0
      %vm467 = vcmp.gt.f32.partialorder %v403, 0.0
      %vm468 = vcmp.gt.f32.partialorder %v404, 0.0
      %vm469 = vcmp.gt.f32.partialorder %v405, 0.0
      %vm470 = vcmp.gt.f32.partialorder %v406, 0.0
      %vm471 = vcmp.gt.f32.partialorder %v407, 0.0
      %vm472 = vcmp.gt.f32.partialorder %v408, 0.0
      %vm473 = vcmp.gt.f32.partialorder %v409, 0.0
      %vm474 = vcmp.gt.f32.partialorder %v410, 0.0
      %vm475 = vcmp.gt.f32.partialorder %v411, 0.0
      %vm476 = vcmp.gt.f32.partialorder %v412, 0.0
      %vm477 = vcmp.gt.f32.partialorder %v413, 0.0
      %vm478 = vcmp.gt.f32.partialorder %v414, 0.0
      %vm479 = vcmp.gt.f32.partialorder %v415, 0.0
      %vm480 = vcmp.gt.f32.partialorder %v416, 0.0
      %vm481 = vcmp.gt.f32.partialorder %v417, 0.0
      %vm482 = vcmp.gt.f32.partialorder %v418, 0.0
      %vm483 = vcmp.gt.f32.partialorder %v419, 0.0
      %vm484 = vcmp.gt.f32.partialorder %v420, 0.0
      %vm485 = vcmp.gt.f32.partialorder %v421, 0.0
      %vm486 = vcmp.gt.f32.partialorder %v422, 0.0
      %vm487 = vcmp.gt.f32.partialorder %v423, 0.0
      %vm488 = vcmp.gt.f32.partialorder %v424, 0.0
      %vm489 = vcmp.gt.f32.partialorder %v425, 0.0
      %vm490 = vcmp.gt.f32.partialorder %v426, 0.0
      %vm491 = vcmp.gt.f32.partialorder %v427, 0.0
      %vm492 = vcmp.gt.f32.partialorder %v428, 0.0
      %vm493 = vcmp.gt.f32.partialorder %v429, 0.0
      %vm494 = vcmp.gt.f32.partialorder %v430, 0.0
      %vm495 = vcmp.gt.f32.partialorder %v431, 0.0
      %vm496 = vcmp.gt.f32.partialorder %v432, 0.0
      %vm497 = vcmp.gt.f32.partialorder %v433, 0.0
      %vm498 = vcmp.gt.f32.partialorder %v434, 0.0
      %vm499 = vcmp.gt.f32.partialorder %v435, 0.0
      %vm500 = vcmp.gt.f32.partialorder %v436, 0.0
      %vm501 = vcmp.gt.f32.partialorder %v437, 0.0
      %v502 = vmul.f32 %v374, 0.1
      %v503 = vmul.f32 %v375, 0.1
      %v504 = vmul.f32 %v376, 0.1
      %v505 = vmul.f32 %v377, 0.1
      %v506 = vmul.f32 %v378, 0.1
      %v507 = vmul.f32 %v379, 0.1
      %v508 = vmul.f32 %v380, 0.1
      %v509 = vmul.f32 %v381, 0.1
      %v510 = vmul.f32 %v382, 0.1
      %v511 = vmul.f32 %v383, 0.1
      %v512 = vmul.f32 %v384, 0.1
      %v513 = vmul.f32 %v385, 0.1
      %v514 = vmul.f32 %v386, 0.1
      %v515 = vmul.f32 %v387, 0.1
      %v516 = vmul.f32 %v388, 0.1
      %v517 = vmul.f32 %v389, 0.1
      %v518 = vmul.f32 %v390, 0.1
      %v519 = vmul.f32 %v391, 0.1
      %v520 = vmul.f32 %v392, 0.1
      %v521 = vmul.f32 %v393, 0.1
      %v522 = vmul.f32 %v394, 0.1
      %v523 = vmul.f32 %v395, 0.1
      %v524 = vmul.f32 %v396, 0.1
      %v525 = vmul.f32 %v397, 0.1
      %v526 = vmul.f32 %v398, 0.1
      %v527 = vmul.f32 %v399, 0.1
      %v528 = vmul.f32 %v400, 0.1
      %v529 = vmul.f32 %v401, 0.1
      %v530 = vmul.f32 %v402, 0.1
      %v531 = vmul.f32 %v403, 0.1
      %v532 = vmul.f32 %v404, 0.1
      %v533 = vmul.f32 %v405, 0.1
      %v534 = vmul.f32 %v406, 0.1
      %v535 = vmul.f32 %v407, 0.1
      %v536 = vmul.f32 %v408, 0.1
      %v537 = vmul.f32 %v409, 0.1
      %v538 = vmul.f32 %v410, 0.1
      %v539 = vmul.f32 %v411, 0.1
      %v540 = vmul.f32 %v412, 0.1
      %v541 = vmul.f32 %v413, 0.1
      %v542 = vmul.f32 %v414, 0.1
      %v543 = vmul.f32 %v415, 0.1
      %v544 = vmul.f32 %v416, 0.1
      %v545 = vmul.f32 %v417, 0.1
      %v546 = vmul.f32 %v418, 0.1
      %v547 = vmul.f32 %v419, 0.1
      %v548 = vmul.f32 %v420, 0.1
      %v549 = vmul.f32 %v421, 0.1
      %v550 = vmul.f32 %v422, 0.1
      %v551 = vmul.f32 %v423, 0.1
      %v552 = vmul.f32 %v424, 0.1
      %v553 = vmul.f32 %v425, 0.1
      %v554 = vmul.f32 %v426, 0.1
      %v555 = vmul.f32 %v427, 0.1
      %v556 = vmul.f32 %v428, 0.1
      %v557 = vmul.f32 %v429, 0.1
      %v558 = vmul.f32 %v430, 0.1
      %v559 = vmul.f32 %v431, 0.1
      %v560 = vmul.f32 %v432, 0.1
      %v561 = vmul.f32 %v433, 0.1
      %v562 = vmul.f32 %v434, 0.1
      %v563 = vmul.f32 %v435, 0.1
      %v564 = vmul.f32 %v436, 0.1
      %v565 = vmul.f32 %v437, 0.1
      %v566 = vsel %vm438, %v374, %v502
      %v567 = vsel %vm439, %v375, %v503
      %v568 = vsel %vm440, %v376, %v504
      %v569 = vsel %vm441, %v377, %v505
      %v570 = vsel %vm442, %v378, %v506
      %v571 = vsel %vm443, %v379, %v507
      %v572 = vsel %vm444, %v380, %v508
      %v573 = vsel %vm445, %v381, %v509
      %v574 = vsel %vm446, %v382, %v510
      %v575 = vsel %vm447, %v383, %v511
      %v576 = vsel %vm448, %v384, %v512
      %v577 = vsel %vm449, %v385, %v513
      %v578 = vsel %vm450, %v386, %v514
      %v579 = vsel %vm451, %v387, %v515
      %v580 = vsel %vm452, %v388, %v516
      %v581 = vsel %vm453, %v389, %v517
      %v582 = vsel %vm454, %v390, %v518
      %v583 = vsel %vm455, %v391, %v519
      %v584 = vsel %vm456, %v392, %v520
      %v585 = vsel %vm457, %v393, %v521
      %v586 = vsel %vm458, %v394, %v522
      %v587 = vsel %vm459, %v395, %v523
      %v588 = vsel %vm460, %v396, %v524
      %v589 = vsel %vm461, %v397, %v525
      %v590 = vsel %vm462, %v398, %v526
      %v591 = vsel %vm463, %v399, %v527
      %v592 = vsel %vm464, %v400, %v528
      %v593 = vsel %vm465, %v401, %v529
      %v594 = vsel %vm466, %v402, %v530
      %v595 = vsel %vm467, %v403, %v531
      %v596 = vsel %vm468, %v404, %v532
      %v597 = vsel %vm469, %v405, %v533
      %v598 = vsel %vm470, %v406, %v534
      %v599 = vsel %vm471, %v407, %v535
      %v600 = vsel %vm472, %v408, %v536
      %v601 = vsel %vm473, %v409, %v537
      %v602 = vsel %vm474, %v410, %v538
      %v603 = vsel %vm475, %v411, %v539
      %v604 = vsel %vm476, %v412, %v540
      %v605 = vsel %vm477, %v413, %v541
      %v606 = vsel %vm478, %v414, %v542
      %v607 = vsel %vm479, %v415, %v543
      %v608 = vsel %vm480, %v416, %v544
      %v609 = vsel %vm481, %v417, %v545
      %v610 = vsel %vm482, %v418, %v546
      %v611 = vsel %vm483, %v419, %v547
      %v612 = vsel %vm484, %v420, %v548
      %v613 = vsel %vm485, %v421, %v549
      %v614 = vsel %vm486, %v422, %v550
      %v615 = vsel %vm487, %v423, %v551
      %v616 = vsel %vm488, %v424, %v552
      %v617 = vsel %vm489, %v425, %v553
      %v618 = vsel %vm490, %v426, %v554
      %v619 = vsel %vm491, %v427, %v555
      %v620 = vsel %vm492, %v428, %v556
      %v621 = vsel %vm493, %v429, %v557
      %v622 = vsel %vm494, %v430, %v558
      %v623 = vsel %vm495, %v431, %v559
      %v624 = vsel %vm496, %v432, %v560
      %v625 = vsel %vm497, %v433, %v561
      %v626 = vsel %vm498, %v434, %v562
      %v627 = vsel %vm499, %v435, %v563
      %v628 = vsel %vm500, %v436, %v564
      %v629 = vsel %vm501, %v437, %v565
      %v630 = vpack.c.bf16 %v566, %v566
      %v631 = vpack.c.bf16 %v567, %v567
      %v632 = vpack.c.bf16 %v568, %v568
      %v633 = vpack.c.bf16 %v569, %v569
      %v634 = vpack.c.bf16 %v570, %v570
      %v635 = vpack.c.bf16 %v571, %v571
      %v636 = vpack.c.bf16 %v572, %v572
      %v637 = vpack.c.bf16 %v573, %v573
      %v638 = vpack.c.bf16 %v574, %v574
      %v639 = vpack.c.bf16 %v575, %v575
      %v640 = vpack.c.bf16 %v576, %v576
      %v641 = vpack.c.bf16 %v577, %v577
      %v642 = vpack.c.bf16 %v578, %v578
      %v643 = vpack.c.bf16 %v579, %v579
      %v644 = vpack.c.bf16 %v580, %v580
      %v645 = vpack.c.bf16 %v581, %v581
      %v646 = vpack.c.bf16 %v582, %v582
      %v647 = vpack.c.bf16 %v583, %v583
      %v648 = vpack.c.bf16 %v584, %v584
      %v649 = vpack.c.bf16 %v585, %v585
      %v650 = vpack.c.bf16 %v586, %v586
      %v651 = vpack.c.bf16 %v587, %v587
      %v652 = vpack.c.bf16 %v588, %v588
      %v653 = vpack.c.bf16 %v589, %v589
      %v654 = vpack.c.bf16 %v590, %v590
      %v655 = vpack.c.bf16 %v591, %v591
      %v656 = vpack.c.bf16 %v592, %v592
      %v657 = vpack.c.bf16 %v593, %v593
      %v658 = vpack.c.bf16 %v594, %v594
      %v659 = vpack.c.bf16 %v595, %v595
      %v660 = vpack.c.bf16 %v596, %v596
      %v661 = vpack.c.bf16 %v597, %v597
      %v662 = vpack.c.bf16 %v598, %v598
      %v663 = vpack.c.bf16 %v599, %v599
      %v664 = vpack.c.bf16 %v600, %v600
      %v665 = vpack.c.bf16 %v601, %v601
      %v666 = vpack.c.bf16 %v602, %v602
      %v667 = vpack.c.bf16 %v603, %v603
      %v668 = vpack.c.bf16 %v604, %v604
      %v669 = vpack.c.bf16 %v605, %v605
      %v670 = vpack.c.bf16 %v606, %v606
      %v671 = vpack.c.bf16 %v607, %v607
      %v672 = vpack.c.bf16 %v608, %v608
      %v673 = vpack.c.bf16 %v609, %v609
      %v674 = vpack.c.bf16 %v610, %v610
      %v675 = vpack.c.bf16 %v611, %v611
      %v676 = vpack.c.bf16 %v612, %v612
      %v677 = vpack.c.bf16 %v613, %v613
      %v678 = vpack.c.bf16 %v614, %v614
      %v679 = vpack.c.bf16 %v615, %v615
      %v680 = vpack.c.bf16 %v616, %v616
      %v681 = vpack.c.bf16 %v617, %v617
      %v682 = vpack.c.bf16 %v618, %v618
      %v683 = vpack.c.bf16 %v619, %v619
      %v684 = vpack.c.bf16 %v620, %v620
      %v685 = vpack.c.bf16 %v621, %v621
      %v686 = vpack.c.bf16 %v622, %v622
      %v687 = vpack.c.bf16 %v623, %v623
      %v688 = vpack.c.bf16 %v624, %v624
      %v689 = vpack.c.bf16 %v625, %v625
      %v690 = vpack.c.bf16 %v626, %v626
      %v691 = vpack.c.bf16 %v627, %v627
      %v692 = vpack.c.bf16 %v628, %v628
      %v693 = vpack.c.bf16 %v629, %v629
      %694 = vst [vmem:[%s172] sm:$0xf] %v630
      %695 = vst [vmem:[%s172 + $0x4] sm:$0xf] %v631
      %696 = vst [vmem:[%s172 + $0x8] sm:$0xf] %v632
      %697 = vst [vmem:[%s172 + $0xc] sm:$0xf] %v633
      %698 = vst [vmem:[%s172 + $0x10] sm:$0xf] %v634
      %699 = vst [vmem:[%s172 + $0x14] sm:$0xf] %v635
      %700 = vst [vmem:[%s172 + $0x18] sm:$0xf] %v636
      %701 = vst [vmem:[%s172 + $0x1c] sm:$0xf] %v637
      %702 = vst [vmem:[%s172 + $0x20] sm:$0xf] %v638
      %703 = vst [vmem:[%s172 + $0x24] sm:$0xf] %v639
      %704 = vst [vmem:[%s172 + $0x28] sm:$0xf] %v640
      %705 = vst [vmem:[%s172 + $0x2c] sm:$0xf] %v641
      %706 = vst [vmem:[%s172 + $0x30] sm:$0xf] %v642
      %707 = vst [vmem:[%s172 + $0x34] sm:$0xf] %v643
      %708 = vst [vmem:[%s172 + $0x38] sm:$0xf] %v644
      %709 = vst [vmem:[%s172 + $0x3c] sm:$0xf] %v645
      %710 = vst [vmem:[%s172 + $0x40] sm:$0xf] %v646
      %711 = vst [vmem:[%s172 + $0x44] sm:$0xf] %v647
      %712 = vst [vmem:[%s172 + $0x48] sm:$0xf] %v648
      %713 = vst [vmem:[%s172 + $0x4c] sm:$0xf] %v649
      %714 = vst [vmem:[%s172 + $0x50] sm:$0xf] %v650
      %715 = vst [vmem:[%s172 + $0x54] sm:$0xf] %v651
      %716 = vst [vmem:[%s172 + $0x58] sm:$0xf] %v652
      %717 = vst [vmem:[%s172 + $0x5c] sm:$0xf] %v653
      %718 = vst [vmem:[%s172 + $0x60] sm:$0xf] %v654
      %719 = vst [vmem:[%s172 + $0x64] sm:$0xf] %v655
      %720 = vst [vmem:[%s172 + $0x68] sm:$0xf] %v656
      %721 = vst [vmem:[%s172 + $0x6c] sm:$0xf] %v657
      %722 = vst [vmem:[%s172 + $0x70] sm:$0xf] %v658
      %723 = vst [vmem:[%s172 + $0x74] sm:$0xf] %v659
      %724 = vst [vmem:[%s172 + $0x78] sm:$0xf] %v660
      %725 = vst [vmem:[%s172 + $0x7c] sm:$0xf] %v661
      %726 = vst [vmem:[%s172 + $0x80] sm:$0xf] %v662
      %727 = vst [vmem:[%s172 + $0x84] sm:$0xf] %v663
      %728 = vst [vmem:[%s172 + $0x88] sm:$0xf] %v664
      %729 = vst [vmem:[%s172 + $0x8c] sm:$0xf] %v665
      %730 = vst [vmem:[%s172 + $0x90] sm:$0xf] %v666
      %731 = vst [vmem:[%s172 + $0x94] sm:$0xf] %v667
      %732 = vst [vmem:[%s172 + $0x98] sm:$0xf] %v668
      %733 = vst [vmem:[%s172 + $0x9c] sm:$0xf] %v669
      %734 = vst [vmem:[%s172 + $0xa0] sm:$0xf] %v670
      %735 = vst [vmem:[%s172 + $0xa4] sm:$0xf] %v671
      %736 = vst [vmem:[%s172 + $0xa8] sm:$0xf] %v672
      %737 = vst [vmem:[%s172 + $0xac] sm:$0xf] %v673
      %738 = vst [vmem:[%s172 + $0xb0] sm:$0xf] %v674
      %739 = vst [vmem:[%s172 + $0xb4] sm:$0xf] %v675
      %740 = vst [vmem:[%s172 + $0xb8] sm:$0xf] %v676
      %741 = vst [vmem:[%s172 + $0xbc] sm:$0xf] %v677
      %742 = vst [vmem:[%s172 + $0xc0] sm:$0xf] %v678
      %743 = vst [vmem:[%s172 + $0xc4] sm:$0xf] %v679
      %744 = vst [vmem:[%s172 + $0xc8] sm:$0xf] %v680
      %745 = vst [vmem:[%s172 + $0xcc] sm:$0xf] %v681
      %746 = vst [vmem:[%s172 + $0xd0] sm:$0xf] %v682
      %747 = vst [vmem:[%s172 + $0xd4] sm:$0xf] %v683
      %748 = vst [vmem:[%s172 + $0xd8] sm:$0xf] %v684
      %749 = vst [vmem:[%s172 + $0xdc] sm:$0xf] %v685
      %750 = vst [vmem:[%s172 + $0xe0] sm:$0xf] %v686
      %751 = vst [vmem:[%s172 + $0xe4] sm:$0xf] %v687
      %752 = vst [vmem:[%s172 + $0xe8] sm:$0xf] %v688
      %753 = vst [vmem:[%s172 + $0xec] sm:$0xf] %v689
      %754 = vst [vmem:[%s172 + $0xf0] sm:$0xf] %v690
      %755 = vst [vmem:[%s172 + $0xf4] sm:$0xf] %v691
      %756 = vst [vmem:[%s172 + $0xf8] sm:$0xf] %v692
      %757 = vst [vmem:[%s172 + $0xfc] sm:$0xf] %v693
      %s758 = smul.u32 64, %s14
      %p759 = scmp.lt.s32.totalorder %s758, 255
      %s760 = scalar_select %p759, %s758, 255
      %s761 = smul.addr %s760, 4
      %s762 = scalar_lea.vmem %s3, %s761
      // Predicated region
      $region33: #{darknet10_forward.20} parent=31 // pred_check
        %p763 = pneg %p100
      $region34: #{darknet10_forward.20} parent=31 // pred_check_branch
        %765 = sbr.rel (%p763) target = $region36
      $region35: #{darknet10_forward.20} parent=31 // pred_region
        %s766 = smul.u32 64, %s14
      $region36: #{darknet10_forward.20} parent=31 // pred_fallthru
        _
    $region32: #{darknet10_forward.20} parent=5 // pred_fallthru
      _
    %p767 = scmp.le.s32.totalorder 2, %s9
    // Predicated region
    $region37: #{darknet10_forward.20} parent=5 // pred_check
      %p768 = pneg %p767
    $region38: #{darknet10_forward.20} parent=5 // pred_check_branch
      %770 = sbr.rel (%p768) target = $region40
    $region39: #{darknet10_forward.20} parent=5 // pred_region
      %s771 = ssub.s32 %s9, 2
      // Predicated region
      $region41: #{darknet10_forward.20} parent=39 // pred_check
        %p772 = pneg %p106
      $region42: #{darknet10_forward.20} parent=39 // pred_check_branch
        %774 = sbr.rel (%p772) target = $region44
      $region43: #{darknet10_forward.20} parent=39 // pred_region
        %s775 = smul.u32 64, %s15
        %p776 = scmp.lt.s32.totalorder %s775, 255
        %s777 = scalar_select %p776, %s775, 255
        %s778 = smul.addr %s777, 4
        %s779 = scalar_lea.vmem %s3, %s778
      $region44: #{darknet10_forward.20} parent=39 // pred_fallthru
        _
    $region40: #{darknet10_forward.20} parent=5 // pred_fallthru
      _
  $region6: #{darknet10_forward.20} parent=0 // loop_footer
    %s13 = sadd.s32 1, %s9
  $region7: #{darknet10_forward.20} parent=0 // loop_footer_branch
    %8 = sbr.rel target = $region3
  $region8: #{darknet10_forward.20} parent=0 // loop_exit
    _

// kernel: darknet10_forward.19
$region0: #{darknet10_forward.19}
  #allocation0 [shape = 'u32[]', space=smem, size = 0x4, offset = 0x4, fixed_abs, tag = 'smem constant byte address 0x4 - core index']
  #allocation1 [shape = 'u32[72,128]{1,0:T(1,128)}', space=vmem, size = 0x9000, scoped, tag = 'internal scratch']
  %s0 = inlined_call_operand.vmem [shape: bf16[2048,27], index: 0, kind: input, shape index: {}]
  %s1 = inlined_call_operand.vmem [shape: bf16[27,128], index: 1, kind: input, shape index: {}]
  %s2 = inlined_call_operand.vmem [shape: bf16[2048,128], index: 2, kind: output, shape index: {0}]
  %s3 = inlined_call_operand.vmem [shape: f32[4,2,128], index: 3, kind: output, shape index: {1}]
  %4 = xla_tuple %s2, %s3
  %s5 = sld [smem:[#allocation0]]
  $region49: #{darknet10_forward.19} parent=0
    _
  %s7 = ssub.s32 1, %s5
  %s8 = scalar_select 0, %s7, %s5
  loop: start=0, step=1, limit=6
  $region2: #{darknet10_forward.19} parent=0 // loop_pre_header
    _
  $region3: #{darknet10_forward.19} parent=0 // loop_header
    %s10 = sphi 0, %s14
    %p11 = scmp.ge.s32.totalorder %s10, 6
    %s20 = sphi 0, %s22
    %s23 = sphi 0, %s20
    %s24 = sphi 0, %s23
    %s40 = sphi 0, %s24
    %s44 = sphi 0, %s44
    %s46 = sphi 0, %s44
    %s47 = sphi 0, %s46
    %s61 = sphi 0, %s47
    %s67 = sphi 0, %s69
    %s70 = sphi 0, %s67
    %s71 = sphi 0, %s70
    %s87 = sphi 0, %s71
    %s93 = sphi 0, %s95
    %s96 = sphi 0, %s93
    %s97 = sphi 0, %s96
    %s113 = sphi 0, %s97
  $region4: #{darknet10_forward.19} parent=0 // loop_header_branch
    %13 = sbr.rel (%p11) target = $region8
  $region5: #{darknet10_forward.19} parent=0 // loop_body
    %s15 = ssub.s32 %s10, 1
    %s16 = ssub.s32 %s10, 2
    %s17 = sadd.s32 %s10, 1
    %s18 = ssub.s32 %s10, %s17
    %p19 = scmp.eq.s32.totalorder %s18, 0
    %s21 = sadd.s32 %s20, 1
    %s22 = scalar_select %p19, %s20, %s21
    %p25 = pneg %p19
    %p26 = scmp.eq.s32.totalorder %s10, 3
    %p27 = por %p25, %p26
    %p28 = scmp.ne.s32.totalorder %s20, %s23
    %p29 = scmp.eq.s32.totalorder %s10, 0
    %p30 = por %p28, %p29
    %p31 = scmp.ne.s32.totalorder %s20, %s23
    %p32 = scmp.eq.s32.totalorder %s15, 3
    %p33 = por %p31, %p32
    %p34 = scmp.ne.s32.totalorder %s23, %s24
    %p35 = scmp.eq.s32.totalorder %s15, 0
    %p36 = por %p34, %p35
    %p37 = scmp.ne.s32.totalorder %s23, %s24
    %p38 = scmp.eq.s32.totalorder %s16, 3
    %p39 = por %p37, %p38
    %p41 = scmp.ne.s32.totalorder %s24, %s40
    %p42 = scmp.eq.s32.totalorder %s16, 0
    %p43 = por %p41, %p42
    %s45 = sadd.s32 %s44, 1
    %p48 = scmp.eq.s32.totalorder %s10, 3
    %p49 = scmp.ne.s32.totalorder %s44, %s46
    %p50 = scmp.eq.s32.totalorder %s10, 0
    %p51 = por %p49, %p50
    %p52 = scmp.ne.s32.totalorder %s44, %s46
    %p53 = scmp.eq.s32.totalorder %s15, 3
    %p54 = por %p52, %p53
    %p55 = scmp.ne.s32.totalorder %s46, %s47
    %p56 = scmp.eq.s32.totalorder %s15, 0
    %p57 = por %p55, %p56
    %p58 = scmp.ne.s32.totalorder %s46, %s47
    %p59 = scmp.eq.s32.totalorder %s16, 3
    %p60 = por %p58, %p59
    %p62 = scmp.ne.s32.totalorder %s47, %s61
    %p63 = scmp.eq.s32.totalorder %s16, 0
    %p64 = por %p62, %p63
    %s65 = ssub.s32 %s10, %s17
    %p66 = scmp.eq.s32.totalorder %s65, 0
    %s68 = sadd.s32 %s67, 1
    %s69 = scalar_select %p66, %s67, %s68
    %p72 = pneg %p66
    %p73 = scmp.eq.s32.totalorder %s10, 3
    %p74 = por %p72, %p73
    %p75 = scmp.ne.s32.totalorder %s67, %s70
    %p76 = scmp.eq.s32.totalorder %s10, 0
    %p77 = por %p75, %p76
    %p78 = scmp.ne.s32.totalorder %s67, %s70
    %p79 = scmp.eq.s32.totalorder %s15, 3
    %p80 = por %p78, %p79
    %p81 = scmp.ne.s32.totalorder %s70, %s71
    %p82 = scmp.eq.s32.totalorder %s15, 0
    %p83 = por %p81, %p82
    %p84 = scmp.ne.s32.totalorder %s70, %s71
    %p85 = scmp.eq.s32.totalorder %s16, 3
    %p86 = por %p84, %p85
    %p88 = scmp.ne.s32.totalorder %s71, %s87
    %p89 = scmp.eq.s32.totalorder %s16, 0
    %p90 = por %p88, %p89
    %s91 = ssub.s32 %s10, %s17
    %p92 = scmp.eq.s32.totalorder %s91, 0
    %s94 = sadd.s32 %s93, 1
    %s95 = scalar_select %p92, %s93, %s94
    %p98 = pneg %p92
    %p99 = scmp.eq.s32.totalorder %s10, 3
    %p100 = por %p98, %p99
    %p101 = scmp.ne.s32.totalorder %s93, %s96
    %p102 = scmp.eq.s32.totalorder %s10, 0
    %p103 = por %p101, %p102
    %p104 = scmp.ne.s32.totalorder %s93, %s96
    %p105 = scmp.eq.s32.totalorder %s15, 3
    %p106 = por %p104, %p105
    %p107 = scmp.ne.s32.totalorder %s96, %s97
    %p108 = scmp.eq.s32.totalorder %s15, 0
    %p109 = por %p107, %p108
    %p110 = scmp.ne.s32.totalorder %s96, %s97
    %p111 = scmp.eq.s32.totalorder %s16, 3
    %p112 = por %p110, %p111
    %p114 = scmp.ne.s32.totalorder %s97, %s113
    %p115 = scmp.eq.s32.totalorder %s16, 0
    %p116 = por %p114, %p115
    %p117 = scmp.le.s32.totalorder 1, %s10
    %p118 = scmp.lt.s32.totalorder %s10, 5
    %p119 = pnand %p117, %p118
    %p120 = pneg %p119
    // Predicated region
    $region9: #{darknet10_forward.19} parent=5 // pred_check
      _
    $region10: #{darknet10_forward.19} parent=5 // pred_check_branch
      %122 = sbr.rel (%p119) target = $region12
    $region11: #{darknet10_forward.19} parent=5 // pred_region
      %s123 = ssub.s32 %s10, 1
      // Predicated region
      $region13: #{darknet10_forward.19} parent=11 // pred_check
        %p124 = pneg %p57
      $region14: #{darknet10_forward.19} parent=11 // pred_check_branch
        %126 = sbr.rel (%p124) target = $region16
      $region15: #{darknet10_forward.19} parent=11 // pred_region
        _
      $region16: #{darknet10_forward.19} parent=11 // pred_fallthru
        _
    $region12: #{darknet10_forward.19} parent=5 // pred_fallthru
      _
    %p127 = scmp.lt.s32.totalorder %s10, 4
    // Predicated region
    $region17: #{darknet10_forward.19} parent=5 // pred_check
      %p128 = pneg %p127
    $region18: #{darknet10_forward.19} parent=5 // pred_check_branch
      %130 = sbr.rel (%p128) target = $region20
    $region19: #{darknet10_forward.19} parent=5 // pred_region
      // Predicated region
      $region21: #{darknet10_forward.19} parent=19 // pred_check
        %p131 = pneg %p30
      $region22: #{darknet10_forward.19} parent=19 // pred_check_branch
        %133 = sbr.rel (%p131) target = $region24
      $region23: #{darknet10_forward.19} parent=19 // pred_region
        %s134 = smul.u32 64, %s10
        %p135 = scmp.lt.s32.totalorder %s134, 255
        %s136 = scalar_select %p135, %s134, 255
        %s137 = smul.addr %s136, 4
        %s138 = scalar_lea.vmem %s0, %s137
        %s139 = smul.u32 64, %s10
      $region24: #{darknet10_forward.19} parent=19 // pred_fallthru
        _
    $region20: #{darknet10_forward.19} parent=5 // pred_fallthru
      _
    %p140 = scmp.le.s32.totalorder 1, %s10
    %p141 = scmp.lt.s32.totalorder %s10, 5
    %p142 = pnand %p140, %p141
    %p143 = pneg %p142
    // Predicated region
    $region25: #{darknet10_forward.19} parent=5 // pred_check
      _
    $region26: #{darknet10_forward.19} parent=5 // pred_check_branch
      %145 = sbr.rel (%p142) target = $region28
    $region27: #{darknet10_forward.19} parent=5 // pred_region
      %s146 = ssub.s32 %s10, 1
      %s147 = smul.u32 64, %s15
      %p148 = scmp.lt.s32.totalorder %s147, 255
      %s149 = scalar_select %p148, %s147, 255
      %s150 = smul.addr %s149, 4
      %s151 = scalar_lea.vmem %s0, %s150
      %p152 = pneg %p36
      %p153 = pneg %p33
      %p154 = pneg %p57
      %p155 = pneg %p54
      %p156 = pneg %p83
      %p157 = pneg %p80
      %s158 = smul.u32 64, %s15
      %p159 = scmp.lt.s32.totalorder %s158, 255
      %s160 = scalar_select %p159, %s158, 255
      %s161 = smul.addr %s160, 4
      %s162 = scalar_lea.vmem %s2, %s161
      %p163 = pneg %p109
      %p164 = pneg %p106
      %p165 = scmp.lt.s32.totalorder %s15, 3
      %s166 = scalar_select %p165, %s15, 3
      %s167 = smul.addr %s166, 2
      %s168 = scalar_lea.vmem %s3, %s167
      %s169 = smul.u32 64, %s15
      %p170 = scmp.lt.s32.totalorder %s169, 255
      %s171 = scalar_select %p170, %s169, 255
      %s172 = smul.addr %s171, 4
      %s173 = scalar_lea.vmem %s0, %s172
      %s174 = smul.u32 64, %s15
      %s175 = smul.u32 64, %s15
      %p176 = scmp.lt.s32.totalorder %s175, 255
      %s177 = scalar_select %p176, %s175, 255
      %s178 = smul.addr %s177, 4
      %s179 = scalar_lea.vmem %s2, %s178
      %s180 = smul.u32 64, %s15
      %p181 = scmp.lt.s32.totalorder %s15, 3
      %s182 = scalar_select %p181, %s15, 3
      %s183 = smul.addr %s182, 2
      %s184 = scalar_lea.vmem %s3, %s183
      %v186 = vld [vmem:[%s173] sm:$0xf]
      %v187 = vld [vmem:[%s173 + $0x4] sm:$0xf]
      %v188 = vld [vmem:[%s173 + $0x8] sm:$0xf]
      %v189 = vld [vmem:[%s173 + $0xc] sm:$0xf]
      %v190 = vld [vmem:[%s173 + $0x10] sm:$0xf]
      %v191 = vld [vmem:[%s173 + $0x14] sm:$0xf]
      %v192 = vld [vmem:[%s173 + $0x18] sm:$0xf]
      %v193 = vld [vmem:[%s173 + $0x1c] sm:$0xf]
      %v194 = vld [vmem:[%s173 + $0x20] sm:$0xf]
      %v195 = vld [vmem:[%s173 + $0x24] sm:$0xf]
      %v196 = vld [vmem:[%s173 + $0x28] sm:$0xf]
      %v197 = vld [vmem:[%s173 + $0x2c] sm:$0xf]
      %v198 = vld [vmem:[%s173 + $0x30] sm:$0xf]
      %v199 = vld [vmem:[%s173 + $0x34] sm:$0xf]
      %v200 = vld [vmem:[%s173 + $0x38] sm:$0xf]
      %v201 = vld [vmem:[%s173 + $0x3c] sm:$0xf]
      %v202 = vld [vmem:[%s173 + $0x40] sm:$0xf]
      %v203 = vld [vmem:[%s173 + $0x44] sm:$0xf]
      %v204 = vld [vmem:[%s173 + $0x48] sm:$0xf]
      %v205 = vld [vmem:[%s173 + $0x4c] sm:$0xf]
      %v206 = vld [vmem:[%s173 + $0x50] sm:$0xf]
      %v207 = vld [vmem:[%s173 + $0x54] sm:$0xf]
      %v208 = vld [vmem:[%s173 + $0x58] sm:$0xf]
      %v209 = vld [vmem:[%s173 + $0x5c] sm:$0xf]
      %v210 = vld [vmem:[%s173 + $0x60] sm:$0xf]
      %v211 = vld [vmem:[%s173 + $0x64] sm:$0xf]
      %v212 = vld [vmem:[%s173 + $0x68] sm:$0xf]
      %v213 = vld [vmem:[%s173 + $0x6c] sm:$0xf]
      %v214 = vld [vmem:[%s173 + $0x70] sm:$0xf]
      %v215 = vld [vmem:[%s173 + $0x74] sm:$0xf]
      %v216 = vld [vmem:[%s173 + $0x78] sm:$0xf]
      %v217 = vld [vmem:[%s173 + $0x7c] sm:$0xf]
      %v218 = vld [vmem:[%s173 + $0x80] sm:$0xf]
      %v219 = vld [vmem:[%s173 + $0x84] sm:$0xf]
      %v220 = vld [vmem:[%s173 + $0x88] sm:$0xf]
      %v221 = vld [vmem:[%s173 + $0x8c] sm:$0xf]
      %v222 = vld [vmem:[%s173 + $0x90] sm:$0xf]
      %v223 = vld [vmem:[%s173 + $0x94] sm:$0xf]
      %v224 = vld [vmem:[%s173 + $0x98] sm:$0xf]
      %v225 = vld [vmem:[%s173 + $0x9c] sm:$0xf]
      %v226 = vld [vmem:[%s173 + $0xa0] sm:$0xf]
      %v227 = vld [vmem:[%s173 + $0xa4] sm:$0xf]
      %v228 = vld [vmem:[%s173 + $0xa8] sm:$0xf]
      %v229 = vld [vmem:[%s173 + $0xac] sm:$0xf]
      %v230 = vld [vmem:[%s173 + $0xb0] sm:$0xf]
      %v231 = vld [vmem:[%s173 + $0xb4] sm:$0xf]
      %v232 = vld [vmem:[%s173 + $0xb8] sm:$0xf]
      %v233 = vld [vmem:[%s173 + $0xbc] sm:$0xf]
      %v234 = vld [vmem:[%s173 + $0xc0] sm:$0xf]
      %v235 = vld [vmem:[%s173 + $0xc4] sm:$0xf]
      %v236 = vld [vmem:[%s173 + $0xc8] sm:$0xf]
      %v237 = vld [vmem:[%s173 + $0xcc] sm:$0xf]
      %v238 = vld [vmem:[%s173 + $0xd0] sm:$0xf]
      %v239 = vld [vmem:[%s173 + $0xd4] sm:$0xf]
      %v240 = vld [vmem:[%s173 + $0xd8] sm:$0xf]
      %v241 = vld [vmem:[%s173 + $0xdc] sm:$0xf]
      %v242 = vld [vmem:[%s173 + $0xe0] sm:$0xf]
      %v243 = vld [vmem:[%s173 + $0xe4] sm:$0xf]
      %v244 = vld [vmem:[%s173 + $0xe8] sm:$0xf]
      %v245 = vld [vmem:[%s173 + $0xec] sm:$0xf]
      %v246 = vld [vmem:[%s173 + $0xf0] sm:$0xf]
      %v247 = vld [vmem:[%s173 + $0xf4] sm:$0xf]
      %v248 = vld [vmem:[%s173 + $0xf8] sm:$0xf]
      %v249 = vld [vmem:[%s173 + $0xfc] sm:$0xf]
      %v250 = vld [vmem:[%s1] sm:$0xf]
      %v251 = vld [vmem:[%s1 + $0x4] sm:$0xf]
      %v252 = vld [vmem:[%s1 + $0x8] sm:$0xf]
      %v253 = vld [vmem:[%s1 + $0xc] sm:$0x3]
      %v318 = vunpack.c.l.b16 %v186
      %v319 = vunpack.c.l.b16 %v187
      %v320 = vunpack.c.l.b16 %v188
      %v321 = vunpack.c.l.b16 %v189
      %v322 = vunpack.c.l.b16 %v190
      %v323 = vunpack.c.l.b16 %v191
      %v324 = vunpack.c.l.b16 %v192
      %v325 = vunpack.c.l.b16 %v193
      %v326 = vunpack.c.l.b16 %v194
      %v327 = vunpack.c.l.b16 %v195
      %v328 = vunpack.c.l.b16 %v196
      %v329 = vunpack.c.l.b16 %v197
      %v330 = vunpack.c.l.b16 %v198
      %v331 = vunpack.c.l.b16 %v199
      %v332 = vunpack.c.l.b16 %v200
      %v333 = vunpack.c.l.b16 %v201
      %v334 = vunpack.c.l.b16 %v202
      %v335 = vunpack.c.l.b16 %v203
      %v336 = vunpack.c.l.b16 %v204
      %v337 = vunpack.c.l.b16 %v205
      %v338 = vunpack.c.l.b16 %v206
      %v339 = vunpack.c.l.b16 %v207
      %v340 = vunpack.c.l.b16 %v208
      %v341 = vunpack.c.l.b16 %v209
      %v342 = vunpack.c.l.b16 %v210
      %v343 = vunpack.c.l.b16 %v211
      %v344 = vunpack.c.l.b16 %v212
      %v345 = vunpack.c.l.b16 %v213
      %v346 = vunpack.c.l.b16 %v214
      %v347 = vunpack.c.l.b16 %v215
      %v348 = vunpack.c.l.b16 %v216
      %v349 = vunpack.c.l.b16 %v217
      %v350 = vunpack.c.l.b16 %v218
      %v351 = vunpack.c.l.b16 %v219
      %v352 = vunpack.c.l.b16 %v220
      %v353 = vunpack.c.l.b16 %v221
      %v354 = vunpack.c.l.b16 %v222
      %v355 = vunpack.c.l.b16 %v223
      %v356 = vunpack.c.l.b16 %v224
      %v357 = vunpack.c.l.b16 %v225
      %v358 = vunpack.c.l.b16 %v226
      %v359 = vunpack.c.l.b16 %v227
      %v360 = vunpack.c.l.b16 %v228
      %v361 = vunpack.c.l.b16 %v229
      %v362 = vunpack.c.l.b16 %v230
      %v363 = vunpack.c.l.b16 %v231
      %v364 = vunpack.c.l.b16 %v232
      %v365 = vunpack.c.l.b16 %v233
      %v366 = vunpack.c.l.b16 %v234
      %v367 = vunpack.c.l.b16 %v235
      %v368 = vunpack.c.l.b16 %v236
      %v369 = vunpack.c.l.b16 %v237
      %v370 = vunpack.c.l.b16 %v238
      %v371 = vunpack.c.l.b16 %v239
      %v372 = vunpack.c.l.b16 %v240
      %v373 = vunpack.c.l.b16 %v241
      %v374 = vunpack.c.l.b16 %v242
      %v375 = vunpack.c.l.b16 %v243
      %v376 = vunpack.c.l.b16 %v244
      %v377 = vunpack.c.l.b16 %v245
      %v378 = vunpack.c.l.b16 %v246
      %v379 = vunpack.c.l.b16 %v247
      %v380 = vunpack.c.l.b16 %v248
      %v381 = vunpack.c.l.b16 %v249
      %v382 = vpack.c.b16 %v319, %v318
      %v383 = vpack.c.b16 %v321, %v320
      %v384 = vpack.c.b16 %v323, %v322
      %v385 = vpack.c.b16 %v325, %v324
      %v386 = vpack.c.b16 %v327, %v326
      %v387 = vpack.c.b16 %v329, %v328
      %v388 = vpack.c.b16 %v331, %v330
      %v389 = vpack.c.b16 %v333, %v332
      %v390 = vpack.c.b16 %v335, %v334
      %v391 = vpack.c.b16 %v337, %v336
      %v392 = vpack.c.b16 %v339, %v338
      %v393 = vpack.c.b16 %v341, %v340
      %v394 = vpack.c.b16 %v343, %v342
      %v395 = vpack.c.b16 %v345, %v344
      %v396 = vpack.c.b16 %v347, %v346
      %v397 = vpack.c.b16 %v349, %v348
      %v398 = vpack.c.b16 %v351, %v350
      %v399 = vpack.c.b16 %v353, %v352
      %v400 = vpack.c.b16 %v355, %v354
      %v401 = vpack.c.b16 %v357, %v356
      %v402 = vpack.c.b16 %v359, %v358
      %v403 = vpack.c.b16 %v361, %v360
      %v404 = vpack.c.b16 %v363, %v362
      %v405 = vpack.c.b16 %v365, %v364
      %v406 = vpack.c.b16 %v367, %v366
      %v407 = vpack.c.b16 %v369, %v368
      %v408 = vpack.c.b16 %v371, %v370
      %v409 = vpack.c.b16 %v373, %v372
      %v410 = vpack.c.b16 %v375, %v374
      %v411 = vpack.c.b16 %v377, %v376
      %v412 = vpack.c.b16 %v379, %v378
      %v413 = vpack.c.b16 %v381, %v380
      %v418 = vunpack.c.l.b16 %v250
      %v419 = vunpack.c.l.b16 %v251
      %v420 = vunpack.c.l.b16 %v252
      %v421 = vunpack.c.l.b16 %v253
      %v422 = vpack.c.b16 %v419, %v418
      %v423 = vpack.c.b16 %v421, %v420
      %vm425 = vcmask 220160
      %v427 = vsel %vm425, %v382, 0
      %v430 = vsel %vm425, %v383, 0
      %v433 = vsel %vm425, %v384, 0
      %v436 = vsel %vm425, %v385, 0
      %v439 = vsel %vm425, %v386, 0
      %v442 = vsel %vm425, %v387, 0
      %v445 = vsel %vm425, %v388, 0
      %v448 = vsel %vm425, %v389, 0
      %v451 = vsel %vm425, %v390, 0
      %v454 = vsel %vm425, %v391, 0
      %v457 = vsel %vm425, %v392, 0
      %v460 = vsel %vm425, %v393, 0
      %v463 = vsel %vm425, %v394, 0
      %v466 = vsel %vm425, %v395, 0
      %v469 = vsel %vm425, %v396, 0
      %v472 = vsel %vm425, %v397, 0
      %v475 = vsel %vm425, %v398, 0
      %v478 = vsel %vm425, %v399, 0
      %v481 = vsel %vm425, %v400, 0
      %v484 = vsel %vm425, %v401, 0
      %v487 = vsel %vm425, %v402, 0
      %v490 = vsel %vm425, %v403, 0
      %v493 = vsel %vm425, %v404, 0
      %v496 = vsel %vm425, %v405, 0
      %v499 = vsel %vm425, %v406, 0
      %v502 = vsel %vm425, %v407, 0
      %v505 = vsel %vm425, %v408, 0
      %v508 = vsel %vm425, %v409, 0
      %v511 = vsel %vm425, %v410, 0
      %v514 = vsel %vm425, %v411, 0
      %v517 = vsel %vm425, %v412, 0
      %v520 = vsel %vm425, %v413, 0
      %vm522 = vcmask 1044480
      %vm523 = vcmask 1045504
      %v524 = vsel %vm522, 4294967295, 65535
      %v525 = vsel %vm523, %v524, 0
      %v527 = vand.u32 %v423, %v525
      %529 = vmatpush.bf16.msra.mxu0 0
      %530 = vmatpush.bf16.msra.mxu0 0
      %531 = vmatpush.bf16.msra.mxu0 0
      %532 = vmatpush.bf16.msra.mxu0 0
      %533 = vmatpush.bf16.msra.mxu0 0
      %534 = vmatpush.bf16.msra.mxu0 0
      %535 = vmatpush.bf16.msra.mxu0 %v527
      %536 = vmatpush.bf16.msra.mxu0 %v422
      %537 = vmatmul.bf16.gmra.mxu0 %v427
      %v538 = vpop.f32.mrf.mxu0
      %v539 = vadd.f32 0.0, %v538
      %v540 = vpop.f32.mrf.mxu0
      %v541 = vadd.f32 0.0, %v540
      %542 = vmatmul.bf16.gmra.mxu0 %v430
      %v543 = vpop.f32.mrf.mxu0
      %v544 = vadd.f32 0.0, %v543
      %v545 = vpop.f32.mrf.mxu0
      %v546 = vadd.f32 0.0, %v545
      %547 = vmatmul.bf16.gmra.mxu0 %v433
      %v548 = vpop.f32.mrf.mxu0
      %v549 = vadd.f32 0.0, %v548
      %v550 = vpop.f32.mrf.mxu0
      %v551 = vadd.f32 0.0, %v550
      %552 = vmatmul.bf16.gmra.mxu0 %v436
      %v553 = vpop.f32.mrf.mxu0
      %v554 = vadd.f32 0.0, %v553
      %v555 = vpop.f32.mrf.mxu0
      %v556 = vadd.f32 0.0, %v555
      %557 = vmatmul.bf16.gmra.mxu0 %v439
      %v558 = vpop.f32.mrf.mxu0
      %v559 = vadd.f32 0.0, %v558
      %v560 = vpop.f32.mrf.mxu0
      %v561 = vadd.f32 0.0, %v560
      %562 = vmatmul.bf16.gmra.mxu0 %v442
      %v563 = vpop.f32.mrf.mxu0
      %v564 = vadd.f32 0.0, %v563
      %v565 = vpop.f32.mrf.mxu0
      %v566 = vadd.f32 0.0, %v565
      %567 = vmatmul.bf16.gmra.mxu0 %v445
      %v568 = vpop.f32.mrf.mxu0
      %v569 = vadd.f32 0.0, %v568
      %v570 = vpop.f32.mrf.mxu0
      %v571 = vadd.f32 0.0, %v570
      %572 = vmatmul.bf16.gmra.mxu0 %v448
      %v573 = vpop.f32.mrf.mxu0
      %v574 = vadd.f32 0.0, %v573
      %v575 = vpop.f32.mrf.mxu0
      %v576 = vadd.f32 0.0, %v575
      %577 = vmatmul.bf16.gmra.mxu0 %v451
      %v578 = vpop.f32.mrf.mxu0
      %v579 = vadd.f32 0.0, %v578
      %v580 = vpop.f32.mrf.mxu0
      %v581 = vadd.f32 0.0, %v580
      %582 = vmatmul.bf16.gmra.mxu0 %v454
      %v583 = vpop.f32.mrf.mxu0
      %v584 = vadd.f32 0.0, %v583
      %v585 = vpop.f32.mrf.mxu0
      %v586 = vadd.f32 0.0, %v585
      %587 = vmatmul.bf16.gmra.mxu0 %v457
      %v588 = vpop.f32.mrf.mxu0
      %v589 = vadd.f32 0.0, %v588
      %v590 = vpop.f32.mrf.mxu0
      %v591 = vadd.f32 0.0, %v590
      %592 = vmatmul.bf16.gmra.mxu0 %v460
      %v593 = vpop.f32.mrf.mxu0
      %v594 = vadd.f32 0.0, %v593
      %v595 = vpop.f32.mrf.mxu0
      %v596 = vadd.f32 0.0, %v595
      %597 = vmatmul.bf16.gmra.mxu0 %v463
      %v598 = vpop.f32.mrf.mxu0
      %v599 = vadd.f32 0.0, %v598
      %v600 = vpop.f32.mrf.mxu0
      %v601 = vadd.f32 0.0, %v600
      %602 = vmatmul.bf16.gmra.mxu0 %v466
      %v603 = vpop.f32.mrf.mxu0
      %v604 = vadd.f32 0.0, %v603
      %v605 = vpop.f32.mrf.mxu0
      %v606 = vadd.f32 0.0, %v605
      %607 = vmatmul.bf16.gmra.mxu0 %v469
      %v608 = vpop.f32.mrf.mxu0
      %v609 = vadd.f32 0.0, %v608
      %v610 = vpop.f32.mrf.mxu0
      %v611 = vadd.f32 0.0, %v610
      %612 = vmatmul.bf16.gmra.mxu0 %v472
      %v613 = vpop.f32.mrf.mxu0
      %v614 = vadd.f32 0.0, %v613
      %v615 = vpop.f32.mrf.mxu0
      %v616 = vadd.f32 0.0, %v615
      %617 = vmatmul.bf16.gmra.mxu0 %v475
      %v618 = vpop.f32.mrf.mxu0
      %v619 = vadd.f32 0.0, %v618
      %v620 = vpop.f32.mrf.mxu0
      %v621 = vadd.f32 0.0, %v620
      %622 = vmatmul.bf16.gmra.mxu0 %v478
      %v623 = vpop.f32.mrf.mxu0
      %v624 = vadd.f32 0.0, %v623
      %v625 = vpop.f32.mrf.mxu0
      %v626 = vadd.f32 0.0, %v625
      %627 = vmatmul.bf16.gmra.mxu0 %v481
      %v628 = vpop.f32.mrf.mxu0
      %v629 = vadd.f32 0.0, %v628
      %v630 = vpop.f32.mrf.mxu0
      %v631 = vadd.f32 0.0, %v630
      %632 = vmatmul.bf16.gmra.mxu0 %v484
      %v633 = vpop.f32.mrf.mxu0
      %v634 = vadd.f32 0.0, %v633
      %v635 = vpop.f32.mrf.mxu0
      %v636 = vadd.f32 0.0, %v635
      %637 = vmatmul.bf16.gmra.mxu0 %v487
      %v638 = vpop.f32.mrf.mxu0
      %v639 = vadd.f32 0.0, %v638
      %v640 = vpop.f32.mrf.mxu0
      %v641 = vadd.f32 0.0, %v640
      %642 = vmatmul.bf16.gmra.mxu0 %v490
      %v643 = vpop.f32.mrf.mxu0
      %v644 = vadd.f32 0.0, %v643
      %v645 = vpop.f32.mrf.mxu0
      %v646 = vadd.f32 0.0, %v645
      %647 = vmatmul.bf16.gmra.mxu0 %v493
      %v648 = vpop.f32.mrf.mxu0
      %v649 = vadd.f32 0.0, %v648
      %v650 = vpop.f32.mrf.mxu0
      %v651 = vadd.f32 0.0, %v650
      %652 = vmatmul.bf16.gmra.mxu0 %v496
      %v653 = vpop.f32.mrf.mxu0
      %v654 = vadd.f32 0.0, %v653
      %v655 = vpop.f32.mrf.mxu0
      %v656 = vadd.f32 0.0, %v655
      %657 = vmatmul.bf16.gmra.mxu0 %v499
      %v658 = vpop.f32.mrf.mxu0
      %v659 = vadd.f32 0.0, %v658
      %v660 = vpop.f32.mrf.mxu0
      %v661 = vadd.f32 0.0, %v660
      %662 = vmatmul.bf16.gmra.mxu0 %v502
      %v663 = vpop.f32.mrf.mxu0
      %v664 = vadd.f32 0.0, %v663
      %v665 = vpop.f32.mrf.mxu0
      %v666 = vadd.f32 0.0, %v665
      %667 = vmatmul.bf16.gmra.mxu0 %v505
      %v668 = vpop.f32.mrf.mxu0
      %v669 = vadd.f32 0.0, %v668
      %v670 = vpop.f32.mrf.mxu0
      %v671 = vadd.f32 0.0, %v670
      %672 = vmatmul.bf16.gmra.mxu0 %v508
      %v673 = vpop.f32.mrf.mxu0
      %v674 = vadd.f32 0.0, %v673
      %v675 = vpop.f32.mrf.mxu0
      %v676 = vadd.f32 0.0, %v675
      %677 = vmatmul.bf16.gmra.mxu0 %v511
      %v678 = vpop.f32.mrf.mxu0
      %v679 = vadd.f32 0.0, %v678
      %v680 = vpop.f32.mrf.mxu0
      %v681 = vadd.f32 0.0, %v680
      %682 = vmatmul.bf16.gmra.mxu0 %v514
      %v683 = vpop.f32.mrf.mxu0
      %v684 = vadd.f32 0.0, %v683
      %v685 = vpop.f32.mrf.mxu0
      %v686 = vadd.f32 0.0, %v685
      %687 = vmatmul.bf16.gmra.mxu0 %v517
      %v688 = vpop.f32.mrf.mxu0
      %v689 = vadd.f32 0.0, %v688
      %v690 = vpop.f32.mrf.mxu0
      %v691 = vadd.f32 0.0, %v690
      %692 = vmatmul.bf16.gmra.mxu0 %v520
      %v693 = vpop.f32.mrf.mxu0
      %v694 = vadd.f32 0.0, %v693
      %v695 = vpop.f32.mrf.mxu0
      %v696 = vadd.f32 0.0, %v695
      %697 = vdwg.mxu0
      %v698 = vpack.c.bf16 %v539, %v539
      %v699 = vpack.c.bf16 %v541, %v541
      %v700 = vpack.c.bf16 %v544, %v544
      %v701 = vpack.c.bf16 %v546, %v546
      %v702 = vpack.c.bf16 %v549, %v549
      %v703 = vpack.c.bf16 %v551, %v551
      %v704 = vpack.c.bf16 %v554, %v554
      %v705 = vpack.c.bf16 %v556, %v556
      %v706 = vpack.c.bf16 %v559, %v559
      %v707 = vpack.c.bf16 %v561, %v561
      %v708 = vpack.c.bf16 %v564, %v564
      %v709 = vpack.c.bf16 %v566, %v566
      %v710 = vpack.c.bf16 %v569, %v569
      %v711 = vpack.c.bf16 %v571, %v571
      %v712 = vpack.c.bf16 %v574, %v574
      %v713 = vpack.c.bf16 %v576, %v576
      %v714 = vpack.c.bf16 %v579, %v579
      %v715 = vpack.c.bf16 %v581, %v581
      %v716 = vpack.c.bf16 %v584, %v584
      %v717 = vpack.c.bf16 %v586, %v586
      %v718 = vpack.c.bf16 %v589, %v589
      %v719 = vpack.c.bf16 %v591, %v591
      %v720 = vpack.c.bf16 %v594, %v594
      %v721 = vpack.c.bf16 %v596, %v596
      %v722 = vpack.c.bf16 %v599, %v599
      %v723 = vpack.c.bf16 %v601, %v601
      %v724 = vpack.c.bf16 %v604, %v604
      %v725 = vpack.c.bf16 %v606, %v606
      %v726 = vpack.c.bf16 %v609, %v609
      %v727 = vpack.c.bf16 %v611, %v611
      %v728 = vpack.c.bf16 %v614, %v614
      %v729 = vpack.c.bf16 %v616, %v616
      %v730 = vpack.c.bf16 %v619, %v619
      %v731 = vpack.c.bf16 %v621, %v621
      %v732 = vpack.c.bf16 %v624, %v624
      %v733 = vpack.c.bf16 %v626, %v626
      %v734 = vpack.c.bf16 %v629, %v629
      %v735 = vpack.c.bf16 %v631, %v631
      %v736 = vpack.c.bf16 %v634, %v634
      %v737 = vpack.c.bf16 %v636, %v636
      %v738 = vpack.c.bf16 %v639, %v639
      %v739 = vpack.c.bf16 %v641, %v641
      %v740 = vpack.c.bf16 %v644, %v644
      %v741 = vpack.c.bf16 %v646, %v646
      %v742 = vpack.c.bf16 %v649, %v649
      %v743 = vpack.c.bf16 %v651, %v651
      %v744 = vpack.c.bf16 %v654, %v654
      %v745 = vpack.c.bf16 %v656, %v656
      %v746 = vpack.c.bf16 %v659, %v659
      %v747 = vpack.c.bf16 %v661, %v661
      %v748 = vpack.c.bf16 %v664, %v664
      %v749 = vpack.c.bf16 %v666, %v666
      %v750 = vpack.c.bf16 %v669, %v669
      %v751 = vpack.c.bf16 %v671, %v671
      %v752 = vpack.c.bf16 %v674, %v674
      %v753 = vpack.c.bf16 %v676, %v676
      %v754 = vpack.c.bf16 %v679, %v679
      %v755 = vpack.c.bf16 %v681, %v681
      %v756 = vpack.c.bf16 %v684, %v684
      %v757 = vpack.c.bf16 %v686, %v686
      %v758 = vpack.c.bf16 %v689, %v689
      %v759 = vpack.c.bf16 %v691, %v691
      %v760 = vpack.c.bf16 %v694, %v694
      %v761 = vpack.c.bf16 %v696, %v696
      %762 = vst [vmem:[%s179] sm:$0xf] %v698
      %763 = vst [vmem:[%s179 + $0x4] sm:$0xf] %v699
      %764 = vst [vmem:[%s179 + $0x8] sm:$0xf] %v700
      %765 = vst [vmem:[%s179 + $0xc] sm:$0xf] %v701
      %766 = vst [vmem:[%s179 + $0x10] sm:$0xf] %v702
      %767 = vst [vmem:[%s179 + $0x14] sm:$0xf] %v703
      %768 = vst [vmem:[%s179 + $0x18] sm:$0xf] %v704
      %769 = vst [vmem:[%s179 + $0x1c] sm:$0xf] %v705
      %770 = vst [vmem:[%s179 + $0x20] sm:$0xf] %v706
      %771 = vst [vmem:[%s179 + $0x24] sm:$0xf] %v707
      %772 = vst [vmem:[%s179 + $0x28] sm:$0xf] %v708
      %773 = vst [vmem:[%s179 + $0x2c] sm:$0xf] %v709
      %774 = vst [vmem:[%s179 + $0x30] sm:$0xf] %v710
      %775 = vst [vmem:[%s179 + $0x34] sm:$0xf] %v711
      %776 = vst [vmem:[%s179 + $0x38] sm:$0xf] %v712
      %777 = vst [vmem:[%s179 + $0x3c] sm:$0xf] %v713
      %778 = vst [vmem:[%s179 + $0x40] sm:$0xf] %v714
      %779 = vst [vmem:[%s179 + $0x44] sm:$0xf] %v715
      %780 = vst [vmem:[%s179 + $0x48] sm:$0xf] %v716
      %781 = vst [vmem:[%s179 + $0x4c] sm:$0xf] %v717
      %782 = vst [vmem:[%s179 + $0x50] sm:$0xf] %v718
      %783 = vst [vmem:[%s179 + $0x54] sm:$0xf] %v719
      %784 = vst [vmem:[%s179 + $0x58] sm:$0xf] %v720
      %785 = vst [vmem:[%s179 + $0x5c] sm:$0xf] %v721
      %786 = vst [vmem:[%s179 + $0x60] sm:$0xf] %v722
      %787 = vst [vmem:[%s179 + $0x64] sm:$0xf] %v723
      %788 = vst [vmem:[%s179 + $0x68] sm:$0xf] %v724
      %789 = vst [vmem:[%s179 + $0x6c] sm:$0xf] %v725
      %790 = vst [vmem:[%s179 + $0x70] sm:$0xf] %v726
      %791 = vst [vmem:[%s179 + $0x74] sm:$0xf] %v727
      %792 = vst [vmem:[%s179 + $0x78] sm:$0xf] %v728
      %793 = vst [vmem:[%s179 + $0x7c] sm:$0xf] %v729
      %794 = vst [vmem:[%s179 + $0x80] sm:$0xf] %v730
      %795 = vst [vmem:[%s179 + $0x84] sm:$0xf] %v731
      %796 = vst [vmem:[%s179 + $0x88] sm:$0xf] %v732
      %797 = vst [vmem:[%s179 + $0x8c] sm:$0xf] %v733
      %798 = vst [vmem:[%s179 + $0x90] sm:$0xf] %v734
      %799 = vst [vmem:[%s179 + $0x94] sm:$0xf] %v735
      %800 = vst [vmem:[%s179 + $0x98] sm:$0xf] %v736
      %801 = vst [vmem:[%s179 + $0x9c] sm:$0xf] %v737
      %802 = vst [vmem:[%s179 + $0xa0] sm:$0xf] %v738
      %803 = vst [vmem:[%s179 + $0xa4] sm:$0xf] %v739
      %804 = vst [vmem:[%s179 + $0xa8] sm:$0xf] %v740
      %805 = vst [vmem:[%s179 + $0xac] sm:$0xf] %v741
      %806 = vst [vmem:[%s179 + $0xb0] sm:$0xf] %v742
      %807 = vst [vmem:[%s179 + $0xb4] sm:$0xf] %v743
      %808 = vst [vmem:[%s179 + $0xb8] sm:$0xf] %v744
      %809 = vst [vmem:[%s179 + $0xbc] sm:$0xf] %v745
      %810 = vst [vmem:[%s179 + $0xc0] sm:$0xf] %v746
      %811 = vst [vmem:[%s179 + $0xc4] sm:$0xf] %v747
      %812 = vst [vmem:[%s179 + $0xc8] sm:$0xf] %v748
      %813 = vst [vmem:[%s179 + $0xcc] sm:$0xf] %v749
      %814 = vst [vmem:[%s179 + $0xd0] sm:$0xf] %v750
      %815 = vst [vmem:[%s179 + $0xd4] sm:$0xf] %v751
      %816 = vst [vmem:[%s179 + $0xd8] sm:$0xf] %v752
      %817 = vst [vmem:[%s179 + $0xdc] sm:$0xf] %v753
      %818 = vst [vmem:[%s179 + $0xe0] sm:$0xf] %v754
      %819 = vst [vmem:[%s179 + $0xe4] sm:$0xf] %v755
      %820 = vst [vmem:[%s179 + $0xe8] sm:$0xf] %v756
      %821 = vst [vmem:[%s179 + $0xec] sm:$0xf] %v757
      %822 = vst [vmem:[%s179 + $0xf0] sm:$0xf] %v758
      %823 = vst [vmem:[%s179 + $0xf4] sm:$0xf] %v759
      %824 = vst [vmem:[%s179 + $0xf8] sm:$0xf] %v760
      %825 = vst [vmem:[%s179 + $0xfc] sm:$0xf] %v761
      %s826 = smul.u32 %s15, 512
      %v827 = vlaneseq
      %v828 = vshrl.u32 %v827, 7
      %v829 = vadd.s32 %v828, 8
      %v830 = vadd.s32 %v828, 16
      %v831 = vadd.s32 %v828, 24
      %v832 = vadd.s32 %v828, 32
      %v833 = vadd.s32 %v828, 40
      %v834 = vadd.s32 %v828, 48
      %v835 = vadd.s32 %v828, 56
      %v836 = vadd.s32 %v828, 64
      %v837 = vadd.s32 %v828, 72
      %v838 = vadd.s32 %v828, 80
      %v839 = vadd.s32 %v828, 88
      %v840 = vadd.s32 %v828, 96
      %v841 = vadd.s32 %v828, 104
      %v842 = vadd.s32 %v828, 112
      %v843 = vadd.s32 %v828, 120
      %v844 = vadd.s32 %v828, 128
      %v845 = vadd.s32 %v828, 136
      %v846 = vadd.s32 %v828, 144
      %v847 = vadd.s32 %v828, 152
      %v848 = vadd.s32 %v828, 160
      %v849 = vadd.s32 %v828, 168
      %v850 = vadd.s32 %v828, 176
      %v851 = vadd.s32 %v828, 184
      %v852 = vadd.s32 %v828, 192
      %v853 = vadd.s32 %v828, 200
      %v854 = vadd.s32 %v828, 208
      %v855 = vadd.s32 %v828, 216
      %v856 = vadd.s32 %v828, 224
      %v857 = vadd.s32 %v828, 232
      %v858 = vadd.s32 %v828, 240
      %v859 = vadd.s32 %v828, 248
      %v860 = vadd.s32 %v828, 256
      %v861 = vadd.s32 %v828, 264
      %v862 = vadd.s32 %v828, 272
      %v863 = vadd.s32 %v828, 280
      %v864 = vadd.s32 %v828, 288
      %v865 = vadd.s32 %v828, 296
      %v866 = vadd.s32 %v828, 304
      %v867 = vadd.s32 %v828, 312
      %v868 = vadd.s32 %v828, 320
      %v869 = vadd.s32 %v828, 328
      %v870 = vadd.s32 %v828, 336
      %v871 = vadd.s32 %v828, 344
      %v872 = vadd.s32 %v828, 352
      %v873 = vadd.s32 %v828, 360
      %v874 = vadd.s32 %v828, 368
      %v875 = vadd.s32 %v828, 376
      %v876 = vadd.s32 %v828, 384
      %v877 = vadd.s32 %v828, 392
      %v878 = vadd.s32 %v828, 400
      %v879 = vadd.s32 %v828, 408
      %v880 = vadd.s32 %v828, 416
      %v881 = vadd.s32 %v828, 424
      %v882 = vadd.s32 %v828, 432
      %v883 = vadd.s32 %v828, 440
      %v884 = vadd.s32 %v828, 448
      %v885 = vadd.s32 %v828, 456
      %v886 = vadd.s32 %v828, 464
      %v887 = vadd.s32 %v828, 472
      %v888 = vadd.s32 %v828, 480
      %v889 = vadd.s32 %v828, 488
      %v890 = vadd.s32 %v828, 496
      %v891 = vadd.s32 %v828, 504
      %v892 = vstv %s826
      %v893 = vadd.s32 %v828, %v892
      %v894 = vadd.s32 %v829, %v892
      %v895 = vadd.s32 %v830, %v892
      %v896 = vadd.s32 %v831, %v892
      %v897 = vadd.s32 %v832, %v892
      %v898 = vadd.s32 %v833, %v892
      %v899 = vadd.s32 %v834, %v892
      %v900 = vadd.s32 %v835, %v892
      %v901 = vadd.s32 %v836, %v892
      %v902 = vadd.s32 %v837, %v892
      %v903 = vadd.s32 %v838, %v892
      %v904 = vadd.s32 %v839, %v892
      %v905 = vadd.s32 %v840, %v892
      %v906 = vadd.s32 %v841, %v892
      %v907 = vadd.s32 %v842, %v892
      %v908 = vadd.s32 %v843, %v892
      %v909 = vadd.s32 %v844, %v892
      %v910 = vadd.s32 %v845, %v892
      %v911 = vadd.s32 %v846, %v892
      %v912 = vadd.s32 %v847, %v892
      %v913 = vadd.s32 %v848, %v892
      %v914 = vadd.s32 %v849, %v892
      %v915 = vadd.s32 %v850, %v892
      %v916 = vadd.s32 %v851, %v892
      %v917 = vadd.s32 %v852, %v892
      %v918 = vadd.s32 %v853, %v892
      %v919 = vadd.s32 %v854, %v892
      %v920 = vadd.s32 %v855, %v892
      %v921 = vadd.s32 %v856, %v892
      %v922 = vadd.s32 %v857, %v892
      %v923 = vadd.s32 %v858, %v892
      %v924 = vadd.s32 %v859, %v892
      %v925 = vadd.s32 %v860, %v892
      %v926 = vadd.s32 %v861, %v892
      %v927 = vadd.s32 %v862, %v892
      %v928 = vadd.s32 %v863, %v892
      %v929 = vadd.s32 %v864, %v892
      %v930 = vadd.s32 %v865, %v892
      %v931 = vadd.s32 %v866, %v892
      %v932 = vadd.s32 %v867, %v892
      %v933 = vadd.s32 %v868, %v892
      %v934 = vadd.s32 %v869, %v892
      %v935 = vadd.s32 %v870, %v892
      %v936 = vadd.s32 %v871, %v892
      %v937 = vadd.s32 %v872, %v892
      %v938 = vadd.s32 %v873, %v892
      %v939 = vadd.s32 %v874, %v892
      %v940 = vadd.s32 %v875, %v892
      %v941 = vadd.s32 %v876, %v892
      %v942 = vadd.s32 %v877, %v892
      %v943 = vadd.s32 %v878, %v892
      %v944 = vadd.s32 %v879, %v892
      %v945 = vadd.s32 %v880, %v892
      %v946 = vadd.s32 %v881, %v892
      %v947 = vadd.s32 %v882, %v892
      %v948 = vadd.s32 %v883, %v892
      %v949 = vadd.s32 %v884, %v892
      %v950 = vadd.s32 %v885, %v892
      %v951 = vadd.s32 %v886, %v892
      %v952 = vadd.s32 %v887, %v892
      %v953 = vadd.s32 %v888, %v892
      %v954 = vadd.s32 %v889, %v892
      %v955 = vadd.s32 %v890, %v892
      %v956 = vadd.s32 %v891, %v892
      %vm957 = vcmp.lt.s32.totalorder %v893, 2048
      %vm958 = vcmp.lt.s32.totalorder %v894, 2048
      %vm959 = vcmp.lt.s32.totalorder %v895, 2048
      %vm960 = vcmp.lt.s32.totalorder %v896, 2048
      %vm961 = vcmp.lt.s32.totalorder %v897, 2048
      %vm962 = vcmp.lt.s32.totalorder %v898, 2048
      %vm963 = vcmp.lt.s32.totalorder %v899, 2048
      %vm964 = vcmp.lt.s32.totalorder %v900, 2048
      %vm965 = vcmp.lt.s32.totalorder %v901, 2048
      %vm966 = vcmp.lt.s32.totalorder %v902, 2048
      %vm967 = vcmp.lt.s32.totalorder %v903, 2048
      %vm968 = vcmp.lt.s32.totalorder %v904, 2048
      %vm969 = vcmp.lt.s32.totalorder %v905, 2048
      %vm970 = vcmp.lt.s32.totalorder %v906, 2048
      %vm971 = vcmp.lt.s32.totalorder %v907, 2048
      %vm972 = vcmp.lt.s32.totalorder %v908, 2048
      %vm973 = vcmp.lt.s32.totalorder %v909, 2048
      %vm974 = vcmp.lt.s32.totalorder %v910, 2048
      %vm975 = vcmp.lt.s32.totalorder %v911, 2048
      %vm976 = vcmp.lt.s32.totalorder %v912, 2048
      %vm977 = vcmp.lt.s32.totalorder %v913, 2048
      %vm978 = vcmp.lt.s32.totalorder %v914, 2048
      %vm979 = vcmp.lt.s32.totalorder %v915, 2048
      %vm980 = vcmp.lt.s32.totalorder %v916, 2048
      %vm981 = vcmp.lt.s32.totalorder %v917, 2048
      %vm982 = vcmp.lt.s32.totalorder %v918, 2048
      %vm983 = vcmp.lt.s32.totalorder %v919, 2048
      %vm984 = vcmp.lt.s32.totalorder %v920, 2048
      %vm985 = vcmp.lt.s32.totalorder %v921, 2048
      %vm986 = vcmp.lt.s32.totalorder %v922, 2048
      %vm987 = vcmp.lt.s32.totalorder %v923, 2048
      %vm988 = vcmp.lt.s32.totalorder %v924, 2048
      %vm989 = vcmp.lt.s32.totalorder %v925, 2048
      %vm990 = vcmp.lt.s32.totalorder %v926, 2048
      %vm991 = vcmp.lt.s32.totalorder %v927, 2048
      %vm992 = vcmp.lt.s32.totalorder %v928, 2048
      %vm993 = vcmp.lt.s32.totalorder %v929, 2048
      %vm994 = vcmp.lt.s32.totalorder %v930, 2048
      %vm995 = vcmp.lt.s32.totalorder %v931, 2048
      %vm996 = vcmp.lt.s32.totalorder %v932, 2048
      %vm997 = vcmp.lt.s32.totalorder %v933, 2048
      %vm998 = vcmp.lt.s32.totalorder %v934, 2048
      %vm999 = vcmp.lt.s32.totalorder %v935, 2048
      %vm1000 = vcmp.lt.s32.totalorder %v936, 2048
      %vm1001 = vcmp.lt.s32.totalorder %v937, 2048
      %vm1002 = vcmp.lt.s32.totalorder %v938, 2048
      %vm1003 = vcmp.lt.s32.totalorder %v939, 2048
      %vm1004 = vcmp.lt.s32.totalorder %v940, 2048
      %vm1005 = vcmp.lt.s32.totalorder %v941, 2048
      %vm1006 = vcmp.lt.s32.totalorder %v942, 2048
      %vm1007 = vcmp.lt.s32.totalorder %v943, 2048
      %vm1008 = vcmp.lt.s32.totalorder %v944, 2048
      %vm1009 = vcmp.lt.s32.totalorder %v945, 2048
      %vm1010 = vcmp.lt.s32.totalorder %v946, 2048
      %vm1011 = vcmp.lt.s32.totalorder %v947, 2048
      %vm1012 = vcmp.lt.s32.totalorder %v948, 2048
      %vm1013 = vcmp.lt.s32.totalorder %v949, 2048
      %vm1014 = vcmp.lt.s32.totalorder %v950, 2048
      %vm1015 = vcmp.lt.s32.totalorder %v951, 2048
      %vm1016 = vcmp.lt.s32.totalorder %v952, 2048
      %vm1017 = vcmp.lt.s32.totalorder %v953, 2048
      %vm1018 = vcmp.lt.s32.totalorder %v954, 2048
      %vm1019 = vcmp.lt.s32.totalorder %v955, 2048
      %vm1020 = vcmp.lt.s32.totalorder %v956, 2048
      %s1021 = ssub.s32 2048, %s826
      %p1022 = scmp.lt.s32.totalorder %s1021, 512
      %s1023 = scalar_select %p1022, %s1021, 512
      %p1024 = scmp.gt.s32.totalorder %s1023, 1
      %s1025 = scalar_select %p1024, %s1023, 1
      %s1026 = scvt.s32.f32 %s1025
      %v1027 = vsel %vm957, 1, 0
      %v1028 = vsel %vm958, 1, 0
      %v1029 = vsel %vm959, 1, 0
      %v1030 = vsel %vm960, 1, 0
      %v1031 = vsel %vm961, 1, 0
      %v1032 = vsel %vm962, 1, 0
      %v1033 = vsel %vm963, 1, 0
      %v1034 = vsel %vm964, 1, 0
      %v1035 = vsel %vm965, 1, 0
      %v1036 = vsel %vm966, 1, 0
      %v1037 = vsel %vm967, 1, 0
      %v1038 = vsel %vm968, 1, 0
      %v1039 = vsel %vm969, 1, 0
      %v1040 = vsel %vm970, 1, 0
      %v1041 = vsel %vm971, 1, 0
      %v1042 = vsel %vm972, 1, 0
      %v1043 = vsel %vm973, 1, 0
      %v1044 = vsel %vm974, 1, 0
      %v1045 = vsel %vm975, 1, 0
      %v1046 = vsel %vm976, 1, 0
      %v1047 = vsel %vm977, 1, 0
      %v1048 = vsel %vm978, 1, 0
      %v1049 = vsel %vm979, 1, 0
      %v1050 = vsel %vm980, 1, 0
      %v1051 = vsel %vm981, 1, 0
      %v1052 = vsel %vm982, 1, 0
      %v1053 = vsel %vm983, 1, 0
      %v1054 = vsel %vm984, 1, 0
      %v1055 = vsel %vm985, 1, 0
      %v1056 = vsel %vm986, 1, 0
      %v1057 = vsel %vm987, 1, 0
      %v1058 = vsel %vm988, 1, 0
      %v1059 = vsel %vm989, 1, 0
      %v1060 = vsel %vm990, 1, 0
      %v1061 = vsel %vm991, 1, 0
      %v1062 = vsel %vm992, 1, 0
      %v1063 = vsel %vm993, 1, 0
      %v1064 = vsel %vm994, 1, 0
      %v1065 = vsel %vm995, 1, 0
      %v1066 = vsel %vm996, 1, 0
      %v1067 = vsel %vm997, 1, 0
      %v1068 = vsel %vm998, 1, 0
      %v1069 = vsel %vm999, 1, 0
      %v1070 = vsel %vm1000, 1, 0
      %v1071 = vsel %vm1001, 1, 0
      %v1072 = vsel %vm1002, 1, 0
      %v1073 = vsel %vm1003, 1, 0
      %v1074 = vsel %vm1004, 1, 0
      %v1075 = vsel %vm1005, 1, 0
      %v1076 = vsel %vm1006, 1, 0
      %v1077 = vsel %vm1007, 1, 0
      %v1078 = vsel %vm1008, 1, 0
      %v1079 = vsel %vm1009, 1, 0
      %v1080 = vsel %vm1010, 1, 0
      %v1081 = vsel %vm1011, 1, 0
      %v1082 = vsel %vm1012, 1, 0
      %v1083 = vsel %vm1013, 1, 0
      %v1084 = vsel %vm1014, 1, 0
      %v1085 = vsel %vm1015, 1, 0
      %v1086 = vsel %vm1016, 1, 0
      %v1087 = vsel %vm1017, 1, 0
      %v1088 = vsel %vm1018, 1, 0
      %v1089 = vsel %vm1019, 1, 0
      %v1090 = vsel %vm1020, 1, 0
      %vm1091 = vcmp.eq.s32.totalorder %v1027, 1
      %vm1092 = vcmp.eq.s32.totalorder %v1028, 1
      %vm1093 = vcmp.eq.s32.totalorder %v1029, 1
      %vm1094 = vcmp.eq.s32.totalorder %v1030, 1
      %vm1095 = vcmp.eq.s32.totalorder %v1031, 1
      %vm1096 = vcmp.eq.s32.totalorder %v1032, 1
      %vm1097 = vcmp.eq.s32.totalorder %v1033, 1
      %vm1098 = vcmp.eq.s32.totalorder %v1034, 1
      %vm1099 = vcmp.eq.s32.totalorder %v1035, 1
      %vm1100 = vcmp.eq.s32.totalorder %v1036, 1
      %vm1101 = vcmp.eq.s32.totalorder %v1037, 1
      %vm1102 = vcmp.eq.s32.totalorder %v1038, 1
      %vm1103 = vcmp.eq.s32.totalorder %v1039, 1
      %vm1104 = vcmp.eq.s32.totalorder %v1040, 1
      %vm1105 = vcmp.eq.s32.totalorder %v1041, 1
      %vm1106 = vcmp.eq.s32.totalorder %v1042, 1
      %vm1107 = vcmp.eq.s32.totalorder %v1043, 1
      %vm1108 = vcmp.eq.s32.totalorder %v1044, 1
      %vm1109 = vcmp.eq.s32.totalorder %v1045, 1
      %vm1110 = vcmp.eq.s32.totalorder %v1046, 1
      %vm1111 = vcmp.eq.s32.totalorder %v1047, 1
      %vm1112 = vcmp.eq.s32.totalorder %v1048, 1
      %vm1113 = vcmp.eq.s32.totalorder %v1049, 1
      %vm1114 = vcmp.eq.s32.totalorder %v1050, 1
      %vm1115 = vcmp.eq.s32.totalorder %v1051, 1
      %vm1116 = vcmp.eq.s32.totalorder %v1052, 1
      %vm1117 = vcmp.eq.s32.totalorder %v1053, 1
      %vm1118 = vcmp.eq.s32.totalorder %v1054, 1
      %vm1119 = vcmp.eq.s32.totalorder %v1055, 1
      %vm1120 = vcmp.eq.s32.totalorder %v1056, 1
      %vm1121 = vcmp.eq.s32.totalorder %v1057, 1
      %vm1122 = vcmp.eq.s32.totalorder %v1058, 1
      %vm1123 = vcmp.eq.s32.totalorder %v1059, 1
      %vm1124 = vcmp.eq.s32.totalorder %v1060, 1
      %vm1125 = vcmp.eq.s32.totalorder %v1061, 1
      %vm1126 = vcmp.eq.s32.totalorder %v1062, 1
      %vm1127 = vcmp.eq.s32.totalorder %v1063, 1
      %vm1128 = vcmp.eq.s32.totalorder %v1064, 1
      %vm1129 = vcmp.eq.s32.totalorder %v1065, 1
      %vm1130 = vcmp.eq.s32.totalorder %v1066, 1
      %vm1131 = vcmp.eq.s32.totalorder %v1067, 1
      %vm1132 = vcmp.eq.s32.totalorder %v1068, 1
      %vm1133 = vcmp.eq.s32.totalorder %v1069, 1
      %vm1134 = vcmp.eq.s32.totalorder %v1070, 1
      %vm1135 = vcmp.eq.s32.totalorder %v1071, 1
      %vm1136 = vcmp.eq.s32.totalorder %v1072, 1
      %vm1137 = vcmp.eq.s32.totalorder %v1073, 1
      %vm1138 = vcmp.eq.s32.totalorder %v1074, 1
      %vm1139 = vcmp.eq.s32.totalorder %v1075, 1
      %vm1140 = vcmp.eq.s32.totalorder %v1076, 1
      %vm1141 = vcmp.eq.s32.totalorder %v1077, 1
      %vm1142 = vcmp.eq.s32.totalorder %v1078, 1
      %vm1143 = vcmp.eq.s32.totalorder %v1079, 1
      %vm1144 = vcmp.eq.s32.totalorder %v1080, 1
      %vm1145 = vcmp.eq.s32.totalorder %v1081, 1
      %vm1146 = vcmp.eq.s32.totalorder %v1082, 1
      %vm1147 = vcmp.eq.s32.totalorder %v1083, 1
      %vm1148 = vcmp.eq.s32.totalorder %v1084, 1
      %vm1149 = vcmp.eq.s32.totalorder %v1085, 1
      %vm1150 = vcmp.eq.s32.totalorder %v1086, 1
      %vm1151 = vcmp.eq.s32.totalorder %v1087, 1
      %vm1152 = vcmp.eq.s32.totalorder %v1088, 1
      %vm1153 = vcmp.eq.s32.totalorder %v1089, 1
      %vm1154 = vcmp.eq.s32.totalorder %v1090, 1
      %v1155 = vsel %vm1091, %v539, 0.0
      %v1156 = vsel %vm1092, %v541, 0.0
      %v1157 = vsel %vm1093, %v544, 0.0
      %v1158 = vsel %vm1094, %v546, 0.0
      %v1159 = vsel %vm1095, %v549, 0.0
      %v1160 = vsel %vm1096, %v551, 0.0
      %v1161 = vsel %vm1097, %v554, 0.0
      %v1162 = vsel %vm1098, %v556, 0.0
      %v1163 = vsel %vm1099, %v559, 0.0
      %v1164 = vsel %vm1100, %v561, 0.0
      %v1165 = vsel %vm1101, %v564, 0.0
      %v1166 = vsel %vm1102, %v566, 0.0
      %v1167 = vsel %vm1103, %v569, 0.0
      %v1168 = vsel %vm1104, %v571, 0.0
      %v1169 = vsel %vm1105, %v574, 0.0
      %v1170 = vsel %vm1106, %v576, 0.0
      %v1171 = vsel %vm1107, %v579, 0.0
      %v1172 = vsel %vm1108, %v581, 0.0
      %v1173 = vsel %vm1109, %v584, 0.0
      %v1174 = vsel %vm1110, %v586, 0.0
      %v1175 = vsel %vm1111, %v589, 0.0
      %v1176 = vsel %vm1112, %v591, 0.0
      %v1177 = vsel %vm1113, %v594, 0.0
      %v1178 = vsel %vm1114, %v596, 0.0
      %v1179 = vsel %vm1115, %v599, 0.0
      %v1180 = vsel %vm1116, %v601, 0.0
      %v1181 = vsel %vm1117, %v604, 0.0
      %v1182 = vsel %vm1118, %v606, 0.0
      %v1183 = vsel %vm1119, %v609, 0.0
      %v1184 = vsel %vm1120, %v611, 0.0
      %v1185 = vsel %vm1121, %v614, 0.0
      %v1186 = vsel %vm1122, %v616, 0.0
      %v1187 = vsel %vm1123, %v619, 0.0
      %v1188 = vsel %vm1124, %v621, 0.0
      %v1189 = vsel %vm1125, %v624, 0.0
      %v1190 = vsel %vm1126, %v626, 0.0
      %v1191 = vsel %vm1127, %v629, 0.0
      %v1192 = vsel %vm1128, %v631, 0.0
      %v1193 = vsel %vm1129, %v634, 0.0
      %v1194 = vsel %vm1130, %v636, 0.0
      %v1195 = vsel %vm1131, %v639, 0.0
      %v1196 = vsel %vm1132, %v641, 0.0
      %v1197 = vsel %vm1133, %v644, 0.0
      %v1198 = vsel %vm1134, %v646, 0.0
      %v1199 = vsel %vm1135, %v649, 0.0
      %v1200 = vsel %vm1136, %v651, 0.0
      %v1201 = vsel %vm1137, %v654, 0.0
      %v1202 = vsel %vm1138, %v656, 0.0
      %v1203 = vsel %vm1139, %v659, 0.0
      %v1204 = vsel %vm1140, %v661, 0.0
      %v1205 = vsel %vm1141, %v664, 0.0
      %v1206 = vsel %vm1142, %v666, 0.0
      %v1207 = vsel %vm1143, %v669, 0.0
      %v1208 = vsel %vm1144, %v671, 0.0
      %v1209 = vsel %vm1145, %v674, 0.0
      %v1210 = vsel %vm1146, %v676, 0.0
      %v1211 = vsel %vm1147, %v679, 0.0
      %v1212 = vsel %vm1148, %v681, 0.0
      %v1213 = vsel %vm1149, %v684, 0.0
      %v1214 = vsel %vm1150, %v686, 0.0
      %v1215 = vsel %vm1151, %v689, 0.0
      %v1216 = vsel %vm1152, %v691, 0.0
      %v1217 = vsel %vm1153, %v694, 0.0
      %v1218 = vsel %vm1154, %v696, 0.0
      %v1219 = vadd.f32 %v1155, %v1156
      %v1220 = vadd.f32 %v1219, %v1157
      %v1221 = vadd.f32 %v1220, %v1158
      %v1222 = vadd.f32 %v1221, %v1159
      %v1223 = vadd.f32 %v1222, %v1160
      %v1224 = vadd.f32 %v1223, %v1161
      %v1225 = vadd.f32 %v1224, %v1162
      %v1226 = vadd.f32 %v1225, %v1163
      %v1227 = vadd.f32 %v1226, %v1164
      %v1228 = vadd.f32 %v1227, %v1165
      %v1229 = vadd.f32 %v1228, %v1166
      %v1230 = vadd.f32 %v1229, %v1167
      %v1231 = vadd.f32 %v1230, %v1168
      %v1232 = vadd.f32 %v1231, %v1169
      %v1233 = vadd.f32 %v1232, %v1170
      %v1234 = vadd.f32 %v1233, %v1171
      %v1235 = vadd.f32 %v1234, %v1172
      %v1236 = vadd.f32 %v1235, %v1173
      %v1237 = vadd.f32 %v1236, %v1174
      %v1238 = vadd.f32 %v1237, %v1175
      %v1239 = vadd.f32 %v1238, %v1176
      %v1240 = vadd.f32 %v1239, %v1177
      %v1241 = vadd.f32 %v1240, %v1178
      %v1242 = vadd.f32 %v1241, %v1179
      %v1243 = vadd.f32 %v1242, %v1180
      %v1244 = vadd.f32 %v1243, %v1181
      %v1245 = vadd.f32 %v1244, %v1182
      %v1246 = vadd.f32 %v1245, %v1183
      %v1247 = vadd.f32 %v1246, %v1184
      %v1248 = vadd.f32 %v1247, %v1185
      %v1249 = vadd.f32 %v1248, %v1186
      %v1250 = vadd.f32 %v1249, %v1187
      %v1251 = vadd.f32 %v1250, %v1188
      %v1252 = vadd.f32 %v1251, %v1189
      %v1253 = vadd.f32 %v1252, %v1190
      %v1254 = vadd.f32 %v1253, %v1191
      %v1255 = vadd.f32 %v1254, %v1192
      %v1256 = vadd.f32 %v1255, %v1193
      %v1257 = vadd.f32 %v1256, %v1194
      %v1258 = vadd.f32 %v1257, %v1195
      %v1259 = vadd.f32 %v1258, %v1196
      %v1260 = vadd.f32 %v1259, %v1197
      %v1261 = vadd.f32 %v1260, %v1198
      %v1262 = vadd.f32 %v1261, %v1199
      %v1263 = vadd.f32 %v1262, %v1200
      %v1264 = vadd.f32 %v1263, %v1201
      %v1265 = vadd.f32 %v1264, %v1202
      %v1266 = vadd.f32 %v1265, %v1203
      %v1267 = vadd.f32 %v1266, %v1204
      %v1268 = vadd.f32 %v1267, %v1205
      %v1269 = vadd.f32 %v1268, %v1206
      %v1270 = vadd.f32 %v1269, %v1207
      %v1271 = vadd.f32 %v1270, %v1208
      %v1272 = vadd.f32 %v1271, %v1209
      %v1273 = vadd.f32 %v1272, %v1210
      %v1274 = vadd.f32 %v1273, %v1211
      %v1275 = vadd.f32 %v1274, %v1212
      %v1276 = vadd.f32 %v1275, %v1213
      %v1277 = vadd.f32 %v1276, %v1214
      %v1278 = vadd.f32 %v1277, %v1215
      %v1279 = vadd.f32 %v1278, %v1216
      %v1280 = vadd.f32 %v1279, %v1217
      %v1281 = vadd.f32 %v1280, %v1218
      %v1282 = vrot.slane %v1281, 4
      %v1283 = vadd.f32 %v1281, %v1282
      %v1284 = vrot.slane %v1283, 2
      %v1285 = vadd.f32 %v1283, %v1284
      %v1286 = vrot.slane %v1285, 1
      %v1287 = vadd.f32 %v1285, %v1286
      %v1288 = vstv %s1026
      %v1289 = vrcp.pop %v1288
      %v1290 = vmul.f32 %v1288, %v1289
      %v1291 = vsub.f32 1.0, %v1290
      %v1292 = vmul.f32 %v1289, %v1291
      %v1293 = vadd.f32 %v1289, %v1292
      %vm1294 = vweird.f32 %v1288
      %vm1295 = vweird.f32 %v1289
      %vm1296 = vmor %vm1294, %vm1295
      %v1297 = vsel %vm1296, %v1289, %v1293
      %v1298 = vand.u32 2147483647, %v1288
      %vm1299 = vcmp.eq.f32.partialorder %v1298, 8.507059e+37
      %v1300 = vand.u32 %v1288, 2147483648
      %v1301 = vor.u32 1.1754944e-38, %v1300
      %v1302 = vsel %vm1299, %v1301, %v1297
      %v1303 = vmul.f32 %v1287, %v1302
      %v1304 = vsub.f32 %v539, %v1303
      %v1305 = vsub.f32 %v541, %v1303
      %v1306 = vsub.f32 %v544, %v1303
      %v1307 = vsub.f32 %v546, %v1303
      %v1308 = vsub.f32 %v549, %v1303
      %v1309 = vsub.f32 %v551, %v1303
      %v1310 = vsub.f32 %v554, %v1303
      %v1311 = vsub.f32 %v556, %v1303
      %v1312 = vsub.f32 %v559, %v1303
      %v1313 = vsub.f32 %v561, %v1303
      %v1314 = vsub.f32 %v564, %v1303
      %v1315 = vsub.f32 %v566, %v1303
      %v1316 = vsub.f32 %v569, %v1303
      %v1317 = vsub.f32 %v571, %v1303
      %v1318 = vsub.f32 %v574, %v1303
      %v1319 = vsub.f32 %v576, %v1303
      %v1320 = vsub.f32 %v579, %v1303
      %v1321 = vsub.f32 %v581, %v1303
      %v1322 = vsub.f32 %v584, %v1303
      %v1323 = vsub.f32 %v586, %v1303
      %v1324 = vsub.f32 %v589, %v1303
      %v1325 = vsub.f32 %v591, %v1303
      %v1326 = vsub.f32 %v594, %v1303
      %v1327 = vsub.f32 %v596, %v1303
      %v1328 = vsub.f32 %v599, %v1303
      %v1329 = vsub.f32 %v601, %v1303
      %v1330 = vsub.f32 %v604, %v1303
      %v1331 = vsub.f32 %v606, %v1303
      %v1332 = vsub.f32 %v609, %v1303
      %v1333 = vsub.f32 %v611, %v1303
      %v1334 = vsub.f32 %v614, %v1303
      %v1335 = vsub.f32 %v616, %v1303
      %v1336 = vsub.f32 %v619, %v1303
      %v1337 = vsub.f32 %v621, %v1303
      %v1338 = vsub.f32 %v624, %v1303
      %v1339 = vsub.f32 %v626, %v1303
      %v1340 = vsub.f32 %v629, %v1303
      %v1341 = vsub.f32 %v631, %v1303
      %v1342 = vsub.f32 %v634, %v1303
      %v1343 = vsub.f32 %v636, %v1303
      %v1344 = vsub.f32 %v639, %v1303
      %v1345 = vsub.f32 %v641, %v1303
      %v1346 = vsub.f32 %v644, %v1303
      %v1347 = vsub.f32 %v646, %v1303
      %v1348 = vsub.f32 %v649, %v1303
      %v1349 = vsub.f32 %v651, %v1303
      %v1350 = vsub.f32 %v654, %v1303
      %v1351 = vsub.f32 %v656, %v1303
      %v1352 = vsub.f32 %v659, %v1303
      %v1353 = vsub.f32 %v661, %v1303
      %v1354 = vsub.f32 %v664, %v1303
      %v1355 = vsub.f32 %v666, %v1303
      %v1356 = vsub.f32 %v669, %v1303
      %v1357 = vsub.f32 %v671, %v1303
      %v1358 = vsub.f32 %v674, %v1303
      %v1359 = vsub.f32 %v676, %v1303
      %v1360 = vsub.f32 %v679, %v1303
      %v1361 = vsub.f32 %v681, %v1303
      %v1362 = vsub.f32 %v684, %v1303
      %v1363 = vsub.f32 %v686, %v1303
      %v1364 = vsub.f32 %v689, %v1303
      %v1365 = vsub.f32 %v691, %v1303
      %v1366 = vsub.f32 %v694, %v1303
      %v1367 = vsub.f32 %v696, %v1303
      %v1368 = vsel %vm1091, %v1304, 0.0
      %v1369 = vsel %vm1092, %v1305, 0.0
      %v1370 = vsel %vm1093, %v1306, 0.0
      %v1371 = vsel %vm1094, %v1307, 0.0
      %v1372 = vsel %vm1095, %v1308, 0.0
      %v1373 = vsel %vm1096, %v1309, 0.0
      %v1374 = vsel %vm1097, %v1310, 0.0
      %v1375 = vsel %vm1098, %v1311, 0.0
      %v1376 = vsel %vm1099, %v1312, 0.0
      %v1377 = vsel %vm1100, %v1313, 0.0
      %v1378 = vsel %vm1101, %v1314, 0.0
      %v1379 = vsel %vm1102, %v1315, 0.0
      %v1380 = vsel %vm1103, %v1316, 0.0
      %v1381 = vsel %vm1104, %v1317, 0.0
      %v1382 = vsel %vm1105, %v1318, 0.0
      %v1383 = vsel %vm1106, %v1319, 0.0
      %v1384 = vsel %vm1107, %v1320, 0.0
      %v1385 = vsel %vm1108, %v1321, 0.0
      %v1386 = vsel %vm1109, %v1322, 0.0
      %v1387 = vsel %vm1110, %v1323, 0.0
      %v1388 = vsel %vm1111, %v1324, 0.0
      %v1389 = vsel %vm1112, %v1325, 0.0
      %v1390 = vsel %vm1113, %v1326, 0.0
      %v1391 = vsel %vm1114, %v1327, 0.0
      %v1392 = vsel %vm1115, %v1328, 0.0
      %v1393 = vsel %vm1116, %v1329, 0.0
      %v1394 = vsel %vm1117, %v1330, 0.0
      %v1395 = vsel %vm1118, %v1331, 0.0
      %v1396 = vsel %vm1119, %v1332, 0.0
      %v1397 = vsel %vm1120, %v1333, 0.0
      %v1398 = vsel %vm1121, %v1334, 0.0
      %v1399 = vsel %vm1122, %v1335, 0.0
      %v1400 = vsel %vm1123, %v1336, 0.0
      %v1401 = vsel %vm1124, %v1337, 0.0
      %v1402 = vsel %vm1125, %v1338, 0.0
      %v1403 = vsel %vm1126, %v1339, 0.0
      %v1404 = vsel %vm1127, %v1340, 0.0
      %v1405 = vsel %vm1128, %v1341, 0.0
      %v1406 = vsel %vm1129, %v1342, 0.0
      %v1407 = vsel %vm1130, %v1343, 0.0
      %v1408 = vsel %vm1131, %v1344, 0.0
      %v1409 = vsel %vm1132, %v1345, 0.0
      %v1410 = vsel %vm1133, %v1346, 0.0
      %v1411 = vsel %vm1134, %v1347, 0.0
      %v1412 = vsel %vm1135, %v1348, 0.0
      %v1413 = vsel %vm1136, %v1349, 0.0
      %v1414 = vsel %vm1137, %v1350, 0.0
      %v1415 = vsel %vm1138, %v1351, 0.0
      %v1416 = vsel %vm1139, %v1352, 0.0
      %v1417 = vsel %vm1140, %v1353, 0.0
      %v1418 = vsel %vm1141, %v1354, 0.0
      %v1419 = vsel %vm1142, %v1355, 0.0
      %v1420 = vsel %vm1143, %v1356, 0.0
      %v1421 = vsel %vm1144, %v1357, 0.0
      %v1422 = vsel %vm1145, %v1358, 0.0
      %v1423 = vsel %vm1146, %v1359, 0.0
      %v1424 = vsel %vm1147, %v1360, 0.0
      %v1425 = vsel %vm1148, %v1361, 0.0
      %v1426 = vsel %vm1149, %v1362, 0.0
      %v1427 = vsel %vm1150, %v1363, 0.0
      %v1428 = vsel %vm1151, %v1364, 0.0
      %v1429 = vsel %vm1152, %v1365, 0.0
      %v1430 = vsel %vm1153, %v1366, 0.0
      %v1431 = vsel %vm1154, %v1367, 0.0
      %1432 = vst [vmem:[%s184] sm:$0x1] %v1287
      %v1433 = vmul.f32 %v1368, %v1368
      %v1434 = vmul.f32 %v1369, %v1369
      %v1435 = vmul.f32 %v1370, %v1370
      %v1436 = vmul.f32 %v1371, %v1371
      %v1437 = vmul.f32 %v1372, %v1372
      %v1438 = vmul.f32 %v1373, %v1373
      %v1439 = vmul.f32 %v1374, %v1374
      %v1440 = vmul.f32 %v1375, %v1375
      %v1441 = vmul.f32 %v1376, %v1376
      %v1442 = vmul.f32 %v1377, %v1377
      %v1443 = vmul.f32 %v1378, %v1378
      %v1444 = vmul.f32 %v1379, %v1379
      %v1445 = vmul.f32 %v1380, %v1380
      %v1446 = vmul.f32 %v1381, %v1381
      %v1447 = vmul.f32 %v1382, %v1382
      %v1448 = vmul.f32 %v1383, %v1383
      %v1449 = vmul.f32 %v1384, %v1384
      %v1450 = vmul.f32 %v1385, %v1385
      %v1451 = vmul.f32 %v1386, %v1386
      %v1452 = vmul.f32 %v1387, %v1387
      %v1453 = vmul.f32 %v1388, %v1388
      %v1454 = vmul.f32 %v1389, %v1389
      %v1455 = vmul.f32 %v1390, %v1390
      %v1456 = vmul.f32 %v1391, %v1391
      %v1457 = vmul.f32 %v1392, %v1392
      %v1458 = vmul.f32 %v1393, %v1393
      %v1459 = vmul.f32 %v1394, %v1394
      %v1460 = vmul.f32 %v1395, %v1395
      %v1461 = vmul.f32 %v1396, %v1396
      %v1462 = vmul.f32 %v1397, %v1397
      %v1463 = vmul.f32 %v1398, %v1398
      %v1464 = vmul.f32 %v1399, %v1399
      %v1465 = vmul.f32 %v1400, %v1400
      %v1466 = vmul.f32 %v1401, %v1401
      %v1467 = vmul.f32 %v1402, %v1402
      %v1468 = vmul.f32 %v1403, %v1403
      %v1469 = vmul.f32 %v1404, %v1404
      %v1470 = vmul.f32 %v1405, %v1405
      %v1471 = vmul.f32 %v1406, %v1406
      %v1472 = vmul.f32 %v1407, %v1407
      %v1473 = vmul.f32 %v1408, %v1408
      %v1474 = vmul.f32 %v1409, %v1409
      %v1475 = vmul.f32 %v1410, %v1410
      %v1476 = vmul.f32 %v1411, %v1411
      %v1477 = vmul.f32 %v1412, %v1412
      %v1478 = vmul.f32 %v1413, %v1413
      %v1479 = vmul.f32 %v1414, %v1414
      %v1480 = vmul.f32 %v1415, %v1415
      %v1481 = vmul.f32 %v1416, %v1416
      %v1482 = vmul.f32 %v1417, %v1417
      %v1483 = vmul.f32 %v1418, %v1418
      %v1484 = vmul.f32 %v1419, %v1419
      %v1485 = vmul.f32 %v1420, %v1420
      %v1486 = vmul.f32 %v1421, %v1421
      %v1487 = vmul.f32 %v1422, %v1422
      %v1488 = vmul.f32 %v1423, %v1423
      %v1489 = vmul.f32 %v1424, %v1424
      %v1490 = vmul.f32 %v1425, %v1425
      %v1491 = vmul.f32 %v1426, %v1426
      %v1492 = vmul.f32 %v1427, %v1427
      %v1493 = vmul.f32 %v1428, %v1428
      %v1494 = vmul.f32 %v1429, %v1429
      %v1495 = vmul.f32 %v1430, %v1430
      %v1496 = vmul.f32 %v1431, %v1431
      %v1497 = vadd.f32 %v1433, %v1434
      %v1498 = vadd.f32 %v1497, %v1435
      %v1499 = vadd.f32 %v1498, %v1436
      %v1500 = vadd.f32 %v1499, %v1437
      %v1501 = vadd.f32 %v1500, %v1438
      %v1502 = vadd.f32 %v1501, %v1439
      %v1503 = vadd.f32 %v1502, %v1440
      %v1504 = vadd.f32 %v1503, %v1441
      %v1505 = vadd.f32 %v1504, %v1442
      %v1506 = vadd.f32 %v1505, %v1443
      %v1507 = vadd.f32 %v1506, %v1444
      %v1508 = vadd.f32 %v1507, %v1445
      %v1509 = vadd.f32 %v1508, %v1446
      %v1510 = vadd.f32 %v1509, %v1447
      %v1511 = vadd.f32 %v1510, %v1448
      %v1512 = vadd.f32 %v1511, %v1449
      %v1513 = vadd.f32 %v1512, %v1450
      %v1514 = vadd.f32 %v1513, %v1451
      %v1515 = vadd.f32 %v1514, %v1452
      %v1516 = vadd.f32 %v1515, %v1453
      %v1517 = vadd.f32 %v1516, %v1454
      %v1518 = vadd.f32 %v1517, %v1455
      %v1519 = vadd.f32 %v1518, %v1456
      %v1520 = vadd.f32 %v1519, %v1457
      %v1521 = vadd.f32 %v1520, %v1458
      %v1522 = vadd.f32 %v1521, %v1459
      %v1523 = vadd.f32 %v1522, %v1460
      %v1524 = vadd.f32 %v1523, %v1461
      %v1525 = vadd.f32 %v1524, %v1462
      %v1526 = vadd.f32 %v1525, %v1463
      %v1527 = vadd.f32 %v1526, %v1464
      %v1528 = vadd.f32 %v1527, %v1465
      %v1529 = vadd.f32 %v1528, %v1466
      %v1530 = vadd.f32 %v1529, %v1467
      %v1531 = vadd.f32 %v1530, %v1468
      %v1532 = vadd.f32 %v1531, %v1469
      %v1533 = vadd.f32 %v1532, %v1470
      %v1534 = vadd.f32 %v1533, %v1471
      %v1535 = vadd.f32 %v1534, %v1472
      %v1536 = vadd.f32 %v1535, %v1473
      %v1537 = vadd.f32 %v1536, %v1474
      %v1538 = vadd.f32 %v1537, %v1475
      %v1539 = vadd.f32 %v1538, %v1476
      %v1540 = vadd.f32 %v1539, %v1477
      %v1541 = vadd.f32 %v1540, %v1478
      %v1542 = vadd.f32 %v1541, %v1479
      %v1543 = vadd.f32 %v1542, %v1480
      %v1544 = vadd.f32 %v1543, %v1481
      %v1545 = vadd.f32 %v1544, %v1482
      %v1546 = vadd.f32 %v1545, %v1483
      %v1547 = vadd.f32 %v1546, %v1484
      %v1548 = vadd.f32 %v1547, %v1485
      %v1549 = vadd.f32 %v1548, %v1486
      %v1550 = vadd.f32 %v1549, %v1487
      %v1551 = vadd.f32 %v1550, %v1488
      %v1552 = vadd.f32 %v1551, %v1489
      %v1553 = vadd.f32 %v1552, %v1490
      %v1554 = vadd.f32 %v1553, %v1491
      %v1555 = vadd.f32 %v1554, %v1492
      %v1556 = vadd.f32 %v1555, %v1493
      %v1557 = vadd.f32 %v1556, %v1494
      %v1558 = vadd.f32 %v1557, %v1495
      %v1559 = vadd.f32 %v1558, %v1496
      %v1560 = vrot.slane %v1559, 4
      %v1561 = vadd.f32 %v1559, %v1560
      %v1562 = vrot.slane %v1561, 2
      %v1563 = vadd.f32 %v1561, %v1562
      %v1564 = vrot.slane %v1563, 1
      %v1565 = vadd.f32 %v1563, %v1564
      %1566 = vst [vmem:[%s184 + $0x1] sm:$0x1] %v1565
      %s1567 = smul.u32 64, %s15
      %p1568 = scmp.lt.s32.totalorder %s1567, 255
      %s1569 = scalar_select %p1568, %s1567, 255
      %s1570 = smul.addr %s1569, 4
      %s1571 = scalar_lea.vmem %s2, %s1570
      %p1572 = scmp.lt.s32.totalorder %s15, 3
      %s1573 = scalar_select %p1572, %s15, 3
      %s1574 = smul.addr %s1573, 2
      %s1575 = scalar_lea.vmem %s3, %s1574
      // Predicated region
      $region29: #{darknet10_forward.19} parent=27 // pred_check
        %p1576 = pneg %p80
      $region30: #{darknet10_forward.19} parent=27 // pred_check_branch
        %1578 = sbr.rel (%p1576) target = $region32
      $region31: #{darknet10_forward.19} parent=27 // pred_region
        %s1579 = smul.u32 64, %s15
      $region32: #{darknet10_forward.19} parent=27 // pred_fallthru
        _
      // Predicated region
      $region33: #{darknet10_forward.19} parent=27 // pred_check
        %p1580 = pneg %p106
      $region34: #{darknet10_forward.19} parent=27 // pred_check_branch
        %1582 = sbr.rel (%p1580) target = $region36
      $region35: #{darknet10_forward.19} parent=27 // pred_region
        _
      $region36: #{darknet10_forward.19} parent=27 // pred_fallthru
        _
    $region28: #{darknet10_forward.19} parent=5 // pred_fallthru
      _
    %p1583 = scmp.le.s32.totalorder 2, %s10
    // Predicated region
    $region37: #{darknet10_forward.19} parent=5 // pred_check
      %p1584 = pneg %p1583
    $region38: #{darknet10_forward.19} parent=5 // pred_check_branch
      %1586 = sbr.rel (%p1584) target = $region40
    $region39: #{darknet10_forward.19} parent=5 // pred_region
      %s1587 = ssub.s32 %s10, 2
      // Predicated region
      $region41: #{darknet10_forward.19} parent=39 // pred_check
        %p1588 = pneg %p86
      $region42: #{darknet10_forward.19} parent=39 // pred_check_branch
        %1590 = sbr.rel (%p1588) target = $region44
      $region43: #{darknet10_forward.19} parent=39 // pred_region
        %s1591 = smul.u32 64, %s16
        %p1592 = scmp.lt.s32.totalorder %s1591, 255
        %s1593 = scalar_select %p1592, %s1591, 255
        %s1594 = smul.addr %s1593, 4
        %s1595 = scalar_lea.vmem %s2, %s1594
      $region44: #{darknet10_forward.19} parent=39 // pred_fallthru
        _
      // Predicated region
      $region45: #{darknet10_forward.19} parent=39 // pred_check
        %p1596 = pneg %p112
      $region46: #{darknet10_forward.19} parent=39 // pred_check_branch
        %1598 = sbr.rel (%p1596) target = $region48
      $region47: #{darknet10_forward.19} parent=39 // pred_region
        %p1599 = scmp.lt.s32.totalorder %s16, 3
        %s1600 = scalar_select %p1599, %s16, 3
        %s1601 = smul.addr %s1600, 2
        %s1602 = scalar_lea.vmem %s3, %s1601
      $region48: #{darknet10_forward.19} parent=39 // pred_fallthru
        _
    $region40: #{darknet10_forward.19} parent=5 // pred_fallthru
      _
  $region6: #{darknet10_forward.19} parent=0 // loop_footer
    %s14 = sadd.s32 1, %s10
  $region7: #{darknet10_forward.19} parent=0 // loop_footer_branch
    %9 = sbr.rel target = $region3
  $region8: #{darknet10_forward.19} parent=0 // loop_exit
    _

// kernel: darknet10_forward.22
$region0: #{darknet10_forward.22}
  #allocation0 [shape = 'u32[]', space=smem, size = 0x4, offset = 0x4, fixed_abs, tag = 'smem constant byte address 0x4 - core index']
  #allocation1 [shape = 'u32[72,128]{1,0:T(1,128)}', space=vmem, size = 0x9000, scoped, tag = 'internal scratch']
  %s0 = inlined_call_operand.vmem [shape: bf16[512,128], index: 0, kind: input, shape index: {}]
  %s1 = inlined_call_operand.vmem [shape: f32[1,128], index: 1, kind: input, shape index: {}]
  %s2 = inlined_call_operand.vmem [shape: f32[1,128], index: 2, kind: input, shape index: {}]
  %s3 = inlined_call_operand.vmem [shape: bf16[512,128], index: 3, kind: output, shape index: {}]
  %s4 = sld [smem:[#allocation0]]
  $region45: #{darknet10_forward.22} parent=0
    _
  %s6 = ssub.s32 1, %s4
  %s7 = scalar_select 0, %s6, %s4
  loop: start=0, step=1, limit=4
  $region2: #{darknet10_forward.22} parent=0 // loop_pre_header
    _
  $region3: #{darknet10_forward.22} parent=0 // loop_header
    %s9 = sphi 0, %s13
    %p10 = scmp.ge.s32.totalorder %s9, 4
    %s19 = sphi 0, %s21
    %s22 = sphi 0, %s19
    %s23 = sphi 0, %s22
    %s39 = sphi 0, %s23
    %s43 = sphi 0, %s43
    %s45 = sphi 0, %s43
    %s46 = sphi 0, %s45
    %s60 = sphi 0, %s46
    %s64 = sphi 0, %s64
    %s66 = sphi 0, %s64
    %s67 = sphi 0, %s66
    %s81 = sphi 0, %s67
    %s87 = sphi 0, %s89
    %s90 = sphi 0, %s87
    %s91 = sphi 0, %s90
    %s107 = sphi 0, %s91
  $region4: #{darknet10_forward.22} parent=0 // loop_header_branch
    %12 = sbr.rel (%p10) target = $region8
  $region5: #{darknet10_forward.22} parent=0 // loop_body
    %s14 = ssub.s32 %s9, 1
    %s15 = ssub.s32 %s9, 2
    %s16 = sadd.s32 %s9, 1
    %s17 = ssub.s32 %s9, %s16
    %p18 = scmp.eq.s32.totalorder %s17, 0
    %s20 = sadd.s32 %s19, 1
    %s21 = scalar_select %p18, %s19, %s20
    %p24 = pneg %p18
    %p25 = scmp.eq.s32.totalorder %s9, 1
    %p26 = por %p24, %p25
    %p27 = scmp.ne.s32.totalorder %s19, %s22
    %p28 = scmp.eq.s32.totalorder %s9, 0
    %p29 = por %p27, %p28
    %p30 = scmp.ne.s32.totalorder %s19, %s22
    %p31 = scmp.eq.s32.totalorder %s14, 1
    %p32 = por %p30, %p31
    %p33 = scmp.ne.s32.totalorder %s22, %s23
    %p34 = scmp.eq.s32.totalorder %s14, 0
    %p35 = por %p33, %p34
    %p36 = scmp.ne.s32.totalorder %s22, %s23
    %p37 = scmp.eq.s32.totalorder %s15, 1
    %p38 = por %p36, %p37
    %p40 = scmp.ne.s32.totalorder %s23, %s39
    %p41 = scmp.eq.s32.totalorder %s15, 0
    %p42 = por %p40, %p41
    %s44 = sadd.s32 %s43, 1
    %p47 = scmp.eq.s32.totalorder %s9, 1
    %p48 = scmp.ne.s32.totalorder %s43, %s45
    %p49 = scmp.eq.s32.totalorder %s9, 0
    %p50 = por %p48, %p49
    %p51 = scmp.ne.s32.totalorder %s43, %s45
    %p52 = scmp.eq.s32.totalorder %s14, 1
    %p53 = por %p51, %p52
    %p54 = scmp.ne.s32.totalorder %s45, %s46
    %p55 = scmp.eq.s32.totalorder %s14, 0
    %p56 = por %p54, %p55
    %p57 = scmp.ne.s32.totalorder %s45, %s46
    %p58 = scmp.eq.s32.totalorder %s15, 1
    %p59 = por %p57, %p58
    %p61 = scmp.ne.s32.totalorder %s46, %s60
    %p62 = scmp.eq.s32.totalorder %s15, 0
    %p63 = por %p61, %p62
    %s65 = sadd.s32 %s64, 1
    %p68 = scmp.eq.s32.totalorder %s9, 1
    %p69 = scmp.ne.s32.totalorder %s64, %s66
    %p70 = scmp.eq.s32.totalorder %s9, 0
    %p71 = por %p69, %p70
    %p72 = scmp.ne.s32.totalorder %s64, %s66
    %p73 = scmp.eq.s32.totalorder %s14, 1
    %p74 = por %p72, %p73
    %p75 = scmp.ne.s32.totalorder %s66, %s67
    %p76 = scmp.eq.s32.totalorder %s14, 0
    %p77 = por %p75, %p76
    %p78 = scmp.ne.s32.totalorder %s66, %s67
    %p79 = scmp.eq.s32.totalorder %s15, 1
    %p80 = por %p78, %p79
    %p82 = scmp.ne.s32.totalorder %s67, %s81
    %p83 = scmp.eq.s32.totalorder %s15, 0
    %p84 = por %p82, %p83
    %s85 = ssub.s32 %s9, %s16
    %p86 = scmp.eq.s32.totalorder %s85, 0
    %s88 = sadd.s32 %s87, 1
    %s89 = scalar_select %p86, %s87, %s88
    %p92 = pneg %p86
    %p93 = scmp.eq.s32.totalorder %s9, 1
    %p94 = por %p92, %p93
    %p95 = scmp.ne.s32.totalorder %s87, %s90
    %p96 = scmp.eq.s32.totalorder %s9, 0
    %p97 = por %p95, %p96
    %p98 = scmp.ne.s32.totalorder %s87, %s90
    %p99 = scmp.eq.s32.totalorder %s14, 1
    %p100 = por %p98, %p99
    %p101 = scmp.ne.s32.totalorder %s90, %s91
    %p102 = scmp.eq.s32.totalorder %s14, 0
    %p103 = por %p101, %p102
    %p104 = scmp.ne.s32.totalorder %s90, %s91
    %p105 = scmp.eq.s32.totalorder %s15, 1
    %p106 = por %p104, %p105
    %p108 = scmp.ne.s32.totalorder %s91, %s107
    %p109 = scmp.eq.s32.totalorder %s15, 0
    %p110 = por %p108, %p109
    %p111 = scmp.le.s32.totalorder 1, %s9
    %p112 = scmp.lt.s32.totalorder %s9, 3
    %p113 = pnand %p111, %p112
    %p114 = pneg %p113
    // Predicated region
    $region9: #{darknet10_forward.22} parent=5 // pred_check
      _
    $region10: #{darknet10_forward.22} parent=5 // pred_check_branch
      %116 = sbr.rel (%p113) target = $region12
    $region11: #{darknet10_forward.22} parent=5 // pred_region
      %s117 = ssub.s32 %s9, 1
      // Predicated region
      $region13: #{darknet10_forward.22} parent=11 // pred_check
        %p118 = pneg %p56
      $region14: #{darknet10_forward.22} parent=11 // pred_check_branch
        %120 = sbr.rel (%p118) target = $region16
      $region15: #{darknet10_forward.22} parent=11 // pred_region
        _
      $region16: #{darknet10_forward.22} parent=11 // pred_fallthru
        _
      // Predicated region
      $region17: #{darknet10_forward.22} parent=11 // pred_check
        %p121 = pneg %p77
      $region18: #{darknet10_forward.22} parent=11 // pred_check_branch
        %123 = sbr.rel (%p121) target = $region20
      $region19: #{darknet10_forward.22} parent=11 // pred_region
        _
      $region20: #{darknet10_forward.22} parent=11 // pred_fallthru
        _
    $region12: #{darknet10_forward.22} parent=5 // pred_fallthru
      _
    %p124 = scmp.lt.s32.totalorder %s9, 2
    // Predicated region
    $region21: #{darknet10_forward.22} parent=5 // pred_check
      %p125 = pneg %p124
    $region22: #{darknet10_forward.22} parent=5 // pred_check_branch
      %127 = sbr.rel (%p125) target = $region24
    $region23: #{darknet10_forward.22} parent=5 // pred_region
      // Predicated region
      $region25: #{darknet10_forward.22} parent=23 // pred_check
        %p128 = pneg %p29
      $region26: #{darknet10_forward.22} parent=23 // pred_check_branch
        %130 = sbr.rel (%p128) target = $region28
      $region27: #{darknet10_forward.22} parent=23 // pred_region
        %s131 = smul.u32 32, %s9
        %p132 = scmp.lt.s32.totalorder %s131, 63
        %s133 = scalar_select %p132, %s131, 63
        %s134 = smul.addr %s133, 4
        %s135 = scalar_lea.vmem %s0, %s134
        %s136 = smul.u32 32, %s9
      $region28: #{darknet10_forward.22} parent=23 // pred_fallthru
        _
    $region24: #{darknet10_forward.22} parent=5 // pred_fallthru
      _
    %p137 = scmp.le.s32.totalorder 1, %s9
    %p138 = scmp.lt.s32.totalorder %s9, 3
    %p139 = pnand %p137, %p138
    %p140 = pneg %p139
    // Predicated region
    $region29: #{darknet10_forward.22} parent=5 // pred_check
      _
    $region30: #{darknet10_forward.22} parent=5 // pred_check_branch
      %142 = sbr.rel (%p139) target = $region32
    $region31: #{darknet10_forward.22} parent=5 // pred_region
      %s143 = ssub.s32 %s9, 1
      %s144 = smul.u32 32, %s14
      %p145 = scmp.lt.s32.totalorder %s144, 63
      %s146 = scalar_select %p145, %s144, 63
      %s147 = smul.addr %s146, 4
      %s148 = scalar_lea.vmem %s0, %s147
      %p149 = pneg %p35
      %p150 = pneg %p32
      %p151 = pneg %p56
      %p152 = pneg %p53
      %p153 = pneg %p77
      %p154 = pneg %p74
      %p155 = pneg %p103
      %p156 = pneg %p100
      %s157 = smul.u32 32, %s14
      %p158 = scmp.lt.s32.totalorder %s157, 63
      %s159 = scalar_select %p158, %s157, 63
      %s160 = smul.addr %s159, 4
      %s161 = scalar_lea.vmem %s3, %s160
      %s162 = smul.u32 32, %s14
      %p163 = scmp.lt.s32.totalorder %s162, 63
      %s164 = scalar_select %p163, %s162, 63
      %s165 = smul.addr %s164, 4
      %s166 = scalar_lea.vmem %s0, %s165
      %s167 = smul.u32 32, %s14
      %s168 = smul.u32 32, %s14
      %p169 = scmp.lt.s32.totalorder %s168, 63
      %s170 = scalar_select %p169, %s168, 63
      %s171 = smul.addr %s170, 4
      %s172 = scalar_lea.vmem %s3, %s171
      %s173 = smul.u32 32, %s14
      %v174 = vld [vmem:[%s166] sm:$0xf]
      %v175 = vld [vmem:[%s166 + $0x4] sm:$0xf]
      %v176 = vld [vmem:[%s166 + $0x8] sm:$0xf]
      %v177 = vld [vmem:[%s166 + $0xc] sm:$0xf]
      %v178 = vld [vmem:[%s166 + $0x10] sm:$0xf]
      %v179 = vld [vmem:[%s166 + $0x14] sm:$0xf]
      %v180 = vld [vmem:[%s166 + $0x18] sm:$0xf]
      %v181 = vld [vmem:[%s166 + $0x1c] sm:$0xf]
      %v182 = vld [vmem:[%s166 + $0x20] sm:$0xf]
      %v183 = vld [vmem:[%s166 + $0x24] sm:$0xf]
      %v184 = vld [vmem:[%s166 + $0x28] sm:$0xf]
      %v185 = vld [vmem:[%s166 + $0x2c] sm:$0xf]
      %v186 = vld [vmem:[%s166 + $0x30] sm:$0xf]
      %v187 = vld [vmem:[%s166 + $0x34] sm:$0xf]
      %v188 = vld [vmem:[%s166 + $0x38] sm:$0xf]
      %v189 = vld [vmem:[%s166 + $0x3c] sm:$0xf]
      %v190 = vld [vmem:[%s166 + $0x40] sm:$0xf]
      %v191 = vld [vmem:[%s166 + $0x44] sm:$0xf]
      %v192 = vld [vmem:[%s166 + $0x48] sm:$0xf]
      %v193 = vld [vmem:[%s166 + $0x4c] sm:$0xf]
      %v194 = vld [vmem:[%s166 + $0x50] sm:$0xf]
      %v195 = vld [vmem:[%s166 + $0x54] sm:$0xf]
      %v196 = vld [vmem:[%s166 + $0x58] sm:$0xf]
      %v197 = vld [vmem:[%s166 + $0x5c] sm:$0xf]
      %v198 = vld [vmem:[%s166 + $0x60] sm:$0xf]
      %v199 = vld [vmem:[%s166 + $0x64] sm:$0xf]
      %v200 = vld [vmem:[%s166 + $0x68] sm:$0xf]
      %v201 = vld [vmem:[%s166 + $0x6c] sm:$0xf]
      %v202 = vld [vmem:[%s166 + $0x70] sm:$0xf]
      %v203 = vld [vmem:[%s166 + $0x74] sm:$0xf]
      %v204 = vld [vmem:[%s166 + $0x78] sm:$0xf]
      %v205 = vld [vmem:[%s166 + $0x7c] sm:$0xf]
      %v206 = vunpack.c.l.bf16 %v174
      %v207 = vunpack.c.l.bf16 %v175
      %v208 = vunpack.c.l.bf16 %v176
      %v209 = vunpack.c.l.bf16 %v177
      %v210 = vunpack.c.l.bf16 %v178
      %v211 = vunpack.c.l.bf16 %v179
      %v212 = vunpack.c.l.bf16 %v180
      %v213 = vunpack.c.l.bf16 %v181
      %v214 = vunpack.c.l.bf16 %v182
      %v215 = vunpack.c.l.bf16 %v183
      %v216 = vunpack.c.l.bf16 %v184
      %v217 = vunpack.c.l.bf16 %v185
      %v218 = vunpack.c.l.bf16 %v186
      %v219 = vunpack.c.l.bf16 %v187
      %v220 = vunpack.c.l.bf16 %v188
      %v221 = vunpack.c.l.bf16 %v189
      %v222 = vunpack.c.l.bf16 %v190
      %v223 = vunpack.c.l.bf16 %v191
      %v224 = vunpack.c.l.bf16 %v192
      %v225 = vunpack.c.l.bf16 %v193
      %v226 = vunpack.c.l.bf16 %v194
      %v227 = vunpack.c.l.bf16 %v195
      %v228 = vunpack.c.l.bf16 %v196
      %v229 = vunpack.c.l.bf16 %v197
      %v230 = vunpack.c.l.bf16 %v198
      %v231 = vunpack.c.l.bf16 %v199
      %v232 = vunpack.c.l.bf16 %v200
      %v233 = vunpack.c.l.bf16 %v201
      %v234 = vunpack.c.l.bf16 %v202
      %v235 = vunpack.c.l.bf16 %v203
      %v236 = vunpack.c.l.bf16 %v204
      %v237 = vunpack.c.l.bf16 %v205
      %v238 = vld [vmem:[%s1] sm:$0x1]
      %v240 = vperm.slane %v238, 0
      %v242 = vmul.f32 %v206, %v240
      %v243 = vmul.f32 %v207, %v240
      %v244 = vmul.f32 %v208, %v240
      %v245 = vmul.f32 %v209, %v240
      %v246 = vmul.f32 %v210, %v240
      %v247 = vmul.f32 %v211, %v240
      %v248 = vmul.f32 %v212, %v240
      %v249 = vmul.f32 %v213, %v240
      %v250 = vmul.f32 %v214, %v240
      %v251 = vmul.f32 %v215, %v240
      %v252 = vmul.f32 %v216, %v240
      %v253 = vmul.f32 %v217, %v240
      %v254 = vmul.f32 %v218, %v240
      %v255 = vmul.f32 %v219, %v240
      %v256 = vmul.f32 %v220, %v240
      %v257 = vmul.f32 %v221, %v240
      %v258 = vmul.f32 %v222, %v240
      %v259 = vmul.f32 %v223, %v240
      %v260 = vmul.f32 %v224, %v240
      %v261 = vmul.f32 %v225, %v240
      %v262 = vmul.f32 %v226, %v240
      %v263 = vmul.f32 %v227, %v240
      %v264 = vmul.f32 %v228, %v240
      %v265 = vmul.f32 %v229, %v240
      %v266 = vmul.f32 %v230, %v240
      %v267 = vmul.f32 %v231, %v240
      %v268 = vmul.f32 %v232, %v240
      %v269 = vmul.f32 %v233, %v240
      %v270 = vmul.f32 %v234, %v240
      %v271 = vmul.f32 %v235, %v240
      %v272 = vmul.f32 %v236, %v240
      %v273 = vmul.f32 %v237, %v240
      %v274 = vld [vmem:[%s2] sm:$0x1]
      %v276 = vperm.slane %v274, 0
      %v278 = vadd.f32 %v242, %v276
      %v279 = vadd.f32 %v243, %v276
      %v280 = vadd.f32 %v244, %v276
      %v281 = vadd.f32 %v245, %v276
      %v282 = vadd.f32 %v246, %v276
      %v283 = vadd.f32 %v247, %v276
      %v284 = vadd.f32 %v248, %v276
      %v285 = vadd.f32 %v249, %v276
      %v286 = vadd.f32 %v250, %v276
      %v287 = vadd.f32 %v251, %v276
      %v288 = vadd.f32 %v252, %v276
      %v289 = vadd.f32 %v253, %v276
      %v290 = vadd.f32 %v254, %v276
      %v291 = vadd.f32 %v255, %v276
      %v292 = vadd.f32 %v256, %v276
      %v293 = vadd.f32 %v257, %v276
      %v294 = vadd.f32 %v258, %v276
      %v295 = vadd.f32 %v259, %v276
      %v296 = vadd.f32 %v260, %v276
      %v297 = vadd.f32 %v261, %v276
      %v298 = vadd.f32 %v262, %v276
      %v299 = vadd.f32 %v263, %v276
      %v300 = vadd.f32 %v264, %v276
      %v301 = vadd.f32 %v265, %v276
      %v302 = vadd.f32 %v266, %v276
      %v303 = vadd.f32 %v267, %v276
      %v304 = vadd.f32 %v268, %v276
      %v305 = vadd.f32 %v269, %v276
      %v306 = vadd.f32 %v270, %v276
      %v307 = vadd.f32 %v271, %v276
      %v308 = vadd.f32 %v272, %v276
      %v309 = vadd.f32 %v273, %v276
      %vm310 = vcmp.gt.f32.partialorder %v278, 0.0
      %vm311 = vcmp.gt.f32.partialorder %v279, 0.0
      %vm312 = vcmp.gt.f32.partialorder %v280, 0.0
      %vm313 = vcmp.gt.f32.partialorder %v281, 0.0
      %vm314 = vcmp.gt.f32.partialorder %v282, 0.0
      %vm315 = vcmp.gt.f32.partialorder %v283, 0.0
      %vm316 = vcmp.gt.f32.partialorder %v284, 0.0
      %vm317 = vcmp.gt.f32.partialorder %v285, 0.0
      %vm318 = vcmp.gt.f32.partialorder %v286, 0.0
      %vm319 = vcmp.gt.f32.partialorder %v287, 0.0
      %vm320 = vcmp.gt.f32.partialorder %v288, 0.0
      %vm321 = vcmp.gt.f32.partialorder %v289, 0.0
      %vm322 = vcmp.gt.f32.partialorder %v290, 0.0
      %vm323 = vcmp.gt.f32.partialorder %v291, 0.0
      %vm324 = vcmp.gt.f32.partialorder %v292, 0.0
      %vm325 = vcmp.gt.f32.partialorder %v293, 0.0
      %vm326 = vcmp.gt.f32.partialorder %v294, 0.0
      %vm327 = vcmp.gt.f32.partialorder %v295, 0.0
      %vm328 = vcmp.gt.f32.partialorder %v296, 0.0
      %vm329 = vcmp.gt.f32.partialorder %v297, 0.0
      %vm330 = vcmp.gt.f32.partialorder %v298, 0.0
      %vm331 = vcmp.gt.f32.partialorder %v299, 0.0
      %vm332 = vcmp.gt.f32.partialorder %v300, 0.0
      %vm333 = vcmp.gt.f32.partialorder %v301, 0.0
      %vm334 = vcmp.gt.f32.partialorder %v302, 0.0
      %vm335 = vcmp.gt.f32.partialorder %v303, 0.0
      %vm336 = vcmp.gt.f32.partialorder %v304, 0.0
      %vm337 = vcmp.gt.f32.partialorder %v305, 0.0
      %vm338 = vcmp.gt.f32.partialorder %v306, 0.0
      %vm339 = vcmp.gt.f32.partialorder %v307, 0.0
      %vm340 = vcmp.gt.f32.partialorder %v308, 0.0
      %vm341 = vcmp.gt.f32.partialorder %v309, 0.0
      %v342 = vmul.f32 %v278, 0.1
      %v343 = vmul.f32 %v279, 0.1
      %v344 = vmul.f32 %v280, 0.1
      %v345 = vmul.f32 %v281, 0.1
      %v346 = vmul.f32 %v282, 0.1
      %v347 = vmul.f32 %v283, 0.1
      %v348 = vmul.f32 %v284, 0.1
      %v349 = vmul.f32 %v285, 0.1
      %v350 = vmul.f32 %v286, 0.1
      %v351 = vmul.f32 %v287, 0.1
      %v352 = vmul.f32 %v288, 0.1
      %v353 = vmul.f32 %v289, 0.1
      %v354 = vmul.f32 %v290, 0.1
      %v355 = vmul.f32 %v291, 0.1
      %v356 = vmul.f32 %v292, 0.1
      %v357 = vmul.f32 %v293, 0.1
      %v358 = vmul.f32 %v294, 0.1
      %v359 = vmul.f32 %v295, 0.1
      %v360 = vmul.f32 %v296, 0.1
      %v361 = vmul.f32 %v297, 0.1
      %v362 = vmul.f32 %v298, 0.1
      %v363 = vmul.f32 %v299, 0.1
      %v364 = vmul.f32 %v300, 0.1
      %v365 = vmul.f32 %v301, 0.1
      %v366 = vmul.f32 %v302, 0.1
      %v367 = vmul.f32 %v303, 0.1
      %v368 = vmul.f32 %v304, 0.1
      %v369 = vmul.f32 %v305, 0.1
      %v370 = vmul.f32 %v306, 0.1
      %v371 = vmul.f32 %v307, 0.1
      %v372 = vmul.f32 %v308, 0.1
      %v373 = vmul.f32 %v309, 0.1
      %v374 = vsel %vm310, %v278, %v342
      %v375 = vsel %vm311, %v279, %v343
      %v376 = vsel %vm312, %v280, %v344
      %v377 = vsel %vm313, %v281, %v345
      %v378 = vsel %vm314, %v282, %v346
      %v379 = vsel %vm315, %v283, %v347
      %v380 = vsel %vm316, %v284, %v348
      %v381 = vsel %vm317, %v285, %v349
      %v382 = vsel %vm318, %v286, %v350
      %v383 = vsel %vm319, %v287, %v351
      %v384 = vsel %vm320, %v288, %v352
      %v385 = vsel %vm321, %v289, %v353
      %v386 = vsel %vm322, %v290, %v354
      %v387 = vsel %vm323, %v291, %v355
      %v388 = vsel %vm324, %v292, %v356
      %v389 = vsel %vm325, %v293, %v357
      %v390 = vsel %vm326, %v294, %v358
      %v391 = vsel %vm327, %v295, %v359
      %v392 = vsel %vm328, %v296, %v360
      %v393 = vsel %vm329, %v297, %v361
      %v394 = vsel %vm330, %v298, %v362
      %v395 = vsel %vm331, %v299, %v363
      %v396 = vsel %vm332, %v300, %v364
      %v397 = vsel %vm333, %v301, %v365
      %v398 = vsel %vm334, %v302, %v366
      %v399 = vsel %vm335, %v303, %v367
      %v400 = vsel %vm336, %v304, %v368
      %v401 = vsel %vm337, %v305, %v369
      %v402 = vsel %vm338, %v306, %v370
      %v403 = vsel %vm339, %v307, %v371
      %v404 = vsel %vm340, %v308, %v372
      %v405 = vsel %vm341, %v309, %v373
      %v406 = vpack.c.bf16 %v374, %v374
      %v407 = vpack.c.bf16 %v375, %v375
      %v408 = vpack.c.bf16 %v376, %v376
      %v409 = vpack.c.bf16 %v377, %v377
      %v410 = vpack.c.bf16 %v378, %v378
      %v411 = vpack.c.bf16 %v379, %v379
      %v412 = vpack.c.bf16 %v380, %v380
      %v413 = vpack.c.bf16 %v381, %v381
      %v414 = vpack.c.bf16 %v382, %v382
      %v415 = vpack.c.bf16 %v383, %v383
      %v416 = vpack.c.bf16 %v384, %v384
      %v417 = vpack.c.bf16 %v385, %v385
      %v418 = vpack.c.bf16 %v386, %v386
      %v419 = vpack.c.bf16 %v387, %v387
      %v420 = vpack.c.bf16 %v388, %v388
      %v421 = vpack.c.bf16 %v389, %v389
      %v422 = vpack.c.bf16 %v390, %v390
      %v423 = vpack.c.bf16 %v391, %v391
      %v424 = vpack.c.bf16 %v392, %v392
      %v425 = vpack.c.bf16 %v393, %v393
      %v426 = vpack.c.bf16 %v394, %v394
      %v427 = vpack.c.bf16 %v395, %v395
      %v428 = vpack.c.bf16 %v396, %v396
      %v429 = vpack.c.bf16 %v397, %v397
      %v430 = vpack.c.bf16 %v398, %v398
      %v431 = vpack.c.bf16 %v399, %v399
      %v432 = vpack.c.bf16 %v400, %v400
      %v433 = vpack.c.bf16 %v401, %v401
      %v434 = vpack.c.bf16 %v402, %v402
      %v435 = vpack.c.bf16 %v403, %v403
      %v436 = vpack.c.bf16 %v404, %v404
      %v437 = vpack.c.bf16 %v405, %v405
      %438 = vst [vmem:[%s172] sm:$0xf] %v406
      %439 = vst [vmem:[%s172 + $0x4] sm:$0xf] %v407
      %440 = vst [vmem:[%s172 + $0x8] sm:$0xf] %v408
      %441 = vst [vmem:[%s172 + $0xc] sm:$0xf] %v409
      %442 = vst [vmem:[%s172 + $0x10] sm:$0xf] %v410
      %443 = vst [vmem:[%s172 + $0x14] sm:$0xf] %v411
      %444 = vst [vmem:[%s172 + $0x18] sm:$0xf] %v412
      %445 = vst [vmem:[%s172 + $0x1c] sm:$0xf] %v413
      %446 = vst [vmem:[%s172 + $0x20] sm:$0xf] %v414
      %447 = vst [vmem:[%s172 + $0x24] sm:$0xf] %v415
      %448 = vst [vmem:[%s172 + $0x28] sm:$0xf] %v416
      %449 = vst [vmem:[%s172 + $0x2c] sm:$0xf] %v417
      %450 = vst [vmem:[%s172 + $0x30] sm:$0xf] %v418
      %451 = vst [vmem:[%s172 + $0x34] sm:$0xf] %v419
      %452 = vst [vmem:[%s172 + $0x38] sm:$0xf] %v420
      %453 = vst [vmem:[%s172 + $0x3c] sm:$0xf] %v421
      %454 = vst [vmem:[%s172 + $0x40] sm:$0xf] %v422
      %455 = vst [vmem:[%s172 + $0x44] sm:$0xf] %v423
      %456 = vst [vmem:[%s172 + $0x48] sm:$0xf] %v424
      %457 = vst [vmem:[%s172 + $0x4c] sm:$0xf] %v425
      %458 = vst [vmem:[%s172 + $0x50] sm:$0xf] %v426
      %459 = vst [vmem:[%s172 + $0x54] sm:$0xf] %v427
      %460 = vst [vmem:[%s172 + $0x58] sm:$0xf] %v428
      %461 = vst [vmem:[%s172 + $0x5c] sm:$0xf] %v429
      %462 = vst [vmem:[%s172 + $0x60] sm:$0xf] %v430
      %463 = vst [vmem:[%s172 + $0x64] sm:$0xf] %v431
      %464 = vst [vmem:[%s172 + $0x68] sm:$0xf] %v432
      %465 = vst [vmem:[%s172 + $0x6c] sm:$0xf] %v433
      %466 = vst [vmem:[%s172 + $0x70] sm:$0xf] %v434
      %467 = vst [vmem:[%s172 + $0x74] sm:$0xf] %v435
      %468 = vst [vmem:[%s172 + $0x78] sm:$0xf] %v436
      %469 = vst [vmem:[%s172 + $0x7c] sm:$0xf] %v437
      %s470 = smul.u32 32, %s14
      %p471 = scmp.lt.s32.totalorder %s470, 63
      %s472 = scalar_select %p471, %s470, 63
      %s473 = smul.addr %s472, 4
      %s474 = scalar_lea.vmem %s3, %s473
      // Predicated region
      $region33: #{darknet10_forward.22} parent=31 // pred_check
        %p475 = pneg %p100
      $region34: #{darknet10_forward.22} parent=31 // pred_check_branch
        %477 = sbr.rel (%p475) target = $region36
      $region35: #{darknet10_forward.22} parent=31 // pred_region
        %s478 = smul.u32 32, %s14
      $region36: #{darknet10_forward.22} parent=31 // pred_fallthru
        _
    $region32: #{darknet10_forward.22} parent=5 // pred_fallthru
      _
    %p479 = scmp.le.s32.totalorder 2, %s9
    // Predicated region
    $region37: #{darknet10_forward.22} parent=5 // pred_check
      %p480 = pneg %p479
    $region38: #{darknet10_forward.22} parent=5 // pred_check_branch
      %482 = sbr.rel (%p480) target = $region40
    $region39: #{darknet10_forward.22} parent=5 // pred_region
      %s483 = ssub.s32 %s9, 2
      // Predicated region
      $region41: #{darknet10_forward.22} parent=39 // pred_check
        %p484 = pneg %p106
      $region42: #{darknet10_forward.22} parent=39 // pred_check_branch
        %486 = sbr.rel (%p484) target = $region44
      $region43: #{darknet10_forward.22} parent=39 // pred_region
        %s487 = smul.u32 32, %s15
        %p488 = scmp.lt.s32.totalorder %s487, 63
        %s489 = scalar_select %p488, %s487, 63
        %s490 = smul.addr %s489, 4
        %s491 = scalar_lea.vmem %s3, %s490
      $region44: #{darknet10_forward.22} parent=39 // pred_fallthru
        _
    $region40: #{darknet10_forward.22} parent=5 // pred_fallthru
      _
  $region6: #{darknet10_forward.22} parent=0 // loop_footer
    %s13 = sadd.s32 1, %s9
  $region7: #{darknet10_forward.22} parent=0 // loop_footer_branch
    %8 = sbr.rel target = $region3
  $region8: #{darknet10_forward.22} parent=0 // loop_exit
    _

// kernel: darknet10_forward.21
$region0: #{darknet10_forward.21}
  #allocation0 [shape = 'u32[]', space=smem, size = 0x4, offset = 0x4, fixed_abs, tag = 'smem constant byte address 0x4 - core index']
  #allocation1 [shape = 'u32[72,128]{1,0:T(1,128)}', space=vmem, size = 0x9000, scoped, tag = 'internal scratch']
  %s0 = inlined_call_operand.vmem [shape: bf16[512,72], index: 0, kind: input, shape index: {}]
  %s1 = inlined_call_operand.vmem [shape: bf16[72,128], index: 1, kind: input, shape index: {}]
  %s2 = inlined_call_operand.vmem [shape: bf16[512,128], index: 2, kind: output, shape index: {0}]
  %s3 = inlined_call_operand.vmem [shape: f32[2,2,128], index: 3, kind: output, shape index: {1}]
  %4 = xla_tuple %s2, %s3
  %s5 = sld [smem:[#allocation0]]
  $region49: #{darknet10_forward.21} parent=0
    _
  %s7 = ssub.s32 1, %s5
  %s8 = scalar_select 0, %s7, %s5
  loop: start=0, step=1, limit=4
  $region2: #{darknet10_forward.21} parent=0 // loop_pre_header
    _
  $region3: #{darknet10_forward.21} parent=0 // loop_header
    %s10 = sphi 0, %s14
    %p11 = scmp.ge.s32.totalorder %s10, 4
    %s20 = sphi 0, %s22
    %s23 = sphi 0, %s20
    %s24 = sphi 0, %s23
    %s40 = sphi 0, %s24
    %s44 = sphi 0, %s44
    %s46 = sphi 0, %s44
    %s47 = sphi 0, %s46
    %s61 = sphi 0, %s47
    %s67 = sphi 0, %s69
    %s70 = sphi 0, %s67
    %s71 = sphi 0, %s70
    %s87 = sphi 0, %s71
    %s93 = sphi 0, %s95
    %s96 = sphi 0, %s93
    %s97 = sphi 0, %s96
    %s113 = sphi 0, %s97
  $region4: #{darknet10_forward.21} parent=0 // loop_header_branch
    %13 = sbr.rel (%p11) target = $region8
  $region5: #{darknet10_forward.21} parent=0 // loop_body
    %s15 = ssub.s32 %s10, 1
    %s16 = ssub.s32 %s10, 2
    %s17 = sadd.s32 %s10, 1
    %s18 = ssub.s32 %s10, %s17
    %p19 = scmp.eq.s32.totalorder %s18, 0
    %s21 = sadd.s32 %s20, 1
    %s22 = scalar_select %p19, %s20, %s21
    %p25 = pneg %p19
    %p26 = scmp.eq.s32.totalorder %s10, 1
    %p27 = por %p25, %p26
    %p28 = scmp.ne.s32.totalorder %s20, %s23
    %p29 = scmp.eq.s32.totalorder %s10, 0
    %p30 = por %p28, %p29
    %p31 = scmp.ne.s32.totalorder %s20, %s23
    %p32 = scmp.eq.s32.totalorder %s15, 1
    %p33 = por %p31, %p32
    %p34 = scmp.ne.s32.totalorder %s23, %s24
    %p35 = scmp.eq.s32.totalorder %s15, 0
    %p36 = por %p34, %p35
    %p37 = scmp.ne.s32.totalorder %s23, %s24
    %p38 = scmp.eq.s32.totalorder %s16, 1
    %p39 = por %p37, %p38
    %p41 = scmp.ne.s32.totalorder %s24, %s40
    %p42 = scmp.eq.s32.totalorder %s16, 0
    %p43 = por %p41, %p42
    %s45 = sadd.s32 %s44, 1
    %p48 = scmp.eq.s32.totalorder %s10, 1
    %p49 = scmp.ne.s32.totalorder %s44, %s46
    %p50 = scmp.eq.s32.totalorder %s10, 0
    %p51 = por %p49, %p50
    %p52 = scmp.ne.s32.totalorder %s44, %s46
    %p53 = scmp.eq.s32.totalorder %s15, 1
    %p54 = por %p52, %p53
    %p55 = scmp.ne.s32.totalorder %s46, %s47
    %p56 = scmp.eq.s32.totalorder %s15, 0
    %p57 = por %p55, %p56
    %p58 = scmp.ne.s32.totalorder %s46, %s47
    %p59 = scmp.eq.s32.totalorder %s16, 1
    %p60 = por %p58, %p59
    %p62 = scmp.ne.s32.totalorder %s47, %s61
    %p63 = scmp.eq.s32.totalorder %s16, 0
    %p64 = por %p62, %p63
    %s65 = ssub.s32 %s10, %s17
    %p66 = scmp.eq.s32.totalorder %s65, 0
    %s68 = sadd.s32 %s67, 1
    %s69 = scalar_select %p66, %s67, %s68
    %p72 = pneg %p66
    %p73 = scmp.eq.s32.totalorder %s10, 1
    %p74 = por %p72, %p73
    %p75 = scmp.ne.s32.totalorder %s67, %s70
    %p76 = scmp.eq.s32.totalorder %s10, 0
    %p77 = por %p75, %p76
    %p78 = scmp.ne.s32.totalorder %s67, %s70
    %p79 = scmp.eq.s32.totalorder %s15, 1
    %p80 = por %p78, %p79
    %p81 = scmp.ne.s32.totalorder %s70, %s71
    %p82 = scmp.eq.s32.totalorder %s15, 0
    %p83 = por %p81, %p82
    %p84 = scmp.ne.s32.totalorder %s70, %s71
    %p85 = scmp.eq.s32.totalorder %s16, 1
    %p86 = por %p84, %p85
    %p88 = scmp.ne.s32.totalorder %s71, %s87
    %p89 = scmp.eq.s32.totalorder %s16, 0
    %p90 = por %p88, %p89
    %s91 = ssub.s32 %s10, %s17
    %p92 = scmp.eq.s32.totalorder %s91, 0
    %s94 = sadd.s32 %s93, 1
    %s95 = scalar_select %p92, %s93, %s94
    %p98 = pneg %p92
    %p99 = scmp.eq.s32.totalorder %s10, 1
    %p100 = por %p98, %p99
    %p101 = scmp.ne.s32.totalorder %s93, %s96
    %p102 = scmp.eq.s32.totalorder %s10, 0
    %p103 = por %p101, %p102
    %p104 = scmp.ne.s32.totalorder %s93, %s96
    %p105 = scmp.eq.s32.totalorder %s15, 1
    %p106 = por %p104, %p105
    %p107 = scmp.ne.s32.totalorder %s96, %s97
    %p108 = scmp.eq.s32.totalorder %s15, 0
    %p109 = por %p107, %p108
    %p110 = scmp.ne.s32.totalorder %s96, %s97
    %p111 = scmp.eq.s32.totalorder %s16, 1
    %p112 = por %p110, %p111
    %p114 = scmp.ne.s32.totalorder %s97, %s113
    %p115 = scmp.eq.s32.totalorder %s16, 0
    %p116 = por %p114, %p115
    %p117 = scmp.le.s32.totalorder 1, %s10
    %p118 = scmp.lt.s32.totalorder %s10, 3
    %p119 = pnand %p117, %p118
    %p120 = pneg %p119
    // Predicated region
    $region9: #{darknet10_forward.21} parent=5 // pred_check
      _
    $region10: #{darknet10_forward.21} parent=5 // pred_check_branch
      %122 = sbr.rel (%p119) target = $region12
    $region11: #{darknet10_forward.21} parent=5 // pred_region
      %s123 = ssub.s32 %s10, 1
      // Predicated region
      $region13: #{darknet10_forward.21} parent=11 // pred_check
        %p124 = pneg %p57
      $region14: #{darknet10_forward.21} parent=11 // pred_check_branch
        %126 = sbr.rel (%p124) target = $region16
      $region15: #{darknet10_forward.21} parent=11 // pred_region
        _
      $region16: #{darknet10_forward.21} parent=11 // pred_fallthru
        _
    $region12: #{darknet10_forward.21} parent=5 // pred_fallthru
      _
    %p127 = scmp.lt.s32.totalorder %s10, 2
    // Predicated region
    $region17: #{darknet10_forward.21} parent=5 // pred_check
      %p128 = pneg %p127
    $region18: #{darknet10_forward.21} parent=5 // pred_check_branch
      %130 = sbr.rel (%p128) target = $region20
    $region19: #{darknet10_forward.21} parent=5 // pred_region
      // Predicated region
      $region21: #{darknet10_forward.21} parent=19 // pred_check
        %p131 = pneg %p30
      $region22: #{darknet10_forward.21} parent=19 // pred_check_branch
        %133 = sbr.rel (%p131) target = $region24
      $region23: #{darknet10_forward.21} parent=19 // pred_region
        %s134 = smul.u32 32, %s10
        %p135 = scmp.lt.s32.totalorder %s134, 63
        %s136 = scalar_select %p135, %s134, 63
        %s137 = smul.addr %s136, 4
        %s138 = scalar_lea.vmem %s0, %s137
        %s139 = smul.u32 32, %s10
      $region24: #{darknet10_forward.21} parent=19 // pred_fallthru
        _
    $region20: #{darknet10_forward.21} parent=5 // pred_fallthru
      _
    %p140 = scmp.le.s32.totalorder 1, %s10
    %p141 = scmp.lt.s32.totalorder %s10, 3
    %p142 = pnand %p140, %p141
    %p143 = pneg %p142
    // Predicated region
    $region25: #{darknet10_forward.21} parent=5 // pred_check
      _
    $region26: #{darknet10_forward.21} parent=5 // pred_check_branch
      %145 = sbr.rel (%p142) target = $region28
    $region27: #{darknet10_forward.21} parent=5 // pred_region
      %s146 = ssub.s32 %s10, 1
      %s147 = smul.u32 32, %s15
      %p148 = scmp.lt.s32.totalorder %s147, 63
      %s149 = scalar_select %p148, %s147, 63
      %s150 = smul.addr %s149, 4
      %s151 = scalar_lea.vmem %s0, %s150
      %p152 = pneg %p36
      %p153 = pneg %p33
      %p154 = pneg %p57
      %p155 = pneg %p54
      %p156 = pneg %p83
      %p157 = pneg %p80
      %s158 = smul.u32 32, %s15
      %p159 = scmp.lt.s32.totalorder %s158, 63
      %s160 = scalar_select %p159, %s158, 63
      %s161 = smul.addr %s160, 4
      %s162 = scalar_lea.vmem %s2, %s161
      %p163 = pneg %p109
      %p164 = pneg %p106
      %p165 = scmp.lt.s32.totalorder %s15, 1
      %s166 = scalar_select %p165, %s15, 1
      %s167 = smul.addr %s166, 2
      %s168 = scalar_lea.vmem %s3, %s167
      %s169 = smul.u32 32, %s15
      %p170 = scmp.lt.s32.totalorder %s169, 63
      %s171 = scalar_select %p170, %s169, 63
      %s172 = smul.addr %s171, 4
      %s173 = scalar_lea.vmem %s0, %s172
      %s174 = smul.u32 32, %s15
      %s175 = smul.u32 32, %s15
      %p176 = scmp.lt.s32.totalorder %s175, 63
      %s177 = scalar_select %p176, %s175, 63
      %s178 = smul.addr %s177, 4
      %s179 = scalar_lea.vmem %s2, %s178
      %s180 = smul.u32 32, %s15
      %p181 = scmp.lt.s32.totalorder %s15, 1
      %s182 = scalar_select %p181, %s15, 1
      %s183 = smul.addr %s182, 2
      %s184 = scalar_lea.vmem %s3, %s183
      %v186 = vld [vmem:[%s173] sm:$0xf]
      %v187 = vld [vmem:[%s173 + $0x4] sm:$0xf]
      %v188 = vld [vmem:[%s173 + $0x8] sm:$0xf]
      %v189 = vld [vmem:[%s173 + $0xc] sm:$0xf]
      %v190 = vld [vmem:[%s173 + $0x10] sm:$0xf]
      %v191 = vld [vmem:[%s173 + $0x14] sm:$0xf]
      %v192 = vld [vmem:[%s173 + $0x18] sm:$0xf]
      %v193 = vld [vmem:[%s173 + $0x1c] sm:$0xf]
      %v194 = vld [vmem:[%s173 + $0x20] sm:$0xf]
      %v195 = vld [vmem:[%s173 + $0x24] sm:$0xf]
      %v196 = vld [vmem:[%s173 + $0x28] sm:$0xf]
      %v197 = vld [vmem:[%s173 + $0x2c] sm:$0xf]
      %v198 = vld [vmem:[%s173 + $0x30] sm:$0xf]
      %v199 = vld [vmem:[%s173 + $0x34] sm:$0xf]
      %v200 = vld [vmem:[%s173 + $0x38] sm:$0xf]
      %v201 = vld [vmem:[%s173 + $0x3c] sm:$0xf]
      %v202 = vld [vmem:[%s173 + $0x40] sm:$0xf]
      %v203 = vld [vmem:[%s173 + $0x44] sm:$0xf]
      %v204 = vld [vmem:[%s173 + $0x48] sm:$0xf]
      %v205 = vld [vmem:[%s173 + $0x4c] sm:$0xf]
      %v206 = vld [vmem:[%s173 + $0x50] sm:$0xf]
      %v207 = vld [vmem:[%s173 + $0x54] sm:$0xf]
      %v208 = vld [vmem:[%s173 + $0x58] sm:$0xf]
      %v209 = vld [vmem:[%s173 + $0x5c] sm:$0xf]
      %v210 = vld [vmem:[%s173 + $0x60] sm:$0xf]
      %v211 = vld [vmem:[%s173 + $0x64] sm:$0xf]
      %v212 = vld [vmem:[%s173 + $0x68] sm:$0xf]
      %v213 = vld [vmem:[%s173 + $0x6c] sm:$0xf]
      %v214 = vld [vmem:[%s173 + $0x70] sm:$0xf]
      %v215 = vld [vmem:[%s173 + $0x74] sm:$0xf]
      %v216 = vld [vmem:[%s173 + $0x78] sm:$0xf]
      %v217 = vld [vmem:[%s173 + $0x7c] sm:$0xf]
      %v218 = vld [vmem:[%s1] sm:$0xf]
      %v219 = vld [vmem:[%s1 + $0x4] sm:$0xf]
      %v220 = vld [vmem:[%s1 + $0x8] sm:$0xf]
      %v221 = vld [vmem:[%s1 + $0xc] sm:$0xf]
      %v222 = vld [vmem:[%s1 + $0x10] sm:$0xf]
      %v223 = vld [vmem:[%s1 + $0x14] sm:$0xf]
      %v224 = vld [vmem:[%s1 + $0x18] sm:$0xf]
      %v225 = vld [vmem:[%s1 + $0x1c] sm:$0xf]
      %v226 = vld [vmem:[%s1 + $0x20] sm:$0xf]
      %v259 = vunpack.c.l.b16 %v186
      %v260 = vunpack.c.l.b16 %v187
      %v261 = vunpack.c.l.b16 %v188
      %v262 = vunpack.c.l.b16 %v189
      %v263 = vunpack.c.l.b16 %v190
      %v264 = vunpack.c.l.b16 %v191
      %v265 = vunpack.c.l.b16 %v192
      %v266 = vunpack.c.l.b16 %v193
      %v267 = vunpack.c.l.b16 %v194
      %v268 = vunpack.c.l.b16 %v195
      %v269 = vunpack.c.l.b16 %v196
      %v270 = vunpack.c.l.b16 %v197
      %v271 = vunpack.c.l.b16 %v198
      %v272 = vunpack.c.l.b16 %v199
      %v273 = vunpack.c.l.b16 %v200
      %v274 = vunpack.c.l.b16 %v201
      %v275 = vunpack.c.l.b16 %v202
      %v276 = vunpack.c.l.b16 %v203
      %v277 = vunpack.c.l.b16 %v204
      %v278 = vunpack.c.l.b16 %v205
      %v279 = vunpack.c.l.b16 %v206
      %v280 = vunpack.c.l.b16 %v207
      %v281 = vunpack.c.l.b16 %v208
      %v282 = vunpack.c.l.b16 %v209
      %v283 = vunpack.c.l.b16 %v210
      %v284 = vunpack.c.l.b16 %v211
      %v285 = vunpack.c.l.b16 %v212
      %v286 = vunpack.c.l.b16 %v213
      %v287 = vunpack.c.l.b16 %v214
      %v288 = vunpack.c.l.b16 %v215
      %v289 = vunpack.c.l.b16 %v216
      %v290 = vunpack.c.l.b16 %v217
      %v291 = vpack.c.b16 %v260, %v259
      %v292 = vpack.c.b16 %v262, %v261
      %v293 = vpack.c.b16 %v264, %v263
      %v294 = vpack.c.b16 %v266, %v265
      %v295 = vpack.c.b16 %v268, %v267
      %v296 = vpack.c.b16 %v270, %v269
      %v297 = vpack.c.b16 %v272, %v271
      %v298 = vpack.c.b16 %v274, %v273
      %v299 = vpack.c.b16 %v276, %v275
      %v300 = vpack.c.b16 %v278, %v277
      %v301 = vpack.c.b16 %v280, %v279
      %v302 = vpack.c.b16 %v282, %v281
      %v303 = vpack.c.b16 %v284, %v283
      %v304 = vpack.c.b16 %v286, %v285
      %v305 = vpack.c.b16 %v288, %v287
      %v306 = vpack.c.b16 %v290, %v289
      %v316 = vunpack.c.l.b16 %v218
      %v317 = vunpack.c.l.b16 %v219
      %v318 = vunpack.c.l.b16 %v220
      %v319 = vunpack.c.l.b16 %v221
      %v320 = vunpack.c.l.b16 %v222
      %v321 = vunpack.c.l.b16 %v223
      %v322 = vunpack.c.l.b16 %v224
      %v323 = vunpack.c.l.b16 %v225
      %v324 = vunpack.c.l.b16 %v226
      %v325 = vpack.c.b16 %v317, %v316
      %v326 = vpack.c.b16 %v319, %v318
      %v327 = vpack.c.b16 %v321, %v320
      %v328 = vpack.c.b16 %v323, %v322
      %v329 = vpack.c.b16 %v324, %v324
      %vm334 = vcmask 588800
      %v336 = vsel %vm334, %v291, 0
      %v339 = vsel %vm334, %v292, 0
      %v342 = vsel %vm334, %v293, 0
      %v345 = vsel %vm334, %v294, 0
      %v348 = vsel %vm334, %v295, 0
      %v351 = vsel %vm334, %v296, 0
      %v354 = vsel %vm334, %v297, 0
      %v357 = vsel %vm334, %v298, 0
      %v360 = vsel %vm334, %v299, 0
      %v363 = vsel %vm334, %v300, 0
      %v366 = vsel %vm334, %v301, 0
      %v369 = vsel %vm334, %v302, 0
      %v372 = vsel %vm334, %v303, 0
      %v375 = vsel %vm334, %v304, 0
      %v378 = vsel %vm334, %v305, 0
      %v381 = vsel %vm334, %v306, 0
      %vm383 = vcmask 1043456
      %v385 = vsel %vm383, %v329, 0
      %387 = vmatpush.bf16.msra.mxu0 0
      %388 = vmatpush.bf16.msra.mxu0 0
      %389 = vmatpush.bf16.msra.mxu0 0
      %390 = vmatpush.bf16.msra.mxu0 %v385
      %391 = vmatpush.bf16.msra.mxu0 %v328
      %392 = vmatpush.bf16.msra.mxu0 %v327
      %393 = vmatpush.bf16.msra.mxu0 %v326
      %394 = vmatpush.bf16.msra.mxu0 %v325
      %395 = vmatmul.bf16.gmra.mxu0 %v336
      %v396 = vpop.f32.mrf.mxu0
      %v397 = vadd.f32 0.0, %v396
      %v398 = vpop.f32.mrf.mxu0
      %v399 = vadd.f32 0.0, %v398
      %400 = vmatmul.bf16.gmra.mxu0 %v339
      %v401 = vpop.f32.mrf.mxu0
      %v402 = vadd.f32 0.0, %v401
      %v403 = vpop.f32.mrf.mxu0
      %v404 = vadd.f32 0.0, %v403
      %405 = vmatmul.bf16.gmra.mxu0 %v342
      %v406 = vpop.f32.mrf.mxu0
      %v407 = vadd.f32 0.0, %v406
      %v408 = vpop.f32.mrf.mxu0
      %v409 = vadd.f32 0.0, %v408
      %410 = vmatmul.bf16.gmra.mxu0 %v345
      %v411 = vpop.f32.mrf.mxu0
      %v412 = vadd.f32 0.0, %v411
      %v413 = vpop.f32.mrf.mxu0
      %v414 = vadd.f32 0.0, %v413
      %415 = vmatmul.bf16.gmra.mxu0 %v348
      %v416 = vpop.f32.mrf.mxu0
      %v417 = vadd.f32 0.0, %v416
      %v418 = vpop.f32.mrf.mxu0
      %v419 = vadd.f32 0.0, %v418
      %420 = vmatmul.bf16.gmra.mxu0 %v351
      %v421 = vpop.f32.mrf.mxu0
      %v422 = vadd.f32 0.0, %v421
      %v423 = vpop.f32.mrf.mxu0
      %v424 = vadd.f32 0.0, %v423
      %425 = vmatmul.bf16.gmra.mxu0 %v354
      %v426 = vpop.f32.mrf.mxu0
      %v427 = vadd.f32 0.0, %v426
      %v428 = vpop.f32.mrf.mxu0
      %v429 = vadd.f32 0.0, %v428
      %430 = vmatmul.bf16.gmra.mxu0 %v357
      %v431 = vpop.f32.mrf.mxu0
      %v432 = vadd.f32 0.0, %v431
      %v433 = vpop.f32.mrf.mxu0
      %v434 = vadd.f32 0.0, %v433
      %435 = vmatmul.bf16.gmra.mxu0 %v360
      %v436 = vpop.f32.mrf.mxu0
      %v437 = vadd.f32 0.0, %v436
      %v438 = vpop.f32.mrf.mxu0
      %v439 = vadd.f32 0.0, %v438
      %440 = vmatmul.bf16.gmra.mxu0 %v363
      %v441 = vpop.f32.mrf.mxu0
      %v442 = vadd.f32 0.0, %v441
      %v443 = vpop.f32.mrf.mxu0
      %v444 = vadd.f32 0.0, %v443
      %445 = vmatmul.bf16.gmra.mxu0 %v366
      %v446 = vpop.f32.mrf.mxu0
      %v447 = vadd.f32 0.0, %v446
      %v448 = vpop.f32.mrf.mxu0
      %v449 = vadd.f32 0.0, %v448
      %450 = vmatmul.bf16.gmra.mxu0 %v369
      %v451 = vpop.f32.mrf.mxu0
      %v452 = vadd.f32 0.0, %v451
      %v453 = vpop.f32.mrf.mxu0
      %v454 = vadd.f32 0.0, %v453
      %455 = vmatmul.bf16.gmra.mxu0 %v372
      %v456 = vpop.f32.mrf.mxu0
      %v457 = vadd.f32 0.0, %v456
      %v458 = vpop.f32.mrf.mxu0
      %v459 = vadd.f32 0.0, %v458
      %460 = vmatmul.bf16.gmra.mxu0 %v375
      %v461 = vpop.f32.mrf.mxu0
      %v462 = vadd.f32 0.0, %v461
      %v463 = vpop.f32.mrf.mxu0
      %v464 = vadd.f32 0.0, %v463
      %465 = vmatmul.bf16.gmra.mxu0 %v378
      %v466 = vpop.f32.mrf.mxu0
      %v467 = vadd.f32 0.0, %v466
      %v468 = vpop.f32.mrf.mxu0
      %v469 = vadd.f32 0.0, %v468
      %470 = vmatmul.bf16.gmra.mxu0 %v381
      %v471 = vpop.f32.mrf.mxu0
      %v472 = vadd.f32 0.0, %v471
      %v473 = vpop.f32.mrf.mxu0
      %v474 = vadd.f32 0.0, %v473
      %475 = vdwg.mxu0
      %v476 = vpack.c.bf16 %v397, %v397
      %v477 = vpack.c.bf16 %v399, %v399
      %v478 = vpack.c.bf16 %v402, %v402
      %v479 = vpack.c.bf16 %v404, %v404
      %v480 = vpack.c.bf16 %v407, %v407
      %v481 = vpack.c.bf16 %v409, %v409
      %v482 = vpack.c.bf16 %v412, %v412
      %v483 = vpack.c.bf16 %v414, %v414
      %v484 = vpack.c.bf16 %v417, %v417
      %v485 = vpack.c.bf16 %v419, %v419
      %v486 = vpack.c.bf16 %v422, %v422
      %v487 = vpack.c.bf16 %v424, %v424
      %v488 = vpack.c.bf16 %v427, %v427
      %v489 = vpack.c.bf16 %v429, %v429
      %v490 = vpack.c.bf16 %v432, %v432
      %v491 = vpack.c.bf16 %v434, %v434
      %v492 = vpack.c.bf16 %v437, %v437
      %v493 = vpack.c.bf16 %v439, %v439
      %v494 = vpack.c.bf16 %v442, %v442
      %v495 = vpack.c.bf16 %v444, %v444
      %v496 = vpack.c.bf16 %v447, %v447
      %v497 = vpack.c.bf16 %v449, %v449
      %v498 = vpack.c.bf16 %v452, %v452
      %v499 = vpack.c.bf16 %v454, %v454
      %v500 = vpack.c.bf16 %v457, %v457
      %v501 = vpack.c.bf16 %v459, %v459
      %v502 = vpack.c.bf16 %v462, %v462
      %v503 = vpack.c.bf16 %v464, %v464
      %v504 = vpack.c.bf16 %v467, %v467
      %v505 = vpack.c.bf16 %v469, %v469
      %v506 = vpack.c.bf16 %v472, %v472
      %v507 = vpack.c.bf16 %v474, %v474
      %508 = vst [vmem:[%s179] sm:$0xf] %v476
      %509 = vst [vmem:[%s179 + $0x4] sm:$0xf] %v477
      %510 = vst [vmem:[%s179 + $0x8] sm:$0xf] %v478
      %511 = vst [vmem:[%s179 + $0xc] sm:$0xf] %v479
      %512 = vst [vmem:[%s179 + $0x10] sm:$0xf] %v480
      %513 = vst [vmem:[%s179 + $0x14] sm:$0xf] %v481
      %514 = vst [vmem:[%s179 + $0x18] sm:$0xf] %v482
      %515 = vst [vmem:[%s179 + $0x1c] sm:$0xf] %v483
      %516 = vst [vmem:[%s179 + $0x20] sm:$0xf] %v484
      %517 = vst [vmem:[%s179 + $0x24] sm:$0xf] %v485
      %518 = vst [vmem:[%s179 + $0x28] sm:$0xf] %v486
      %519 = vst [vmem:[%s179 + $0x2c] sm:$0xf] %v487
      %520 = vst [vmem:[%s179 + $0x30] sm:$0xf] %v488
      %521 = vst [vmem:[%s179 + $0x34] sm:$0xf] %v489
      %522 = vst [vmem:[%s179 + $0x38] sm:$0xf] %v490
      %523 = vst [vmem:[%s179 + $0x3c] sm:$0xf] %v491
      %524 = vst [vmem:[%s179 + $0x40] sm:$0xf] %v492
      %525 = vst [vmem:[%s179 + $0x44] sm:$0xf] %v493
      %526 = vst [vmem:[%s179 + $0x48] sm:$0xf] %v494
      %527 = vst [vmem:[%s179 + $0x4c] sm:$0xf] %v495
      %528 = vst [vmem:[%s179 + $0x50] sm:$0xf] %v496
      %529 = vst [vmem:[%s179 + $0x54] sm:$0xf] %v497
      %530 = vst [vmem:[%s179 + $0x58] sm:$0xf] %v498
      %531 = vst [vmem:[%s179 + $0x5c] sm:$0xf] %v499
      %532 = vst [vmem:[%s179 + $0x60] sm:$0xf] %v500
      %533 = vst [vmem:[%s179 + $0x64] sm:$0xf] %v501
      %534 = vst [vmem:[%s179 + $0x68] sm:$0xf] %v502
      %535 = vst [vmem:[%s179 + $0x6c] sm:$0xf] %v503
      %536 = vst [vmem:[%s179 + $0x70] sm:$0xf] %v504
      %537 = vst [vmem:[%s179 + $0x74] sm:$0xf] %v505
      %538 = vst [vmem:[%s179 + $0x78] sm:$0xf] %v506
      %539 = vst [vmem:[%s179 + $0x7c] sm:$0xf] %v507
      %s540 = smul.u32 %s15, 256
      %v541 = vlaneseq
      %v542 = vshrl.u32 %v541, 7
      %v543 = vadd.s32 %v542, 8
      %v544 = vadd.s32 %v542, 16
      %v545 = vadd.s32 %v542, 24
      %v546 = vadd.s32 %v542, 32
      %v547 = vadd.s32 %v542, 40
      %v548 = vadd.s32 %v542, 48
      %v549 = vadd.s32 %v542, 56
      %v550 = vadd.s32 %v542, 64
      %v551 = vadd.s32 %v542, 72
      %v552 = vadd.s32 %v542, 80
      %v553 = vadd.s32 %v542, 88
      %v554 = vadd.s32 %v542, 96
      %v555 = vadd.s32 %v542, 104
      %v556 = vadd.s32 %v542, 112
      %v557 = vadd.s32 %v542, 120
      %v558 = vadd.s32 %v542, 128
      %v559 = vadd.s32 %v542, 136
      %v560 = vadd.s32 %v542, 144
      %v561 = vadd.s32 %v542, 152
      %v562 = vadd.s32 %v542, 160
      %v563 = vadd.s32 %v542, 168
      %v564 = vadd.s32 %v542, 176
      %v565 = vadd.s32 %v542, 184
      %v566 = vadd.s32 %v542, 192
      %v567 = vadd.s32 %v542, 200
      %v568 = vadd.s32 %v542, 208
      %v569 = vadd.s32 %v542, 216
      %v570 = vadd.s32 %v542, 224
      %v571 = vadd.s32 %v542, 232
      %v572 = vadd.s32 %v542, 240
      %v573 = vadd.s32 %v542, 248
      %v574 = vstv %s540
      %v575 = vadd.s32 %v542, %v574
      %v576 = vadd.s32 %v543, %v574
      %v577 = vadd.s32 %v544, %v574
      %v578 = vadd.s32 %v545, %v574
      %v579 = vadd.s32 %v546, %v574
      %v580 = vadd.s32 %v547, %v574
      %v581 = vadd.s32 %v548, %v574
      %v582 = vadd.s32 %v549, %v574
      %v583 = vadd.s32 %v550, %v574
      %v584 = vadd.s32 %v551, %v574
      %v585 = vadd.s32 %v552, %v574
      %v586 = vadd.s32 %v553, %v574
      %v587 = vadd.s32 %v554, %v574
      %v588 = vadd.s32 %v555, %v574
      %v589 = vadd.s32 %v556, %v574
      %v590 = vadd.s32 %v557, %v574
      %v591 = vadd.s32 %v558, %v574
      %v592 = vadd.s32 %v559, %v574
      %v593 = vadd.s32 %v560, %v574
      %v594 = vadd.s32 %v561, %v574
      %v595 = vadd.s32 %v562, %v574
      %v596 = vadd.s32 %v563, %v574
      %v597 = vadd.s32 %v564, %v574
      %v598 = vadd.s32 %v565, %v574
      %v599 = vadd.s32 %v566, %v574
      %v600 = vadd.s32 %v567, %v574
      %v601 = vadd.s32 %v568, %v574
      %v602 = vadd.s32 %v569, %v574
      %v603 = vadd.s32 %v570, %v574
      %v604 = vadd.s32 %v571, %v574
      %v605 = vadd.s32 %v572, %v574
      %v606 = vadd.s32 %v573, %v574
      %vm607 = vcmp.lt.s32.totalorder %v575, 512
      %vm608 = vcmp.lt.s32.totalorder %v576, 512
      %vm609 = vcmp.lt.s32.totalorder %v577, 512
      %vm610 = vcmp.lt.s32.totalorder %v578, 512
      %vm611 = vcmp.lt.s32.totalorder %v579, 512
      %vm612 = vcmp.lt.s32.totalorder %v580, 512
      %vm613 = vcmp.lt.s32.totalorder %v581, 512
      %vm614 = vcmp.lt.s32.totalorder %v582, 512
      %vm615 = vcmp.lt.s32.totalorder %v583, 512
      %vm616 = vcmp.lt.s32.totalorder %v584, 512
      %vm617 = vcmp.lt.s32.totalorder %v585, 512
      %vm618 = vcmp.lt.s32.totalorder %v586, 512
      %vm619 = vcmp.lt.s32.totalorder %v587, 512
      %vm620 = vcmp.lt.s32.totalorder %v588, 512
      %vm621 = vcmp.lt.s32.totalorder %v589, 512
      %vm622 = vcmp.lt.s32.totalorder %v590, 512
      %vm623 = vcmp.lt.s32.totalorder %v591, 512
      %vm624 = vcmp.lt.s32.totalorder %v592, 512
      %vm625 = vcmp.lt.s32.totalorder %v593, 512
      %vm626 = vcmp.lt.s32.totalorder %v594, 512
      %vm627 = vcmp.lt.s32.totalorder %v595, 512
      %vm628 = vcmp.lt.s32.totalorder %v596, 512
      %vm629 = vcmp.lt.s32.totalorder %v597, 512
      %vm630 = vcmp.lt.s32.totalorder %v598, 512
      %vm631 = vcmp.lt.s32.totalorder %v599, 512
      %vm632 = vcmp.lt.s32.totalorder %v600, 512
      %vm633 = vcmp.lt.s32.totalorder %v601, 512
      %vm634 = vcmp.lt.s32.totalorder %v602, 512
      %vm635 = vcmp.lt.s32.totalorder %v603, 512
      %vm636 = vcmp.lt.s32.totalorder %v604, 512
      %vm637 = vcmp.lt.s32.totalorder %v605, 512
      %vm638 = vcmp.lt.s32.totalorder %v606, 512
      %s639 = ssub.s32 512, %s540
      %p640 = scmp.lt.s32.totalorder %s639, 256
      %s641 = scalar_select %p640, %s639, 256
      %p642 = scmp.gt.s32.totalorder %s641, 1
      %s643 = scalar_select %p642, %s641, 1
      %s644 = scvt.s32.f32 %s643
      %v645 = vsel %vm607, 1, 0
      %v646 = vsel %vm608, 1, 0
      %v647 = vsel %vm609, 1, 0
      %v648 = vsel %vm610, 1, 0
      %v649 = vsel %vm611, 1, 0
      %v650 = vsel %vm612, 1, 0
      %v651 = vsel %vm613, 1, 0
      %v652 = vsel %vm614, 1, 0
      %v653 = vsel %vm615, 1, 0
      %v654 = vsel %vm616, 1, 0
      %v655 = vsel %vm617, 1, 0
      %v656 = vsel %vm618, 1, 0
      %v657 = vsel %vm619, 1, 0
      %v658 = vsel %vm620, 1, 0
      %v659 = vsel %vm621, 1, 0
      %v660 = vsel %vm622, 1, 0
      %v661 = vsel %vm623, 1, 0
      %v662 = vsel %vm624, 1, 0
      %v663 = vsel %vm625, 1, 0
      %v664 = vsel %vm626, 1, 0
      %v665 = vsel %vm627, 1, 0
      %v666 = vsel %vm628, 1, 0
      %v667 = vsel %vm629, 1, 0
      %v668 = vsel %vm630, 1, 0
      %v669 = vsel %vm631, 1, 0
      %v670 = vsel %vm632, 1, 0
      %v671 = vsel %vm633, 1, 0
      %v672 = vsel %vm634, 1, 0
      %v673 = vsel %vm635, 1, 0
      %v674 = vsel %vm636, 1, 0
      %v675 = vsel %vm637, 1, 0
      %v676 = vsel %vm638, 1, 0
      %vm677 = vcmp.eq.s32.totalorder %v645, 1
      %vm678 = vcmp.eq.s32.totalorder %v646, 1
      %vm679 = vcmp.eq.s32.totalorder %v647, 1
      %vm680 = vcmp.eq.s32.totalorder %v648, 1
      %vm681 = vcmp.eq.s32.totalorder %v649, 1
      %vm682 = vcmp.eq.s32.totalorder %v650, 1
      %vm683 = vcmp.eq.s32.totalorder %v651, 1
      %vm684 = vcmp.eq.s32.totalorder %v652, 1
      %vm685 = vcmp.eq.s32.totalorder %v653, 1
      %vm686 = vcmp.eq.s32.totalorder %v654, 1
      %vm687 = vcmp.eq.s32.totalorder %v655, 1
      %vm688 = vcmp.eq.s32.totalorder %v656, 1
      %vm689 = vcmp.eq.s32.totalorder %v657, 1
      %vm690 = vcmp.eq.s32.totalorder %v658, 1
      %vm691 = vcmp.eq.s32.totalorder %v659, 1
      %vm692 = vcmp.eq.s32.totalorder %v660, 1
      %vm693 = vcmp.eq.s32.totalorder %v661, 1
      %vm694 = vcmp.eq.s32.totalorder %v662, 1
      %vm695 = vcmp.eq.s32.totalorder %v663, 1
      %vm696 = vcmp.eq.s32.totalorder %v664, 1
      %vm697 = vcmp.eq.s32.totalorder %v665, 1
      %vm698 = vcmp.eq.s32.totalorder %v666, 1
      %vm699 = vcmp.eq.s32.totalorder %v667, 1
      %vm700 = vcmp.eq.s32.totalorder %v668, 1
      %vm701 = vcmp.eq.s32.totalorder %v669, 1
      %vm702 = vcmp.eq.s32.totalorder %v670, 1
      %vm703 = vcmp.eq.s32.totalorder %v671, 1
      %vm704 = vcmp.eq.s32.totalorder %v672, 1
      %vm705 = vcmp.eq.s32.totalorder %v673, 1
      %vm706 = vcmp.eq.s32.totalorder %v674, 1
      %vm707 = vcmp.eq.s32.totalorder %v675, 1
      %vm708 = vcmp.eq.s32.totalorder %v676, 1
      %v709 = vsel %vm677, %v397, 0.0
      %v710 = vsel %vm678, %v399, 0.0
      %v711 = vsel %vm679, %v402, 0.0
      %v712 = vsel %vm680, %v404, 0.0
      %v713 = vsel %vm681, %v407, 0.0
      %v714 = vsel %vm682, %v409, 0.0
      %v715 = vsel %vm683, %v412, 0.0
      %v716 = vsel %vm684, %v414, 0.0
      %v717 = vsel %vm685, %v417, 0.0
      %v718 = vsel %vm686, %v419, 0.0
      %v719 = vsel %vm687, %v422, 0.0
      %v720 = vsel %vm688, %v424, 0.0
      %v721 = vsel %vm689, %v427, 0.0
      %v722 = vsel %vm690, %v429, 0.0
      %v723 = vsel %vm691, %v432, 0.0
      %v724 = vsel %vm692, %v434, 0.0
      %v725 = vsel %vm693, %v437, 0.0
      %v726 = vsel %vm694, %v439, 0.0
      %v727 = vsel %vm695, %v442, 0.0
      %v728 = vsel %vm696, %v444, 0.0
      %v729 = vsel %vm697, %v447, 0.0
      %v730 = vsel %vm698, %v449, 0.0
      %v731 = vsel %vm699, %v452, 0.0
      %v732 = vsel %vm700, %v454, 0.0
      %v733 = vsel %vm701, %v457, 0.0
      %v734 = vsel %vm702, %v459, 0.0
      %v735 = vsel %vm703, %v462, 0.0
      %v736 = vsel %vm704, %v464, 0.0
      %v737 = vsel %vm705, %v467, 0.0
      %v738 = vsel %vm706, %v469, 0.0
      %v739 = vsel %vm707, %v472, 0.0
      %v740 = vsel %vm708, %v474, 0.0
      %v741 = vadd.f32 %v709, %v710
      %v742 = vadd.f32 %v741, %v711
      %v743 = vadd.f32 %v742, %v712
      %v744 = vadd.f32 %v743, %v713
      %v745 = vadd.f32 %v744, %v714
      %v746 = vadd.f32 %v745, %v715
      %v747 = vadd.f32 %v746, %v716
      %v748 = vadd.f32 %v747, %v717
      %v749 = vadd.f32 %v748, %v718
      %v750 = vadd.f32 %v749, %v719
      %v751 = vadd.f32 %v750, %v720
      %v752 = vadd.f32 %v751, %v721
      %v753 = vadd.f32 %v752, %v722
      %v754 = vadd.f32 %v753, %v723
      %v755 = vadd.f32 %v754, %v724
      %v756 = vadd.f32 %v755, %v725
      %v757 = vadd.f32 %v756, %v726
      %v758 = vadd.f32 %v757, %v727
      %v759 = vadd.f32 %v758, %v728
      %v760 = vadd.f32 %v759, %v729
      %v761 = vadd.f32 %v760, %v730
      %v762 = vadd.f32 %v761, %v731
      %v763 = vadd.f32 %v762, %v732
      %v764 = vadd.f32 %v763, %v733
      %v765 = vadd.f32 %v764, %v734
      %v766 = vadd.f32 %v765, %v735
      %v767 = vadd.f32 %v766, %v736
      %v768 = vadd.f32 %v767, %v737
      %v769 = vadd.f32 %v768, %v738
      %v770 = vadd.f32 %v769, %v739
      %v771 = vadd.f32 %v770, %v740
      %v772 = vrot.slane %v771, 4
      %v773 = vadd.f32 %v771, %v772
      %v774 = vrot.slane %v773, 2
      %v775 = vadd.f32 %v773, %v774
      %v776 = vrot.slane %v775, 1
      %v777 = vadd.f32 %v775, %v776
      %v778 = vstv %s644
      %v779 = vrcp.pop %v778
      %v780 = vmul.f32 %v778, %v779
      %v781 = vsub.f32 1.0, %v780
      %v782 = vmul.f32 %v779, %v781
      %v783 = vadd.f32 %v779, %v782
      %vm784 = vweird.f32 %v778
      %vm785 = vweird.f32 %v779
      %vm786 = vmor %vm784, %vm785
      %v787 = vsel %vm786, %v779, %v783
      %v788 = vand.u32 2147483647, %v778
      %vm789 = vcmp.eq.f32.partialorder %v788, 8.507059e+37
      %v790 = vand.u32 %v778, 2147483648
      %v791 = vor.u32 1.1754944e-38, %v790
      %v792 = vsel %vm789, %v791, %v787
      %v793 = vmul.f32 %v777, %v792
      %v794 = vsub.f32 %v397, %v793
      %v795 = vsub.f32 %v399, %v793
      %v796 = vsub.f32 %v402, %v793
      %v797 = vsub.f32 %v404, %v793
      %v798 = vsub.f32 %v407, %v793
      %v799 = vsub.f32 %v409, %v793
      %v800 = vsub.f32 %v412, %v793
      %v801 = vsub.f32 %v414, %v793
      %v802 = vsub.f32 %v417, %v793
      %v803 = vsub.f32 %v419, %v793
      %v804 = vsub.f32 %v422, %v793
      %v805 = vsub.f32 %v424, %v793
      %v806 = vsub.f32 %v427, %v793
      %v807 = vsub.f32 %v429, %v793
      %v808 = vsub.f32 %v432, %v793
      %v809 = vsub.f32 %v434, %v793
      %v810 = vsub.f32 %v437, %v793
      %v811 = vsub.f32 %v439, %v793
      %v812 = vsub.f32 %v442, %v793
      %v813 = vsub.f32 %v444, %v793
      %v814 = vsub.f32 %v447, %v793
      %v815 = vsub.f32 %v449, %v793
      %v816 = vsub.f32 %v452, %v793
      %v817 = vsub.f32 %v454, %v793
      %v818 = vsub.f32 %v457, %v793
      %v819 = vsub.f32 %v459, %v793
      %v820 = vsub.f32 %v462, %v793
      %v821 = vsub.f32 %v464, %v793
      %v822 = vsub.f32 %v467, %v793
      %v823 = vsub.f32 %v469, %v793
      %v824 = vsub.f32 %v472, %v793
      %v825 = vsub.f32 %v474, %v793
      %v826 = vsel %vm677, %v794, 0.0
      %v827 = vsel %vm678, %v795, 0.0
      %v828 = vsel %vm679, %v796, 0.0
      %v829 = vsel %vm680, %v797, 0.0
      %v830 = vsel %vm681, %v798, 0.0
      %v831 = vsel %vm682, %v799, 0.0
      %v832 = vsel %vm683, %v800, 0.0
      %v833 = vsel %vm684, %v801, 0.0
      %v834 = vsel %vm685, %v802, 0.0
      %v835 = vsel %vm686, %v803, 0.0
      %v836 = vsel %vm687, %v804, 0.0
      %v837 = vsel %vm688, %v805, 0.0
      %v838 = vsel %vm689, %v806, 0.0
      %v839 = vsel %vm690, %v807, 0.0
      %v840 = vsel %vm691, %v808, 0.0
      %v841 = vsel %vm692, %v809, 0.0
      %v842 = vsel %vm693, %v810, 0.0
      %v843 = vsel %vm694, %v811, 0.0
      %v844 = vsel %vm695, %v812, 0.0
      %v845 = vsel %vm696, %v813, 0.0
      %v846 = vsel %vm697, %v814, 0.0
      %v847 = vsel %vm698, %v815, 0.0
      %v848 = vsel %vm699, %v816, 0.0
      %v849 = vsel %vm700, %v817, 0.0
      %v850 = vsel %vm701, %v818, 0.0
      %v851 = vsel %vm702, %v819, 0.0
      %v852 = vsel %vm703, %v820, 0.0
      %v853 = vsel %vm704, %v821, 0.0
      %v854 = vsel %vm705, %v822, 0.0
      %v855 = vsel %vm706, %v823, 0.0
      %v856 = vsel %vm707, %v824, 0.0
      %v857 = vsel %vm708, %v825, 0.0
      %858 = vst [vmem:[%s184] sm:$0x1] %v777
      %v859 = vmul.f32 %v826, %v826
      %v860 = vmul.f32 %v827, %v827
      %v861 = vmul.f32 %v828, %v828
      %v862 = vmul.f32 %v829, %v829
      %v863 = vmul.f32 %v830, %v830
      %v864 = vmul.f32 %v831, %v831
      %v865 = vmul.f32 %v832, %v832
      %v866 = vmul.f32 %v833, %v833
      %v867 = vmul.f32 %v834, %v834
      %v868 = vmul.f32 %v835, %v835
      %v869 = vmul.f32 %v836, %v836
      %v870 = vmul.f32 %v837, %v837
      %v871 = vmul.f32 %v838, %v838
      %v872 = vmul.f32 %v839, %v839
      %v873 = vmul.f32 %v840, %v840
      %v874 = vmul.f32 %v841, %v841
      %v875 = vmul.f32 %v842, %v842
      %v876 = vmul.f32 %v843, %v843
      %v877 = vmul.f32 %v844, %v844
      %v878 = vmul.f32 %v845, %v845
      %v879 = vmul.f32 %v846, %v846
      %v880 = vmul.f32 %v847, %v847
      %v881 = vmul.f32 %v848, %v848
      %v882 = vmul.f32 %v849, %v849
      %v883 = vmul.f32 %v850, %v850
      %v884 = vmul.f32 %v851, %v851
      %v885 = vmul.f32 %v852, %v852
      %v886 = vmul.f32 %v853, %v853
      %v887 = vmul.f32 %v854, %v854
      %v888 = vmul.f32 %v855, %v855
      %v889 = vmul.f32 %v856, %v856
      %v890 = vmul.f32 %v857, %v857
      %v891 = vadd.f32 %v859, %v860
      %v892 = vadd.f32 %v891, %v861
      %v893 = vadd.f32 %v892, %v862
      %v894 = vadd.f32 %v893, %v863
      %v895 = vadd.f32 %v894, %v864
      %v896 = vadd.f32 %v895, %v865
      %v897 = vadd.f32 %v896, %v866
      %v898 = vadd.f32 %v897, %v867
      %v899 = vadd.f32 %v898, %v868
      %v900 = vadd.f32 %v899, %v869
      %v901 = vadd.f32 %v900, %v870
      %v902 = vadd.f32 %v901, %v871
      %v903 = vadd.f32 %v902, %v872
      %v904 = vadd.f32 %v903, %v873
      %v905 = vadd.f32 %v904, %v874
      %v906 = vadd.f32 %v905, %v875
      %v907 = vadd.f32 %v906, %v876
      %v908 = vadd.f32 %v907, %v877
      %v909 = vadd.f32 %v908, %v878
      %v910 = vadd.f32 %v909, %v879
      %v911 = vadd.f32 %v910, %v880
      %v912 = vadd.f32 %v911, %v881
      %v913 = vadd.f32 %v912, %v882
      %v914 = vadd.f32 %v913, %v883
      %v915 = vadd.f32 %v914, %v884
      %v916 = vadd.f32 %v915, %v885
      %v917 = vadd.f32 %v916, %v886
      %v918 = vadd.f32 %v917, %v887
      %v919 = vadd.f32 %v918, %v888
      %v920 = vadd.f32 %v919, %v889
      %v921 = vadd.f32 %v920, %v890
      %v922 = vrot.slane %v921, 4
      %v923 = vadd.f32 %v921, %v922
      %v924 = vrot.slane %v923, 2
      %v925 = vadd.f32 %v923, %v924
      %v926 = vrot.slane %v925, 1
      %v927 = vadd.f32 %v925, %v926
      %928 = vst [vmem:[%s184 + $0x1] sm:$0x1] %v927
      %s929 = smul.u32 32, %s15
      %p930 = scmp.lt.s32.totalorder %s929, 63
      %s931 = scalar_select %p930, %s929, 63
      %s932 = smul.addr %s931, 4
      %s933 = scalar_lea.vmem %s2, %s932
      %p934 = scmp.lt.s32.totalorder %s15, 1
      %s935 = scalar_select %p934, %s15, 1
      %s936 = smul.addr %s935, 2
      %s937 = scalar_lea.vmem %s3, %s936
      // Predicated region
      $region29: #{darknet10_forward.21} parent=27 // pred_check
        %p938 = pneg %p80
      $region30: #{darknet10_forward.21} parent=27 // pred_check_branch
        %940 = sbr.rel (%p938) target = $region32
      $region31: #{darknet10_forward.21} parent=27 // pred_region
        %s941 = smul.u32 32, %s15
      $region32: #{darknet10_forward.21} parent=27 // pred_fallthru
        _
      // Predicated region
      $region33: #{darknet10_forward.21} parent=27 // pred_check
        %p942 = pneg %p106
      $region34: #{darknet10_forward.21} parent=27 // pred_check_branch
        %944 = sbr.rel (%p942) target = $region36
      $region35: #{darknet10_forward.21} parent=27 // pred_region
        _
      $region36: #{darknet10_forward.21} parent=27 // pred_fallthru
        _
    $region28: #{darknet10_forward.21} parent=5 // pred_fallthru
      _
    %p945 = scmp.le.s32.totalorder 2, %s10
    // Predicated region
    $region37: #{darknet10_forward.21} parent=5 // pred_check
      %p946 = pneg %p945
    $region38: #{darknet10_forward.21} parent=5 // pred_check_branch
      %948 = sbr.rel (%p946) target = $region40
    $region39: #{darknet10_forward.21} parent=5 // pred_region
      %s949 = ssub.s32 %s10, 2
      // Predicated region
      $region41: #{darknet10_forward.21} parent=39 // pred_check
        %p950 = pneg %p86
      $region42: #{darknet10_forward.21} parent=39 // pred_check_branch
        %952 = sbr.rel (%p950) target = $region44
      $region43: #{darknet10_forward.21} parent=39 // pred_region
        %s953 = smul.u32 32, %s16
        %p954 = scmp.lt.s32.totalorder %s953, 63
        %s955 = scalar_select %p954, %s953, 63
        %s956 = smul.addr %s955, 4
        %s957 = scalar_lea.vmem %s2, %s956
      $region44: #{darknet10_forward.21} parent=39 // pred_fallthru
        _
      // Predicated region
      $region45: #{darknet10_forward.21} parent=39 // pred_check
        %p958 = pneg %p112
      $region46: #{darknet10_forward.21} parent=39 // pred_check_branch
        %960 = sbr.rel (%p958) target = $region48
      $region47: #{darknet10_forward.21} parent=39 // pred_region
        %p961 = scmp.lt.s32.totalorder %s16, 1
        %s962 = scalar_select %p961, %s16, 1
        %s963 = smul.addr %s962, 2
        %s964 = scalar_lea.vmem %s3, %s963
      $region48: #{darknet10_forward.21} parent=39 // pred_fallthru
        _
    $region40: #{darknet10_forward.21} parent=5 // pred_fallthru
      _
  $region6: #{darknet10_forward.21} parent=0 // loop_footer
    %s14 = sadd.s32 1, %s10
  $region7: #{darknet10_forward.21} parent=0 // loop_footer_branch
    %9 = sbr.rel target = $region3
  $region8: #{darknet10_forward.21} parent=0 // loop_exit
    _

// kernel: darknet10_forward.23
$region0: #{darknet10_forward.23}
  #allocation0 [shape = 'u32[]', space=smem, size = 0x4, offset = 0x4, fixed_abs, tag = 'smem constant byte address 0x4 - core index']
  #allocation1 [shape = 'u32[72,128]{1,0:T(1,128)}', space=vmem, size = 0x9000, scoped, tag = 'internal scratch']
  %s0 = inlined_call_operand.vmem [shape: bf16[128,144], index: 0, kind: input, shape index: {}]
  %s1 = inlined_call_operand.vmem [shape: bf16[144,128], index: 1, kind: input, shape index: {}]
  %s2 = inlined_call_operand.vmem [shape: bf16[128,128], index: 2, kind: output, shape index: {0}]
  %s3 = inlined_call_operand.vmem [shape: f32[2,2,128], index: 3, kind: output, shape index: {1}]
  %4 = xla_tuple %s2, %s3
  %s5 = sld [smem:[#allocation0]]
  $region49: #{darknet10_forward.23} parent=0
    _
  %s7 = ssub.s32 1, %s5
  %s8 = scalar_select 0, %s7, %s5
  loop: start=0, step=1, limit=4
  $region2: #{darknet10_forward.23} parent=0 // loop_pre_header
    _
  $region3: #{darknet10_forward.23} parent=0 // loop_header
    %s10 = sphi 0, %s14
    %p11 = scmp.ge.s32.totalorder %s10, 4
    %s20 = sphi 0, %s22
    %s23 = sphi 0, %s20
    %s24 = sphi 0, %s23
    %s40 = sphi 0, %s24
    %s44 = sphi 0, %s44
    %s46 = sphi 0, %s44
    %s47 = sphi 0, %s46
    %s61 = sphi 0, %s47
    %s67 = sphi 0, %s69
    %s70 = sphi 0, %s67
    %s71 = sphi 0, %s70
    %s87 = sphi 0, %s71
    %s93 = sphi 0, %s95
    %s96 = sphi 0, %s93
    %s97 = sphi 0, %s96
    %s113 = sphi 0, %s97
  $region4: #{darknet10_forward.23} parent=0 // loop_header_branch
    %13 = sbr.rel (%p11) target = $region8
  $region5: #{darknet10_forward.23} parent=0 // loop_body
    %s15 = ssub.s32 %s10, 1
    %s16 = ssub.s32 %s10, 2
    %s17 = sadd.s32 %s10, 1
    %s18 = ssub.s32 %s10, %s17
    %p19 = scmp.eq.s32.totalorder %s18, 0
    %s21 = sadd.s32 %s20, 1
    %s22 = scalar_select %p19, %s20, %s21
    %p25 = pneg %p19
    %p26 = scmp.eq.s32.totalorder %s10, 1
    %p27 = por %p25, %p26
    %p28 = scmp.ne.s32.totalorder %s20, %s23
    %p29 = scmp.eq.s32.totalorder %s10, 0
    %p30 = por %p28, %p29
    %p31 = scmp.ne.s32.totalorder %s20, %s23
    %p32 = scmp.eq.s32.totalorder %s15, 1
    %p33 = por %p31, %p32
    %p34 = scmp.ne.s32.totalorder %s23, %s24
    %p35 = scmp.eq.s32.totalorder %s15, 0
    %p36 = por %p34, %p35
    %p37 = scmp.ne.s32.totalorder %s23, %s24
    %p38 = scmp.eq.s32.totalorder %s16, 1
    %p39 = por %p37, %p38
    %p41 = scmp.ne.s32.totalorder %s24, %s40
    %p42 = scmp.eq.s32.totalorder %s16, 0
    %p43 = por %p41, %p42
    %s45 = sadd.s32 %s44, 1
    %p48 = scmp.eq.s32.totalorder %s10, 1
    %p49 = scmp.ne.s32.totalorder %s44, %s46
    %p50 = scmp.eq.s32.totalorder %s10, 0
    %p51 = por %p49, %p50
    %p52 = scmp.ne.s32.totalorder %s44, %s46
    %p53 = scmp.eq.s32.totalorder %s15, 1
    %p54 = por %p52, %p53
    %p55 = scmp.ne.s32.totalorder %s46, %s47
    %p56 = scmp.eq.s32.totalorder %s15, 0
    %p57 = por %p55, %p56
    %p58 = scmp.ne.s32.totalorder %s46, %s47
    %p59 = scmp.eq.s32.totalorder %s16, 1
    %p60 = por %p58, %p59
    %p62 = scmp.ne.s32.totalorder %s47, %s61
    %p63 = scmp.eq.s32.totalorder %s16, 0
    %p64 = por %p62, %p63
    %s65 = ssub.s32 %s10, %s17
    %p66 = scmp.eq.s32.totalorder %s65, 0
    %s68 = sadd.s32 %s67, 1
    %s69 = scalar_select %p66, %s67, %s68
    %p72 = pneg %p66
    %p73 = scmp.eq.s32.totalorder %s10, 1
    %p74 = por %p72, %p73
    %p75 = scmp.ne.s32.totalorder %s67, %s70
    %p76 = scmp.eq.s32.totalorder %s10, 0
    %p77 = por %p75, %p76
    %p78 = scmp.ne.s32.totalorder %s67, %s70
    %p79 = scmp.eq.s32.totalorder %s15, 1
    %p80 = por %p78, %p79
    %p81 = scmp.ne.s32.totalorder %s70, %s71
    %p82 = scmp.eq.s32.totalorder %s15, 0
    %p83 = por %p81, %p82
    %p84 = scmp.ne.s32.totalorder %s70, %s71
    %p85 = scmp.eq.s32.totalorder %s16, 1
    %p86 = por %p84, %p85
    %p88 = scmp.ne.s32.totalorder %s71, %s87
    %p89 = scmp.eq.s32.totalorder %s16, 0
    %p90 = por %p88, %p89
    %s91 = ssub.s32 %s10, %s17
    %p92 = scmp.eq.s32.totalorder %s91, 0
    %s94 = sadd.s32 %s93, 1
    %s95 = scalar_select %p92, %s93, %s94
    %p98 = pneg %p92
    %p99 = scmp.eq.s32.totalorder %s10, 1
    %p100 = por %p98, %p99
    %p101 = scmp.ne.s32.totalorder %s93, %s96
    %p102 = scmp.eq.s32.totalorder %s10, 0
    %p103 = por %p101, %p102
    %p104 = scmp.ne.s32.totalorder %s93, %s96
    %p105 = scmp.eq.s32.totalorder %s15, 1
    %p106 = por %p104, %p105
    %p107 = scmp.ne.s32.totalorder %s96, %s97
    %p108 = scmp.eq.s32.totalorder %s15, 0
    %p109 = por %p107, %p108
    %p110 = scmp.ne.s32.totalorder %s96, %s97
    %p111 = scmp.eq.s32.totalorder %s16, 1
    %p112 = por %p110, %p111
    %p114 = scmp.ne.s32.totalorder %s97, %s113
    %p115 = scmp.eq.s32.totalorder %s16, 0
    %p116 = por %p114, %p115
    %p117 = scmp.le.s32.totalorder 1, %s10
    %p118 = scmp.lt.s32.totalorder %s10, 3
    %p119 = pnand %p117, %p118
    %p120 = pneg %p119
    // Predicated region
    $region9: #{darknet10_forward.23} parent=5 // pred_check
      _
    $region10: #{darknet10_forward.23} parent=5 // pred_check_branch
      %122 = sbr.rel (%p119) target = $region12
    $region11: #{darknet10_forward.23} parent=5 // pred_region
      %s123 = ssub.s32 %s10, 1
      // Predicated region
      $region13: #{darknet10_forward.23} parent=11 // pred_check
        %p124 = pneg %p57
      $region14: #{darknet10_forward.23} parent=11 // pred_check_branch
        %126 = sbr.rel (%p124) target = $region16
      $region15: #{darknet10_forward.23} parent=11 // pred_region
        _
      $region16: #{darknet10_forward.23} parent=11 // pred_fallthru
        _
    $region12: #{darknet10_forward.23} parent=5 // pred_fallthru
      _
    %p127 = scmp.lt.s32.totalorder %s10, 2
    // Predicated region
    $region17: #{darknet10_forward.23} parent=5 // pred_check
      %p128 = pneg %p127
    $region18: #{darknet10_forward.23} parent=5 // pred_check_branch
      %130 = sbr.rel (%p128) target = $region20
    $region19: #{darknet10_forward.23} parent=5 // pred_region
      // Predicated region
      $region21: #{darknet10_forward.23} parent=19 // pred_check
        %p131 = pneg %p30
      $region22: #{darknet10_forward.23} parent=19 // pred_check_branch
        %133 = sbr.rel (%p131) target = $region24
      $region23: #{darknet10_forward.23} parent=19 // pred_region
        %s134 = smul.u32 8, %s10
        %p135 = scmp.lt.s32.totalorder %s134, 15
        %s136 = scalar_select %p135, %s134, 15
        %s137 = smul.addr %s136, 2
        %s138 = smul.addr %s137, 4
        %s139 = scalar_lea.vmem %s0, %s138
        %s140 = smul.u32 8, %s10
      $region24: #{darknet10_forward.23} parent=19 // pred_fallthru
        _
    $region20: #{darknet10_forward.23} parent=5 // pred_fallthru
      _
    %p141 = scmp.le.s32.totalorder 1, %s10
    %p142 = scmp.lt.s32.totalorder %s10, 3
    %p143 = pnand %p141, %p142
    %p144 = pneg %p143
    // Predicated region
    $region25: #{darknet10_forward.23} parent=5 // pred_check
      _
    $region26: #{darknet10_forward.23} parent=5 // pred_check_branch
      %146 = sbr.rel (%p143) target = $region28
    $region27: #{darknet10_forward.23} parent=5 // pred_region
      %s147 = ssub.s32 %s10, 1
      %s148 = smul.u32 8, %s15
      %p149 = scmp.lt.s32.totalorder %s148, 15
      %s150 = scalar_select %p149, %s148, 15
      %s151 = smul.addr %s150, 2
      %s152 = smul.addr %s151, 4
      %s153 = scalar_lea.vmem %s0, %s152
      %p154 = pneg %p36
      %p155 = pneg %p33
      %p156 = pneg %p57
      %p157 = pneg %p54
      %p158 = pneg %p83
      %p159 = pneg %p80
      %s160 = smul.u32 8, %s15
      %p161 = scmp.lt.s32.totalorder %s160, 15
      %s162 = scalar_select %p161, %s160, 15
      %s163 = smul.addr %s162, 4
      %s164 = scalar_lea.vmem %s2, %s163
      %p165 = pneg %p109
      %p166 = pneg %p106
      %p167 = scmp.lt.s32.totalorder %s15, 1
      %s168 = scalar_select %p167, %s15, 1
      %s169 = smul.addr %s168, 2
      %s170 = scalar_lea.vmem %s3, %s169
      %s171 = smul.u32 8, %s15
      %p172 = scmp.lt.s32.totalorder %s171, 15
      %s173 = scalar_select %p172, %s171, 15
      %s174 = smul.addr %s173, 2
      %s175 = smul.addr %s174, 4
      %s176 = scalar_lea.vmem %s0, %s175
      %s177 = smul.u32 8, %s15
      %s178 = smul.u32 8, %s15
      %p179 = scmp.lt.s32.totalorder %s178, 15
      %s180 = scalar_select %p179, %s178, 15
      %s181 = smul.addr %s180, 4
      %s182 = scalar_lea.vmem %s2, %s181
      %s183 = smul.u32 8, %s15
      %p184 = scmp.lt.s32.totalorder %s15, 1
      %s185 = scalar_select %p184, %s15, 1
      %s186 = smul.addr %s185, 2
      %s187 = scalar_lea.vmem %s3, %s186
      %v189 = vld [vmem:[%s176] sm:$0xff]
      %v190 = vld [vmem:[%s176 + $0x8] sm:$0xff]
      %v191 = vld [vmem:[%s176 + $0x10] sm:$0xff]
      %v192 = vld [vmem:[%s176 + $0x18] sm:$0xff]
      %v193 = vld [vmem:[%s176 + $0x20] sm:$0xff]
      %v194 = vld [vmem:[%s176 + $0x28] sm:$0xff]
      %v195 = vld [vmem:[%s176 + $0x30] sm:$0xff]
      %v196 = vld [vmem:[%s176 + $0x38] sm:$0xff]
      %v197 = vld [vmem:[%s1] sm:$0xf]
      %v198 = vld [vmem:[%s1 + $0x4] sm:$0xf]
      %v199 = vld [vmem:[%s1 + $0x8] sm:$0xf]
      %v200 = vld [vmem:[%s1 + $0xc] sm:$0xf]
      %v201 = vld [vmem:[%s1 + $0x10] sm:$0xf]
      %v202 = vld [vmem:[%s1 + $0x14] sm:$0xf]
      %v203 = vld [vmem:[%s1 + $0x18] sm:$0xf]
      %v204 = vld [vmem:[%s1 + $0x1c] sm:$0xf]
      %v205 = vld [vmem:[%s1 + $0x20] sm:$0xf]
      %v206 = vld [vmem:[%s1 + $0x24] sm:$0xf]
      %v207 = vld [vmem:[%s1 + $0x28] sm:$0xf]
      %v208 = vld [vmem:[%s1 + $0x2c] sm:$0xf]
      %v209 = vld [vmem:[%s1 + $0x30] sm:$0xf]
      %v210 = vld [vmem:[%s1 + $0x34] sm:$0xf]
      %v211 = vld [vmem:[%s1 + $0x38] sm:$0xf]
      %v212 = vld [vmem:[%s1 + $0x3c] sm:$0xf]
      %v213 = vld [vmem:[%s1 + $0x40] sm:$0xf]
      %v214 = vld [vmem:[%s1 + $0x44] sm:$0xf]
      %v223 = vunpack.c.l.b16 %v189
      %v224 = vunpack.c.h.b16 %v189
      %v225 = vunpack.c.l.b16 %v190
      %v226 = vunpack.c.h.b16 %v190
      %v227 = vunpack.c.l.b16 %v191
      %v228 = vunpack.c.h.b16 %v191
      %v229 = vunpack.c.l.b16 %v192
      %v230 = vunpack.c.h.b16 %v192
      %v231 = vunpack.c.l.b16 %v193
      %v232 = vunpack.c.h.b16 %v193
      %v233 = vunpack.c.l.b16 %v194
      %v234 = vunpack.c.h.b16 %v194
      %v235 = vunpack.c.l.b16 %v195
      %v236 = vunpack.c.h.b16 %v195
      %v237 = vunpack.c.l.b16 %v196
      %v238 = vunpack.c.h.b16 %v196
      %v239 = vpack.c.b16 %v225, %v223
      %v240 = vpack.c.b16 %v226, %v224
      %v241 = vpack.c.b16 %v229, %v227
      %v242 = vpack.c.b16 %v230, %v228
      %v243 = vpack.c.b16 %v233, %v231
      %v244 = vpack.c.b16 %v234, %v232
      %v245 = vpack.c.b16 %v237, %v235
      %v246 = vpack.c.b16 %v238, %v236
      %v269 = vunpack.c.l.b16 %v197
      %v270 = vunpack.c.l.b16 %v198
      %v271 = vunpack.c.l.b16 %v199
      %v272 = vunpack.c.l.b16 %v200
      %v273 = vunpack.c.l.b16 %v201
      %v274 = vunpack.c.l.b16 %v202
      %v275 = vunpack.c.l.b16 %v203
      %v276 = vunpack.c.l.b16 %v204
      %v277 = vunpack.c.l.b16 %v205
      %v278 = vunpack.c.l.b16 %v206
      %v279 = vunpack.c.l.b16 %v207
      %v280 = vunpack.c.l.b16 %v208
      %v281 = vunpack.c.l.b16 %v209
      %v282 = vunpack.c.l.b16 %v210
      %v283 = vunpack.c.l.b16 %v211
      %v284 = vunpack.c.l.b16 %v212
      %v285 = vunpack.c.l.b16 %v213
      %v286 = vunpack.c.l.b16 %v214
      %v287 = vpack.c.b16 %v270, %v269
      %v288 = vpack.c.b16 %v272, %v271
      %v289 = vpack.c.b16 %v274, %v273
      %v290 = vpack.c.b16 %v276, %v275
      %v291 = vpack.c.b16 %v278, %v277
      %v292 = vpack.c.b16 %v280, %v279
      %v293 = vpack.c.b16 %v282, %v281
      %v294 = vpack.c.b16 %v284, %v283
      %v295 = vpack.c.b16 %v286, %v285
      %vm305 = vcmask 130048
      %v307 = vsel %vm305, %v240, 0
      %v310 = vsel %vm305, %v242, 0
      %v313 = vsel %vm305, %v244, 0
      %v316 = vsel %vm305, %v246, 0
      %318 = vmatpush.bf16.msra.mxu0 %v294
      %319 = vmatpush.bf16.msra.mxu0 %v293
      %320 = vmatpush.bf16.msra.mxu0 %v292
      %321 = vmatpush.bf16.msra.mxu0 %v291
      %322 = vmatpush.bf16.msra.mxu0 %v290
      %323 = vmatpush.bf16.msra.mxu0 %v289
      %324 = vmatpush.bf16.msra.mxu0 %v288
      %325 = vmatpush.bf16.msra.mxu0 %v287
      %326 = vmatmul.bf16.gmra.mxu0 %v239
      %v327 = vpop.f32.mrf.mxu0
      %v328 = vadd.f32 0.0, %v327
      %v329 = vpop.f32.mrf.mxu0
      %v330 = vadd.f32 0.0, %v329
      %331 = vmatmul.bf16.gmra.mxu0 %v241
      %v332 = vpop.f32.mrf.mxu0
      %v333 = vadd.f32 0.0, %v332
      %v334 = vpop.f32.mrf.mxu0
      %v335 = vadd.f32 0.0, %v334
      %336 = vmatmul.bf16.gmra.mxu0 %v243
      %v337 = vpop.f32.mrf.mxu0
      %v338 = vadd.f32 0.0, %v337
      %v339 = vpop.f32.mrf.mxu0
      %v340 = vadd.f32 0.0, %v339
      %341 = vmatmul.bf16.gmra.mxu0 %v245
      %v342 = vpop.f32.mrf.mxu0
      %v343 = vadd.f32 0.0, %v342
      %v344 = vpop.f32.mrf.mxu0
      %v345 = vadd.f32 0.0, %v344
      %346 = vdwg.mxu0
      %347 = vmatpush.bf16.msra.mxu0 0
      %348 = vmatpush.bf16.msra.mxu0 0
      %349 = vmatpush.bf16.msra.mxu0 0
      %350 = vmatpush.bf16.msra.mxu0 0
      %351 = vmatpush.bf16.msra.mxu0 0
      %352 = vmatpush.bf16.msra.mxu0 0
      %353 = vmatpush.bf16.msra.mxu0 0
      %354 = vmatpush.bf16.msra.mxu0 %v295
      %355 = vmatmul.bf16.gmra.mxu0 %v307
      %v356 = vpop.f32.mrf.mxu0
      %v357 = vadd.f32 %v328, %v356
      %v358 = vpop.f32.mrf.mxu0
      %v359 = vadd.f32 %v330, %v358
      %360 = vmatmul.bf16.gmra.mxu0 %v310
      %v361 = vpop.f32.mrf.mxu0
      %v362 = vadd.f32 %v333, %v361
      %v363 = vpop.f32.mrf.mxu0
      %v364 = vadd.f32 %v335, %v363
      %365 = vmatmul.bf16.gmra.mxu0 %v313
      %v366 = vpop.f32.mrf.mxu0
      %v367 = vadd.f32 %v338, %v366
      %v368 = vpop.f32.mrf.mxu0
      %v369 = vadd.f32 %v340, %v368
      %370 = vmatmul.bf16.gmra.mxu0 %v316
      %v371 = vpop.f32.mrf.mxu0
      %v372 = vadd.f32 %v343, %v371
      %v373 = vpop.f32.mrf.mxu0
      %v374 = vadd.f32 %v345, %v373
      %375 = vdwg.mxu0
      %v376 = vpack.c.bf16 %v357, %v357
      %v377 = vpack.c.bf16 %v359, %v359
      %v378 = vpack.c.bf16 %v362, %v362
      %v379 = vpack.c.bf16 %v364, %v364
      %v380 = vpack.c.bf16 %v367, %v367
      %v381 = vpack.c.bf16 %v369, %v369
      %v382 = vpack.c.bf16 %v372, %v372
      %v383 = vpack.c.bf16 %v374, %v374
      %384 = vst [vmem:[%s182] sm:$0xf] %v376
      %385 = vst [vmem:[%s182 + $0x4] sm:$0xf] %v377
      %386 = vst [vmem:[%s182 + $0x8] sm:$0xf] %v378
      %387 = vst [vmem:[%s182 + $0xc] sm:$0xf] %v379
      %388 = vst [vmem:[%s182 + $0x10] sm:$0xf] %v380
      %389 = vst [vmem:[%s182 + $0x14] sm:$0xf] %v381
      %390 = vst [vmem:[%s182 + $0x18] sm:$0xf] %v382
      %391 = vst [vmem:[%s182 + $0x1c] sm:$0xf] %v383
      %s392 = smul.u32 %s15, 64
      %v393 = vlaneseq
      %v394 = vshrl.u32 %v393, 7
      %v395 = vadd.s32 %v394, 8
      %v396 = vadd.s32 %v394, 16
      %v397 = vadd.s32 %v394, 24
      %v398 = vadd.s32 %v394, 32
      %v399 = vadd.s32 %v394, 40
      %v400 = vadd.s32 %v394, 48
      %v401 = vadd.s32 %v394, 56
      %v402 = vstv %s392
      %v403 = vadd.s32 %v394, %v402
      %v404 = vadd.s32 %v395, %v402
      %v405 = vadd.s32 %v396, %v402
      %v406 = vadd.s32 %v397, %v402
      %v407 = vadd.s32 %v398, %v402
      %v408 = vadd.s32 %v399, %v402
      %v409 = vadd.s32 %v400, %v402
      %v410 = vadd.s32 %v401, %v402
      %vm411 = vcmp.lt.s32.totalorder %v403, 128
      %vm412 = vcmp.lt.s32.totalorder %v404, 128
      %vm413 = vcmp.lt.s32.totalorder %v405, 128
      %vm414 = vcmp.lt.s32.totalorder %v406, 128
      %vm415 = vcmp.lt.s32.totalorder %v407, 128
      %vm416 = vcmp.lt.s32.totalorder %v408, 128
      %vm417 = vcmp.lt.s32.totalorder %v409, 128
      %vm418 = vcmp.lt.s32.totalorder %v410, 128
      %s419 = ssub.s32 128, %s392
      %p420 = scmp.lt.s32.totalorder %s419, 64
      %s421 = scalar_select %p420, %s419, 64
      %p422 = scmp.gt.s32.totalorder %s421, 1
      %s423 = scalar_select %p422, %s421, 1
      %s424 = scvt.s32.f32 %s423
      %v425 = vsel %vm411, 1, 0
      %v426 = vsel %vm412, 1, 0
      %v427 = vsel %vm413, 1, 0
      %v428 = vsel %vm414, 1, 0
      %v429 = vsel %vm415, 1, 0
      %v430 = vsel %vm416, 1, 0
      %v431 = vsel %vm417, 1, 0
      %v432 = vsel %vm418, 1, 0
      %vm433 = vcmp.eq.s32.totalorder %v425, 1
      %vm434 = vcmp.eq.s32.totalorder %v426, 1
      %vm435 = vcmp.eq.s32.totalorder %v427, 1
      %vm436 = vcmp.eq.s32.totalorder %v428, 1
      %vm437 = vcmp.eq.s32.totalorder %v429, 1
      %vm438 = vcmp.eq.s32.totalorder %v430, 1
      %vm439 = vcmp.eq.s32.totalorder %v431, 1
      %vm440 = vcmp.eq.s32.totalorder %v432, 1
      %v441 = vsel %vm433, %v357, 0.0
      %v442 = vsel %vm434, %v359, 0.0
      %v443 = vsel %vm435, %v362, 0.0
      %v444 = vsel %vm436, %v364, 0.0
      %v445 = vsel %vm437, %v367, 0.0
      %v446 = vsel %vm438, %v369, 0.0
      %v447 = vsel %vm439, %v372, 0.0
      %v448 = vsel %vm440, %v374, 0.0
      %v449 = vadd.f32 %v441, %v442
      %v450 = vadd.f32 %v449, %v443
      %v451 = vadd.f32 %v450, %v444
      %v452 = vadd.f32 %v451, %v445
      %v453 = vadd.f32 %v452, %v446
      %v454 = vadd.f32 %v453, %v447
      %v455 = vadd.f32 %v454, %v448
      %v456 = vrot.slane %v455, 4
      %v457 = vadd.f32 %v455, %v456
      %v458 = vrot.slane %v457, 2
      %v459 = vadd.f32 %v457, %v458
      %v460 = vrot.slane %v459, 1
      %v461 = vadd.f32 %v459, %v460
      %v462 = vstv %s424
      %v463 = vrcp.pop %v462
      %v464 = vmul.f32 %v462, %v463
      %v465 = vsub.f32 1.0, %v464
      %v466 = vmul.f32 %v463, %v465
      %v467 = vadd.f32 %v463, %v466
      %vm468 = vweird.f32 %v462
      %vm469 = vweird.f32 %v463
      %vm470 = vmor %vm468, %vm469
      %v471 = vsel %vm470, %v463, %v467
      %v472 = vand.u32 2147483647, %v462
      %vm473 = vcmp.eq.f32.partialorder %v472, 8.507059e+37
      %v474 = vand.u32 %v462, 2147483648
      %v475 = vor.u32 1.1754944e-38, %v474
      %v476 = vsel %vm473, %v475, %v471
      %v477 = vmul.f32 %v461, %v476
      %v478 = vsub.f32 %v357, %v477
      %v479 = vsub.f32 %v359, %v477
      %v480 = vsub.f32 %v362, %v477
      %v481 = vsub.f32 %v364, %v477
      %v482 = vsub.f32 %v367, %v477
      %v483 = vsub.f32 %v369, %v477
      %v484 = vsub.f32 %v372, %v477
      %v485 = vsub.f32 %v374, %v477
      %v486 = vsel %vm433, %v478, 0.0
      %v487 = vsel %vm434, %v479, 0.0
      %v488 = vsel %vm435, %v480, 0.0
      %v489 = vsel %vm436, %v481, 0.0
      %v490 = vsel %vm437, %v482, 0.0
      %v491 = vsel %vm438, %v483, 0.0
      %v492 = vsel %vm439, %v484, 0.0
      %v493 = vsel %vm440, %v485, 0.0
      %494 = vst [vmem:[%s187] sm:$0x1] %v461
      %v495 = vmul.f32 %v486, %v486
      %v496 = vmul.f32 %v487, %v487
      %v497 = vmul.f32 %v488, %v488
      %v498 = vmul.f32 %v489, %v489
      %v499 = vmul.f32 %v490, %v490
      %v500 = vmul.f32 %v491, %v491
      %v501 = vmul.f32 %v492, %v492
      %v502 = vmul.f32 %v493, %v493
      %v503 = vadd.f32 %v495, %v496
      %v504 = vadd.f32 %v503, %v497
      %v505 = vadd.f32 %v504, %v498
      %v506 = vadd.f32 %v505, %v499
      %v507 = vadd.f32 %v506, %v500
      %v508 = vadd.f32 %v507, %v501
      %v509 = vadd.f32 %v508, %v502
      %v510 = vrot.slane %v509, 4
      %v511 = vadd.f32 %v509, %v510
      %v512 = vrot.slane %v511, 2
      %v513 = vadd.f32 %v511, %v512
      %v514 = vrot.slane %v513, 1
      %v515 = vadd.f32 %v513, %v514
      %516 = vst [vmem:[%s187 + $0x1] sm:$0x1] %v515
      %s517 = smul.u32 8, %s15
      %p518 = scmp.lt.s32.totalorder %s517, 15
      %s519 = scalar_select %p518, %s517, 15
      %s520 = smul.addr %s519, 4
      %s521 = scalar_lea.vmem %s2, %s520
      %p522 = scmp.lt.s32.totalorder %s15, 1
      %s523 = scalar_select %p522, %s15, 1
      %s524 = smul.addr %s523, 2
      %s525 = scalar_lea.vmem %s3, %s524
      // Predicated region
      $region29: #{darknet10_forward.23} parent=27 // pred_check
        %p526 = pneg %p80
      $region30: #{darknet10_forward.23} parent=27 // pred_check_branch
        %528 = sbr.rel (%p526) target = $region32
      $region31: #{darknet10_forward.23} parent=27 // pred_region
        %s529 = smul.u32 8, %s15
      $region32: #{darknet10_forward.23} parent=27 // pred_fallthru
        _
      // Predicated region
      $region33: #{darknet10_forward.23} parent=27 // pred_check
        %p530 = pneg %p106
      $region34: #{darknet10_forward.23} parent=27 // pred_check_branch
        %532 = sbr.rel (%p530) target = $region36
      $region35: #{darknet10_forward.23} parent=27 // pred_region
        _
      $region36: #{darknet10_forward.23} parent=27 // pred_fallthru
        _
    $region28: #{darknet10_forward.23} parent=5 // pred_fallthru
      _
    %p533 = scmp.le.s32.totalorder 2, %s10
    // Predicated region
    $region37: #{darknet10_forward.23} parent=5 // pred_check
      %p534 = pneg %p533
    $region38: #{darknet10_forward.23} parent=5 // pred_check_branch
      %536 = sbr.rel (%p534) target = $region40
    $region39: #{darknet10_forward.23} parent=5 // pred_region
      %s537 = ssub.s32 %s10, 2
      // Predicated region
      $region41: #{darknet10_forward.23} parent=39 // pred_check
        %p538 = pneg %p86
      $region42: #{darknet10_forward.23} parent=39 // pred_check_branch
        %540 = sbr.rel (%p538) target = $region44
      $region43: #{darknet10_forward.23} parent=39 // pred_region
        %s541 = smul.u32 8, %s16
        %p542 = scmp.lt.s32.totalorder %s541, 15
        %s543 = scalar_select %p542, %s541, 15
        %s544 = smul.addr %s543, 4
        %s545 = scalar_lea.vmem %s2, %s544
      $region44: #{darknet10_forward.23} parent=39 // pred_fallthru
        _
      // Predicated region
      $region45: #{darknet10_forward.23} parent=39 // pred_check
        %p546 = pneg %p112
      $region46: #{darknet10_forward.23} parent=39 // pred_check_branch
        %548 = sbr.rel (%p546) target = $region48
      $region47: #{darknet10_forward.23} parent=39 // pred_region
        %p549 = scmp.lt.s32.totalorder %s16, 1
        %s550 = scalar_select %p549, %s16, 1
        %s551 = smul.addr %s550, 2
        %s552 = scalar_lea.vmem %s3, %s551
      $region48: #{darknet10_forward.23} parent=39 // pred_fallthru
        _
    $region40: #{darknet10_forward.23} parent=5 // pred_fallthru
      _
  $region6: #{darknet10_forward.23} parent=0 // loop_footer
    %s14 = sadd.s32 1, %s10
  $region7: #{darknet10_forward.23} parent=0 // loop_footer_branch
    %9 = sbr.rel target = $region3
  $region8: #{darknet10_forward.23} parent=0 // loop_exit
    _

// kernel: darknet10_forward.24
$region0: #{darknet10_forward.24}
  #allocation0 [shape = 'u32[]', space=smem, size = 0x4, offset = 0x4, fixed_abs, tag = 'smem constant byte address 0x4 - core index']
  #allocation1 [shape = 'u32[72,128]{1,0:T(1,128)}', space=vmem, size = 0x9000, scoped, tag = 'internal scratch']
  %s0 = inlined_call_operand.vmem [shape: bf16[128,128], index: 0, kind: input, shape index: {}]
  %s1 = inlined_call_operand.vmem [shape: f32[1,128], index: 1, kind: input, shape index: {}]
  %s2 = inlined_call_operand.vmem [shape: f32[1,128], index: 2, kind: input, shape index: {}]
  %s3 = inlined_call_operand.vmem [shape: bf16[128,128], index: 3, kind: output, shape index: {}]
  %s4 = sld [smem:[#allocation0]]
  $region45: #{darknet10_forward.24} parent=0
    _
  %s6 = ssub.s32 1, %s4
  %s7 = scalar_select 0, %s6, %s4
  loop: start=0, step=1, limit=4
  $region2: #{darknet10_forward.24} parent=0 // loop_pre_header
    _
  $region3: #{darknet10_forward.24} parent=0 // loop_header
    %s9 = sphi 0, %s13
    %p10 = scmp.ge.s32.totalorder %s9, 4
    %s19 = sphi 0, %s21
    %s22 = sphi 0, %s19
    %s23 = sphi 0, %s22
    %s39 = sphi 0, %s23
    %s43 = sphi 0, %s43
    %s45 = sphi 0, %s43
    %s46 = sphi 0, %s45
    %s60 = sphi 0, %s46
    %s64 = sphi 0, %s64
    %s66 = sphi 0, %s64
    %s67 = sphi 0, %s66
    %s81 = sphi 0, %s67
    %s87 = sphi 0, %s89
    %s90 = sphi 0, %s87
    %s91 = sphi 0, %s90
    %s107 = sphi 0, %s91
  $region4: #{darknet10_forward.24} parent=0 // loop_header_branch
    %12 = sbr.rel (%p10) target = $region8
  $region5: #{darknet10_forward.24} parent=0 // loop_body
    %s14 = ssub.s32 %s9, 1
    %s15 = ssub.s32 %s9, 2
    %s16 = sadd.s32 %s9, 1
    %s17 = ssub.s32 %s9, %s16
    %p18 = scmp.eq.s32.totalorder %s17, 0
    %s20 = sadd.s32 %s19, 1
    %s21 = scalar_select %p18, %s19, %s20
    %p24 = pneg %p18
    %p25 = scmp.eq.s32.totalorder %s9, 1
    %p26 = por %p24, %p25
    %p27 = scmp.ne.s32.totalorder %s19, %s22
    %p28 = scmp.eq.s32.totalorder %s9, 0
    %p29 = por %p27, %p28
    %p30 = scmp.ne.s32.totalorder %s19, %s22
    %p31 = scmp.eq.s32.totalorder %s14, 1
    %p32 = por %p30, %p31
    %p33 = scmp.ne.s32.totalorder %s22, %s23
    %p34 = scmp.eq.s32.totalorder %s14, 0
    %p35 = por %p33, %p34
    %p36 = scmp.ne.s32.totalorder %s22, %s23
    %p37 = scmp.eq.s32.totalorder %s15, 1
    %p38 = por %p36, %p37
    %p40 = scmp.ne.s32.totalorder %s23, %s39
    %p41 = scmp.eq.s32.totalorder %s15, 0
    %p42 = por %p40, %p41
    %s44 = sadd.s32 %s43, 1
    %p47 = scmp.eq.s32.totalorder %s9, 1
    %p48 = scmp.ne.s32.totalorder %s43, %s45
    %p49 = scmp.eq.s32.totalorder %s9, 0
    %p50 = por %p48, %p49
    %p51 = scmp.ne.s32.totalorder %s43, %s45
    %p52 = scmp.eq.s32.totalorder %s14, 1
    %p53 = por %p51, %p52
    %p54 = scmp.ne.s32.totalorder %s45, %s46
    %p55 = scmp.eq.s32.totalorder %s14, 0
    %p56 = por %p54, %p55
    %p57 = scmp.ne.s32.totalorder %s45, %s46
    %p58 = scmp.eq.s32.totalorder %s15, 1
    %p59 = por %p57, %p58
    %p61 = scmp.ne.s32.totalorder %s46, %s60
    %p62 = scmp.eq.s32.totalorder %s15, 0
    %p63 = por %p61, %p62
    %s65 = sadd.s32 %s64, 1
    %p68 = scmp.eq.s32.totalorder %s9, 1
    %p69 = scmp.ne.s32.totalorder %s64, %s66
    %p70 = scmp.eq.s32.totalorder %s9, 0
    %p71 = por %p69, %p70
    %p72 = scmp.ne.s32.totalorder %s64, %s66
    %p73 = scmp.eq.s32.totalorder %s14, 1
    %p74 = por %p72, %p73
    %p75 = scmp.ne.s32.totalorder %s66, %s67
    %p76 = scmp.eq.s32.totalorder %s14, 0
    %p77 = por %p75, %p76
    %p78 = scmp.ne.s32.totalorder %s66, %s67
    %p79 = scmp.eq.s32.totalorder %s15, 1
    %p80 = por %p78, %p79
    %p82 = scmp.ne.s32.totalorder %s67, %s81
    %p83 = scmp.eq.s32.totalorder %s15, 0
    %p84 = por %p82, %p83
    %s85 = ssub.s32 %s9, %s16
    %p86 = scmp.eq.s32.totalorder %s85, 0
    %s88 = sadd.s32 %s87, 1
    %s89 = scalar_select %p86, %s87, %s88
    %p92 = pneg %p86
    %p93 = scmp.eq.s32.totalorder %s9, 1
    %p94 = por %p92, %p93
    %p95 = scmp.ne.s32.totalorder %s87, %s90
    %p96 = scmp.eq.s32.totalorder %s9, 0
    %p97 = por %p95, %p96
    %p98 = scmp.ne.s32.totalorder %s87, %s90
    %p99 = scmp.eq.s32.totalorder %s14, 1
    %p100 = por %p98, %p99
    %p101 = scmp.ne.s32.totalorder %s90, %s91
    %p102 = scmp.eq.s32.totalorder %s14, 0
    %p103 = por %p101, %p102
    %p104 = scmp.ne.s32.totalorder %s90, %s91
    %p105 = scmp.eq.s32.totalorder %s15, 1
    %p106 = por %p104, %p105
    %p108 = scmp.ne.s32.totalorder %s91, %s107
    %p109 = scmp.eq.s32.totalorder %s15, 0
    %p110 = por %p108, %p109
    %p111 = scmp.le.s32.totalorder 1, %s9
    %p112 = scmp.lt.s32.totalorder %s9, 3
    %p113 = pnand %p111, %p112
    %p114 = pneg %p113
    // Predicated region
    $region9: #{darknet10_forward.24} parent=5 // pred_check
      _
    $region10: #{darknet10_forward.24} parent=5 // pred_check_branch
      %116 = sbr.rel (%p113) target = $region12
    $region11: #{darknet10_forward.24} parent=5 // pred_region
      %s117 = ssub.s32 %s9, 1
      // Predicated region
      $region13: #{darknet10_forward.24} parent=11 // pred_check
        %p118 = pneg %p56
      $region14: #{darknet10_forward.24} parent=11 // pred_check_branch
        %120 = sbr.rel (%p118) target = $region16
      $region15: #{darknet10_forward.24} parent=11 // pred_region
        _
      $region16: #{darknet10_forward.24} parent=11 // pred_fallthru
        _
      // Predicated region
      $region17: #{darknet10_forward.24} parent=11 // pred_check
        %p121 = pneg %p77
      $region18: #{darknet10_forward.24} parent=11 // pred_check_branch
        %123 = sbr.rel (%p121) target = $region20
      $region19: #{darknet10_forward.24} parent=11 // pred_region
        _
      $region20: #{darknet10_forward.24} parent=11 // pred_fallthru
        _
    $region12: #{darknet10_forward.24} parent=5 // pred_fallthru
      _
    %p124 = scmp.lt.s32.totalorder %s9, 2
    // Predicated region
    $region21: #{darknet10_forward.24} parent=5 // pred_check
      %p125 = pneg %p124
    $region22: #{darknet10_forward.24} parent=5 // pred_check_branch
      %127 = sbr.rel (%p125) target = $region24
    $region23: #{darknet10_forward.24} parent=5 // pred_region
      // Predicated region
      $region25: #{darknet10_forward.24} parent=23 // pred_check
        %p128 = pneg %p29
      $region26: #{darknet10_forward.24} parent=23 // pred_check_branch
        %130 = sbr.rel (%p128) target = $region28
      $region27: #{darknet10_forward.24} parent=23 // pred_region
        %s131 = smul.u32 8, %s9
        %p132 = scmp.lt.s32.totalorder %s131, 15
        %s133 = scalar_select %p132, %s131, 15
        %s134 = smul.addr %s133, 4
        %s135 = scalar_lea.vmem %s0, %s134
        %s136 = smul.u32 8, %s9
      $region28: #{darknet10_forward.24} parent=23 // pred_fallthru
        _
    $region24: #{darknet10_forward.24} parent=5 // pred_fallthru
      _
    %p137 = scmp.le.s32.totalorder 1, %s9
    %p138 = scmp.lt.s32.totalorder %s9, 3
    %p139 = pnand %p137, %p138
    %p140 = pneg %p139
    // Predicated region
    $region29: #{darknet10_forward.24} parent=5 // pred_check
      _
    $region30: #{darknet10_forward.24} parent=5 // pred_check_branch
      %142 = sbr.rel (%p139) target = $region32
    $region31: #{darknet10_forward.24} parent=5 // pred_region
      %s143 = ssub.s32 %s9, 1
      %s144 = smul.u32 8, %s14
      %p145 = scmp.lt.s32.totalorder %s144, 15
      %s146 = scalar_select %p145, %s144, 15
      %s147 = smul.addr %s146, 4
      %s148 = scalar_lea.vmem %s0, %s147
      %p149 = pneg %p35
      %p150 = pneg %p32
      %p151 = pneg %p56
      %p152 = pneg %p53
      %p153 = pneg %p77
      %p154 = pneg %p74
      %p155 = pneg %p103
      %p156 = pneg %p100
      %s157 = smul.u32 8, %s14
      %p158 = scmp.lt.s32.totalorder %s157, 15
      %s159 = scalar_select %p158, %s157, 15
      %s160 = smul.addr %s159, 4
      %s161 = scalar_lea.vmem %s3, %s160
      %s162 = smul.u32 8, %s14
      %p163 = scmp.lt.s32.totalorder %s162, 15
      %s164 = scalar_select %p163, %s162, 15
      %s165 = smul.addr %s164, 4
      %s166 = scalar_lea.vmem %s0, %s165
      %s167 = smul.u32 8, %s14
      %s168 = smul.u32 8, %s14
      %p169 = scmp.lt.s32.totalorder %s168, 15
      %s170 = scalar_select %p169, %s168, 15
      %s171 = smul.addr %s170, 4
      %s172 = scalar_lea.vmem %s3, %s171
      %s173 = smul.u32 8, %s14
      %v174 = vld [vmem:[%s166] sm:$0xf]
      %v175 = vld [vmem:[%s166 + $0x4] sm:$0xf]
      %v176 = vld [vmem:[%s166 + $0x8] sm:$0xf]
      %v177 = vld [vmem:[%s166 + $0xc] sm:$0xf]
      %v178 = vld [vmem:[%s166 + $0x10] sm:$0xf]
      %v179 = vld [vmem:[%s166 + $0x14] sm:$0xf]
      %v180 = vld [vmem:[%s166 + $0x18] sm:$0xf]
      %v181 = vld [vmem:[%s166 + $0x1c] sm:$0xf]
      %v182 = vunpack.c.l.bf16 %v174
      %v183 = vunpack.c.l.bf16 %v175
      %v184 = vunpack.c.l.bf16 %v176
      %v185 = vunpack.c.l.bf16 %v177
      %v186 = vunpack.c.l.bf16 %v178
      %v187 = vunpack.c.l.bf16 %v179
      %v188 = vunpack.c.l.bf16 %v180
      %v189 = vunpack.c.l.bf16 %v181
      %v190 = vld [vmem:[%s1] sm:$0x1]
      %v192 = vperm.slane %v190, 0
      %v194 = vmul.f32 %v182, %v192
      %v195 = vmul.f32 %v183, %v192
      %v196 = vmul.f32 %v184, %v192
      %v197 = vmul.f32 %v185, %v192
      %v198 = vmul.f32 %v186, %v192
      %v199 = vmul.f32 %v187, %v192
      %v200 = vmul.f32 %v188, %v192
      %v201 = vmul.f32 %v189, %v192
      %v202 = vld [vmem:[%s2] sm:$0x1]
      %v204 = vperm.slane %v202, 0
      %v206 = vadd.f32 %v194, %v204
      %v207 = vadd.f32 %v195, %v204
      %v208 = vadd.f32 %v196, %v204
      %v209 = vadd.f32 %v197, %v204
      %v210 = vadd.f32 %v198, %v204
      %v211 = vadd.f32 %v199, %v204
      %v212 = vadd.f32 %v200, %v204
      %v213 = vadd.f32 %v201, %v204
      %vm214 = vcmp.gt.f32.partialorder %v206, 0.0
      %vm215 = vcmp.gt.f32.partialorder %v207, 0.0
      %vm216 = vcmp.gt.f32.partialorder %v208, 0.0
      %vm217 = vcmp.gt.f32.partialorder %v209, 0.0
      %vm218 = vcmp.gt.f32.partialorder %v210, 0.0
      %vm219 = vcmp.gt.f32.partialorder %v211, 0.0
      %vm220 = vcmp.gt.f32.partialorder %v212, 0.0
      %vm221 = vcmp.gt.f32.partialorder %v213, 0.0
      %v222 = vmul.f32 %v206, 0.1
      %v223 = vmul.f32 %v207, 0.1
      %v224 = vmul.f32 %v208, 0.1
      %v225 = vmul.f32 %v209, 0.1
      %v226 = vmul.f32 %v210, 0.1
      %v227 = vmul.f32 %v211, 0.1
      %v228 = vmul.f32 %v212, 0.1
      %v229 = vmul.f32 %v213, 0.1
      %v230 = vsel %vm214, %v206, %v222
      %v231 = vsel %vm215, %v207, %v223
      %v232 = vsel %vm216, %v208, %v224
      %v233 = vsel %vm217, %v209, %v225
      %v234 = vsel %vm218, %v210, %v226
      %v235 = vsel %vm219, %v211, %v227
      %v236 = vsel %vm220, %v212, %v228
      %v237 = vsel %vm221, %v213, %v229
      %v238 = vpack.c.bf16 %v230, %v230
      %v239 = vpack.c.bf16 %v231, %v231
      %v240 = vpack.c.bf16 %v232, %v232
      %v241 = vpack.c.bf16 %v233, %v233
      %v242 = vpack.c.bf16 %v234, %v234
      %v243 = vpack.c.bf16 %v235, %v235
      %v244 = vpack.c.bf16 %v236, %v236
      %v245 = vpack.c.bf16 %v237, %v237
      %246 = vst [vmem:[%s172] sm:$0xf] %v238
      %247 = vst [vmem:[%s172 + $0x4] sm:$0xf] %v239
      %248 = vst [vmem:[%s172 + $0x8] sm:$0xf] %v240
      %249 = vst [vmem:[%s172 + $0xc] sm:$0xf] %v241
      %250 = vst [vmem:[%s172 + $0x10] sm:$0xf] %v242
      %251 = vst [vmem:[%s172 + $0x14] sm:$0xf] %v243
      %252 = vst [vmem:[%s172 + $0x18] sm:$0xf] %v244
      %253 = vst [vmem:[%s172 + $0x1c] sm:$0xf] %v245
      %s254 = smul.u32 8, %s14
      %p255 = scmp.lt.s32.totalorder %s254, 15
      %s256 = scalar_select %p255, %s254, 15
      %s257 = smul.addr %s256, 4
      %s258 = scalar_lea.vmem %s3, %s257
      // Predicated region
      $region33: #{darknet10_forward.24} parent=31 // pred_check
        %p259 = pneg %p100
      $region34: #{darknet10_forward.24} parent=31 // pred_check_branch
        %261 = sbr.rel (%p259) target = $region36
      $region35: #{darknet10_forward.24} parent=31 // pred_region
        %s262 = smul.u32 8, %s14
      $region36: #{darknet10_forward.24} parent=31 // pred_fallthru
        _
    $region32: #{darknet10_forward.24} parent=5 // pred_fallthru
      _
    %p263 = scmp.le.s32.totalorder 2, %s9
    // Predicated region
    $region37: #{darknet10_forward.24} parent=5 // pred_check
      %p264 = pneg %p263
    $region38: #{darknet10_forward.24} parent=5 // pred_check_branch
      %266 = sbr.rel (%p264) target = $region40
    $region39: #{darknet10_forward.24} parent=5 // pred_region
      %s267 = ssub.s32 %s9, 2
      // Predicated region
      $region41: #{darknet10_forward.24} parent=39 // pred_check
        %p268 = pneg %p106
      $region42: #{darknet10_forward.24} parent=39 // pred_check_branch
        %270 = sbr.rel (%p268) target = $region44
      $region43: #{darknet10_forward.24} parent=39 // pred_region
        %s271 = smul.u32 8, %s15
        %p272 = scmp.lt.s32.totalorder %s271, 15
        %s273 = scalar_select %p272, %s271, 15
        %s274 = smul.addr %s273, 4
        %s275 = scalar_lea.vmem %s3, %s274
      $region44: #{darknet10_forward.24} parent=39 // pred_fallthru
        _
    $region40: #{darknet10_forward.24} parent=5 // pred_fallthru
      _
  $region6: #{darknet10_forward.24} parent=0 // loop_footer
    %s13 = sadd.s32 1, %s9
  $region7: #{darknet10_forward.24} parent=0 // loop_footer_branch
    %8 = sbr.rel target = $region3
  $region8: #{darknet10_forward.24} parent=0 // loop_exit
    _

// kernel: darknet10_forward.25
$region0: #{darknet10_forward.25}
  #allocation0 [shape = 'u32[]', space=smem, size = 0x4, offset = 0x4, fixed_abs, tag = 'smem constant byte address 0x4 - core index']
  #allocation1 [shape = 'u32[72,128]{1,0:T(1,128)}', space=vmem, size = 0x9000, scoped, tag = 'internal scratch']
  %s0 = inlined_call_operand.vmem [shape: bf16[32,288], index: 0, kind: input, shape index: {}]
  %s1 = inlined_call_operand.vmem [shape: bf16[288,128], index: 1, kind: input, shape index: {}]
  %s2 = inlined_call_operand.vmem [shape: bf16[32,128], index: 2, kind: output, shape index: {0}]
  %s3 = inlined_call_operand.vmem [shape: f32[2,2,128], index: 3, kind: output, shape index: {1}]
  %4 = xla_tuple %s2, %s3
  %s5 = sld [smem:[#allocation0]]
  $region49: #{darknet10_forward.25} parent=0
    _
  %s7 = ssub.s32 1, %s5
  %s8 = scalar_select 0, %s7, %s5
  loop: start=0, step=1, limit=4
  $region2: #{darknet10_forward.25} parent=0 // loop_pre_header
    _
  $region3: #{darknet10_forward.25} parent=0 // loop_header
    %s10 = sphi 0, %s14
    %p11 = scmp.ge.s32.totalorder %s10, 4
    %s20 = sphi 0, %s22
    %s23 = sphi 0, %s20
    %s24 = sphi 0, %s23
    %s40 = sphi 0, %s24
    %s44 = sphi 0, %s44
    %s46 = sphi 0, %s44
    %s47 = sphi 0, %s46
    %s61 = sphi 0, %s47
    %s67 = sphi 0, %s69
    %s70 = sphi 0, %s67
    %s71 = sphi 0, %s70
    %s87 = sphi 0, %s71
    %s93 = sphi 0, %s95
    %s96 = sphi 0, %s93
    %s97 = sphi 0, %s96
    %s113 = sphi 0, %s97
  $region4: #{darknet10_forward.25} parent=0 // loop_header_branch
    %13 = sbr.rel (%p11) target = $region8
  $region5: #{darknet10_forward.25} parent=0 // loop_body
    %s15 = ssub.s32 %s10, 1
    %s16 = ssub.s32 %s10, 2
    %s17 = sadd.s32 %s10, 1
    %s18 = ssub.s32 %s10, %s17
    %p19 = scmp.eq.s32.totalorder %s18, 0
    %s21 = sadd.s32 %s20, 1
    %s22 = scalar_select %p19, %s20, %s21
    %p25 = pneg %p19
    %p26 = scmp.eq.s32.totalorder %s10, 1
    %p27 = por %p25, %p26
    %p28 = scmp.ne.s32.totalorder %s20, %s23
    %p29 = scmp.eq.s32.totalorder %s10, 0
    %p30 = por %p28, %p29
    %p31 = scmp.ne.s32.totalorder %s20, %s23
    %p32 = scmp.eq.s32.totalorder %s15, 1
    %p33 = por %p31, %p32
    %p34 = scmp.ne.s32.totalorder %s23, %s24
    %p35 = scmp.eq.s32.totalorder %s15, 0
    %p36 = por %p34, %p35
    %p37 = scmp.ne.s32.totalorder %s23, %s24
    %p38 = scmp.eq.s32.totalorder %s16, 1
    %p39 = por %p37, %p38
    %p41 = scmp.ne.s32.totalorder %s24, %s40
    %p42 = scmp.eq.s32.totalorder %s16, 0
    %p43 = por %p41, %p42
    %s45 = sadd.s32 %s44, 1
    %p48 = scmp.eq.s32.totalorder %s10, 1
    %p49 = scmp.ne.s32.totalorder %s44, %s46
    %p50 = scmp.eq.s32.totalorder %s10, 0
    %p51 = por %p49, %p50
    %p52 = scmp.ne.s32.totalorder %s44, %s46
    %p53 = scmp.eq.s32.totalorder %s15, 1
    %p54 = por %p52, %p53
    %p55 = scmp.ne.s32.totalorder %s46, %s47
    %p56 = scmp.eq.s32.totalorder %s15, 0
    %p57 = por %p55, %p56
    %p58 = scmp.ne.s32.totalorder %s46, %s47
    %p59 = scmp.eq.s32.totalorder %s16, 1
    %p60 = por %p58, %p59
    %p62 = scmp.ne.s32.totalorder %s47, %s61
    %p63 = scmp.eq.s32.totalorder %s16, 0
    %p64 = por %p62, %p63
    %s65 = ssub.s32 %s10, %s17
    %p66 = scmp.eq.s32.totalorder %s65, 0
    %s68 = sadd.s32 %s67, 1
    %s69 = scalar_select %p66, %s67, %s68
    %p72 = pneg %p66
    %p73 = scmp.eq.s32.totalorder %s10, 1
    %p74 = por %p72, %p73
    %p75 = scmp.ne.s32.totalorder %s67, %s70
    %p76 = scmp.eq.s32.totalorder %s10, 0
    %p77 = por %p75, %p76
    %p78 = scmp.ne.s32.totalorder %s67, %s70
    %p79 = scmp.eq.s32.totalorder %s15, 1
    %p80 = por %p78, %p79
    %p81 = scmp.ne.s32.totalorder %s70, %s71
    %p82 = scmp.eq.s32.totalorder %s15, 0
    %p83 = por %p81, %p82
    %p84 = scmp.ne.s32.totalorder %s70, %s71
    %p85 = scmp.eq.s32.totalorder %s16, 1
    %p86 = por %p84, %p85
    %p88 = scmp.ne.s32.totalorder %s71, %s87
    %p89 = scmp.eq.s32.totalorder %s16, 0
    %p90 = por %p88, %p89
    %s91 = ssub.s32 %s10, %s17
    %p92 = scmp.eq.s32.totalorder %s91, 0
    %s94 = sadd.s32 %s93, 1
    %s95 = scalar_select %p92, %s93, %s94
    %p98 = pneg %p92
    %p99 = scmp.eq.s32.totalorder %s10, 1
    %p100 = por %p98, %p99
    %p101 = scmp.ne.s32.totalorder %s93, %s96
    %p102 = scmp.eq.s32.totalorder %s10, 0
    %p103 = por %p101, %p102
    %p104 = scmp.ne.s32.totalorder %s93, %s96
    %p105 = scmp.eq.s32.totalorder %s15, 1
    %p106 = por %p104, %p105
    %p107 = scmp.ne.s32.totalorder %s96, %s97
    %p108 = scmp.eq.s32.totalorder %s15, 0
    %p109 = por %p107, %p108
    %p110 = scmp.ne.s32.totalorder %s96, %s97
    %p111 = scmp.eq.s32.totalorder %s16, 1
    %p112 = por %p110, %p111
    %p114 = scmp.ne.s32.totalorder %s97, %s113
    %p115 = scmp.eq.s32.totalorder %s16, 0
    %p116 = por %p114, %p115
    %p117 = scmp.le.s32.totalorder 1, %s10
    %p118 = scmp.lt.s32.totalorder %s10, 3
    %p119 = pnand %p117, %p118
    %p120 = pneg %p119
    // Predicated region
    $region9: #{darknet10_forward.25} parent=5 // pred_check
      _
    $region10: #{darknet10_forward.25} parent=5 // pred_check_branch
      %122 = sbr.rel (%p119) target = $region12
    $region11: #{darknet10_forward.25} parent=5 // pred_region
      %s123 = ssub.s32 %s10, 1
      // Predicated region
      $region13: #{darknet10_forward.25} parent=11 // pred_check
        %p124 = pneg %p57
      $region14: #{darknet10_forward.25} parent=11 // pred_check_branch
        %126 = sbr.rel (%p124) target = $region16
      $region15: #{darknet10_forward.25} parent=11 // pred_region
        _
      $region16: #{darknet10_forward.25} parent=11 // pred_fallthru
        _
    $region12: #{darknet10_forward.25} parent=5 // pred_fallthru
      _
    %p127 = scmp.lt.s32.totalorder %s10, 2
    // Predicated region
    $region17: #{darknet10_forward.25} parent=5 // pred_check
      %p128 = pneg %p127
    $region18: #{darknet10_forward.25} parent=5 // pred_check_branch
      %130 = sbr.rel (%p128) target = $region20
    $region19: #{darknet10_forward.25} parent=5 // pred_region
      // Predicated region
      $region21: #{darknet10_forward.25} parent=19 // pred_check
        %p131 = pneg %p30
      $region22: #{darknet10_forward.25} parent=19 // pred_check_branch
        %133 = sbr.rel (%p131) target = $region24
      $region23: #{darknet10_forward.25} parent=19 // pred_region
        %s134 = smul.u32 2, %s10
        %p135 = scmp.lt.s32.totalorder %s134, 3
        %s136 = scalar_select %p135, %s134, 3
        %s137 = smul.addr %s136, 3
        %s138 = smul.addr %s137, 4
        %s139 = scalar_lea.vmem %s0, %s138
        %s140 = smul.u32 2, %s10
      $region24: #{darknet10_forward.25} parent=19 // pred_fallthru
        _
    $region20: #{darknet10_forward.25} parent=5 // pred_fallthru
      _
    %p141 = scmp.le.s32.totalorder 1, %s10
    %p142 = scmp.lt.s32.totalorder %s10, 3
    %p143 = pnand %p141, %p142
    %p144 = pneg %p143
    // Predicated region
    $region25: #{darknet10_forward.25} parent=5 // pred_check
      _
    $region26: #{darknet10_forward.25} parent=5 // pred_check_branch
      %146 = sbr.rel (%p143) target = $region28
    $region27: #{darknet10_forward.25} parent=5 // pred_region
      %s147 = ssub.s32 %s10, 1
      %s148 = smul.u32 2, %s15
      %p149 = scmp.lt.s32.totalorder %s148, 3
      %s150 = scalar_select %p149, %s148, 3
      %s151 = smul.addr %s150, 3
      %s152 = smul.addr %s151, 4
      %s153 = scalar_lea.vmem %s0, %s152
      %p154 = pneg %p36
      %p155 = pneg %p33
      %p156 = pneg %p57
      %p157 = pneg %p54
      %p158 = pneg %p83
      %p159 = pneg %p80
      %s160 = smul.u32 2, %s15
      %p161 = scmp.lt.s32.totalorder %s160, 3
      %s162 = scalar_select %p161, %s160, 3
      %s163 = smul.addr %s162, 4
      %s164 = scalar_lea.vmem %s2, %s163
      %p165 = pneg %p109
      %p166 = pneg %p106
      %p167 = scmp.lt.s32.totalorder %s15, 1
      %s168 = scalar_select %p167, %s15, 1
      %s169 = smul.addr %s168, 2
      %s170 = scalar_lea.vmem %s3, %s169
      %s171 = smul.u32 2, %s15
      %p172 = scmp.lt.s32.totalorder %s171, 3
      %s173 = scalar_select %p172, %s171, 3
      %s174 = smul.addr %s173, 3
      %s175 = smul.addr %s174, 4
      %s176 = scalar_lea.vmem %s0, %s175
      %s177 = smul.u32 2, %s15
      %s178 = smul.u32 2, %s15
      %p179 = scmp.lt.s32.totalorder %s178, 3
      %s180 = scalar_select %p179, %s178, 3
      %s181 = smul.addr %s180, 4
      %s182 = scalar_lea.vmem %s2, %s181
      %s183 = smul.u32 2, %s15
      %p184 = scmp.lt.s32.totalorder %s15, 1
      %s185 = scalar_select %p184, %s15, 1
      %s186 = smul.addr %s185, 2
      %s187 = scalar_lea.vmem %s3, %s186
      %v189 = vld [vmem:[%s176] sm:$0xff]
      %v190 = vld [vmem:[%s176 + $0x8] sm:$0xf]
      %v191 = vld [vmem:[%s176 + $0xc] sm:$0xff]
      %v192 = vld [vmem:[%s176 + $0x14] sm:$0xf]
      %v193 = vld [vmem:[%s1] sm:$0xf]
      %v194 = vld [vmem:[%s1 + $0x4] sm:$0xf]
      %v195 = vld [vmem:[%s1 + $0x8] sm:$0xf]
      %v196 = vld [vmem:[%s1 + $0xc] sm:$0xf]
      %v197 = vld [vmem:[%s1 + $0x10] sm:$0xf]
      %v198 = vld [vmem:[%s1 + $0x14] sm:$0xf]
      %v199 = vld [vmem:[%s1 + $0x18] sm:$0xf]
      %v200 = vld [vmem:[%s1 + $0x1c] sm:$0xf]
      %v201 = vld [vmem:[%s1 + $0x20] sm:$0xf]
      %v202 = vld [vmem:[%s1 + $0x24] sm:$0xf]
      %v203 = vld [vmem:[%s1 + $0x28] sm:$0xf]
      %v204 = vld [vmem:[%s1 + $0x2c] sm:$0xf]
      %v205 = vld [vmem:[%s1 + $0x30] sm:$0xf]
      %v206 = vld [vmem:[%s1 + $0x34] sm:$0xf]
      %v207 = vld [vmem:[%s1 + $0x38] sm:$0xf]
      %v208 = vld [vmem:[%s1 + $0x3c] sm:$0xf]
      %v209 = vld [vmem:[%s1 + $0x40] sm:$0xf]
      %v210 = vld [vmem:[%s1 + $0x44] sm:$0xf]
      %v211 = vld [vmem:[%s1 + $0x48] sm:$0xf]
      %v212 = vld [vmem:[%s1 + $0x4c] sm:$0xf]
      %v213 = vld [vmem:[%s1 + $0x50] sm:$0xf]
      %v214 = vld [vmem:[%s1 + $0x54] sm:$0xf]
      %v215 = vld [vmem:[%s1 + $0x58] sm:$0xf]
      %v216 = vld [vmem:[%s1 + $0x5c] sm:$0xf]
      %v217 = vld [vmem:[%s1 + $0x60] sm:$0xf]
      %v218 = vld [vmem:[%s1 + $0x64] sm:$0xf]
      %v219 = vld [vmem:[%s1 + $0x68] sm:$0xf]
      %v220 = vld [vmem:[%s1 + $0x6c] sm:$0xf]
      %v221 = vld [vmem:[%s1 + $0x70] sm:$0xf]
      %v222 = vld [vmem:[%s1 + $0x74] sm:$0xf]
      %v223 = vld [vmem:[%s1 + $0x78] sm:$0xf]
      %v224 = vld [vmem:[%s1 + $0x7c] sm:$0xf]
      %v225 = vld [vmem:[%s1 + $0x80] sm:$0xf]
      %v226 = vld [vmem:[%s1 + $0x84] sm:$0xf]
      %v227 = vld [vmem:[%s1 + $0x88] sm:$0xf]
      %v228 = vld [vmem:[%s1 + $0x8c] sm:$0xf]
      %v233 = vunpack.c.l.b16 %v189
      %v234 = vunpack.c.h.b16 %v189
      %v235 = vunpack.c.l.b16 %v190
      %v236 = vunpack.c.l.b16 %v191
      %v237 = vunpack.c.h.b16 %v191
      %v238 = vunpack.c.l.b16 %v192
      %v239 = vpack.c.b16 %v236, %v233
      %v240 = vpack.c.b16 %v237, %v234
      %v241 = vpack.c.b16 %v238, %v235
      %v280 = vunpack.c.l.b16 %v193
      %v281 = vunpack.c.l.b16 %v194
      %v282 = vunpack.c.l.b16 %v195
      %v283 = vunpack.c.l.b16 %v196
      %v284 = vunpack.c.l.b16 %v197
      %v285 = vunpack.c.l.b16 %v198
      %v286 = vunpack.c.l.b16 %v199
      %v287 = vunpack.c.l.b16 %v200
      %v288 = vunpack.c.l.b16 %v201
      %v289 = vunpack.c.l.b16 %v202
      %v290 = vunpack.c.l.b16 %v203
      %v291 = vunpack.c.l.b16 %v204
      %v292 = vunpack.c.l.b16 %v205
      %v293 = vunpack.c.l.b16 %v206
      %v294 = vunpack.c.l.b16 %v207
      %v295 = vunpack.c.l.b16 %v208
      %v296 = vunpack.c.l.b16 %v209
      %v297 = vunpack.c.l.b16 %v210
      %v298 = vunpack.c.l.b16 %v211
      %v299 = vunpack.c.l.b16 %v212
      %v300 = vunpack.c.l.b16 %v213
      %v301 = vunpack.c.l.b16 %v214
      %v302 = vunpack.c.l.b16 %v215
      %v303 = vunpack.c.l.b16 %v216
      %v304 = vunpack.c.l.b16 %v217
      %v305 = vunpack.c.l.b16 %v218
      %v306 = vunpack.c.l.b16 %v219
      %v307 = vunpack.c.l.b16 %v220
      %v308 = vunpack.c.l.b16 %v221
      %v309 = vunpack.c.l.b16 %v222
      %v310 = vunpack.c.l.b16 %v223
      %v311 = vunpack.c.l.b16 %v224
      %v312 = vunpack.c.l.b16 %v225
      %v313 = vunpack.c.l.b16 %v226
      %v314 = vunpack.c.l.b16 %v227
      %v315 = vunpack.c.l.b16 %v228
      %v316 = vpack.c.b16 %v281, %v280
      %v317 = vpack.c.b16 %v283, %v282
      %v318 = vpack.c.b16 %v285, %v284
      %v319 = vpack.c.b16 %v287, %v286
      %v320 = vpack.c.b16 %v289, %v288
      %v321 = vpack.c.b16 %v291, %v290
      %v322 = vpack.c.b16 %v293, %v292
      %v323 = vpack.c.b16 %v295, %v294
      %v324 = vpack.c.b16 %v297, %v296
      %v325 = vpack.c.b16 %v299, %v298
      %v326 = vpack.c.b16 %v301, %v300
      %v327 = vpack.c.b16 %v303, %v302
      %v328 = vpack.c.b16 %v305, %v304
      %v329 = vpack.c.b16 %v307, %v306
      %v330 = vpack.c.b16 %v309, %v308
      %v331 = vpack.c.b16 %v311, %v310
      %v332 = vpack.c.b16 %v313, %v312
      %v333 = vpack.c.b16 %v315, %v314
      %vm352 = vcmask 261120
      %v354 = vsel %vm352, %v241, 0
      %356 = vmatpush.bf16.msra.mxu0 %v323
      %357 = vmatpush.bf16.msra.mxu0 %v322
      %358 = vmatpush.bf16.msra.mxu0 %v321
      %359 = vmatpush.bf16.msra.mxu0 %v320
      %360 = vmatpush.bf16.msra.mxu0 %v319
      %361 = vmatpush.bf16.msra.mxu0 %v318
      %362 = vmatpush.bf16.msra.mxu0 %v317
      %363 = vmatpush.bf16.msra.mxu0 %v316
      %364 = vmatmul.bf16.gmra.mxu0 %v239
      %v365 = vpop.f32.mrf.mxu0
      %v366 = vadd.f32 0.0, %v365
      %v367 = vpop.f32.mrf.mxu0
      %v368 = vadd.f32 0.0, %v367
      %369 = vdwg.mxu0
      %370 = vmatpush.bf16.msra.mxu0 %v331
      %371 = vmatpush.bf16.msra.mxu0 %v330
      %372 = vmatpush.bf16.msra.mxu0 %v329
      %373 = vmatpush.bf16.msra.mxu0 %v328
      %374 = vmatpush.bf16.msra.mxu0 %v327
      %375 = vmatpush.bf16.msra.mxu0 %v326
      %376 = vmatpush.bf16.msra.mxu0 %v325
      %377 = vmatpush.bf16.msra.mxu0 %v324
      %378 = vmatmul.bf16.gmra.mxu0 %v240
      %v379 = vpop.f32.mrf.mxu0
      %v380 = vadd.f32 %v366, %v379
      %v381 = vpop.f32.mrf.mxu0
      %v382 = vadd.f32 %v368, %v381
      %383 = vdwg.mxu0
      %384 = vmatpush.bf16.msra.mxu0 0
      %385 = vmatpush.bf16.msra.mxu0 0
      %386 = vmatpush.bf16.msra.mxu0 0
      %387 = vmatpush.bf16.msra.mxu0 0
      %388 = vmatpush.bf16.msra.mxu0 0
      %389 = vmatpush.bf16.msra.mxu0 0
      %390 = vmatpush.bf16.msra.mxu0 %v333
      %391 = vmatpush.bf16.msra.mxu0 %v332
      %392 = vmatmul.bf16.gmra.mxu0 %v354
      %v393 = vpop.f32.mrf.mxu0
      %v394 = vadd.f32 %v380, %v393
      %v395 = vpop.f32.mrf.mxu0
      %v396 = vadd.f32 %v382, %v395
      %397 = vdwg.mxu0
      %v398 = vpack.c.bf16 %v394, %v394
      %v399 = vpack.c.bf16 %v396, %v396
      %400 = vst [vmem:[%s182] sm:$0xf] %v398
      %401 = vst [vmem:[%s182 + $0x4] sm:$0xf] %v399
      %s402 = smul.u32 %s15, 16
      %v403 = vlaneseq
      %v404 = vshrl.u32 %v403, 7
      %v405 = vadd.s32 %v404, 8
      %v406 = vstv %s402
      %v407 = vadd.s32 %v404, %v406
      %v408 = vadd.s32 %v405, %v406
      %vm409 = vcmp.lt.s32.totalorder %v407, 32
      %vm410 = vcmp.lt.s32.totalorder %v408, 32
      %s411 = ssub.s32 32, %s402
      %p412 = scmp.lt.s32.totalorder %s411, 16
      %s413 = scalar_select %p412, %s411, 16
      %p414 = scmp.gt.s32.totalorder %s413, 1
      %s415 = scalar_select %p414, %s413, 1
      %s416 = scvt.s32.f32 %s415
      %v417 = vsel %vm409, 1, 0
      %v418 = vsel %vm410, 1, 0
      %vm419 = vcmp.eq.s32.totalorder %v417, 1
      %vm420 = vcmp.eq.s32.totalorder %v418, 1
      %v421 = vsel %vm419, %v394, 0.0
      %v422 = vsel %vm420, %v396, 0.0
      %v423 = vadd.f32 %v421, %v422
      %v424 = vrot.slane %v423, 4
      %v425 = vadd.f32 %v423, %v424
      %v426 = vrot.slane %v425, 2
      %v427 = vadd.f32 %v425, %v426
      %v428 = vrot.slane %v427, 1
      %v429 = vadd.f32 %v427, %v428
      %v430 = vstv %s416
      %v431 = vrcp.pop %v430
      %v432 = vmul.f32 %v430, %v431
      %v433 = vsub.f32 1.0, %v432
      %v434 = vmul.f32 %v431, %v433
      %v435 = vadd.f32 %v431, %v434
      %vm436 = vweird.f32 %v430
      %vm437 = vweird.f32 %v431
      %vm438 = vmor %vm436, %vm437
      %v439 = vsel %vm438, %v431, %v435
      %v440 = vand.u32 2147483647, %v430
      %vm441 = vcmp.eq.f32.partialorder %v440, 8.507059e+37
      %v442 = vand.u32 %v430, 2147483648
      %v443 = vor.u32 1.1754944e-38, %v442
      %v444 = vsel %vm441, %v443, %v439
      %v445 = vmul.f32 %v429, %v444
      %v446 = vsub.f32 %v394, %v445
      %v447 = vsub.f32 %v396, %v445
      %v448 = vsel %vm419, %v446, 0.0
      %v449 = vsel %vm420, %v447, 0.0
      %450 = vst [vmem:[%s187] sm:$0x1] %v429
      %v451 = vmul.f32 %v448, %v448
      %v452 = vmul.f32 %v449, %v449
      %v453 = vadd.f32 %v451, %v452
      %v454 = vrot.slane %v453, 4
      %v455 = vadd.f32 %v453, %v454
      %v456 = vrot.slane %v455, 2
      %v457 = vadd.f32 %v455, %v456
      %v458 = vrot.slane %v457, 1
      %v459 = vadd.f32 %v457, %v458
      %460 = vst [vmem:[%s187 + $0x1] sm:$0x1] %v459
      %s461 = smul.u32 2, %s15
      %p462 = scmp.lt.s32.totalorder %s461, 3
      %s463 = scalar_select %p462, %s461, 3
      %s464 = smul.addr %s463, 4
      %s465 = scalar_lea.vmem %s2, %s464
      %p466 = scmp.lt.s32.totalorder %s15, 1
      %s467 = scalar_select %p466, %s15, 1
      %s468 = smul.addr %s467, 2
      %s469 = scalar_lea.vmem %s3, %s468
      // Predicated region
      $region29: #{darknet10_forward.25} parent=27 // pred_check
        %p470 = pneg %p80
      $region30: #{darknet10_forward.25} parent=27 // pred_check_branch
        %472 = sbr.rel (%p470) target = $region32
      $region31: #{darknet10_forward.25} parent=27 // pred_region
        %s473 = smul.u32 2, %s15
      $region32: #{darknet10_forward.25} parent=27 // pred_fallthru
        _
      // Predicated region
      $region33: #{darknet10_forward.25} parent=27 // pred_check
        %p474 = pneg %p106
      $region34: #{darknet10_forward.25} parent=27 // pred_check_branch
        %476 = sbr.rel (%p474) target = $region36
      $region35: #{darknet10_forward.25} parent=27 // pred_region
        _
      $region36: #{darknet10_forward.25} parent=27 // pred_fallthru
        _
    $region28: #{darknet10_forward.25} parent=5 // pred_fallthru
      _
    %p477 = scmp.le.s32.totalorder 2, %s10
    // Predicated region
    $region37: #{darknet10_forward.25} parent=5 // pred_check
      %p478 = pneg %p477
    $region38: #{darknet10_forward.25} parent=5 // pred_check_branch
      %480 = sbr.rel (%p478) target = $region40
    $region39: #{darknet10_forward.25} parent=5 // pred_region
      %s481 = ssub.s32 %s10, 2
      // Predicated region
      $region41: #{darknet10_forward.25} parent=39 // pred_check
        %p482 = pneg %p86
      $region42: #{darknet10_forward.25} parent=39 // pred_check_branch
        %484 = sbr.rel (%p482) target = $region44
      $region43: #{darknet10_forward.25} parent=39 // pred_region
        %s485 = smul.u32 2, %s16
        %p486 = scmp.lt.s32.totalorder %s485, 3
        %s487 = scalar_select %p486, %s485, 3
        %s488 = smul.addr %s487, 4
        %s489 = scalar_lea.vmem %s2, %s488
      $region44: #{darknet10_forward.25} parent=39 // pred_fallthru
        _
      // Predicated region
      $region45: #{darknet10_forward.25} parent=39 // pred_check
        %p490 = pneg %p112
      $region46: #{darknet10_forward.25} parent=39 // pred_check_branch
        %492 = sbr.rel (%p490) target = $region48
      $region47: #{darknet10_forward.25} parent=39 // pred_region
        %p493 = scmp.lt.s32.totalorder %s16, 1
        %s494 = scalar_select %p493, %s16, 1
        %s495 = smul.addr %s494, 2
        %s496 = scalar_lea.vmem %s3, %s495
      $region48: #{darknet10_forward.25} parent=39 // pred_fallthru
        _
    $region40: #{darknet10_forward.25} parent=5 // pred_fallthru
      _
  $region6: #{darknet10_forward.25} parent=0 // loop_footer
    %s14 = sadd.s32 1, %s10
  $region7: #{darknet10_forward.25} parent=0 // loop_footer_branch
    %9 = sbr.rel target = $region3
  $region8: #{darknet10_forward.25} parent=0 // loop_exit
    _

// kernel: darknet10_forward.26
$region0: #{darknet10_forward.26}
  #allocation0 [shape = 'u32[]', space=smem, size = 0x4, offset = 0x4, fixed_abs, tag = 'smem constant byte address 0x4 - core index']
  #allocation1 [shape = 'u32[72,128]{1,0:T(1,128)}', space=vmem, size = 0x9000, scoped, tag = 'internal scratch']
  %s0 = inlined_call_operand.vmem [shape: bf16[32,128], index: 0, kind: input, shape index: {}]
  %s1 = inlined_call_operand.vmem [shape: f32[1,128], index: 1, kind: input, shape index: {}]
  %s2 = inlined_call_operand.vmem [shape: f32[1,128], index: 2, kind: input, shape index: {}]
  %s3 = inlined_call_operand.vmem [shape: bf16[32,128], index: 3, kind: output, shape index: {}]
  %s4 = sld [smem:[#allocation0]]
  $region45: #{darknet10_forward.26} parent=0
    _
  %s6 = ssub.s32 1, %s4
  %s7 = scalar_select 0, %s6, %s4
  loop: start=0, step=1, limit=4
  $region2: #{darknet10_forward.26} parent=0 // loop_pre_header
    _
  $region3: #{darknet10_forward.26} parent=0 // loop_header
    %s9 = sphi 0, %s13
    %p10 = scmp.ge.s32.totalorder %s9, 4
    %s19 = sphi 0, %s21
    %s22 = sphi 0, %s19
    %s23 = sphi 0, %s22
    %s39 = sphi 0, %s23
    %s43 = sphi 0, %s43
    %s45 = sphi 0, %s43
    %s46 = sphi 0, %s45
    %s60 = sphi 0, %s46
    %s64 = sphi 0, %s64
    %s66 = sphi 0, %s64
    %s67 = sphi 0, %s66
    %s81 = sphi 0, %s67
    %s87 = sphi 0, %s89
    %s90 = sphi 0, %s87
    %s91 = sphi 0, %s90
    %s107 = sphi 0, %s91
  $region4: #{darknet10_forward.26} parent=0 // loop_header_branch
    %12 = sbr.rel (%p10) target = $region8
  $region5: #{darknet10_forward.26} parent=0 // loop_body
    %s14 = ssub.s32 %s9, 1
    %s15 = ssub.s32 %s9, 2
    %s16 = sadd.s32 %s9, 1
    %s17 = ssub.s32 %s9, %s16
    %p18 = scmp.eq.s32.totalorder %s17, 0
    %s20 = sadd.s32 %s19, 1
    %s21 = scalar_select %p18, %s19, %s20
    %p24 = pneg %p18
    %p25 = scmp.eq.s32.totalorder %s9, 1
    %p26 = por %p24, %p25
    %p27 = scmp.ne.s32.totalorder %s19, %s22
    %p28 = scmp.eq.s32.totalorder %s9, 0
    %p29 = por %p27, %p28
    %p30 = scmp.ne.s32.totalorder %s19, %s22
    %p31 = scmp.eq.s32.totalorder %s14, 1
    %p32 = por %p30, %p31
    %p33 = scmp.ne.s32.totalorder %s22, %s23
    %p34 = scmp.eq.s32.totalorder %s14, 0
    %p35 = por %p33, %p34
    %p36 = scmp.ne.s32.totalorder %s22, %s23
    %p37 = scmp.eq.s32.totalorder %s15, 1
    %p38 = por %p36, %p37
    %p40 = scmp.ne.s32.totalorder %s23, %s39
    %p41 = scmp.eq.s32.totalorder %s15, 0
    %p42 = por %p40, %p41
    %s44 = sadd.s32 %s43, 1
    %p47 = scmp.eq.s32.totalorder %s9, 1
    %p48 = scmp.ne.s32.totalorder %s43, %s45
    %p49 = scmp.eq.s32.totalorder %s9, 0
    %p50 = por %p48, %p49
    %p51 = scmp.ne.s32.totalorder %s43, %s45
    %p52 = scmp.eq.s32.totalorder %s14, 1
    %p53 = por %p51, %p52
    %p54 = scmp.ne.s32.totalorder %s45, %s46
    %p55 = scmp.eq.s32.totalorder %s14, 0
    %p56 = por %p54, %p55
    %p57 = scmp.ne.s32.totalorder %s45, %s46
    %p58 = scmp.eq.s32.totalorder %s15, 1
    %p59 = por %p57, %p58
    %p61 = scmp.ne.s32.totalorder %s46, %s60
    %p62 = scmp.eq.s32.totalorder %s15, 0
    %p63 = por %p61, %p62
    %s65 = sadd.s32 %s64, 1
    %p68 = scmp.eq.s32.totalorder %s9, 1
    %p69 = scmp.ne.s32.totalorder %s64, %s66
    %p70 = scmp.eq.s32.totalorder %s9, 0
    %p71 = por %p69, %p70
    %p72 = scmp.ne.s32.totalorder %s64, %s66
    %p73 = scmp.eq.s32.totalorder %s14, 1
    %p74 = por %p72, %p73
    %p75 = scmp.ne.s32.totalorder %s66, %s67
    %p76 = scmp.eq.s32.totalorder %s14, 0
    %p77 = por %p75, %p76
    %p78 = scmp.ne.s32.totalorder %s66, %s67
    %p79 = scmp.eq.s32.totalorder %s15, 1
    %p80 = por %p78, %p79
    %p82 = scmp.ne.s32.totalorder %s67, %s81
    %p83 = scmp.eq.s32.totalorder %s15, 0
    %p84 = por %p82, %p83
    %s85 = ssub.s32 %s9, %s16
    %p86 = scmp.eq.s32.totalorder %s85, 0
    %s88 = sadd.s32 %s87, 1
    %s89 = scalar_select %p86, %s87, %s88
    %p92 = pneg %p86
    %p93 = scmp.eq.s32.totalorder %s9, 1
    %p94 = por %p92, %p93
    %p95 = scmp.ne.s32.totalorder %s87, %s90
    %p96 = scmp.eq.s32.totalorder %s9, 0
    %p97 = por %p95, %p96
    %p98 = scmp.ne.s32.totalorder %s87, %s90
    %p99 = scmp.eq.s32.totalorder %s14, 1
    %p100 = por %p98, %p99
    %p101 = scmp.ne.s32.totalorder %s90, %s91
    %p102 = scmp.eq.s32.totalorder %s14, 0
    %p103 = por %p101, %p102
    %p104 = scmp.ne.s32.totalorder %s90, %s91
    %p105 = scmp.eq.s32.totalorder %s15, 1
    %p106 = por %p104, %p105
    %p108 = scmp.ne.s32.totalorder %s91, %s107
    %p109 = scmp.eq.s32.totalorder %s15, 0
    %p110 = por %p108, %p109
    %p111 = scmp.le.s32.totalorder 1, %s9
    %p112 = scmp.lt.s32.totalorder %s9, 3
    %p113 = pnand %p111, %p112
    %p114 = pneg %p113
    // Predicated region
    $region9: #{darknet10_forward.26} parent=5 // pred_check
      _
    $region10: #{darknet10_forward.26} parent=5 // pred_check_branch
      %116 = sbr.rel (%p113) target = $region12
    $region11: #{darknet10_forward.26} parent=5 // pred_region
      %s117 = ssub.s32 %s9, 1
      // Predicated region
      $region13: #{darknet10_forward.26} parent=11 // pred_check
        %p118 = pneg %p56
      $region14: #{darknet10_forward.26} parent=11 // pred_check_branch
        %120 = sbr.rel (%p118) target = $region16
      $region15: #{darknet10_forward.26} parent=11 // pred_region
        _
      $region16: #{darknet10_forward.26} parent=11 // pred_fallthru
        _
      // Predicated region
      $region17: #{darknet10_forward.26} parent=11 // pred_check
        %p121 = pneg %p77
      $region18: #{darknet10_forward.26} parent=11 // pred_check_branch
        %123 = sbr.rel (%p121) target = $region20
      $region19: #{darknet10_forward.26} parent=11 // pred_region
        _
      $region20: #{darknet10_forward.26} parent=11 // pred_fallthru
        _
    $region12: #{darknet10_forward.26} parent=5 // pred_fallthru
      _
    %p124 = scmp.lt.s32.totalorder %s9, 2
    // Predicated region
    $region21: #{darknet10_forward.26} parent=5 // pred_check
      %p125 = pneg %p124
    $region22: #{darknet10_forward.26} parent=5 // pred_check_branch
      %127 = sbr.rel (%p125) target = $region24
    $region23: #{darknet10_forward.26} parent=5 // pred_region
      // Predicated region
      $region25: #{darknet10_forward.26} parent=23 // pred_check
        %p128 = pneg %p29
      $region26: #{darknet10_forward.26} parent=23 // pred_check_branch
        %130 = sbr.rel (%p128) target = $region28
      $region27: #{darknet10_forward.26} parent=23 // pred_region
        %s131 = smul.u32 2, %s9
        %p132 = scmp.lt.s32.totalorder %s131, 3
        %s133 = scalar_select %p132, %s131, 3
        %s134 = smul.addr %s133, 4
        %s135 = scalar_lea.vmem %s0, %s134
        %s136 = smul.u32 2, %s9
      $region28: #{darknet10_forward.26} parent=23 // pred_fallthru
        _
    $region24: #{darknet10_forward.26} parent=5 // pred_fallthru
      _
    %p137 = scmp.le.s32.totalorder 1, %s9
    %p138 = scmp.lt.s32.totalorder %s9, 3
    %p139 = pnand %p137, %p138
    %p140 = pneg %p139
    // Predicated region
    $region29: #{darknet10_forward.26} parent=5 // pred_check
      _
    $region30: #{darknet10_forward.26} parent=5 // pred_check_branch
      %142 = sbr.rel (%p139) target = $region32
    $region31: #{darknet10_forward.26} parent=5 // pred_region
      %s143 = ssub.s32 %s9, 1
      %s144 = smul.u32 2, %s14
      %p145 = scmp.lt.s32.totalorder %s144, 3
      %s146 = scalar_select %p145, %s144, 3
      %s147 = smul.addr %s146, 4
      %s148 = scalar_lea.vmem %s0, %s147
      %p149 = pneg %p35
      %p150 = pneg %p32
      %p151 = pneg %p56
      %p152 = pneg %p53
      %p153 = pneg %p77
      %p154 = pneg %p74
      %p155 = pneg %p103
      %p156 = pneg %p100
      %s157 = smul.u32 2, %s14
      %p158 = scmp.lt.s32.totalorder %s157, 3
      %s159 = scalar_select %p158, %s157, 3
      %s160 = smul.addr %s159, 4
      %s161 = scalar_lea.vmem %s3, %s160
      %s162 = smul.u32 2, %s14
      %p163 = scmp.lt.s32.totalorder %s162, 3
      %s164 = scalar_select %p163, %s162, 3
      %s165 = smul.addr %s164, 4
      %s166 = scalar_lea.vmem %s0, %s165
      %s167 = smul.u32 2, %s14
      %s168 = smul.u32 2, %s14
      %p169 = scmp.lt.s32.totalorder %s168, 3
      %s170 = scalar_select %p169, %s168, 3
      %s171 = smul.addr %s170, 4
      %s172 = scalar_lea.vmem %s3, %s171
      %s173 = smul.u32 2, %s14
      %v174 = vld [vmem:[%s166] sm:$0xf]
      %v175 = vld [vmem:[%s166 + $0x4] sm:$0xf]
      %v176 = vunpack.c.l.bf16 %v174
      %v177 = vunpack.c.l.bf16 %v175
      %v178 = vld [vmem:[%s1] sm:$0x1]
      %v180 = vperm.slane %v178, 0
      %v182 = vmul.f32 %v176, %v180
      %v183 = vmul.f32 %v177, %v180
      %v184 = vld [vmem:[%s2] sm:$0x1]
      %v186 = vperm.slane %v184, 0
      %v188 = vadd.f32 %v182, %v186
      %v189 = vadd.f32 %v183, %v186
      %vm190 = vcmp.gt.f32.partialorder %v188, 0.0
      %vm191 = vcmp.gt.f32.partialorder %v189, 0.0
      %v192 = vmul.f32 %v188, 0.1
      %v193 = vmul.f32 %v189, 0.1
      %v194 = vsel %vm190, %v188, %v192
      %v195 = vsel %vm191, %v189, %v193
      %v196 = vpack.c.bf16 %v194, %v194
      %v197 = vpack.c.bf16 %v195, %v195
      %198 = vst [vmem:[%s172] sm:$0xf] %v196
      %199 = vst [vmem:[%s172 + $0x4] sm:$0xf] %v197
      %s200 = smul.u32 2, %s14
      %p201 = scmp.lt.s32.totalorder %s200, 3
      %s202 = scalar_select %p201, %s200, 3
      %s203 = smul.addr %s202, 4
      %s204 = scalar_lea.vmem %s3, %s203
      // Predicated region
      $region33: #{darknet10_forward.26} parent=31 // pred_check
        %p205 = pneg %p100
      $region34: #{darknet10_forward.26} parent=31 // pred_check_branch
        %207 = sbr.rel (%p205) target = $region36
      $region35: #{darknet10_forward.26} parent=31 // pred_region
        %s208 = smul.u32 2, %s14
      $region36: #{darknet10_forward.26} parent=31 // pred_fallthru
        _
    $region32: #{darknet10_forward.26} parent=5 // pred_fallthru
      _
    %p209 = scmp.le.s32.totalorder 2, %s9
    // Predicated region
    $region37: #{darknet10_forward.26} parent=5 // pred_check
      %p210 = pneg %p209
    $region38: #{darknet10_forward.26} parent=5 // pred_check_branch
      %212 = sbr.rel (%p210) target = $region40
    $region39: #{darknet10_forward.26} parent=5 // pred_region
      %s213 = ssub.s32 %s9, 2
      // Predicated region
      $region41: #{darknet10_forward.26} parent=39 // pred_check
        %p214 = pneg %p106
      $region42: #{darknet10_forward.26} parent=39 // pred_check_branch
        %216 = sbr.rel (%p214) target = $region44
      $region43: #{darknet10_forward.26} parent=39 // pred_region
        %s217 = smul.u32 2, %s15
        %p218 = scmp.lt.s32.totalorder %s217, 3
        %s219 = scalar_select %p218, %s217, 3
        %s220 = smul.addr %s219, 4
        %s221 = scalar_lea.vmem %s3, %s220
      $region44: #{darknet10_forward.26} parent=39 // pred_fallthru
        _
    $region40: #{darknet10_forward.26} parent=5 // pred_fallthru
      _
  $region6: #{darknet10_forward.26} parent=0 // loop_footer
    %s13 = sadd.s32 1, %s9
  $region7: #{darknet10_forward.26} parent=0 // loop_footer_branch
    %8 = sbr.rel target = $region3
  $region8: #{darknet10_forward.26} parent=0 // loop_exit
    _

// kernel: darknet10_forward.28
$region0: #{darknet10_forward.28}
  #allocation0 [shape = 'u32[]', space=smem, size = 0x4, offset = 0x4, fixed_abs, tag = 'smem constant byte address 0x4 - core index']
  #allocation1 [shape = 'u32[72,128]{1,0:T(1,128)}', space=vmem, size = 0x9000, scoped, tag = 'internal scratch']
  %s0 = inlined_call_operand.vmem [shape: bf16[8,128], index: 0, kind: input, shape index: {}]
  %s1 = inlined_call_operand.vmem [shape: f32[1,128], index: 1, kind: input, shape index: {}]
  %s2 = inlined_call_operand.vmem [shape: f32[1,128], index: 2, kind: input, shape index: {}]
  %s3 = inlined_call_operand.vmem [shape: bf16[8,128], index: 3, kind: output, shape index: {}]
  %s4 = sld [smem:[#allocation0]]
  $region22: #{darknet10_forward.28} parent=0
    _
  %s6 = ssub.s32 1, %s4
  %s7 = scalar_select 0, %s6, %s4
  // Predicated region
  $region2: #{darknet10_forward.28} parent=0 // pred_check
    _
  $region3: #{darknet10_forward.28} parent=0 // pred_check_branch
    %9 = sbr.rel (0) target = $region5
  $region4: #{darknet10_forward.28} parent=0 // pred_region
    _
  $region5: #{darknet10_forward.28} parent=0 // pred_fallthru
    _
  // Predicated region
  $region6: #{darknet10_forward.28} parent=0 // pred_check
    _
  $region7: #{darknet10_forward.28} parent=0 // pred_check_branch
    %11 = sbr.rel (0) target = $region9
  $region8: #{darknet10_forward.28} parent=0 // pred_region
    _
  $region9: #{darknet10_forward.28} parent=0 // pred_fallthru
    _
  // Predicated region
  $region10: #{darknet10_forward.28} parent=0 // pred_check
    _
  $region11: #{darknet10_forward.28} parent=0 // pred_check_branch
    %13 = sbr.rel (0) target = $region13
  $region12: #{darknet10_forward.28} parent=0 // pred_region
    _
  $region13: #{darknet10_forward.28} parent=0 // pred_fallthru
    _
  %v14 = vld [vmem:[%s0] sm:$0xf]
  %v15 = vunpack.c.l.bf16 %v14
  %v16 = vld [vmem:[%s1] sm:$0x1]
  %v18 = vperm.slane %v16, 0
  %v20 = vmul.f32 %v15, %v18
  %v21 = vld [vmem:[%s2] sm:$0x1]
  %v23 = vperm.slane %v21, 0
  %v25 = vadd.f32 %v20, %v23
  %vm26 = vcmp.gt.f32.partialorder %v25, 0.0
  %v27 = vmul.f32 %v25, 0.1
  %v28 = vsel %vm26, %v25, %v27
  %v29 = vpack.c.bf16 %v28, %v28
  %30 = vst [vmem:[%s3] sm:$0xf] %v29
  // Predicated region
  $region14: #{darknet10_forward.28} parent=0 // pred_check
    _
  $region15: #{darknet10_forward.28} parent=0 // pred_check_branch
    %32 = sbr.rel (0) target = $region17
  $region16: #{darknet10_forward.28} parent=0 // pred_region
    _
  $region17: #{darknet10_forward.28} parent=0 // pred_fallthru
    _
  // Predicated region
  $region18: #{darknet10_forward.28} parent=0 // pred_check
    _
  $region19: #{darknet10_forward.28} parent=0 // pred_check_branch
    %34 = sbr.rel (0) target = $region21
  $region20: #{darknet10_forward.28} parent=0 // pred_region
    _
  $region21: #{darknet10_forward.28} parent=0 // pred_fallthru
    _

// kernel: darknet10_forward.27
$region0: #{darknet10_forward.27}
  #allocation0 [shape = 'u32[]', space=smem, size = 0x4, offset = 0x4, fixed_abs, tag = 'smem constant byte address 0x4 - core index']
  #allocation1 [shape = 'u32[72,128]{1,0:T(1,128)}', space=vmem, size = 0x9000, scoped, tag = 'internal scratch']
  %s0 = inlined_call_operand.vmem [shape: bf16[8,576], index: 0, kind: input, shape index: {}]
  %s1 = inlined_call_operand.vmem [shape: bf16[576,128], index: 1, kind: input, shape index: {}]
  %s2 = inlined_call_operand.vmem [shape: bf16[8,128], index: 2, kind: output, shape index: {0}]
  %s3 = inlined_call_operand.vmem [shape: f32[1,2,128], index: 3, kind: output, shape index: {1}]
  %4 = xla_tuple %s2, %s3
  %s5 = sld [smem:[#allocation0]]
  $region26: #{darknet10_forward.27} parent=0
    _
  %s7 = ssub.s32 1, %s5
  %s8 = scalar_select 0, %s7, %s5
  // Predicated region
  $region2: #{darknet10_forward.27} parent=0 // pred_check
    _
  $region3: #{darknet10_forward.27} parent=0 // pred_check_branch
    %10 = sbr.rel (0) target = $region5
  $region4: #{darknet10_forward.27} parent=0 // pred_region
    _
  $region5: #{darknet10_forward.27} parent=0 // pred_fallthru
    _
  // Predicated region
  $region6: #{darknet10_forward.27} parent=0 // pred_check
    _
  $region7: #{darknet10_forward.27} parent=0 // pred_check_branch
    %12 = sbr.rel (0) target = $region9
  $region8: #{darknet10_forward.27} parent=0 // pred_region
    _
  $region9: #{darknet10_forward.27} parent=0 // pred_fallthru
    _
  %v14 = vld [vmem:[%s0] sm:$0xff]
  %v15 = vld [vmem:[%s0 + $0x8] sm:$0xff]
  %v16 = vld [vmem:[%s0 + $0x10] sm:$0xf]
  %v17 = vld [vmem:[%s1] sm:$0xf]
  %v18 = vld [vmem:[%s1 + $0x4] sm:$0xf]
  %v19 = vld [vmem:[%s1 + $0x8] sm:$0xf]
  %v20 = vld [vmem:[%s1 + $0xc] sm:$0xf]
  %v21 = vld [vmem:[%s1 + $0x10] sm:$0xf]
  %v22 = vld [vmem:[%s1 + $0x14] sm:$0xf]
  %v23 = vld [vmem:[%s1 + $0x18] sm:$0xf]
  %v24 = vld [vmem:[%s1 + $0x1c] sm:$0xf]
  %v25 = vld [vmem:[%s1 + $0x20] sm:$0xf]
  %v26 = vld [vmem:[%s1 + $0x24] sm:$0xf]
  %v27 = vld [vmem:[%s1 + $0x28] sm:$0xf]
  %v28 = vld [vmem:[%s1 + $0x2c] sm:$0xf]
  %v29 = vld [vmem:[%s1 + $0x30] sm:$0xf]
  %v30 = vld [vmem:[%s1 + $0x34] sm:$0xf]
  %v31 = vld [vmem:[%s1 + $0x38] sm:$0xf]
  %v32 = vld [vmem:[%s1 + $0x3c] sm:$0xf]
  %v33 = vld [vmem:[%s1 + $0x40] sm:$0xf]
  %v34 = vld [vmem:[%s1 + $0x44] sm:$0xf]
  %v35 = vld [vmem:[%s1 + $0x48] sm:$0xf]
  %v36 = vld [vmem:[%s1 + $0x4c] sm:$0xf]
  %v37 = vld [vmem:[%s1 + $0x50] sm:$0xf]
  %v38 = vld [vmem:[%s1 + $0x54] sm:$0xf]
  %v39 = vld [vmem:[%s1 + $0x58] sm:$0xf]
  %v40 = vld [vmem:[%s1 + $0x5c] sm:$0xf]
  %v41 = vld [vmem:[%s1 + $0x60] sm:$0xf]
  %v42 = vld [vmem:[%s1 + $0x64] sm:$0xf]
  %v43 = vld [vmem:[%s1 + $0x68] sm:$0xf]
  %v44 = vld [vmem:[%s1 + $0x6c] sm:$0xf]
  %v45 = vld [vmem:[%s1 + $0x70] sm:$0xf]
  %v46 = vld [vmem:[%s1 + $0x74] sm:$0xf]
  %v47 = vld [vmem:[%s1 + $0x78] sm:$0xf]
  %v48 = vld [vmem:[%s1 + $0x7c] sm:$0xf]
  %v49 = vld [vmem:[%s1 + $0x80] sm:$0xf]
  %v50 = vld [vmem:[%s1 + $0x84] sm:$0xf]
  %v51 = vld [vmem:[%s1 + $0x88] sm:$0xf]
  %v52 = vld [vmem:[%s1 + $0x8c] sm:$0xf]
  %v53 = vld [vmem:[%s1 + $0x90] sm:$0xf]
  %v54 = vld [vmem:[%s1 + $0x94] sm:$0xf]
  %v55 = vld [vmem:[%s1 + $0x98] sm:$0xf]
  %v56 = vld [vmem:[%s1 + $0x9c] sm:$0xf]
  %v57 = vld [vmem:[%s1 + $0xa0] sm:$0xf]
  %v58 = vld [vmem:[%s1 + $0xa4] sm:$0xf]
  %v59 = vld [vmem:[%s1 + $0xa8] sm:$0xf]
  %v60 = vld [vmem:[%s1 + $0xac] sm:$0xf]
  %v61 = vld [vmem:[%s1 + $0xb0] sm:$0xf]
  %v62 = vld [vmem:[%s1 + $0xb4] sm:$0xf]
  %v63 = vld [vmem:[%s1 + $0xb8] sm:$0xf]
  %v64 = vld [vmem:[%s1 + $0xbc] sm:$0xf]
  %v65 = vld [vmem:[%s1 + $0xc0] sm:$0xf]
  %v66 = vld [vmem:[%s1 + $0xc4] sm:$0xf]
  %v67 = vld [vmem:[%s1 + $0xc8] sm:$0xf]
  %v68 = vld [vmem:[%s1 + $0xcc] sm:$0xf]
  %v69 = vld [vmem:[%s1 + $0xd0] sm:$0xf]
  %v70 = vld [vmem:[%s1 + $0xd4] sm:$0xf]
  %v71 = vld [vmem:[%s1 + $0xd8] sm:$0xf]
  %v72 = vld [vmem:[%s1 + $0xdc] sm:$0xf]
  %v73 = vld [vmem:[%s1 + $0xe0] sm:$0xf]
  %v74 = vld [vmem:[%s1 + $0xe4] sm:$0xf]
  %v75 = vld [vmem:[%s1 + $0xe8] sm:$0xf]
  %v76 = vld [vmem:[%s1 + $0xec] sm:$0xf]
  %v77 = vld [vmem:[%s1 + $0xf0] sm:$0xf]
  %v78 = vld [vmem:[%s1 + $0xf4] sm:$0xf]
  %v79 = vld [vmem:[%s1 + $0xf8] sm:$0xf]
  %v80 = vld [vmem:[%s1 + $0xfc] sm:$0xf]
  %v81 = vld [vmem:[%s1 + $0x100] sm:$0xf]
  %v82 = vld [vmem:[%s1 + $0x104] sm:$0xf]
  %v83 = vld [vmem:[%s1 + $0x108] sm:$0xf]
  %v84 = vld [vmem:[%s1 + $0x10c] sm:$0xf]
  %v85 = vld [vmem:[%s1 + $0x110] sm:$0xf]
  %v86 = vld [vmem:[%s1 + $0x114] sm:$0xf]
  %v87 = vld [vmem:[%s1 + $0x118] sm:$0xf]
  %v88 = vld [vmem:[%s1 + $0x11c] sm:$0xf]
  %v92 = vunpack.c.l.b16 %v14
  %v93 = vunpack.c.h.b16 %v14
  %v94 = vunpack.c.l.b16 %v15
  %v95 = vunpack.c.h.b16 %v15
  %v96 = vunpack.c.l.b16 %v16
  %v97 = vpack.c.b16 %v92, %v92
  %v98 = vpack.c.b16 %v93, %v93
  %v99 = vpack.c.b16 %v94, %v94
  %v100 = vpack.c.b16 %v95, %v95
  %v101 = vpack.c.b16 %v96, %v96
  %v178 = vunpack.c.l.b16 %v17
  %v179 = vunpack.c.l.b16 %v18
  %v180 = vunpack.c.l.b16 %v19
  %v181 = vunpack.c.l.b16 %v20
  %v182 = vunpack.c.l.b16 %v21
  %v183 = vunpack.c.l.b16 %v22
  %v184 = vunpack.c.l.b16 %v23
  %v185 = vunpack.c.l.b16 %v24
  %v186 = vunpack.c.l.b16 %v25
  %v187 = vunpack.c.l.b16 %v26
  %v188 = vunpack.c.l.b16 %v27
  %v189 = vunpack.c.l.b16 %v28
  %v190 = vunpack.c.l.b16 %v29
  %v191 = vunpack.c.l.b16 %v30
  %v192 = vunpack.c.l.b16 %v31
  %v193 = vunpack.c.l.b16 %v32
  %v194 = vunpack.c.l.b16 %v33
  %v195 = vunpack.c.l.b16 %v34
  %v196 = vunpack.c.l.b16 %v35
  %v197 = vunpack.c.l.b16 %v36
  %v198 = vunpack.c.l.b16 %v37
  %v199 = vunpack.c.l.b16 %v38
  %v200 = vunpack.c.l.b16 %v39
  %v201 = vunpack.c.l.b16 %v40
  %v202 = vunpack.c.l.b16 %v41
  %v203 = vunpack.c.l.b16 %v42
  %v204 = vunpack.c.l.b16 %v43
  %v205 = vunpack.c.l.b16 %v44
  %v206 = vunpack.c.l.b16 %v45
  %v207 = vunpack.c.l.b16 %v46
  %v208 = vunpack.c.l.b16 %v47
  %v209 = vunpack.c.l.b16 %v48
  %v210 = vunpack.c.l.b16 %v49
  %v211 = vunpack.c.l.b16 %v50
  %v212 = vunpack.c.l.b16 %v51
  %v213 = vunpack.c.l.b16 %v52
  %v214 = vunpack.c.l.b16 %v53
  %v215 = vunpack.c.l.b16 %v54
  %v216 = vunpack.c.l.b16 %v55
  %v217 = vunpack.c.l.b16 %v56
  %v218 = vunpack.c.l.b16 %v57
  %v219 = vunpack.c.l.b16 %v58
  %v220 = vunpack.c.l.b16 %v59
  %v221 = vunpack.c.l.b16 %v60
  %v222 = vunpack.c.l.b16 %v61
  %v223 = vunpack.c.l.b16 %v62
  %v224 = vunpack.c.l.b16 %v63
  %v225 = vunpack.c.l.b16 %v64
  %v226 = vunpack.c.l.b16 %v65
  %v227 = vunpack.c.l.b16 %v66
  %v228 = vunpack.c.l.b16 %v67
  %v229 = vunpack.c.l.b16 %v68
  %v230 = vunpack.c.l.b16 %v69
  %v231 = vunpack.c.l.b16 %v70
  %v232 = vunpack.c.l.b16 %v71
  %v233 = vunpack.c.l.b16 %v72
  %v234 = vunpack.c.l.b16 %v73
  %v235 = vunpack.c.l.b16 %v74
  %v236 = vunpack.c.l.b16 %v75
  %v237 = vunpack.c.l.b16 %v76
  %v238 = vunpack.c.l.b16 %v77
  %v239 = vunpack.c.l.b16 %v78
  %v240 = vunpack.c.l.b16 %v79
  %v241 = vunpack.c.l.b16 %v80
  %v242 = vunpack.c.l.b16 %v81
  %v243 = vunpack.c.l.b16 %v82
  %v244 = vunpack.c.l.b16 %v83
  %v245 = vunpack.c.l.b16 %v84
  %v246 = vunpack.c.l.b16 %v85
  %v247 = vunpack.c.l.b16 %v86
  %v248 = vunpack.c.l.b16 %v87
  %v249 = vunpack.c.l.b16 %v88
  %v250 = vpack.c.b16 %v179, %v178
  %v251 = vpack.c.b16 %v181, %v180
  %v252 = vpack.c.b16 %v183, %v182
  %v253 = vpack.c.b16 %v185, %v184
  %v254 = vpack.c.b16 %v187, %v186
  %v255 = vpack.c.b16 %v189, %v188
  %v256 = vpack.c.b16 %v191, %v190
  %v257 = vpack.c.b16 %v193, %v192
  %v258 = vpack.c.b16 %v195, %v194
  %v259 = vpack.c.b16 %v197, %v196
  %v260 = vpack.c.b16 %v199, %v198
  %v261 = vpack.c.b16 %v201, %v200
  %v262 = vpack.c.b16 %v203, %v202
  %v263 = vpack.c.b16 %v205, %v204
  %v264 = vpack.c.b16 %v207, %v206
  %v265 = vpack.c.b16 %v209, %v208
  %v266 = vpack.c.b16 %v211, %v210
  %v267 = vpack.c.b16 %v213, %v212
  %v268 = vpack.c.b16 %v215, %v214
  %v269 = vpack.c.b16 %v217, %v216
  %v270 = vpack.c.b16 %v219, %v218
  %v271 = vpack.c.b16 %v221, %v220
  %v272 = vpack.c.b16 %v223, %v222
  %v273 = vpack.c.b16 %v225, %v224
  %v274 = vpack.c.b16 %v227, %v226
  %v275 = vpack.c.b16 %v229, %v228
  %v276 = vpack.c.b16 %v231, %v230
  %v277 = vpack.c.b16 %v233, %v232
  %v278 = vpack.c.b16 %v235, %v234
  %v279 = vpack.c.b16 %v237, %v236
  %v280 = vpack.c.b16 %v239, %v238
  %v281 = vpack.c.b16 %v241, %v240
  %v282 = vpack.c.b16 %v243, %v242
  %v283 = vpack.c.b16 %v245, %v244
  %v284 = vpack.c.b16 %v247, %v246
  %v285 = vpack.c.b16 %v249, %v248
  %vm322 = vcmask 523264
  %v324 = vsel %vm322, %v101, 0
  %326 = vmatpush.bf16.msra.mxu0 %v257
  %327 = vmatpush.bf16.msra.mxu0 %v256
  %328 = vmatpush.bf16.msra.mxu0 %v255
  %329 = vmatpush.bf16.msra.mxu0 %v254
  %330 = vmatpush.bf16.msra.mxu0 %v253
  %331 = vmatpush.bf16.msra.mxu0 %v252
  %332 = vmatpush.bf16.msra.mxu0 %v251
  %333 = vmatpush.bf16.msra.mxu0 %v250
  %334 = vmatmul.bf16.gmra.mxu0 %v97
  %v335 = vpop.f32.mrf.mxu0
  %v336 = vadd.f32 0.0, %v335
  %v337 = vpop.f32.mrf.mxu0
  %338 = vdwg.mxu0
  %339 = vmatpush.bf16.msra.mxu0 %v265
  %340 = vmatpush.bf16.msra.mxu0 %v264
  %341 = vmatpush.bf16.msra.mxu0 %v263
  %342 = vmatpush.bf16.msra.mxu0 %v262
  %343 = vmatpush.bf16.msra.mxu0 %v261
  %344 = vmatpush.bf16.msra.mxu0 %v260
  %345 = vmatpush.bf16.msra.mxu0 %v259
  %346 = vmatpush.bf16.msra.mxu0 %v258
  %347 = vmatmul.bf16.gmra.mxu0 %v98
  %v348 = vpop.f32.mrf.mxu0
  %v349 = vadd.f32 %v336, %v348
  %v350 = vpop.f32.mrf.mxu0
  %351 = vdwg.mxu0
  %352 = vmatpush.bf16.msra.mxu0 %v273
  %353 = vmatpush.bf16.msra.mxu0 %v272
  %354 = vmatpush.bf16.msra.mxu0 %v271
  %355 = vmatpush.bf16.msra.mxu0 %v270
  %356 = vmatpush.bf16.msra.mxu0 %v269
  %357 = vmatpush.bf16.msra.mxu0 %v268
  %358 = vmatpush.bf16.msra.mxu0 %v267
  %359 = vmatpush.bf16.msra.mxu0 %v266
  %360 = vmatmul.bf16.gmra.mxu0 %v99
  %v361 = vpop.f32.mrf.mxu0
  %v362 = vadd.f32 %v349, %v361
  %v363 = vpop.f32.mrf.mxu0
  %364 = vdwg.mxu0
  %365 = vmatpush.bf16.msra.mxu0 %v281
  %366 = vmatpush.bf16.msra.mxu0 %v280
  %367 = vmatpush.bf16.msra.mxu0 %v279
  %368 = vmatpush.bf16.msra.mxu0 %v278
  %369 = vmatpush.bf16.msra.mxu0 %v277
  %370 = vmatpush.bf16.msra.mxu0 %v276
  %371 = vmatpush.bf16.msra.mxu0 %v275
  %372 = vmatpush.bf16.msra.mxu0 %v274
  %373 = vmatmul.bf16.gmra.mxu0 %v100
  %v374 = vpop.f32.mrf.mxu0
  %v375 = vadd.f32 %v362, %v374
  %v376 = vpop.f32.mrf.mxu0
  %377 = vdwg.mxu0
  %378 = vmatpush.bf16.msra.mxu0 0
  %379 = vmatpush.bf16.msra.mxu0 0
  %380 = vmatpush.bf16.msra.mxu0 0
  %381 = vmatpush.bf16.msra.mxu0 0
  %382 = vmatpush.bf16.msra.mxu0 %v285
  %383 = vmatpush.bf16.msra.mxu0 %v284
  %384 = vmatpush.bf16.msra.mxu0 %v283
  %385 = vmatpush.bf16.msra.mxu0 %v282
  %386 = vmatmul.bf16.gmra.mxu0 %v324
  %v387 = vpop.f32.mrf.mxu0
  %v388 = vadd.f32 %v375, %v387
  %v389 = vpop.f32.mrf.mxu0
  %390 = vdwg.mxu0
  %v391 = vpack.c.bf16 %v388, %v388
  %392 = vst [vmem:[%s2] sm:$0xf] %v391
  %s393 = smul.u32 0, 8
  %v394 = vlaneseq
  %v395 = vshrl.u32 %v394, 7
  %v396 = vstv %s393
  %v397 = vadd.s32 %v395, %v396
  %vm398 = vcmp.lt.s32.totalorder %v397, 8
  %s399 = ssub.s32 8, %s393
  %p400 = scmp.lt.s32.totalorder %s399, 8
  %s401 = scalar_select %p400, %s399, 8
  %p402 = scmp.gt.s32.totalorder %s401, 1
  %s403 = scalar_select %p402, %s401, 1
  %s404 = scvt.s32.f32 %s403
  %v405 = vsel %vm398, 1, 0
  %vm406 = vcmp.eq.s32.totalorder %v405, 1
  %v407 = vsel %vm406, %v388, 0.0
  %v408 = vrot.slane %v407, 4
  %v409 = vadd.f32 %v407, %v408
  %v410 = vrot.slane %v409, 2
  %v411 = vadd.f32 %v409, %v410
  %v412 = vrot.slane %v411, 1
  %v413 = vadd.f32 %v411, %v412
  %v414 = vstv %s404
  %v415 = vrcp.pop %v414
  %v416 = vmul.f32 %v414, %v415
  %v417 = vsub.f32 1.0, %v416
  %v418 = vmul.f32 %v415, %v417
  %v419 = vadd.f32 %v415, %v418
  %vm420 = vweird.f32 %v414
  %vm421 = vweird.f32 %v415
  %vm422 = vmor %vm420, %vm421
  %v423 = vsel %vm422, %v415, %v419
  %v424 = vand.u32 2147483647, %v414
  %vm425 = vcmp.eq.f32.partialorder %v424, 8.507059e+37
  %v426 = vand.u32 %v414, 2147483648
  %v427 = vor.u32 1.1754944e-38, %v426
  %v428 = vsel %vm425, %v427, %v423
  %v429 = vmul.f32 %v413, %v428
  %v430 = vsub.f32 %v388, %v429
  %v431 = vsel %vm406, %v430, 0.0
  %432 = vst [vmem:[%s3] sm:$0x1] %v413
  %v433 = vmul.f32 %v431, %v431
  %v434 = vrot.slane %v433, 4
  %v435 = vadd.f32 %v433, %v434
  %v436 = vrot.slane %v435, 2
  %v437 = vadd.f32 %v435, %v436
  %v438 = vrot.slane %v437, 1
  %v439 = vadd.f32 %v437, %v438
  %440 = vst [vmem:[%s3 + $0x1] sm:$0x1] %v439
  // Predicated region
  $region10: #{darknet10_forward.27} parent=0 // pred_check
    _
  $region11: #{darknet10_forward.27} parent=0 // pred_check_branch
    %442 = sbr.rel (0) target = $region13
  $region12: #{darknet10_forward.27} parent=0 // pred_region
    _
  $region13: #{darknet10_forward.27} parent=0 // pred_fallthru
    _
  // Predicated region
  $region14: #{darknet10_forward.27} parent=0 // pred_check
    _
  $region15: #{darknet10_forward.27} parent=0 // pred_check_branch
    %444 = sbr.rel (0) target = $region17
  $region16: #{darknet10_forward.27} parent=0 // pred_region
    _
  $region17: #{darknet10_forward.27} parent=0 // pred_fallthru
    _
  // Predicated region
  $region18: #{darknet10_forward.27} parent=0 // pred_check
    _
  $region19: #{darknet10_forward.27} parent=0 // pred_check_branch
    %446 = sbr.rel (0) target = $region21
  $region20: #{darknet10_forward.27} parent=0 // pred_region
    _
  $region21: #{darknet10_forward.27} parent=0 // pred_fallthru
    _
  // Predicated region
  $region22: #{darknet10_forward.27} parent=0 // pred_check
    _
  $region23: #{darknet10_forward.27} parent=0 // pred_check_branch
    %448 = sbr.rel (0) target = $region25
  $region24: #{darknet10_forward.27} parent=0 // pred_region
    _
  $region25: #{darknet10_forward.27} parent=0 // pred_fallthru
    _

// kernel: darknet10_forward.30
$region0: #{darknet10_forward.30}
  #allocation0 [shape = 'u32[]', space=smem, size = 0x4, offset = 0x4, fixed_abs, tag = 'smem constant byte address 0x4 - core index']
  #allocation1 [shape = 'u32[72,128]{1,0:T(1,128)}', space=vmem, size = 0x9000, scoped, tag = 'internal scratch']
  %s0 = inlined_call_operand.vmem [shape: bf16[8,256], index: 0, kind: input, shape index: {}]
  %s1 = inlined_call_operand.vmem [shape: f32[1,256], index: 1, kind: input, shape index: {}]
  %s2 = inlined_call_operand.vmem [shape: f32[1,256], index: 2, kind: input, shape index: {}]
  %s3 = inlined_call_operand.vmem [shape: bf16[8,256], index: 3, kind: output, shape index: {}]
  %s4 = sld [smem:[#allocation0]]
  $region22: #{darknet10_forward.30} parent=0
    _
  %s6 = ssub.s32 1, %s4
  %s7 = scalar_select 0, %s6, %s4
  // Predicated region
  $region2: #{darknet10_forward.30} parent=0 // pred_check
    _
  $region3: #{darknet10_forward.30} parent=0 // pred_check_branch
    %9 = sbr.rel (0) target = $region5
  $region4: #{darknet10_forward.30} parent=0 // pred_region
    _
  $region5: #{darknet10_forward.30} parent=0 // pred_fallthru
    _
  // Predicated region
  $region6: #{darknet10_forward.30} parent=0 // pred_check
    _
  $region7: #{darknet10_forward.30} parent=0 // pred_check_branch
    %11 = sbr.rel (0) target = $region9
  $region8: #{darknet10_forward.30} parent=0 // pred_region
    _
  $region9: #{darknet10_forward.30} parent=0 // pred_fallthru
    _
  // Predicated region
  $region10: #{darknet10_forward.30} parent=0 // pred_check
    _
  $region11: #{darknet10_forward.30} parent=0 // pred_check_branch
    %13 = sbr.rel (0) target = $region13
  $region12: #{darknet10_forward.30} parent=0 // pred_region
    _
  $region13: #{darknet10_forward.30} parent=0 // pred_fallthru
    _
  %v14 = vld [vmem:[%s0] sm:$0xff]
  %v15 = vunpack.c.l.bf16 %v14
  %v16 = vunpack.c.h.bf16 %v14
  %v17 = vld [vmem:[%s1] sm:$0x3]
  %v19 = vperm.slane %v17, 0
  %v20 = vperm.slane %v17, 1
  %v23 = vmul.f32 %v15, %v19
  %v24 = vmul.f32 %v16, %v20
  %v25 = vld [vmem:[%s2] sm:$0x3]
  %v27 = vperm.slane %v25, 0
  %v28 = vperm.slane %v25, 1
  %v31 = vadd.f32 %v23, %v27
  %v32 = vadd.f32 %v24, %v28
  %vm33 = vcmp.gt.f32.partialorder %v31, 0.0
  %vm34 = vcmp.gt.f32.partialorder %v32, 0.0
  %v35 = vmul.f32 %v31, 0.1
  %v36 = vmul.f32 %v32, 0.1
  %v37 = vsel %vm33, %v31, %v35
  %v38 = vsel %vm34, %v32, %v36
  %v39 = vpack.c.bf16 %v38, %v37
  %40 = vst [vmem:[%s3] sm:$0xff] %v39
  // Predicated region
  $region14: #{darknet10_forward.30} parent=0 // pred_check
    _
  $region15: #{darknet10_forward.30} parent=0 // pred_check_branch
    %42 = sbr.rel (0) target = $region17
  $region16: #{darknet10_forward.30} parent=0 // pred_region
    _
  $region17: #{darknet10_forward.30} parent=0 // pred_fallthru
    _
  // Predicated region
  $region18: #{darknet10_forward.30} parent=0 // pred_check
    _
  $region19: #{darknet10_forward.30} parent=0 // pred_check_branch
    %44 = sbr.rel (0) target = $region21
  $region20: #{darknet10_forward.30} parent=0 // pred_region
    _
  $region21: #{darknet10_forward.30} parent=0 // pred_fallthru
    _

// kernel: darknet10_forward.29
$region0: #{darknet10_forward.29}
  #allocation0 [shape = 'u32[]', space=smem, size = 0x4, offset = 0x4, fixed_abs, tag = 'smem constant byte address 0x4 - core index']
  #allocation1 [shape = 'u32[72,128]{1,0:T(1,128)}', space=vmem, size = 0x9000, scoped, tag = 'internal scratch']
  %s0 = inlined_call_operand.vmem [shape: bf16[8,1152], index: 0, kind: input, shape index: {}]
  %s1 = inlined_call_operand.vmem [shape: bf16[1152,256], index: 1, kind: input, shape index: {}]
  %s2 = inlined_call_operand.vmem [shape: bf16[8,256], index: 2, kind: output, shape index: {0}]
  %s3 = inlined_call_operand.vmem [shape: f32[1,2,256], index: 3, kind: output, shape index: {1}]
  %4 = xla_tuple %s2, %s3
  %s5 = sld [smem:[#allocation0]]
  $region26: #{darknet10_forward.29} parent=0
    _
  %s7 = ssub.s32 1, %s5
  %s8 = scalar_select 0, %s7, %s5
  // Predicated region
  $region2: #{darknet10_forward.29} parent=0 // pred_check
    _
  $region3: #{darknet10_forward.29} parent=0 // pred_check_branch
    %10 = sbr.rel (0) target = $region5
  $region4: #{darknet10_forward.29} parent=0 // pred_region
    _
  $region5: #{darknet10_forward.29} parent=0 // pred_fallthru
    _
  // Predicated region
  $region6: #{darknet10_forward.29} parent=0 // pred_check
    _
  $region7: #{darknet10_forward.29} parent=0 // pred_check_branch
    %12 = sbr.rel (0) target = $region9
  $region8: #{darknet10_forward.29} parent=0 // pred_region
    _
  $region9: #{darknet10_forward.29} parent=0 // pred_fallthru
    _
  %v13 = vld [vmem:[%s0] sm:$0xff]
  %v14 = vld [vmem:[%s0 + $0x8] sm:$0xff]
  %v15 = vld [vmem:[%s0 + $0x10] sm:$0xff]
  %v16 = vld [vmem:[%s0 + $0x18] sm:$0xff]
  %v17 = vld [vmem:[%s0 + $0x20] sm:$0xf]
  %v18 = vld [vmem:[%s1] sm:$0xff]
  %v19 = vld [vmem:[%s1 + $0x8] sm:$0xff]
  %v20 = vld [vmem:[%s1 + $0x10] sm:$0xff]
  %v21 = vld [vmem:[%s1 + $0x18] sm:$0xff]
  %v22 = vld [vmem:[%s1 + $0x20] sm:$0xff]
  %v23 = vld [vmem:[%s1 + $0x28] sm:$0xff]
  %v24 = vld [vmem:[%s1 + $0x30] sm:$0xff]
  %v25 = vld [vmem:[%s1 + $0x38] sm:$0xff]
  %v26 = vld [vmem:[%s1 + $0x40] sm:$0xff]
  %v27 = vld [vmem:[%s1 + $0x48] sm:$0xff]
  %v28 = vld [vmem:[%s1 + $0x50] sm:$0xff]
  %v29 = vld [vmem:[%s1 + $0x58] sm:$0xff]
  %v30 = vld [vmem:[%s1 + $0x60] sm:$0xff]
  %v31 = vld [vmem:[%s1 + $0x68] sm:$0xff]
  %v32 = vld [vmem:[%s1 + $0x70] sm:$0xff]
  %v33 = vld [vmem:[%s1 + $0x78] sm:$0xff]
  %v34 = vld [vmem:[%s1 + $0x80] sm:$0xff]
  %v35 = vld [vmem:[%s1 + $0x88] sm:$0xff]
  %v36 = vld [vmem:[%s1 + $0x90] sm:$0xff]
  %v37 = vld [vmem:[%s1 + $0x98] sm:$0xff]
  %v38 = vld [vmem:[%s1 + $0xa0] sm:$0xff]
  %v39 = vld [vmem:[%s1 + $0xa8] sm:$0xff]
  %v40 = vld [vmem:[%s1 + $0xb0] sm:$0xff]
  %v41 = vld [vmem:[%s1 + $0xb8] sm:$0xff]
  %v42 = vld [vmem:[%s1 + $0xc0] sm:$0xff]
  %v43 = vld [vmem:[%s1 + $0xc8] sm:$0xff]
  %v44 = vld [vmem:[%s1 + $0xd0] sm:$0xff]
  %v45 = vld [vmem:[%s1 + $0xd8] sm:$0xff]
  %v46 = vld [vmem:[%s1 + $0xe0] sm:$0xff]
  %v47 = vld [vmem:[%s1 + $0xe8] sm:$0xff]
  %v48 = vld [vmem:[%s1 + $0xf0] sm:$0xff]
  %v49 = vld [vmem:[%s1 + $0xf8] sm:$0xff]
  %v50 = vld [vmem:[%s1 + $0x100] sm:$0xff]
  %v51 = vld [vmem:[%s1 + $0x108] sm:$0xff]
  %v52 = vld [vmem:[%s1 + $0x110] sm:$0xff]
  %v53 = vld [vmem:[%s1 + $0x118] sm:$0xff]
  %v54 = vld [vmem:[%s1 + $0x120] sm:$0xff]
  %v55 = vld [vmem:[%s1 + $0x128] sm:$0xff]
  %v56 = vld [vmem:[%s1 + $0x130] sm:$0xff]
  %v57 = vld [vmem:[%s1 + $0x138] sm:$0xff]
  %v58 = vld [vmem:[%s1 + $0x140] sm:$0xff]
  %v59 = vld [vmem:[%s1 + $0x148] sm:$0xff]
  %v60 = vld [vmem:[%s1 + $0x150] sm:$0xff]
  %v61 = vld [vmem:[%s1 + $0x158] sm:$0xff]
  %v62 = vld [vmem:[%s1 + $0x160] sm:$0xff]
  %v63 = vld [vmem:[%s1 + $0x168] sm:$0xff]
  %v64 = vld [vmem:[%s1 + $0x170] sm:$0xff]
  %v65 = vld [vmem:[%s1 + $0x178] sm:$0xff]
  %v66 = vld [vmem:[%s1 + $0x180] sm:$0xff]
  %v67 = vld [vmem:[%s1 + $0x188] sm:$0xff]
  %v68 = vld [vmem:[%s1 + $0x190] sm:$0xff]
  %v69 = vld [vmem:[%s1 + $0x198] sm:$0xff]
  %v70 = vld [vmem:[%s1 + $0x1a0] sm:$0xff]
  %v71 = vld [vmem:[%s1 + $0x1a8] sm:$0xff]
  %v72 = vld [vmem:[%s1 + $0x1b0] sm:$0xff]
  %v73 = vld [vmem:[%s1 + $0x1b8] sm:$0xff]
  %v74 = vld [vmem:[%s1 + $0x1c0] sm:$0xff]
  %v75 = vld [vmem:[%s1 + $0x1c8] sm:$0xff]
  %v76 = vld [vmem:[%s1 + $0x1d0] sm:$0xff]
  %v77 = vld [vmem:[%s1 + $0x1d8] sm:$0xff]
  %v78 = vld [vmem:[%s1 + $0x1e0] sm:$0xff]
  %v79 = vld [vmem:[%s1 + $0x1e8] sm:$0xff]
  %v80 = vld [vmem:[%s1 + $0x1f0] sm:$0xff]
  %v81 = vld [vmem:[%s1 + $0x1f8] sm:$0xff]
  %v82 = vld [vmem:[%s1 + $0x200] sm:$0xff]
  %v83 = vld [vmem:[%s1 + $0x208] sm:$0xff]
  %v84 = vld [vmem:[%s1 + $0x210] sm:$0xff]
  %v85 = vld [vmem:[%s1 + $0x218] sm:$0xff]
  %v86 = vld [vmem:[%s1 + $0x220] sm:$0xff]
  %v87 = vld [vmem:[%s1 + $0x228] sm:$0xff]
  %v88 = vld [vmem:[%s1 + $0x230] sm:$0xff]
  %v89 = vld [vmem:[%s1 + $0x238] sm:$0xff]
  %v90 = vld [vmem:[%s1 + $0x240] sm:$0xff]
  %v91 = vld [vmem:[%s1 + $0x248] sm:$0xff]
  %v92 = vld [vmem:[%s1 + $0x250] sm:$0xff]
  %v93 = vld [vmem:[%s1 + $0x258] sm:$0xff]
  %v94 = vld [vmem:[%s1 + $0x260] sm:$0xff]
  %v95 = vld [vmem:[%s1 + $0x268] sm:$0xff]
  %v96 = vld [vmem:[%s1 + $0x270] sm:$0xff]
  %v97 = vld [vmem:[%s1 + $0x278] sm:$0xff]
  %v98 = vld [vmem:[%s1 + $0x280] sm:$0xff]
  %v99 = vld [vmem:[%s1 + $0x288] sm:$0xff]
  %v100 = vld [vmem:[%s1 + $0x290] sm:$0xff]
  %v101 = vld [vmem:[%s1 + $0x298] sm:$0xff]
  %v102 = vld [vmem:[%s1 + $0x2a0] sm:$0xff]
  %v103 = vld [vmem:[%s1 + $0x2a8] sm:$0xff]
  %v104 = vld [vmem:[%s1 + $0x2b0] sm:$0xff]
  %v105 = vld [vmem:[%s1 + $0x2b8] sm:$0xff]
  %v106 = vld [vmem:[%s1 + $0x2c0] sm:$0xff]
  %v107 = vld [vmem:[%s1 + $0x2c8] sm:$0xff]
  %v108 = vld [vmem:[%s1 + $0x2d0] sm:$0xff]
  %v109 = vld [vmem:[%s1 + $0x2d8] sm:$0xff]
  %v110 = vld [vmem:[%s1 + $0x2e0] sm:$0xff]
  %v111 = vld [vmem:[%s1 + $0x2e8] sm:$0xff]
  %v112 = vld [vmem:[%s1 + $0x2f0] sm:$0xff]
  %v113 = vld [vmem:[%s1 + $0x2f8] sm:$0xff]
  %v114 = vld [vmem:[%s1 + $0x300] sm:$0xff]
  %v115 = vld [vmem:[%s1 + $0x308] sm:$0xff]
  %v116 = vld [vmem:[%s1 + $0x310] sm:$0xff]
  %v117 = vld [vmem:[%s1 + $0x318] sm:$0xff]
  %v118 = vld [vmem:[%s1 + $0x320] sm:$0xff]
  %v119 = vld [vmem:[%s1 + $0x328] sm:$0xff]
  %v120 = vld [vmem:[%s1 + $0x330] sm:$0xff]
  %v121 = vld [vmem:[%s1 + $0x338] sm:$0xff]
  %v122 = vld [vmem:[%s1 + $0x340] sm:$0xff]
  %v123 = vld [vmem:[%s1 + $0x348] sm:$0xff]
  %v124 = vld [vmem:[%s1 + $0x350] sm:$0xff]
  %v125 = vld [vmem:[%s1 + $0x358] sm:$0xff]
  %v126 = vld [vmem:[%s1 + $0x360] sm:$0xff]
  %v127 = vld [vmem:[%s1 + $0x368] sm:$0xff]
  %v128 = vld [vmem:[%s1 + $0x370] sm:$0xff]
  %v129 = vld [vmem:[%s1 + $0x378] sm:$0xff]
  %v130 = vld [vmem:[%s1 + $0x380] sm:$0xff]
  %v131 = vld [vmem:[%s1 + $0x388] sm:$0xff]
  %v132 = vld [vmem:[%s1 + $0x390] sm:$0xff]
  %v133 = vld [vmem:[%s1 + $0x398] sm:$0xff]
  %v134 = vld [vmem:[%s1 + $0x3a0] sm:$0xff]
  %v135 = vld [vmem:[%s1 + $0x3a8] sm:$0xff]
  %v136 = vld [vmem:[%s1 + $0x3b0] sm:$0xff]
  %v137 = vld [vmem:[%s1 + $0x3b8] sm:$0xff]
  %v138 = vld [vmem:[%s1 + $0x3c0] sm:$0xff]
  %v139 = vld [vmem:[%s1 + $0x3c8] sm:$0xff]
  %v140 = vld [vmem:[%s1 + $0x3d0] sm:$0xff]
  %v141 = vld [vmem:[%s1 + $0x3d8] sm:$0xff]
  %v142 = vld [vmem:[%s1 + $0x3e0] sm:$0xff]
  %v143 = vld [vmem:[%s1 + $0x3e8] sm:$0xff]
  %v144 = vld [vmem:[%s1 + $0x3f0] sm:$0xff]
  %v145 = vld [vmem:[%s1 + $0x3f8] sm:$0xff]
  %v146 = vld [vmem:[%s1 + $0x400] sm:$0xff]
  %v147 = vld [vmem:[%s1 + $0x408] sm:$0xff]
  %v148 = vld [vmem:[%s1 + $0x410] sm:$0xff]
  %v149 = vld [vmem:[%s1 + $0x418] sm:$0xff]
  %v150 = vld [vmem:[%s1 + $0x420] sm:$0xff]
  %v151 = vld [vmem:[%s1 + $0x428] sm:$0xff]
  %v152 = vld [vmem:[%s1 + $0x430] sm:$0xff]
  %v153 = vld [vmem:[%s1 + $0x438] sm:$0xff]
  %v154 = vld [vmem:[%s1 + $0x440] sm:$0xff]
  %v155 = vld [vmem:[%s1 + $0x448] sm:$0xff]
  %v156 = vld [vmem:[%s1 + $0x450] sm:$0xff]
  %v157 = vld [vmem:[%s1 + $0x458] sm:$0xff]
  %v158 = vld [vmem:[%s1 + $0x460] sm:$0xff]
  %v159 = vld [vmem:[%s1 + $0x468] sm:$0xff]
  %v160 = vld [vmem:[%s1 + $0x470] sm:$0xff]
  %v161 = vld [vmem:[%s1 + $0x478] sm:$0xff]
  %v167 = vunpack.c.l.b16 %v13
  %v168 = vunpack.c.h.b16 %v13
  %v169 = vunpack.c.l.b16 %v14
  %v170 = vunpack.c.h.b16 %v14
  %v171 = vunpack.c.l.b16 %v15
  %v172 = vunpack.c.h.b16 %v15
  %v173 = vunpack.c.l.b16 %v16
  %v174 = vunpack.c.h.b16 %v16
  %v175 = vunpack.c.l.b16 %v17
  %v176 = vpack.c.b16 %v167, %v167
  %v177 = vpack.c.b16 %v168, %v168
  %v178 = vpack.c.b16 %v169, %v169
  %v179 = vpack.c.b16 %v170, %v170
  %v180 = vpack.c.b16 %v171, %v171
  %v181 = vpack.c.b16 %v172, %v172
  %v182 = vpack.c.b16 %v173, %v173
  %v183 = vpack.c.b16 %v174, %v174
  %v184 = vpack.c.b16 %v175, %v175
  %v338 = vunpack.c.l.b16 %v18
  %v339 = vunpack.c.h.b16 %v18
  %v340 = vunpack.c.l.b16 %v19
  %v341 = vunpack.c.h.b16 %v19
  %v342 = vunpack.c.l.b16 %v20
  %v343 = vunpack.c.h.b16 %v20
  %v344 = vunpack.c.l.b16 %v21
  %v345 = vunpack.c.h.b16 %v21
  %v346 = vunpack.c.l.b16 %v22
  %v347 = vunpack.c.h.b16 %v22
  %v348 = vunpack.c.l.b16 %v23
  %v349 = vunpack.c.h.b16 %v23
  %v350 = vunpack.c.l.b16 %v24
  %v351 = vunpack.c.h.b16 %v24
  %v352 = vunpack.c.l.b16 %v25
  %v353 = vunpack.c.h.b16 %v25
  %v354 = vunpack.c.l.b16 %v26
  %v355 = vunpack.c.h.b16 %v26
  %v356 = vunpack.c.l.b16 %v27
  %v357 = vunpack.c.h.b16 %v27
  %v358 = vunpack.c.l.b16 %v28
  %v359 = vunpack.c.h.b16 %v28
  %v360 = vunpack.c.l.b16 %v29
  %v361 = vunpack.c.h.b16 %v29
  %v362 = vunpack.c.l.b16 %v30
  %v363 = vunpack.c.h.b16 %v30
  %v364 = vunpack.c.l.b16 %v31
  %v365 = vunpack.c.h.b16 %v31
  %v366 = vunpack.c.l.b16 %v32
  %v367 = vunpack.c.h.b16 %v32
  %v368 = vunpack.c.l.b16 %v33
  %v369 = vunpack.c.h.b16 %v33
  %v370 = vunpack.c.l.b16 %v34
  %v371 = vunpack.c.h.b16 %v34
  %v372 = vunpack.c.l.b16 %v35
  %v373 = vunpack.c.h.b16 %v35
  %v374 = vunpack.c.l.b16 %v36
  %v375 = vunpack.c.h.b16 %v36
  %v376 = vunpack.c.l.b16 %v37
  %v377 = vunpack.c.h.b16 %v37
  %v378 = vunpack.c.l.b16 %v38
  %v379 = vunpack.c.h.b16 %v38
  %v380 = vunpack.c.l.b16 %v39
  %v381 = vunpack.c.h.b16 %v39
  %v382 = vunpack.c.l.b16 %v40
  %v383 = vunpack.c.h.b16 %v40
  %v384 = vunpack.c.l.b16 %v41
  %v385 = vunpack.c.h.b16 %v41
  %v386 = vunpack.c.l.b16 %v42
  %v387 = vunpack.c.h.b16 %v42
  %v388 = vunpack.c.l.b16 %v43
  %v389 = vunpack.c.h.b16 %v43
  %v390 = vunpack.c.l.b16 %v44
  %v391 = vunpack.c.h.b16 %v44
  %v392 = vunpack.c.l.b16 %v45
  %v393 = vunpack.c.h.b16 %v45
  %v394 = vunpack.c.l.b16 %v46
  %v395 = vunpack.c.h.b16 %v46
  %v396 = vunpack.c.l.b16 %v47
  %v397 = vunpack.c.h.b16 %v47
  %v398 = vunpack.c.l.b16 %v48
  %v399 = vunpack.c.h.b16 %v48
  %v400 = vunpack.c.l.b16 %v49
  %v401 = vunpack.c.h.b16 %v49
  %v402 = vunpack.c.l.b16 %v50
  %v403 = vunpack.c.h.b16 %v50
  %v404 = vunpack.c.l.b16 %v51
  %v405 = vunpack.c.h.b16 %v51
  %v406 = vunpack.c.l.b16 %v52
  %v407 = vunpack.c.h.b16 %v52
  %v408 = vunpack.c.l.b16 %v53
  %v409 = vunpack.c.h.b16 %v53
  %v410 = vunpack.c.l.b16 %v54
  %v411 = vunpack.c.h.b16 %v54
  %v412 = vunpack.c.l.b16 %v55
  %v413 = vunpack.c.h.b16 %v55
  %v414 = vunpack.c.l.b16 %v56
  %v415 = vunpack.c.h.b16 %v56
  %v416 = vunpack.c.l.b16 %v57
  %v417 = vunpack.c.h.b16 %v57
  %v418 = vunpack.c.l.b16 %v58
  %v419 = vunpack.c.h.b16 %v58
  %v420 = vunpack.c.l.b16 %v59
  %v421 = vunpack.c.h.b16 %v59
  %v422 = vunpack.c.l.b16 %v60
  %v423 = vunpack.c.h.b16 %v60
  %v424 = vunpack.c.l.b16 %v61
  %v425 = vunpack.c.h.b16 %v61
  %v426 = vunpack.c.l.b16 %v62
  %v427 = vunpack.c.h.b16 %v62
  %v428 = vunpack.c.l.b16 %v63
  %v429 = vunpack.c.h.b16 %v63
  %v430 = vunpack.c.l.b16 %v64
  %v431 = vunpack.c.h.b16 %v64
  %v432 = vunpack.c.l.b16 %v65
  %v433 = vunpack.c.h.b16 %v65
  %v434 = vunpack.c.l.b16 %v66
  %v435 = vunpack.c.h.b16 %v66
  %v436 = vunpack.c.l.b16 %v67
  %v437 = vunpack.c.h.b16 %v67
  %v438 = vunpack.c.l.b16 %v68
  %v439 = vunpack.c.h.b16 %v68
  %v440 = vunpack.c.l.b16 %v69
  %v441 = vunpack.c.h.b16 %v69
  %v442 = vunpack.c.l.b16 %v70
  %v443 = vunpack.c.h.b16 %v70
  %v444 = vunpack.c.l.b16 %v71
  %v445 = vunpack.c.h.b16 %v71
  %v446 = vunpack.c.l.b16 %v72
  %v447 = vunpack.c.h.b16 %v72
  %v448 = vunpack.c.l.b16 %v73
  %v449 = vunpack.c.h.b16 %v73
  %v450 = vunpack.c.l.b16 %v74
  %v451 = vunpack.c.h.b16 %v74
  %v452 = vunpack.c.l.b16 %v75
  %v453 = vunpack.c.h.b16 %v75
  %v454 = vunpack.c.l.b16 %v76
  %v455 = vunpack.c.h.b16 %v76
  %v456 = vunpack.c.l.b16 %v77
  %v457 = vunpack.c.h.b16 %v77
  %v458 = vunpack.c.l.b16 %v78
  %v459 = vunpack.c.h.b16 %v78
  %v460 = vunpack.c.l.b16 %v79
  %v461 = vunpack.c.h.b16 %v79
  %v462 = vunpack.c.l.b16 %v80
  %v463 = vunpack.c.h.b16 %v80
  %v464 = vunpack.c.l.b16 %v81
  %v465 = vunpack.c.h.b16 %v81
  %v466 = vunpack.c.l.b16 %v82
  %v467 = vunpack.c.h.b16 %v82
  %v468 = vunpack.c.l.b16 %v83
  %v469 = vunpack.c.h.b16 %v83
  %v470 = vunpack.c.l.b16 %v84
  %v471 = vunpack.c.h.b16 %v84
  %v472 = vunpack.c.l.b16 %v85
  %v473 = vunpack.c.h.b16 %v85
  %v474 = vunpack.c.l.b16 %v86
  %v475 = vunpack.c.h.b16 %v86
  %v476 = vunpack.c.l.b16 %v87
  %v477 = vunpack.c.h.b16 %v87
  %v478 = vunpack.c.l.b16 %v88
  %v479 = vunpack.c.h.b16 %v88
  %v480 = vunpack.c.l.b16 %v89
  %v481 = vunpack.c.h.b16 %v89
  %v482 = vunpack.c.l.b16 %v90
  %v483 = vunpack.c.h.b16 %v90
  %v484 = vunpack.c.l.b16 %v91
  %v485 = vunpack.c.h.b16 %v91
  %v486 = vunpack.c.l.b16 %v92
  %v487 = vunpack.c.h.b16 %v92
  %v488 = vunpack.c.l.b16 %v93
  %v489 = vunpack.c.h.b16 %v93
  %v490 = vunpack.c.l.b16 %v94
  %v491 = vunpack.c.h.b16 %v94
  %v492 = vunpack.c.l.b16 %v95
  %v493 = vunpack.c.h.b16 %v95
  %v494 = vunpack.c.l.b16 %v96
  %v495 = vunpack.c.h.b16 %v96
  %v496 = vunpack.c.l.b16 %v97
  %v497 = vunpack.c.h.b16 %v97
  %v498 = vunpack.c.l.b16 %v98
  %v499 = vunpack.c.h.b16 %v98
  %v500 = vunpack.c.l.b16 %v99
  %v501 = vunpack.c.h.b16 %v99
  %v502 = vunpack.c.l.b16 %v100
  %v503 = vunpack.c.h.b16 %v100
  %v504 = vunpack.c.l.b16 %v101
  %v505 = vunpack.c.h.b16 %v101
  %v506 = vunpack.c.l.b16 %v102
  %v507 = vunpack.c.h.b16 %v102
  %v508 = vunpack.c.l.b16 %v103
  %v509 = vunpack.c.h.b16 %v103
  %v510 = vunpack.c.l.b16 %v104
  %v511 = vunpack.c.h.b16 %v104
  %v512 = vunpack.c.l.b16 %v105
  %v513 = vunpack.c.h.b16 %v105
  %v514 = vunpack.c.l.b16 %v106
  %v515 = vunpack.c.h.b16 %v106
  %v516 = vunpack.c.l.b16 %v107
  %v517 = vunpack.c.h.b16 %v107
  %v518 = vunpack.c.l.b16 %v108
  %v519 = vunpack.c.h.b16 %v108
  %v520 = vunpack.c.l.b16 %v109
  %v521 = vunpack.c.h.b16 %v109
  %v522 = vunpack.c.l.b16 %v110
  %v523 = vunpack.c.h.b16 %v110
  %v524 = vunpack.c.l.b16 %v111
  %v525 = vunpack.c.h.b16 %v111
  %v526 = vunpack.c.l.b16 %v112
  %v527 = vunpack.c.h.b16 %v112
  %v528 = vunpack.c.l.b16 %v113
  %v529 = vunpack.c.h.b16 %v113
  %v530 = vunpack.c.l.b16 %v114
  %v531 = vunpack.c.h.b16 %v114
  %v532 = vunpack.c.l.b16 %v115
  %v533 = vunpack.c.h.b16 %v115
  %v534 = vunpack.c.l.b16 %v116
  %v535 = vunpack.c.h.b16 %v116
  %v536 = vunpack.c.l.b16 %v117
  %v537 = vunpack.c.h.b16 %v117
  %v538 = vunpack.c.l.b16 %v118
  %v539 = vunpack.c.h.b16 %v118
  %v540 = vunpack.c.l.b16 %v119
  %v541 = vunpack.c.h.b16 %v119
  %v542 = vunpack.c.l.b16 %v120
  %v543 = vunpack.c.h.b16 %v120
  %v544 = vunpack.c.l.b16 %v121
  %v545 = vunpack.c.h.b16 %v121
  %v546 = vunpack.c.l.b16 %v122
  %v547 = vunpack.c.h.b16 %v122
  %v548 = vunpack.c.l.b16 %v123
  %v549 = vunpack.c.h.b16 %v123
  %v550 = vunpack.c.l.b16 %v124
  %v551 = vunpack.c.h.b16 %v124
  %v552 = vunpack.c.l.b16 %v125
  %v553 = vunpack.c.h.b16 %v125
  %v554 = vunpack.c.l.b16 %v126
  %v555 = vunpack.c.h.b16 %v126
  %v556 = vunpack.c.l.b16 %v127
  %v557 = vunpack.c.h.b16 %v127
  %v558 = vunpack.c.l.b16 %v128
  %v559 = vunpack.c.h.b16 %v128
  %v560 = vunpack.c.l.b16 %v129
  %v561 = vunpack.c.h.b16 %v129
  %v562 = vunpack.c.l.b16 %v130
  %v563 = vunpack.c.h.b16 %v130
  %v564 = vunpack.c.l.b16 %v131
  %v565 = vunpack.c.h.b16 %v131
  %v566 = vunpack.c.l.b16 %v132
  %v567 = vunpack.c.h.b16 %v132
  %v568 = vunpack.c.l.b16 %v133
  %v569 = vunpack.c.h.b16 %v133
  %v570 = vunpack.c.l.b16 %v134
  %v571 = vunpack.c.h.b16 %v134
  %v572 = vunpack.c.l.b16 %v135
  %v573 = vunpack.c.h.b16 %v135
  %v574 = vunpack.c.l.b16 %v136
  %v575 = vunpack.c.h.b16 %v136
  %v576 = vunpack.c.l.b16 %v137
  %v577 = vunpack.c.h.b16 %v137
  %v578 = vunpack.c.l.b16 %v138
  %v579 = vunpack.c.h.b16 %v138
  %v580 = vunpack.c.l.b16 %v139
  %v581 = vunpack.c.h.b16 %v139
  %v582 = vunpack.c.l.b16 %v140
  %v583 = vunpack.c.h.b16 %v140
  %v584 = vunpack.c.l.b16 %v141
  %v585 = vunpack.c.h.b16 %v141
  %v586 = vunpack.c.l.b16 %v142
  %v587 = vunpack.c.h.b16 %v142
  %v588 = vunpack.c.l.b16 %v143
  %v589 = vunpack.c.h.b16 %v143
  %v590 = vunpack.c.l.b16 %v144
  %v591 = vunpack.c.h.b16 %v144
  %v592 = vunpack.c.l.b16 %v145
  %v593 = vunpack.c.h.b16 %v145
  %v594 = vunpack.c.l.b16 %v146
  %v595 = vunpack.c.h.b16 %v146
  %v596 = vunpack.c.l.b16 %v147
  %v597 = vunpack.c.h.b16 %v147
  %v598 = vunpack.c.l.b16 %v148
  %v599 = vunpack.c.h.b16 %v148
  %v600 = vunpack.c.l.b16 %v149
  %v601 = vunpack.c.h.b16 %v149
  %v602 = vunpack.c.l.b16 %v150
  %v603 = vunpack.c.h.b16 %v150
  %v604 = vunpack.c.l.b16 %v151
  %v605 = vunpack.c.h.b16 %v151
  %v606 = vunpack.c.l.b16 %v152
  %v607 = vunpack.c.h.b16 %v152
  %v608 = vunpack.c.l.b16 %v153
  %v609 = vunpack.c.h.b16 %v153
  %v610 = vunpack.c.l.b16 %v154
  %v611 = vunpack.c.h.b16 %v154
  %v612 = vunpack.c.l.b16 %v155
  %v613 = vunpack.c.h.b16 %v155
  %v614 = vunpack.c.l.b16 %v156
  %v615 = vunpack.c.h.b16 %v156
  %v616 = vunpack.c.l.b16 %v157
  %v617 = vunpack.c.h.b16 %v157
  %v618 = vunpack.c.l.b16 %v158
  %v619 = vunpack.c.h.b16 %v158
  %v620 = vunpack.c.l.b16 %v159
  %v621 = vunpack.c.h.b16 %v159
  %v622 = vunpack.c.l.b16 %v160
  %v623 = vunpack.c.h.b16 %v160
  %v624 = vunpack.c.l.b16 %v161
  %v625 = vunpack.c.h.b16 %v161
  %v626 = vpack.c.b16 %v340, %v338
  %v627 = vpack.c.b16 %v341, %v339
  %v628 = vpack.c.b16 %v344, %v342
  %v629 = vpack.c.b16 %v345, %v343
  %v630 = vpack.c.b16 %v348, %v346
  %v631 = vpack.c.b16 %v349, %v347
  %v632 = vpack.c.b16 %v352, %v350
  %v633 = vpack.c.b16 %v353, %v351
  %v634 = vpack.c.b16 %v356, %v354
  %v635 = vpack.c.b16 %v357, %v355
  %v636 = vpack.c.b16 %v360, %v358
  %v637 = vpack.c.b16 %v361, %v359
  %v638 = vpack.c.b16 %v364, %v362
  %v639 = vpack.c.b16 %v365, %v363
  %v640 = vpack.c.b16 %v368, %v366
  %v641 = vpack.c.b16 %v369, %v367
  %v642 = vpack.c.b16 %v372, %v370
  %v643 = vpack.c.b16 %v373, %v371
  %v644 = vpack.c.b16 %v376, %v374
  %v645 = vpack.c.b16 %v377, %v375
  %v646 = vpack.c.b16 %v380, %v378
  %v647 = vpack.c.b16 %v381, %v379
  %v648 = vpack.c.b16 %v384, %v382
  %v649 = vpack.c.b16 %v385, %v383
  %v650 = vpack.c.b16 %v388, %v386
  %v651 = vpack.c.b16 %v389, %v387
  %v652 = vpack.c.b16 %v392, %v390
  %v653 = vpack.c.b16 %v393, %v391
  %v654 = vpack.c.b16 %v396, %v394
  %v655 = vpack.c.b16 %v397, %v395
  %v656 = vpack.c.b16 %v400, %v398
  %v657 = vpack.c.b16 %v401, %v399
  %v658 = vpack.c.b16 %v404, %v402
  %v659 = vpack.c.b16 %v405, %v403
  %v660 = vpack.c.b16 %v408, %v406
  %v661 = vpack.c.b16 %v409, %v407
  %v662 = vpack.c.b16 %v412, %v410
  %v663 = vpack.c.b16 %v413, %v411
  %v664 = vpack.c.b16 %v416, %v414
  %v665 = vpack.c.b16 %v417, %v415
  %v666 = vpack.c.b16 %v420, %v418
  %v667 = vpack.c.b16 %v421, %v419
  %v668 = vpack.c.b16 %v424, %v422
  %v669 = vpack.c.b16 %v425, %v423
  %v670 = vpack.c.b16 %v428, %v426
  %v671 = vpack.c.b16 %v429, %v427
  %v672 = vpack.c.b16 %v432, %v430
  %v673 = vpack.c.b16 %v433, %v431
  %v674 = vpack.c.b16 %v436, %v434
  %v675 = vpack.c.b16 %v437, %v435
  %v676 = vpack.c.b16 %v440, %v438
  %v677 = vpack.c.b16 %v441, %v439
  %v678 = vpack.c.b16 %v444, %v442
  %v679 = vpack.c.b16 %v445, %v443
  %v680 = vpack.c.b16 %v448, %v446
  %v681 = vpack.c.b16 %v449, %v447
  %v682 = vpack.c.b16 %v452, %v450
  %v683 = vpack.c.b16 %v453, %v451
  %v684 = vpack.c.b16 %v456, %v454
  %v685 = vpack.c.b16 %v457, %v455
  %v686 = vpack.c.b16 %v460, %v458
  %v687 = vpack.c.b16 %v461, %v459
  %v688 = vpack.c.b16 %v464, %v462
  %v689 = vpack.c.b16 %v465, %v463
  %v690 = vpack.c.b16 %v468, %v466
  %v691 = vpack.c.b16 %v469, %v467
  %v692 = vpack.c.b16 %v472, %v470
  %v693 = vpack.c.b16 %v473, %v471
  %v694 = vpack.c.b16 %v476, %v474
  %v695 = vpack.c.b16 %v477, %v475
  %v696 = vpack.c.b16 %v480, %v478
  %v697 = vpack.c.b16 %v481, %v479
  %v698 = vpack.c.b16 %v484, %v482
  %v699 = vpack.c.b16 %v485, %v483
  %v700 = vpack.c.b16 %v488, %v486
  %v701 = vpack.c.b16 %v489, %v487
  %v702 = vpack.c.b16 %v492, %v490
  %v703 = vpack.c.b16 %v493, %v491
  %v704 = vpack.c.b16 %v496, %v494
  %v705 = vpack.c.b16 %v497, %v495
  %v706 = vpack.c.b16 %v500, %v498
  %v707 = vpack.c.b16 %v501, %v499
  %v708 = vpack.c.b16 %v504, %v502
  %v709 = vpack.c.b16 %v505, %v503
  %v710 = vpack.c.b16 %v508, %v506
  %v711 = vpack.c.b16 %v509, %v507
  %v712 = vpack.c.b16 %v512, %v510
  %v713 = vpack.c.b16 %v513, %v511
  %v714 = vpack.c.b16 %v516, %v514
  %v715 = vpack.c.b16 %v517, %v515
  %v716 = vpack.c.b16 %v520, %v518
  %v717 = vpack.c.b16 %v521, %v519
  %v718 = vpack.c.b16 %v524, %v522
  %v719 = vpack.c.b16 %v525, %v523
  %v720 = vpack.c.b16 %v528, %v526
  %v721 = vpack.c.b16 %v529, %v527
  %v722 = vpack.c.b16 %v532, %v530
  %v723 = vpack.c.b16 %v533, %v531
  %v724 = vpack.c.b16 %v536, %v534
  %v725 = vpack.c.b16 %v537, %v535
  %v726 = vpack.c.b16 %v540, %v538
  %v727 = vpack.c.b16 %v541, %v539
  %v728 = vpack.c.b16 %v544, %v542
  %v729 = vpack.c.b16 %v545, %v543
  %v730 = vpack.c.b16 %v548, %v546
  %v731 = vpack.c.b16 %v549, %v547
  %v732 = vpack.c.b16 %v552, %v550
  %v733 = vpack.c.b16 %v553, %v551
  %v734 = vpack.c.b16 %v556, %v554
  %v735 = vpack.c.b16 %v557, %v555
  %v736 = vpack.c.b16 %v560, %v558
  %v737 = vpack.c.b16 %v561, %v559
  %v738 = vpack.c.b16 %v564, %v562
  %v739 = vpack.c.b16 %v565, %v563
  %v740 = vpack.c.b16 %v568, %v566
  %v741 = vpack.c.b16 %v569, %v567
  %v742 = vpack.c.b16 %v572, %v570
  %v743 = vpack.c.b16 %v573, %v571
  %v744 = vpack.c.b16 %v576, %v574
  %v745 = vpack.c.b16 %v577, %v575
  %v746 = vpack.c.b16 %v580, %v578
  %v747 = vpack.c.b16 %v581, %v579
  %v748 = vpack.c.b16 %v584, %v582
  %v749 = vpack.c.b16 %v585, %v583
  %v750 = vpack.c.b16 %v588, %v586
  %v751 = vpack.c.b16 %v589, %v587
  %v752 = vpack.c.b16 %v592, %v590
  %v753 = vpack.c.b16 %v593, %v591
  %v754 = vpack.c.b16 %v596, %v594
  %v755 = vpack.c.b16 %v597, %v595
  %v756 = vpack.c.b16 %v600, %v598
  %v757 = vpack.c.b16 %v601, %v599
  %v758 = vpack.c.b16 %v604, %v602
  %v759 = vpack.c.b16 %v605, %v603
  %v760 = vpack.c.b16 %v608, %v606
  %v761 = vpack.c.b16 %v609, %v607
  %v762 = vpack.c.b16 %v612, %v610
  %v763 = vpack.c.b16 %v613, %v611
  %v764 = vpack.c.b16 %v616, %v614
  %v765 = vpack.c.b16 %v617, %v615
  %v766 = vpack.c.b16 %v620, %v618
  %v767 = vpack.c.b16 %v621, %v619
  %v768 = vpack.c.b16 %v624, %v622
  %v769 = vpack.c.b16 %v625, %v623
  %914 = vmatpush.bf16.msra.mxu0 %v640
  %915 = vmatpush.bf16.msra.mxu0 %v638
  %916 = vmatpush.bf16.msra.mxu0 %v636
  %917 = vmatpush.bf16.msra.mxu0 %v634
  %918 = vmatpush.bf16.msra.mxu0 %v632
  %919 = vmatpush.bf16.msra.mxu0 %v630
  %920 = vmatpush.bf16.msra.mxu0 %v628
  %921 = vmatpush.bf16.msra.mxu0 %v626
  %922 = vmatmul.bf16.gmra.mxu0 %v176
  %v923 = vpop.f32.mrf.mxu0
  %v924 = vadd.f32 0.0, %v923
  %v925 = vpop.f32.mrf.mxu0
  %926 = vdwg.mxu0
  %927 = vmatpush.bf16.msra.mxu0 %v656
  %928 = vmatpush.bf16.msra.mxu0 %v654
  %929 = vmatpush.bf16.msra.mxu0 %v652
  %930 = vmatpush.bf16.msra.mxu0 %v650
  %931 = vmatpush.bf16.msra.mxu0 %v648
  %932 = vmatpush.bf16.msra.mxu0 %v646
  %933 = vmatpush.bf16.msra.mxu0 %v644
  %934 = vmatpush.bf16.msra.mxu0 %v642
  %935 = vmatmul.bf16.gmra.mxu0 %v177
  %v936 = vpop.f32.mrf.mxu0
  %v937 = vadd.f32 %v924, %v936
  %v938 = vpop.f32.mrf.mxu0
  %939 = vdwg.mxu0
  %940 = vmatpush.bf16.msra.mxu0 %v672
  %941 = vmatpush.bf16.msra.mxu0 %v670
  %942 = vmatpush.bf16.msra.mxu0 %v668
  %943 = vmatpush.bf16.msra.mxu0 %v666
  %944 = vmatpush.bf16.msra.mxu0 %v664
  %945 = vmatpush.bf16.msra.mxu0 %v662
  %946 = vmatpush.bf16.msra.mxu0 %v660
  %947 = vmatpush.bf16.msra.mxu0 %v658
  %948 = vmatmul.bf16.gmra.mxu0 %v178
  %v949 = vpop.f32.mrf.mxu0
  %v950 = vadd.f32 %v937, %v949
  %v951 = vpop.f32.mrf.mxu0
  %952 = vdwg.mxu0
  %953 = vmatpush.bf16.msra.mxu0 %v688
  %954 = vmatpush.bf16.msra.mxu0 %v686
  %955 = vmatpush.bf16.msra.mxu0 %v684
  %956 = vmatpush.bf16.msra.mxu0 %v682
  %957 = vmatpush.bf16.msra.mxu0 %v680
  %958 = vmatpush.bf16.msra.mxu0 %v678
  %959 = vmatpush.bf16.msra.mxu0 %v676
  %960 = vmatpush.bf16.msra.mxu0 %v674
  %961 = vmatmul.bf16.gmra.mxu0 %v179
  %v962 = vpop.f32.mrf.mxu0
  %v963 = vadd.f32 %v950, %v962
  %v964 = vpop.f32.mrf.mxu0
  %965 = vdwg.mxu0
  %966 = vmatpush.bf16.msra.mxu0 %v704
  %967 = vmatpush.bf16.msra.mxu0 %v702
  %968 = vmatpush.bf16.msra.mxu0 %v700
  %969 = vmatpush.bf16.msra.mxu0 %v698
  %970 = vmatpush.bf16.msra.mxu0 %v696
  %971 = vmatpush.bf16.msra.mxu0 %v694
  %972 = vmatpush.bf16.msra.mxu0 %v692
  %973 = vmatpush.bf16.msra.mxu0 %v690
  %974 = vmatmul.bf16.gmra.mxu0 %v180
  %v975 = vpop.f32.mrf.mxu0
  %v976 = vadd.f32 %v963, %v975
  %v977 = vpop.f32.mrf.mxu0
  %978 = vdwg.mxu0
  %979 = vmatpush.bf16.msra.mxu0 %v720
  %980 = vmatpush.bf16.msra.mxu0 %v718
  %981 = vmatpush.bf16.msra.mxu0 %v716
  %982 = vmatpush.bf16.msra.mxu0 %v714
  %983 = vmatpush.bf16.msra.mxu0 %v712
  %984 = vmatpush.bf16.msra.mxu0 %v710
  %985 = vmatpush.bf16.msra.mxu0 %v708
  %986 = vmatpush.bf16.msra.mxu0 %v706
  %987 = vmatmul.bf16.gmra.mxu0 %v181
  %v988 = vpop.f32.mrf.mxu0
  %v989 = vadd.f32 %v976, %v988
  %v990 = vpop.f32.mrf.mxu0
  %991 = vdwg.mxu0
  %992 = vmatpush.bf16.msra.mxu0 %v736
  %993 = vmatpush.bf16.msra.mxu0 %v734
  %994 = vmatpush.bf16.msra.mxu0 %v732
  %995 = vmatpush.bf16.msra.mxu0 %v730
  %996 = vmatpush.bf16.msra.mxu0 %v728
  %997 = vmatpush.bf16.msra.mxu0 %v726
  %998 = vmatpush.bf16.msra.mxu0 %v724
  %999 = vmatpush.bf16.msra.mxu0 %v722
  %1000 = vmatmul.bf16.gmra.mxu0 %v182
  %v1001 = vpop.f32.mrf.mxu0
  %v1002 = vadd.f32 %v989, %v1001
  %v1003 = vpop.f32.mrf.mxu0
  %1004 = vdwg.mxu0
  %1005 = vmatpush.bf16.msra.mxu0 %v752
  %1006 = vmatpush.bf16.msra.mxu0 %v750
  %1007 = vmatpush.bf16.msra.mxu0 %v748
  %1008 = vmatpush.bf16.msra.mxu0 %v746
  %1009 = vmatpush.bf16.msra.mxu0 %v744
  %1010 = vmatpush.bf16.msra.mxu0 %v742
  %1011 = vmatpush.bf16.msra.mxu0 %v740
  %1012 = vmatpush.bf16.msra.mxu0 %v738
  %1013 = vmatmul.bf16.gmra.mxu0 %v183
  %v1014 = vpop.f32.mrf.mxu0
  %v1015 = vadd.f32 %v1002, %v1014
  %v1016 = vpop.f32.mrf.mxu0
  %1017 = vdwg.mxu0
  %1018 = vmatpush.bf16.msra.mxu0 %v768
  %1019 = vmatpush.bf16.msra.mxu0 %v766
  %1020 = vmatpush.bf16.msra.mxu0 %v764
  %1021 = vmatpush.bf16.msra.mxu0 %v762
  %1022 = vmatpush.bf16.msra.mxu0 %v760
  %1023 = vmatpush.bf16.msra.mxu0 %v758
  %1024 = vmatpush.bf16.msra.mxu0 %v756
  %1025 = vmatpush.bf16.msra.mxu0 %v754
  %1026 = vmatmul.bf16.gmra.mxu0 %v184
  %v1027 = vpop.f32.mrf.mxu0
  %v1028 = vadd.f32 %v1015, %v1027
  %v1029 = vpop.f32.mrf.mxu0
  %1030 = vdwg.mxu0
  %1031 = vmatpush.bf16.msra.mxu0 %v641
  %1032 = vmatpush.bf16.msra.mxu0 %v639
  %1033 = vmatpush.bf16.msra.mxu0 %v637
  %1034 = vmatpush.bf16.msra.mxu0 %v635
  %1035 = vmatpush.bf16.msra.mxu0 %v633
  %1036 = vmatpush.bf16.msra.mxu0 %v631
  %1037 = vmatpush.bf16.msra.mxu0 %v629
  %1038 = vmatpush.bf16.msra.mxu0 %v627
  %1039 = vmatmul.bf16.gmra.mxu0 %v176
  %v1040 = vpop.f32.mrf.mxu0
  %v1041 = vadd.f32 0.0, %v1040
  %v1042 = vpop.f32.mrf.mxu0
  %1043 = vdwg.mxu0
  %1044 = vmatpush.bf16.msra.mxu0 %v657
  %1045 = vmatpush.bf16.msra.mxu0 %v655
  %1046 = vmatpush.bf16.msra.mxu0 %v653
  %1047 = vmatpush.bf16.msra.mxu0 %v651
  %1048 = vmatpush.bf16.msra.mxu0 %v649
  %1049 = vmatpush.bf16.msra.mxu0 %v647
  %1050 = vmatpush.bf16.msra.mxu0 %v645
  %1051 = vmatpush.bf16.msra.mxu0 %v643
  %1052 = vmatmul.bf16.gmra.mxu0 %v177
  %v1053 = vpop.f32.mrf.mxu0
  %v1054 = vadd.f32 %v1041, %v1053
  %v1055 = vpop.f32.mrf.mxu0
  %1056 = vdwg.mxu0
  %1057 = vmatpush.bf16.msra.mxu0 %v673
  %1058 = vmatpush.bf16.msra.mxu0 %v671
  %1059 = vmatpush.bf16.msra.mxu0 %v669
  %1060 = vmatpush.bf16.msra.mxu0 %v667
  %1061 = vmatpush.bf16.msra.mxu0 %v665
  %1062 = vmatpush.bf16.msra.mxu0 %v663
  %1063 = vmatpush.bf16.msra.mxu0 %v661
  %1064 = vmatpush.bf16.msra.mxu0 %v659
  %1065 = vmatmul.bf16.gmra.mxu0 %v178
  %v1066 = vpop.f32.mrf.mxu0
  %v1067 = vadd.f32 %v1054, %v1066
  %v1068 = vpop.f32.mrf.mxu0
  %1069 = vdwg.mxu0
  %1070 = vmatpush.bf16.msra.mxu0 %v689
  %1071 = vmatpush.bf16.msra.mxu0 %v687
  %1072 = vmatpush.bf16.msra.mxu0 %v685
  %1073 = vmatpush.bf16.msra.mxu0 %v683
  %1074 = vmatpush.bf16.msra.mxu0 %v681
  %1075 = vmatpush.bf16.msra.mxu0 %v679
  %1076 = vmatpush.bf16.msra.mxu0 %v677
  %1077 = vmatpush.bf16.msra.mxu0 %v675
  %1078 = vmatmul.bf16.gmra.mxu0 %v179
  %v1079 = vpop.f32.mrf.mxu0
  %v1080 = vadd.f32 %v1067, %v1079
  %v1081 = vpop.f32.mrf.mxu0
  %1082 = vdwg.mxu0
  %1083 = vmatpush.bf16.msra.mxu0 %v705
  %1084 = vmatpush.bf16.msra.mxu0 %v703
  %1085 = vmatpush.bf16.msra.mxu0 %v701
  %1086 = vmatpush.bf16.msra.mxu0 %v699
  %1087 = vmatpush.bf16.msra.mxu0 %v697
  %1088 = vmatpush.bf16.msra.mxu0 %v695
  %1089 = vmatpush.bf16.msra.mxu0 %v693
  %1090 = vmatpush.bf16.msra.mxu0 %v691
  %1091 = vmatmul.bf16.gmra.mxu0 %v180
  %v1092 = vpop.f32.mrf.mxu0
  %v1093 = vadd.f32 %v1080, %v1092
  %v1094 = vpop.f32.mrf.mxu0
  %1095 = vdwg.mxu0
  %1096 = vmatpush.bf16.msra.mxu0 %v721
  %1097 = vmatpush.bf16.msra.mxu0 %v719
  %1098 = vmatpush.bf16.msra.mxu0 %v717
  %1099 = vmatpush.bf16.msra.mxu0 %v715
  %1100 = vmatpush.bf16.msra.mxu0 %v713
  %1101 = vmatpush.bf16.msra.mxu0 %v711
  %1102 = vmatpush.bf16.msra.mxu0 %v709
  %1103 = vmatpush.bf16.msra.mxu0 %v707
  %1104 = vmatmul.bf16.gmra.mxu0 %v181
  %v1105 = vpop.f32.mrf.mxu0
  %v1106 = vadd.f32 %v1093, %v1105
  %v1107 = vpop.f32.mrf.mxu0
  %1108 = vdwg.mxu0
  %1109 = vmatpush.bf16.msra.mxu0 %v737
  %1110 = vmatpush.bf16.msra.mxu0 %v735
  %1111 = vmatpush.bf16.msra.mxu0 %v733
  %1112 = vmatpush.bf16.msra.mxu0 %v731
  %1113 = vmatpush.bf16.msra.mxu0 %v729
  %1114 = vmatpush.bf16.msra.mxu0 %v727
  %1115 = vmatpush.bf16.msra.mxu0 %v725
  %1116 = vmatpush.bf16.msra.mxu0 %v723
  %1117 = vmatmul.bf16.gmra.mxu0 %v182
  %v1118 = vpop.f32.mrf.mxu0
  %v1119 = vadd.f32 %v1106, %v1118
  %v1120 = vpop.f32.mrf.mxu0
  %1121 = vdwg.mxu0
  %1122 = vmatpush.bf16.msra.mxu0 %v753
  %1123 = vmatpush.bf16.msra.mxu0 %v751
  %1124 = vmatpush.bf16.msra.mxu0 %v749
  %1125 = vmatpush.bf16.msra.mxu0 %v747
  %1126 = vmatpush.bf16.msra.mxu0 %v745
  %1127 = vmatpush.bf16.msra.mxu0 %v743
  %1128 = vmatpush.bf16.msra.mxu0 %v741
  %1129 = vmatpush.bf16.msra.mxu0 %v739
  %1130 = vmatmul.bf16.gmra.mxu0 %v183
  %v1131 = vpop.f32.mrf.mxu0
  %v1132 = vadd.f32 %v1119, %v1131
  %v1133 = vpop.f32.mrf.mxu0
  %1134 = vdwg.mxu0
  %1135 = vmatpush.bf16.msra.mxu0 %v769
  %1136 = vmatpush.bf16.msra.mxu0 %v767
  %1137 = vmatpush.bf16.msra.mxu0 %v765
  %1138 = vmatpush.bf16.msra.mxu0 %v763
  %1139 = vmatpush.bf16.msra.mxu0 %v761
  %1140 = vmatpush.bf16.msra.mxu0 %v759
  %1141 = vmatpush.bf16.msra.mxu0 %v757
  %1142 = vmatpush.bf16.msra.mxu0 %v755
  %1143 = vmatmul.bf16.gmra.mxu0 %v184
  %v1144 = vpop.f32.mrf.mxu0
  %v1145 = vadd.f32 %v1132, %v1144
  %v1146 = vpop.f32.mrf.mxu0
  %1147 = vdwg.mxu0
  %v1148 = vpack.c.bf16 %v1145, %v1028
  %1149 = vst [vmem:[%s2] sm:$0xff] %v1148
  %s1150 = smul.u32 0, 8
  %v1151 = vlaneseq
  %v1152 = vshrl.u32 %v1151, 7
  %v1153 = vstv %s1150
  %v1154 = vadd.s32 %v1152, %v1153
  %vm1155 = vcmp.lt.s32.totalorder %v1154, 2
  %s1156 = ssub.s32 2, %s1150
  %p1157 = scmp.lt.s32.totalorder %s1156, 8
  %s1158 = scalar_select %p1157, %s1156, 8
  %p1159 = scmp.gt.s32.totalorder %s1158, 1
  %s1160 = scalar_select %p1159, %s1158, 1
  %s1161 = scvt.s32.f32 %s1160
  %v1162 = vsel %vm1155, 1, 0
  %vm1163 = vcmp.eq.s32.totalorder %v1162, 1
  %v1164 = vsel %vm1163, %v1028, 0.0
  %v1165 = vsel %vm1163, %v1145, 0.0
  %v1166 = vrot.slane %v1164, 4
  %v1167 = vadd.f32 %v1164, %v1166
  %v1168 = vrot.slane %v1167, 2
  %v1169 = vadd.f32 %v1167, %v1168
  %v1170 = vrot.slane %v1169, 1
  %v1171 = vadd.f32 %v1169, %v1170
  %v1172 = vrot.slane %v1165, 4
  %v1173 = vadd.f32 %v1165, %v1172
  %v1174 = vrot.slane %v1173, 2
  %v1175 = vadd.f32 %v1173, %v1174
  %v1176 = vrot.slane %v1175, 1
  %v1177 = vadd.f32 %v1175, %v1176
  %v1178 = vstv %s1161
  %v1179 = vrcp.pop %v1178
  %v1180 = vmul.f32 %v1178, %v1179
  %v1181 = vsub.f32 1.0, %v1180
  %v1182 = vmul.f32 %v1179, %v1181
  %v1183 = vadd.f32 %v1179, %v1182
  %vm1184 = vweird.f32 %v1178
  %vm1185 = vweird.f32 %v1179
  %vm1186 = vmor %vm1184, %vm1185
  %v1187 = vsel %vm1186, %v1179, %v1183
  %v1188 = vand.u32 2147483647, %v1178
  %vm1189 = vcmp.eq.f32.partialorder %v1188, 8.507059e+37
  %v1190 = vand.u32 %v1178, 2147483648
  %v1191 = vor.u32 1.1754944e-38, %v1190
  %v1192 = vsel %vm1189, %v1191, %v1187
  %v1193 = vmul.f32 %v1171, %v1192
  %v1194 = vmul.f32 %v1177, %v1192
  %v1195 = vsub.f32 %v1028, %v1193
  %v1196 = vsub.f32 %v1145, %v1194
  %v1197 = vsel %vm1163, %v1195, 0.0
  %v1198 = vsel %vm1163, %v1196, 0.0
  %v1201 = vrot.slane %v1177, 7
  %vm1202 = vcmask 1040384
  %v1203 = vsel %vm1202, %v1171, %v1201
  %v1205 = vlaneseq
  %vm1206 = vcmp.ge.s32.totalorder %v1205, 0
  %vm1207 = vcmp.lt.s32.totalorder %v1205, 256
  %vm1208 = vmand %vm1206, %vm1207
  %1209 = vst.msk [vmem:[%s3] ss:$2 sm:$0x3] %vm1208, %v1203
  %v1210 = vmul.f32 %v1197, %v1197
  %v1211 = vmul.f32 %v1198, %v1198
  %v1212 = vrot.slane %v1210, 4
  %v1213 = vadd.f32 %v1210, %v1212
  %v1214 = vrot.slane %v1213, 2
  %v1215 = vadd.f32 %v1213, %v1214
  %v1216 = vrot.slane %v1215, 1
  %v1217 = vadd.f32 %v1215, %v1216
  %v1218 = vrot.slane %v1211, 4
  %v1219 = vadd.f32 %v1211, %v1218
  %v1220 = vrot.slane %v1219, 2
  %v1221 = vadd.f32 %v1219, %v1220
  %v1222 = vrot.slane %v1221, 1
  %v1223 = vadd.f32 %v1221, %v1222
  %v1226 = vrot.slane %v1223, 7
  %v1227 = vsel %vm1202, %v1217, %v1226
  %s1229 = scalar_lea.vmem %s3, 1
  %1230 = vst.msk [vmem:[%s1229] ss:$2 sm:$0x3] %vm1208, %v1227
  // Predicated region
  $region10: #{darknet10_forward.29} parent=0 // pred_check
    _
  $region11: #{darknet10_forward.29} parent=0 // pred_check_branch
    %1232 = sbr.rel (0) target = $region13
  $region12: #{darknet10_forward.29} parent=0 // pred_region
    _
  $region13: #{darknet10_forward.29} parent=0 // pred_fallthru
    _
  // Predicated region
  $region14: #{darknet10_forward.29} parent=0 // pred_check
    _
  $region15: #{darknet10_forward.29} parent=0 // pred_check_branch
    %1234 = sbr.rel (0) target = $region17
  $region16: #{darknet10_forward.29} parent=0 // pred_region
    _
  $region17: #{darknet10_forward.29} parent=0 // pred_fallthru
    _
  // Predicated region
  $region18: #{darknet10_forward.29} parent=0 // pred_check
    _
  $region19: #{darknet10_forward.29} parent=0 // pred_check_branch
    %1236 = sbr.rel (0) target = $region21
  $region20: #{darknet10_forward.29} parent=0 // pred_region
    _
  $region21: #{darknet10_forward.29} parent=0 // pred_fallthru
    _
  // Predicated region
  $region22: #{darknet10_forward.29} parent=0 // pred_check
    _
  $region23: #{darknet10_forward.29} parent=0 // pred_check_branch
    %1238 = sbr.rel (0) target = $region25
  $region24: #{darknet10_forward.29} parent=0 // pred_region
    _
  $region25: #{darknet10_forward.29} parent=0 // pred_fallthru
    _

// kernel: darknet10_forward.31
$region0: #{darknet10_forward.31}
  #allocation0 [shape = 'u32[]', space=smem, size = 0x4, offset = 0x4, fixed_abs, tag = 'smem constant byte address 0x4 - core index']
  #allocation1 [shape = 'u32[72,128]{1,0:T(1,128)}', space=vmem, size = 0x9000, scoped, tag = 'internal scratch']
  %s0 = inlined_call_operand.vmem [shape: bf16[8,256], index: 0, kind: input, shape index: {}]
  %s1 = inlined_call_operand.vmem [shape: bf16[256,128], index: 1, kind: input, shape index: {}]
  %s2 = inlined_call_operand.vmem [shape: bf16[8,128], index: 2, kind: output, shape index: {0}]
  %s3 = inlined_call_operand.vmem [shape: f32[1,2,128], index: 3, kind: output, shape index: {1}]
  %4 = xla_tuple %s2, %s3
  %s5 = sld [smem:[#allocation0]]
  $region26: #{darknet10_forward.31} parent=0
    _
  %s7 = ssub.s32 1, %s5
  %s8 = scalar_select 0, %s7, %s5
  // Predicated region
  $region2: #{darknet10_forward.31} parent=0 // pred_check
    _
  $region3: #{darknet10_forward.31} parent=0 // pred_check_branch
    %10 = sbr.rel (0) target = $region5
  $region4: #{darknet10_forward.31} parent=0 // pred_region
    _
  $region5: #{darknet10_forward.31} parent=0 // pred_fallthru
    _
  // Predicated region
  $region6: #{darknet10_forward.31} parent=0 // pred_check
    _
  $region7: #{darknet10_forward.31} parent=0 // pred_check_branch
    %12 = sbr.rel (0) target = $region9
  $region8: #{darknet10_forward.31} parent=0 // pred_region
    _
  $region9: #{darknet10_forward.31} parent=0 // pred_fallthru
    _
  %v13 = vld [vmem:[%s0] sm:$0xff]
  %v14 = vld [vmem:[%s1] sm:$0xf]
  %v15 = vld [vmem:[%s1 + $0x4] sm:$0xf]
  %v16 = vld [vmem:[%s1 + $0x8] sm:$0xf]
  %v17 = vld [vmem:[%s1 + $0xc] sm:$0xf]
  %v18 = vld [vmem:[%s1 + $0x10] sm:$0xf]
  %v19 = vld [vmem:[%s1 + $0x14] sm:$0xf]
  %v20 = vld [vmem:[%s1 + $0x18] sm:$0xf]
  %v21 = vld [vmem:[%s1 + $0x1c] sm:$0xf]
  %v22 = vld [vmem:[%s1 + $0x20] sm:$0xf]
  %v23 = vld [vmem:[%s1 + $0x24] sm:$0xf]
  %v24 = vld [vmem:[%s1 + $0x28] sm:$0xf]
  %v25 = vld [vmem:[%s1 + $0x2c] sm:$0xf]
  %v26 = vld [vmem:[%s1 + $0x30] sm:$0xf]
  %v27 = vld [vmem:[%s1 + $0x34] sm:$0xf]
  %v28 = vld [vmem:[%s1 + $0x38] sm:$0xf]
  %v29 = vld [vmem:[%s1 + $0x3c] sm:$0xf]
  %v30 = vld [vmem:[%s1 + $0x40] sm:$0xf]
  %v31 = vld [vmem:[%s1 + $0x44] sm:$0xf]
  %v32 = vld [vmem:[%s1 + $0x48] sm:$0xf]
  %v33 = vld [vmem:[%s1 + $0x4c] sm:$0xf]
  %v34 = vld [vmem:[%s1 + $0x50] sm:$0xf]
  %v35 = vld [vmem:[%s1 + $0x54] sm:$0xf]
  %v36 = vld [vmem:[%s1 + $0x58] sm:$0xf]
  %v37 = vld [vmem:[%s1 + $0x5c] sm:$0xf]
  %v38 = vld [vmem:[%s1 + $0x60] sm:$0xf]
  %v39 = vld [vmem:[%s1 + $0x64] sm:$0xf]
  %v40 = vld [vmem:[%s1 + $0x68] sm:$0xf]
  %v41 = vld [vmem:[%s1 + $0x6c] sm:$0xf]
  %v42 = vld [vmem:[%s1 + $0x70] sm:$0xf]
  %v43 = vld [vmem:[%s1 + $0x74] sm:$0xf]
  %v44 = vld [vmem:[%s1 + $0x78] sm:$0xf]
  %v45 = vld [vmem:[%s1 + $0x7c] sm:$0xf]
  %v47 = vunpack.c.l.b16 %v13
  %v48 = vunpack.c.h.b16 %v13
  %v49 = vpack.c.b16 %v47, %v47
  %v50 = vpack.c.b16 %v48, %v48
  %v85 = vunpack.c.l.b16 %v14
  %v86 = vunpack.c.l.b16 %v15
  %v87 = vunpack.c.l.b16 %v16
  %v88 = vunpack.c.l.b16 %v17
  %v89 = vunpack.c.l.b16 %v18
  %v90 = vunpack.c.l.b16 %v19
  %v91 = vunpack.c.l.b16 %v20
  %v92 = vunpack.c.l.b16 %v21
  %v93 = vunpack.c.l.b16 %v22
  %v94 = vunpack.c.l.b16 %v23
  %v95 = vunpack.c.l.b16 %v24
  %v96 = vunpack.c.l.b16 %v25
  %v97 = vunpack.c.l.b16 %v26
  %v98 = vunpack.c.l.b16 %v27
  %v99 = vunpack.c.l.b16 %v28
  %v100 = vunpack.c.l.b16 %v29
  %v101 = vunpack.c.l.b16 %v30
  %v102 = vunpack.c.l.b16 %v31
  %v103 = vunpack.c.l.b16 %v32
  %v104 = vunpack.c.l.b16 %v33
  %v105 = vunpack.c.l.b16 %v34
  %v106 = vunpack.c.l.b16 %v35
  %v107 = vunpack.c.l.b16 %v36
  %v108 = vunpack.c.l.b16 %v37
  %v109 = vunpack.c.l.b16 %v38
  %v110 = vunpack.c.l.b16 %v39
  %v111 = vunpack.c.l.b16 %v40
  %v112 = vunpack.c.l.b16 %v41
  %v113 = vunpack.c.l.b16 %v42
  %v114 = vunpack.c.l.b16 %v43
  %v115 = vunpack.c.l.b16 %v44
  %v116 = vunpack.c.l.b16 %v45
  %v117 = vpack.c.b16 %v86, %v85
  %v118 = vpack.c.b16 %v88, %v87
  %v119 = vpack.c.b16 %v90, %v89
  %v120 = vpack.c.b16 %v92, %v91
  %v121 = vpack.c.b16 %v94, %v93
  %v122 = vpack.c.b16 %v96, %v95
  %v123 = vpack.c.b16 %v98, %v97
  %v124 = vpack.c.b16 %v100, %v99
  %v125 = vpack.c.b16 %v102, %v101
  %v126 = vpack.c.b16 %v104, %v103
  %v127 = vpack.c.b16 %v106, %v105
  %v128 = vpack.c.b16 %v108, %v107
  %v129 = vpack.c.b16 %v110, %v109
  %v130 = vpack.c.b16 %v112, %v111
  %v131 = vpack.c.b16 %v114, %v113
  %v132 = vpack.c.b16 %v116, %v115
  %149 = vmatpush.bf16.msra.mxu0 %v124
  %150 = vmatpush.bf16.msra.mxu0 %v123
  %151 = vmatpush.bf16.msra.mxu0 %v122
  %152 = vmatpush.bf16.msra.mxu0 %v121
  %153 = vmatpush.bf16.msra.mxu0 %v120
  %154 = vmatpush.bf16.msra.mxu0 %v119
  %155 = vmatpush.bf16.msra.mxu0 %v118
  %156 = vmatpush.bf16.msra.mxu0 %v117
  %157 = vmatmul.bf16.gmra.mxu0 %v49
  %v158 = vpop.f32.mrf.mxu0
  %v159 = vadd.f32 0.0, %v158
  %v160 = vpop.f32.mrf.mxu0
  %161 = vdwg.mxu0
  %162 = vmatpush.bf16.msra.mxu0 %v132
  %163 = vmatpush.bf16.msra.mxu0 %v131
  %164 = vmatpush.bf16.msra.mxu0 %v130
  %165 = vmatpush.bf16.msra.mxu0 %v129
  %166 = vmatpush.bf16.msra.mxu0 %v128
  %167 = vmatpush.bf16.msra.mxu0 %v127
  %168 = vmatpush.bf16.msra.mxu0 %v126
  %169 = vmatpush.bf16.msra.mxu0 %v125
  %170 = vmatmul.bf16.gmra.mxu0 %v50
  %v171 = vpop.f32.mrf.mxu0
  %v172 = vadd.f32 %v159, %v171
  %v173 = vpop.f32.mrf.mxu0
  %174 = vdwg.mxu0
  %v175 = vpack.c.bf16 %v172, %v172
  %176 = vst [vmem:[%s2] sm:$0xf] %v175
  %s177 = smul.u32 0, 8
  %v178 = vlaneseq
  %v179 = vshrl.u32 %v178, 7
  %v180 = vstv %s177
  %v181 = vadd.s32 %v179, %v180
  %vm182 = vcmp.lt.s32.totalorder %v181, 2
  %s183 = ssub.s32 2, %s177
  %p184 = scmp.lt.s32.totalorder %s183, 8
  %s185 = scalar_select %p184, %s183, 8
  %p186 = scmp.gt.s32.totalorder %s185, 1
  %s187 = scalar_select %p186, %s185, 1
  %s188 = scvt.s32.f32 %s187
  %v189 = vsel %vm182, 1, 0
  %vm190 = vcmp.eq.s32.totalorder %v189, 1
  %v191 = vsel %vm190, %v172, 0.0
  %v192 = vrot.slane %v191, 4
  %v193 = vadd.f32 %v191, %v192
  %v194 = vrot.slane %v193, 2
  %v195 = vadd.f32 %v193, %v194
  %v196 = vrot.slane %v195, 1
  %v197 = vadd.f32 %v195, %v196
  %v198 = vstv %s188
  %v199 = vrcp.pop %v198
  %v200 = vmul.f32 %v198, %v199
  %v201 = vsub.f32 1.0, %v200
  %v202 = vmul.f32 %v199, %v201
  %v203 = vadd.f32 %v199, %v202
  %vm204 = vweird.f32 %v198
  %vm205 = vweird.f32 %v199
  %vm206 = vmor %vm204, %vm205
  %v207 = vsel %vm206, %v199, %v203
  %v208 = vand.u32 2147483647, %v198
  %vm209 = vcmp.eq.f32.partialorder %v208, 8.507059e+37
  %v210 = vand.u32 %v198, 2147483648
  %v211 = vor.u32 1.1754944e-38, %v210
  %v212 = vsel %vm209, %v211, %v207
  %v213 = vmul.f32 %v197, %v212
  %v214 = vsub.f32 %v172, %v213
  %v215 = vsel %vm190, %v214, 0.0
  %216 = vst [vmem:[%s3] sm:$0x1] %v197
  %v217 = vmul.f32 %v215, %v215
  %v218 = vrot.slane %v217, 4
  %v219 = vadd.f32 %v217, %v218
  %v220 = vrot.slane %v219, 2
  %v221 = vadd.f32 %v219, %v220
  %v222 = vrot.slane %v221, 1
  %v223 = vadd.f32 %v221, %v222
  %224 = vst [vmem:[%s3 + $0x1] sm:$0x1] %v223
  // Predicated region
  $region10: #{darknet10_forward.31} parent=0 // pred_check
    _
  $region11: #{darknet10_forward.31} parent=0 // pred_check_branch
    %226 = sbr.rel (0) target = $region13
  $region12: #{darknet10_forward.31} parent=0 // pred_region
    _
  $region13: #{darknet10_forward.31} parent=0 // pred_fallthru
    _
  // Predicated region
  $region14: #{darknet10_forward.31} parent=0 // pred_check
    _
  $region15: #{darknet10_forward.31} parent=0 // pred_check_branch
    %228 = sbr.rel (0) target = $region17
  $region16: #{darknet10_forward.31} parent=0 // pred_region
    _
  $region17: #{darknet10_forward.31} parent=0 // pred_fallthru
    _
  // Predicated region
  $region18: #{darknet10_forward.31} parent=0 // pred_check
    _
  $region19: #{darknet10_forward.31} parent=0 // pred_check_branch
    %230 = sbr.rel (0) target = $region21
  $region20: #{darknet10_forward.31} parent=0 // pred_region
    _
  $region21: #{darknet10_forward.31} parent=0 // pred_fallthru
    _
  // Predicated region
  $region22: #{darknet10_forward.31} parent=0 // pred_check
    _
  $region23: #{darknet10_forward.31} parent=0 // pred_check_branch
    %232 = sbr.rel (0) target = $region25
  $region24: #{darknet10_forward.31} parent=0 // pred_region
    _
  $region25: #{darknet10_forward.31} parent=0 // pred_fallthru
    _

// kernel: darknet10_forward.33
$region0: #{darknet10_forward.33}
  #allocation0 [shape = 'u32[]', space=smem, size = 0x4, offset = 0x4, fixed_abs, tag = 'smem constant byte address 0x4 - core index']
  #allocation1 [shape = 'u32[72,128]{1,0:T(1,128)}', space=vmem, size = 0x9000, scoped, tag = 'internal scratch']
  %s0 = inlined_call_operand.vmem [shape: bf16[8,256], index: 0, kind: input, shape index: {}]
  %s1 = inlined_call_operand.vmem [shape: bf16[256,128], index: 1, kind: input, shape index: {}]
  %s2 = inlined_call_operand.vmem [shape: bf16[8,128], index: 2, kind: output, shape index: {0}]
  %s3 = inlined_call_operand.vmem [shape: f32[1,2,128], index: 3, kind: output, shape index: {1}]
  %4 = xla_tuple %s2, %s3
  %s5 = sld [smem:[#allocation0]]
  $region26: #{darknet10_forward.33} parent=0
    _
  %s7 = ssub.s32 1, %s5
  %s8 = scalar_select 0, %s7, %s5
  // Predicated region
  $region2: #{darknet10_forward.33} parent=0 // pred_check
    _
  $region3: #{darknet10_forward.33} parent=0 // pred_check_branch
    %10 = sbr.rel (0) target = $region5
  $region4: #{darknet10_forward.33} parent=0 // pred_region
    _
  $region5: #{darknet10_forward.33} parent=0 // pred_fallthru
    _
  // Predicated region
  $region6: #{darknet10_forward.33} parent=0 // pred_check
    _
  $region7: #{darknet10_forward.33} parent=0 // pred_check_branch
    %12 = sbr.rel (0) target = $region9
  $region8: #{darknet10_forward.33} parent=0 // pred_region
    _
  $region9: #{darknet10_forward.33} parent=0 // pred_fallthru
    _
  %v13 = vld [vmem:[%s0] sm:$0xff]
  %v14 = vld [vmem:[%s1] sm:$0xf]
  %v15 = vld [vmem:[%s1 + $0x4] sm:$0xf]
  %v16 = vld [vmem:[%s1 + $0x8] sm:$0xf]
  %v17 = vld [vmem:[%s1 + $0xc] sm:$0xf]
  %v18 = vld [vmem:[%s1 + $0x10] sm:$0xf]
  %v19 = vld [vmem:[%s1 + $0x14] sm:$0xf]
  %v20 = vld [vmem:[%s1 + $0x18] sm:$0xf]
  %v21 = vld [vmem:[%s1 + $0x1c] sm:$0xf]
  %v22 = vld [vmem:[%s1 + $0x20] sm:$0xf]
  %v23 = vld [vmem:[%s1 + $0x24] sm:$0xf]
  %v24 = vld [vmem:[%s1 + $0x28] sm:$0xf]
  %v25 = vld [vmem:[%s1 + $0x2c] sm:$0xf]
  %v26 = vld [vmem:[%s1 + $0x30] sm:$0xf]
  %v27 = vld [vmem:[%s1 + $0x34] sm:$0xf]
  %v28 = vld [vmem:[%s1 + $0x38] sm:$0xf]
  %v29 = vld [vmem:[%s1 + $0x3c] sm:$0xf]
  %v30 = vld [vmem:[%s1 + $0x40] sm:$0xf]
  %v31 = vld [vmem:[%s1 + $0x44] sm:$0xf]
  %v32 = vld [vmem:[%s1 + $0x48] sm:$0xf]
  %v33 = vld [vmem:[%s1 + $0x4c] sm:$0xf]
  %v34 = vld [vmem:[%s1 + $0x50] sm:$0xf]
  %v35 = vld [vmem:[%s1 + $0x54] sm:$0xf]
  %v36 = vld [vmem:[%s1 + $0x58] sm:$0xf]
  %v37 = vld [vmem:[%s1 + $0x5c] sm:$0xf]
  %v38 = vld [vmem:[%s1 + $0x60] sm:$0xf]
  %v39 = vld [vmem:[%s1 + $0x64] sm:$0xf]
  %v40 = vld [vmem:[%s1 + $0x68] sm:$0xf]
  %v41 = vld [vmem:[%s1 + $0x6c] sm:$0xf]
  %v42 = vld [vmem:[%s1 + $0x70] sm:$0xf]
  %v43 = vld [vmem:[%s1 + $0x74] sm:$0xf]
  %v44 = vld [vmem:[%s1 + $0x78] sm:$0xf]
  %v45 = vld [vmem:[%s1 + $0x7c] sm:$0xf]
  %v47 = vunpack.c.l.b16 %v13
  %v48 = vunpack.c.h.b16 %v13
  %v49 = vpack.c.b16 %v47, %v47
  %v50 = vpack.c.b16 %v48, %v48
  %v85 = vunpack.c.l.b16 %v14
  %v86 = vunpack.c.l.b16 %v15
  %v87 = vunpack.c.l.b16 %v16
  %v88 = vunpack.c.l.b16 %v17
  %v89 = vunpack.c.l.b16 %v18
  %v90 = vunpack.c.l.b16 %v19
  %v91 = vunpack.c.l.b16 %v20
  %v92 = vunpack.c.l.b16 %v21
  %v93 = vunpack.c.l.b16 %v22
  %v94 = vunpack.c.l.b16 %v23
  %v95 = vunpack.c.l.b16 %v24
  %v96 = vunpack.c.l.b16 %v25
  %v97 = vunpack.c.l.b16 %v26
  %v98 = vunpack.c.l.b16 %v27
  %v99 = vunpack.c.l.b16 %v28
  %v100 = vunpack.c.l.b16 %v29
  %v101 = vunpack.c.l.b16 %v30
  %v102 = vunpack.c.l.b16 %v31
  %v103 = vunpack.c.l.b16 %v32
  %v104 = vunpack.c.l.b16 %v33
  %v105 = vunpack.c.l.b16 %v34
  %v106 = vunpack.c.l.b16 %v35
  %v107 = vunpack.c.l.b16 %v36
  %v108 = vunpack.c.l.b16 %v37
  %v109 = vunpack.c.l.b16 %v38
  %v110 = vunpack.c.l.b16 %v39
  %v111 = vunpack.c.l.b16 %v40
  %v112 = vunpack.c.l.b16 %v41
  %v113 = vunpack.c.l.b16 %v42
  %v114 = vunpack.c.l.b16 %v43
  %v115 = vunpack.c.l.b16 %v44
  %v116 = vunpack.c.l.b16 %v45
  %v117 = vpack.c.b16 %v86, %v85
  %v118 = vpack.c.b16 %v88, %v87
  %v119 = vpack.c.b16 %v90, %v89
  %v120 = vpack.c.b16 %v92, %v91
  %v121 = vpack.c.b16 %v94, %v93
  %v122 = vpack.c.b16 %v96, %v95
  %v123 = vpack.c.b16 %v98, %v97
  %v124 = vpack.c.b16 %v100, %v99
  %v125 = vpack.c.b16 %v102, %v101
  %v126 = vpack.c.b16 %v104, %v103
  %v127 = vpack.c.b16 %v106, %v105
  %v128 = vpack.c.b16 %v108, %v107
  %v129 = vpack.c.b16 %v110, %v109
  %v130 = vpack.c.b16 %v112, %v111
  %v131 = vpack.c.b16 %v114, %v113
  %v132 = vpack.c.b16 %v116, %v115
  %149 = vmatpush.bf16.msra.mxu0 %v124
  %150 = vmatpush.bf16.msra.mxu0 %v123
  %151 = vmatpush.bf16.msra.mxu0 %v122
  %152 = vmatpush.bf16.msra.mxu0 %v121
  %153 = vmatpush.bf16.msra.mxu0 %v120
  %154 = vmatpush.bf16.msra.mxu0 %v119
  %155 = vmatpush.bf16.msra.mxu0 %v118
  %156 = vmatpush.bf16.msra.mxu0 %v117
  %157 = vmatmul.bf16.gmra.mxu0 %v49
  %v158 = vpop.f32.mrf.mxu0
  %v159 = vadd.f32 0.0, %v158
  %v160 = vpop.f32.mrf.mxu0
  %161 = vdwg.mxu0
  %162 = vmatpush.bf16.msra.mxu0 %v132
  %163 = vmatpush.bf16.msra.mxu0 %v131
  %164 = vmatpush.bf16.msra.mxu0 %v130
  %165 = vmatpush.bf16.msra.mxu0 %v129
  %166 = vmatpush.bf16.msra.mxu0 %v128
  %167 = vmatpush.bf16.msra.mxu0 %v127
  %168 = vmatpush.bf16.msra.mxu0 %v126
  %169 = vmatpush.bf16.msra.mxu0 %v125
  %170 = vmatmul.bf16.gmra.mxu0 %v50
  %v171 = vpop.f32.mrf.mxu0
  %v172 = vadd.f32 %v159, %v171
  %v173 = vpop.f32.mrf.mxu0
  %174 = vdwg.mxu0
  %v175 = vpack.c.bf16 %v172, %v172
  %176 = vst [vmem:[%s2] sm:$0xf] %v175
  %s177 = smul.u32 0, 8
  %v178 = vlaneseq
  %v179 = vshrl.u32 %v178, 7
  %v180 = vstv %s177
  %v181 = vadd.s32 %v179, %v180
  %vm182 = vcmp.lt.s32.totalorder %v181, 8
  %s183 = ssub.s32 8, %s177
  %p184 = scmp.lt.s32.totalorder %s183, 8
  %s185 = scalar_select %p184, %s183, 8
  %p186 = scmp.gt.s32.totalorder %s185, 1
  %s187 = scalar_select %p186, %s185, 1
  %s188 = scvt.s32.f32 %s187
  %v189 = vsel %vm182, 1, 0
  %vm190 = vcmp.eq.s32.totalorder %v189, 1
  %v191 = vsel %vm190, %v172, 0.0
  %v192 = vrot.slane %v191, 4
  %v193 = vadd.f32 %v191, %v192
  %v194 = vrot.slane %v193, 2
  %v195 = vadd.f32 %v193, %v194
  %v196 = vrot.slane %v195, 1
  %v197 = vadd.f32 %v195, %v196
  %v198 = vstv %s188
  %v199 = vrcp.pop %v198
  %v200 = vmul.f32 %v198, %v199
  %v201 = vsub.f32 1.0, %v200
  %v202 = vmul.f32 %v199, %v201
  %v203 = vadd.f32 %v199, %v202
  %vm204 = vweird.f32 %v198
  %vm205 = vweird.f32 %v199
  %vm206 = vmor %vm204, %vm205
  %v207 = vsel %vm206, %v199, %v203
  %v208 = vand.u32 2147483647, %v198
  %vm209 = vcmp.eq.f32.partialorder %v208, 8.507059e+37
  %v210 = vand.u32 %v198, 2147483648
  %v211 = vor.u32 1.1754944e-38, %v210
  %v212 = vsel %vm209, %v211, %v207
  %v213 = vmul.f32 %v197, %v212
  %v214 = vsub.f32 %v172, %v213
  %v215 = vsel %vm190, %v214, 0.0
  %216 = vst [vmem:[%s3] sm:$0x1] %v197
  %v217 = vmul.f32 %v215, %v215
  %v218 = vrot.slane %v217, 4
  %v219 = vadd.f32 %v217, %v218
  %v220 = vrot.slane %v219, 2
  %v221 = vadd.f32 %v219, %v220
  %v222 = vrot.slane %v221, 1
  %v223 = vadd.f32 %v221, %v222
  %224 = vst [vmem:[%s3 + $0x1] sm:$0x1] %v223
  // Predicated region
  $region10: #{darknet10_forward.33} parent=0 // pred_check
    _
  $region11: #{darknet10_forward.33} parent=0 // pred_check_branch
    %226 = sbr.rel (0) target = $region13
  $region12: #{darknet10_forward.33} parent=0 // pred_region
    _
  $region13: #{darknet10_forward.33} parent=0 // pred_fallthru
    _
  // Predicated region
  $region14: #{darknet10_forward.33} parent=0 // pred_check
    _
  $region15: #{darknet10_forward.33} parent=0 // pred_check_branch
    %228 = sbr.rel (0) target = $region17
  $region16: #{darknet10_forward.33} parent=0 // pred_region
    _
  $region17: #{darknet10_forward.33} parent=0 // pred_fallthru
    _
  // Predicated region
  $region18: #{darknet10_forward.33} parent=0 // pred_check
    _
  $region19: #{darknet10_forward.33} parent=0 // pred_check_branch
    %230 = sbr.rel (0) target = $region21
  $region20: #{darknet10_forward.33} parent=0 // pred_region
    _
  $region21: #{darknet10_forward.33} parent=0 // pred_fallthru
    _
  // Predicated region
  $region22: #{darknet10_forward.33} parent=0 // pred_check
    _
  $region23: #{darknet10_forward.33} parent=0 // pred_check_branch
    %232 = sbr.rel (0) target = $region25
  $region24: #{darknet10_forward.33} parent=0 // pred_region
    _
  $region25: #{darknet10_forward.33} parent=0 // pred_fallthru
    _

// kernel: darknet10_forward.37
$region0: #{darknet10_forward.37}
  #allocation0 [shape = 'u32[]', space=smem, size = 0x4, offset = 0x4, fixed_abs, tag = 'smem constant byte address 0x4 - core index']
  #allocation1 [shape = 'u32[72,128]{1,0:T(1,128)}', space=vmem, size = 0x9000, scoped, tag = 'internal scratch']
  %s0 = inlined_call_operand.vmem [shape: bf16[32,64], index: 0, kind: input, shape index: {}]
  %s1 = inlined_call_operand.vmem [shape: bf16[64,128], index: 1, kind: input, shape index: {}]
  %s2 = inlined_call_operand.vmem [shape: f32[1,128], index: 2, kind: input, shape index: {}]
  %s3 = inlined_call_operand.vmem [shape: f32[32,128], index: 3, kind: output, shape index: {}]
  %s4 = sld [smem:[#allocation0]]
  $region45: #{darknet10_forward.37} parent=0
    _
  %s6 = ssub.s32 1, %s4
  %s7 = scalar_select 0, %s6, %s4
  loop: start=0, step=1, limit=4
  $region2: #{darknet10_forward.37} parent=0 // loop_pre_header
    _
  $region3: #{darknet10_forward.37} parent=0 // loop_header
    %s9 = sphi 0, %s13
    %p10 = scmp.ge.s32.totalorder %s9, 4
    %s19 = sphi 0, %s21
    %s22 = sphi 0, %s19
    %s23 = sphi 0, %s22
    %s39 = sphi 0, %s23
    %s43 = sphi 0, %s43
    %s45 = sphi 0, %s43
    %s46 = sphi 0, %s45
    %s60 = sphi 0, %s46
    %s64 = sphi 0, %s64
    %s66 = sphi 0, %s64
    %s67 = sphi 0, %s66
    %s81 = sphi 0, %s67
    %s87 = sphi 0, %s89
    %s90 = sphi 0, %s87
    %s91 = sphi 0, %s90
    %s107 = sphi 0, %s91
  $region4: #{darknet10_forward.37} parent=0 // loop_header_branch
    %12 = sbr.rel (%p10) target = $region8
  $region5: #{darknet10_forward.37} parent=0 // loop_body
    %s14 = ssub.s32 %s9, 1
    %s15 = ssub.s32 %s9, 2
    %s16 = sadd.s32 %s9, 1
    %s17 = ssub.s32 %s9, %s16
    %p18 = scmp.eq.s32.totalorder %s17, 0
    %s20 = sadd.s32 %s19, 1
    %s21 = scalar_select %p18, %s19, %s20
    %p24 = pneg %p18
    %p25 = scmp.eq.s32.totalorder %s9, 1
    %p26 = por %p24, %p25
    %p27 = scmp.ne.s32.totalorder %s19, %s22
    %p28 = scmp.eq.s32.totalorder %s9, 0
    %p29 = por %p27, %p28
    %p30 = scmp.ne.s32.totalorder %s19, %s22
    %p31 = scmp.eq.s32.totalorder %s14, 1
    %p32 = por %p30, %p31
    %p33 = scmp.ne.s32.totalorder %s22, %s23
    %p34 = scmp.eq.s32.totalorder %s14, 0
    %p35 = por %p33, %p34
    %p36 = scmp.ne.s32.totalorder %s22, %s23
    %p37 = scmp.eq.s32.totalorder %s15, 1
    %p38 = por %p36, %p37
    %p40 = scmp.ne.s32.totalorder %s23, %s39
    %p41 = scmp.eq.s32.totalorder %s15, 0
    %p42 = por %p40, %p41
    %s44 = sadd.s32 %s43, 1
    %p47 = scmp.eq.s32.totalorder %s9, 1
    %p48 = scmp.ne.s32.totalorder %s43, %s45
    %p49 = scmp.eq.s32.totalorder %s9, 0
    %p50 = por %p48, %p49
    %p51 = scmp.ne.s32.totalorder %s43, %s45
    %p52 = scmp.eq.s32.totalorder %s14, 1
    %p53 = por %p51, %p52
    %p54 = scmp.ne.s32.totalorder %s45, %s46
    %p55 = scmp.eq.s32.totalorder %s14, 0
    %p56 = por %p54, %p55
    %p57 = scmp.ne.s32.totalorder %s45, %s46
    %p58 = scmp.eq.s32.totalorder %s15, 1
    %p59 = por %p57, %p58
    %p61 = scmp.ne.s32.totalorder %s46, %s60
    %p62 = scmp.eq.s32.totalorder %s15, 0
    %p63 = por %p61, %p62
    %s65 = sadd.s32 %s64, 1
    %p68 = scmp.eq.s32.totalorder %s9, 1
    %p69 = scmp.ne.s32.totalorder %s64, %s66
    %p70 = scmp.eq.s32.totalorder %s9, 0
    %p71 = por %p69, %p70
    %p72 = scmp.ne.s32.totalorder %s64, %s66
    %p73 = scmp.eq.s32.totalorder %s14, 1
    %p74 = por %p72, %p73
    %p75 = scmp.ne.s32.totalorder %s66, %s67
    %p76 = scmp.eq.s32.totalorder %s14, 0
    %p77 = por %p75, %p76
    %p78 = scmp.ne.s32.totalorder %s66, %s67
    %p79 = scmp.eq.s32.totalorder %s15, 1
    %p80 = por %p78, %p79
    %p82 = scmp.ne.s32.totalorder %s67, %s81
    %p83 = scmp.eq.s32.totalorder %s15, 0
    %p84 = por %p82, %p83
    %s85 = ssub.s32 %s9, %s16
    %p86 = scmp.eq.s32.totalorder %s85, 0
    %s88 = sadd.s32 %s87, 1
    %s89 = scalar_select %p86, %s87, %s88
    %p92 = pneg %p86
    %p93 = scmp.eq.s32.totalorder %s9, 1
    %p94 = por %p92, %p93
    %p95 = scmp.ne.s32.totalorder %s87, %s90
    %p96 = scmp.eq.s32.totalorder %s9, 0
    %p97 = por %p95, %p96
    %p98 = scmp.ne.s32.totalorder %s87, %s90
    %p99 = scmp.eq.s32.totalorder %s14, 1
    %p100 = por %p98, %p99
    %p101 = scmp.ne.s32.totalorder %s90, %s91
    %p102 = scmp.eq.s32.totalorder %s14, 0
    %p103 = por %p101, %p102
    %p104 = scmp.ne.s32.totalorder %s90, %s91
    %p105 = scmp.eq.s32.totalorder %s15, 1
    %p106 = por %p104, %p105
    %p108 = scmp.ne.s32.totalorder %s91, %s107
    %p109 = scmp.eq.s32.totalorder %s15, 0
    %p110 = por %p108, %p109
    %p111 = scmp.le.s32.totalorder 1, %s9
    %p112 = scmp.lt.s32.totalorder %s9, 3
    %p113 = pnand %p111, %p112
    %p114 = pneg %p113
    // Predicated region
    $region9: #{darknet10_forward.37} parent=5 // pred_check
      _
    $region10: #{darknet10_forward.37} parent=5 // pred_check_branch
      %116 = sbr.rel (%p113) target = $region12
    $region11: #{darknet10_forward.37} parent=5 // pred_region
      %s117 = ssub.s32 %s9, 1
      // Predicated region
      $region13: #{darknet10_forward.37} parent=11 // pred_check
        %p118 = pneg %p56
      $region14: #{darknet10_forward.37} parent=11 // pred_check_branch
        %120 = sbr.rel (%p118) target = $region16
      $region15: #{darknet10_forward.37} parent=11 // pred_region
        _
      $region16: #{darknet10_forward.37} parent=11 // pred_fallthru
        _
      // Predicated region
      $region17: #{darknet10_forward.37} parent=11 // pred_check
        %p121 = pneg %p77
      $region18: #{darknet10_forward.37} parent=11 // pred_check_branch
        %123 = sbr.rel (%p121) target = $region20
      $region19: #{darknet10_forward.37} parent=11 // pred_region
        _
      $region20: #{darknet10_forward.37} parent=11 // pred_fallthru
        _
    $region12: #{darknet10_forward.37} parent=5 // pred_fallthru
      _
    %p124 = scmp.lt.s32.totalorder %s9, 2
    // Predicated region
    $region21: #{darknet10_forward.37} parent=5 // pred_check
      %p125 = pneg %p124
    $region22: #{darknet10_forward.37} parent=5 // pred_check_branch
      %127 = sbr.rel (%p125) target = $region24
    $region23: #{darknet10_forward.37} parent=5 // pred_region
      // Predicated region
      $region25: #{darknet10_forward.37} parent=23 // pred_check
        %p128 = pneg %p29
      $region26: #{darknet10_forward.37} parent=23 // pred_check_branch
        %130 = sbr.rel (%p128) target = $region28
      $region27: #{darknet10_forward.37} parent=23 // pred_region
        %s131 = smul.u32 2, %s9
        %p132 = scmp.lt.s32.totalorder %s131, 3
        %s133 = scalar_select %p132, %s131, 3
        %s134 = smul.addr %s133, 4
        %s135 = scalar_lea.vmem %s0, %s134
        %s136 = smul.u32 2, %s9
      $region28: #{darknet10_forward.37} parent=23 // pred_fallthru
        _
    $region24: #{darknet10_forward.37} parent=5 // pred_fallthru
      _
    %p137 = scmp.le.s32.totalorder 1, %s9
    %p138 = scmp.lt.s32.totalorder %s9, 3
    %p139 = pnand %p137, %p138
    %p140 = pneg %p139
    // Predicated region
    $region29: #{darknet10_forward.37} parent=5 // pred_check
      _
    $region30: #{darknet10_forward.37} parent=5 // pred_check_branch
      %142 = sbr.rel (%p139) target = $region32
    $region31: #{darknet10_forward.37} parent=5 // pred_region
      %s143 = ssub.s32 %s9, 1
      %s144 = smul.u32 2, %s14
      %p145 = scmp.lt.s32.totalorder %s144, 3
      %s146 = scalar_select %p145, %s144, 3
      %s147 = smul.addr %s146, 4
      %s148 = scalar_lea.vmem %s0, %s147
      %p149 = pneg %p35
      %p150 = pneg %p32
      %p151 = pneg %p56
      %p152 = pneg %p53
      %p153 = pneg %p77
      %p154 = pneg %p74
      %p155 = pneg %p103
      %p156 = pneg %p100
      %s157 = smul.u32 2, %s14
      %p158 = scmp.lt.s32.totalorder %s157, 3
      %s159 = scalar_select %p158, %s157, 3
      %s160 = smul.addr %s159, 8
      %s161 = scalar_lea.vmem %s3, %s160
      %s162 = smul.u32 2, %s14
      %p163 = scmp.lt.s32.totalorder %s162, 3
      %s164 = scalar_select %p163, %s162, 3
      %s165 = smul.addr %s164, 4
      %s166 = scalar_lea.vmem %s0, %s165
      %s167 = smul.u32 2, %s14
      %s168 = smul.u32 2, %s14
      %p169 = scmp.lt.s32.totalorder %s168, 3
      %s170 = scalar_select %p169, %s168, 3
      %s171 = smul.addr %s170, 8
      %s172 = scalar_lea.vmem %s3, %s171
      %s173 = smul.u32 2, %s14
      %v175 = vld [vmem:[%s166] sm:$0xf]
      %v176 = vld [vmem:[%s166 + $0x4] sm:$0xf]
      %v177 = vld [vmem:[%s1] sm:$0xf]
      %v178 = vld [vmem:[%s1 + $0x4] sm:$0xf]
      %v179 = vld [vmem:[%s1 + $0x8] sm:$0xf]
      %v180 = vld [vmem:[%s1 + $0xc] sm:$0xf]
      %v181 = vld [vmem:[%s1 + $0x10] sm:$0xf]
      %v182 = vld [vmem:[%s1 + $0x14] sm:$0xf]
      %v183 = vld [vmem:[%s1 + $0x18] sm:$0xf]
      %v184 = vld [vmem:[%s1 + $0x1c] sm:$0xf]
      %v185 = vld [vmem:[%s2] sm:$0x1]
      %v187 = vperm.slane %v185, 0
      %v191 = vunpack.c.l.b16 %v175
      %v192 = vunpack.c.l.b16 %v176
      %v193 = vpack.c.b16 %v192, %v191
      %v202 = vunpack.c.l.b16 %v177
      %v203 = vunpack.c.l.b16 %v178
      %v204 = vunpack.c.l.b16 %v179
      %v205 = vunpack.c.l.b16 %v180
      %v206 = vunpack.c.l.b16 %v181
      %v207 = vunpack.c.l.b16 %v182
      %v208 = vunpack.c.l.b16 %v183
      %v209 = vunpack.c.l.b16 %v184
      %v210 = vpack.c.b16 %v203, %v202
      %v211 = vpack.c.b16 %v205, %v204
      %v212 = vpack.c.b16 %v207, %v206
      %v213 = vpack.c.b16 %v209, %v208
      %vm218 = vcmask 523264
      %v220 = vsel %vm218, %v193, 0
      %222 = vmatpush.bf16.msra.mxu0 0
      %223 = vmatpush.bf16.msra.mxu0 0
      %224 = vmatpush.bf16.msra.mxu0 0
      %225 = vmatpush.bf16.msra.mxu0 0
      %226 = vmatpush.bf16.msra.mxu0 %v213
      %227 = vmatpush.bf16.msra.mxu0 %v212
      %228 = vmatpush.bf16.msra.mxu0 %v211
      %229 = vmatpush.bf16.msra.mxu0 %v210
      %230 = vmatmul.bf16.gmra.mxu0 %v220
      %v231 = vpop.f32.mrf.mxu0
      %v232 = vadd.f32 %v187, %v231
      %v233 = vpop.f32.mrf.mxu0
      %v234 = vadd.f32 %v187, %v233
      %235 = vdwg.mxu0
      %236 = vst [vmem:[%s172] sm:$0xff] %v232
      %237 = vst [vmem:[%s172 + $0x8] sm:$0xff] %v234
      %s238 = smul.u32 2, %s14
      %p239 = scmp.lt.s32.totalorder %s238, 3
      %s240 = scalar_select %p239, %s238, 3
      %s241 = smul.addr %s240, 8
      %s242 = scalar_lea.vmem %s3, %s241
      // Predicated region
      $region33: #{darknet10_forward.37} parent=31 // pred_check
        %p243 = pneg %p100
      $region34: #{darknet10_forward.37} parent=31 // pred_check_branch
        %245 = sbr.rel (%p243) target = $region36
      $region35: #{darknet10_forward.37} parent=31 // pred_region
        %s246 = smul.u32 2, %s14
      $region36: #{darknet10_forward.37} parent=31 // pred_fallthru
        _
    $region32: #{darknet10_forward.37} parent=5 // pred_fallthru
      _
    %p247 = scmp.le.s32.totalorder 2, %s9
    // Predicated region
    $region37: #{darknet10_forward.37} parent=5 // pred_check
      %p248 = pneg %p247
    $region38: #{darknet10_forward.37} parent=5 // pred_check_branch
      %250 = sbr.rel (%p248) target = $region40
    $region39: #{darknet10_forward.37} parent=5 // pred_region
      %s251 = ssub.s32 %s9, 2
      // Predicated region
      $region41: #{darknet10_forward.37} parent=39 // pred_check
        %p252 = pneg %p106
      $region42: #{darknet10_forward.37} parent=39 // pred_check_branch
        %254 = sbr.rel (%p252) target = $region44
      $region43: #{darknet10_forward.37} parent=39 // pred_region
        %s255 = smul.u32 2, %s15
        %p256 = scmp.lt.s32.totalorder %s255, 3
        %s257 = scalar_select %p256, %s255, 3
        %s258 = smul.addr %s257, 8
        %s259 = scalar_lea.vmem %s3, %s258
      $region44: #{darknet10_forward.37} parent=39 // pred_fallthru
        _
    $region40: #{darknet10_forward.37} parent=5 // pred_fallthru
      _
  $region6: #{darknet10_forward.37} parent=0 // loop_footer
    %s13 = sadd.s32 1, %s9
  $region7: #{darknet10_forward.37} parent=0 // loop_footer_branch
    %8 = sbr.rel target = $region3
  $region8: #{darknet10_forward.37} parent=0 // loop_exit
    _

// kernel: darknet10_forward.35
$region0: #{darknet10_forward.35}
  #allocation0 [shape = 'u32[]', space=smem, size = 0x4, offset = 0x4, fixed_abs, tag = 'smem constant byte address 0x4 - core index']
  #allocation1 [shape = 'u32[72,128]{1,0:T(1,128)}', space=vmem, size = 0x9000, scoped, tag = 'internal scratch']
  %s0 = inlined_call_operand.vmem [shape: bf16[32,1152], index: 0, kind: input, shape index: {}]
  %s1 = inlined_call_operand.vmem [shape: bf16[1152,128], index: 1, kind: input, shape index: {}]
  %s2 = inlined_call_operand.vmem [shape: bf16[32,128], index: 2, kind: output, shape index: {0}]
  %s3 = inlined_call_operand.vmem [shape: f32[2,2,128], index: 3, kind: output, shape index: {1}]
  %4 = xla_tuple %s2, %s3
  %s5 = sld [smem:[#allocation0]]
  $region49: #{darknet10_forward.35} parent=0
    _
  %s7 = ssub.s32 1, %s5
  %s8 = scalar_select 0, %s7, %s5
  loop: start=0, step=1, limit=4
  $region2: #{darknet10_forward.35} parent=0 // loop_pre_header
    _
  $region3: #{darknet10_forward.35} parent=0 // loop_header
    %s10 = sphi 0, %s14
    %p11 = scmp.ge.s32.totalorder %s10, 4
    %s20 = sphi 0, %s22
    %s23 = sphi 0, %s20
    %s24 = sphi 0, %s23
    %s40 = sphi 0, %s24
    %s44 = sphi 0, %s44
    %s46 = sphi 0, %s44
    %s47 = sphi 0, %s46
    %s61 = sphi 0, %s47
    %s67 = sphi 0, %s69
    %s70 = sphi 0, %s67
    %s71 = sphi 0, %s70
    %s87 = sphi 0, %s71
    %s93 = sphi 0, %s95
    %s96 = sphi 0, %s93
    %s97 = sphi 0, %s96
    %s113 = sphi 0, %s97
  $region4: #{darknet10_forward.35} parent=0 // loop_header_branch
    %13 = sbr.rel (%p11) target = $region8
  $region5: #{darknet10_forward.35} parent=0 // loop_body
    %s15 = ssub.s32 %s10, 1
    %s16 = ssub.s32 %s10, 2
    %s17 = sadd.s32 %s10, 1
    %s18 = ssub.s32 %s10, %s17
    %p19 = scmp.eq.s32.totalorder %s18, 0
    %s21 = sadd.s32 %s20, 1
    %s22 = scalar_select %p19, %s20, %s21
    %p25 = pneg %p19
    %p26 = scmp.eq.s32.totalorder %s10, 1
    %p27 = por %p25, %p26
    %p28 = scmp.ne.s32.totalorder %s20, %s23
    %p29 = scmp.eq.s32.totalorder %s10, 0
    %p30 = por %p28, %p29
    %p31 = scmp.ne.s32.totalorder %s20, %s23
    %p32 = scmp.eq.s32.totalorder %s15, 1
    %p33 = por %p31, %p32
    %p34 = scmp.ne.s32.totalorder %s23, %s24
    %p35 = scmp.eq.s32.totalorder %s15, 0
    %p36 = por %p34, %p35
    %p37 = scmp.ne.s32.totalorder %s23, %s24
    %p38 = scmp.eq.s32.totalorder %s16, 1
    %p39 = por %p37, %p38
    %p41 = scmp.ne.s32.totalorder %s24, %s40
    %p42 = scmp.eq.s32.totalorder %s16, 0
    %p43 = por %p41, %p42
    %s45 = sadd.s32 %s44, 1
    %p48 = scmp.eq.s32.totalorder %s10, 1
    %p49 = scmp.ne.s32.totalorder %s44, %s46
    %p50 = scmp.eq.s32.totalorder %s10, 0
    %p51 = por %p49, %p50
    %p52 = scmp.ne.s32.totalorder %s44, %s46
    %p53 = scmp.eq.s32.totalorder %s15, 1
    %p54 = por %p52, %p53
    %p55 = scmp.ne.s32.totalorder %s46, %s47
    %p56 = scmp.eq.s32.totalorder %s15, 0
    %p57 = por %p55, %p56
    %p58 = scmp.ne.s32.totalorder %s46, %s47
    %p59 = scmp.eq.s32.totalorder %s16, 1
    %p60 = por %p58, %p59
    %p62 = scmp.ne.s32.totalorder %s47, %s61
    %p63 = scmp.eq.s32.totalorder %s16, 0
    %p64 = por %p62, %p63
    %s65 = ssub.s32 %s10, %s17
    %p66 = scmp.eq.s32.totalorder %s65, 0
    %s68 = sadd.s32 %s67, 1
    %s69 = scalar_select %p66, %s67, %s68
    %p72 = pneg %p66
    %p73 = scmp.eq.s32.totalorder %s10, 1
    %p74 = por %p72, %p73
    %p75 = scmp.ne.s32.totalorder %s67, %s70
    %p76 = scmp.eq.s32.totalorder %s10, 0
    %p77 = por %p75, %p76
    %p78 = scmp.ne.s32.totalorder %s67, %s70
    %p79 = scmp.eq.s32.totalorder %s15, 1
    %p80 = por %p78, %p79
    %p81 = scmp.ne.s32.totalorder %s70, %s71
    %p82 = scmp.eq.s32.totalorder %s15, 0
    %p83 = por %p81, %p82
    %p84 = scmp.ne.s32.totalorder %s70, %s71
    %p85 = scmp.eq.s32.totalorder %s16, 1
    %p86 = por %p84, %p85
    %p88 = scmp.ne.s32.totalorder %s71, %s87
    %p89 = scmp.eq.s32.totalorder %s16, 0
    %p90 = por %p88, %p89
    %s91 = ssub.s32 %s10, %s17
    %p92 = scmp.eq.s32.totalorder %s91, 0
    %s94 = sadd.s32 %s93, 1
    %s95 = scalar_select %p92, %s93, %s94
    %p98 = pneg %p92
    %p99 = scmp.eq.s32.totalorder %s10, 1
    %p100 = por %p98, %p99
    %p101 = scmp.ne.s32.totalorder %s93, %s96
    %p102 = scmp.eq.s32.totalorder %s10, 0
    %p103 = por %p101, %p102
    %p104 = scmp.ne.s32.totalorder %s93, %s96
    %p105 = scmp.eq.s32.totalorder %s15, 1
    %p106 = por %p104, %p105
    %p107 = scmp.ne.s32.totalorder %s96, %s97
    %p108 = scmp.eq.s32.totalorder %s15, 0
    %p109 = por %p107, %p108
    %p110 = scmp.ne.s32.totalorder %s96, %s97
    %p111 = scmp.eq.s32.totalorder %s16, 1
    %p112 = por %p110, %p111
    %p114 = scmp.ne.s32.totalorder %s97, %s113
    %p115 = scmp.eq.s32.totalorder %s16, 0
    %p116 = por %p114, %p115
    %p117 = scmp.le.s32.totalorder 1, %s10
    %p118 = scmp.lt.s32.totalorder %s10, 3
    %p119 = pnand %p117, %p118
    %p120 = pneg %p119
    // Predicated region
    $region9: #{darknet10_forward.35} parent=5 // pred_check
      _
    $region10: #{darknet10_forward.35} parent=5 // pred_check_branch
      %122 = sbr.rel (%p119) target = $region12
    $region11: #{darknet10_forward.35} parent=5 // pred_region
      %s123 = ssub.s32 %s10, 1
      // Predicated region
      $region13: #{darknet10_forward.35} parent=11 // pred_check
        %p124 = pneg %p57
      $region14: #{darknet10_forward.35} parent=11 // pred_check_branch
        %126 = sbr.rel (%p124) target = $region16
      $region15: #{darknet10_forward.35} parent=11 // pred_region
        _
      $region16: #{darknet10_forward.35} parent=11 // pred_fallthru
        _
    $region12: #{darknet10_forward.35} parent=5 // pred_fallthru
      _
    %p127 = scmp.lt.s32.totalorder %s10, 2
    // Predicated region
    $region17: #{darknet10_forward.35} parent=5 // pred_check
      %p128 = pneg %p127
    $region18: #{darknet10_forward.35} parent=5 // pred_check_branch
      %130 = sbr.rel (%p128) target = $region20
    $region19: #{darknet10_forward.35} parent=5 // pred_region
      // Predicated region
      $region21: #{darknet10_forward.35} parent=19 // pred_check
        %p131 = pneg %p30
      $region22: #{darknet10_forward.35} parent=19 // pred_check_branch
        %133 = sbr.rel (%p131) target = $region24
      $region23: #{darknet10_forward.35} parent=19 // pred_region
        %s134 = smul.u32 2, %s10
        %p135 = scmp.lt.s32.totalorder %s134, 3
        %s136 = scalar_select %p135, %s134, 3
        %s137 = smul.addr %s136, 9
        %s138 = smul.addr %s137, 4
        %s139 = scalar_lea.vmem %s0, %s138
        %s140 = smul.u32 2, %s10
      $region24: #{darknet10_forward.35} parent=19 // pred_fallthru
        _
    $region20: #{darknet10_forward.35} parent=5 // pred_fallthru
      _
    %p141 = scmp.le.s32.totalorder 1, %s10
    %p142 = scmp.lt.s32.totalorder %s10, 3
    %p143 = pnand %p141, %p142
    %p144 = pneg %p143
    // Predicated region
    $region25: #{darknet10_forward.35} parent=5 // pred_check
      _
    $region26: #{darknet10_forward.35} parent=5 // pred_check_branch
      %146 = sbr.rel (%p143) target = $region28
    $region27: #{darknet10_forward.35} parent=5 // pred_region
      %s147 = ssub.s32 %s10, 1
      %s148 = smul.u32 2, %s15
      %p149 = scmp.lt.s32.totalorder %s148, 3
      %s150 = scalar_select %p149, %s148, 3
      %s151 = smul.addr %s150, 9
      %s152 = smul.addr %s151, 4
      %s153 = scalar_lea.vmem %s0, %s152
      %p154 = pneg %p36
      %p155 = pneg %p33
      %p156 = pneg %p57
      %p157 = pneg %p54
      %p158 = pneg %p83
      %p159 = pneg %p80
      %s160 = smul.u32 2, %s15
      %p161 = scmp.lt.s32.totalorder %s160, 3
      %s162 = scalar_select %p161, %s160, 3
      %s163 = smul.addr %s162, 4
      %s164 = scalar_lea.vmem %s2, %s163
      %p165 = pneg %p109
      %p166 = pneg %p106
      %p167 = scmp.lt.s32.totalorder %s15, 1
      %s168 = scalar_select %p167, %s15, 1
      %s169 = smul.addr %s168, 2
      %s170 = scalar_lea.vmem %s3, %s169
      %s171 = smul.u32 2, %s15
      %p172 = scmp.lt.s32.totalorder %s171, 3
      %s173 = scalar_select %p172, %s171, 3
      %s174 = smul.addr %s173, 9
      %s175 = smul.addr %s174, 4
      %s176 = scalar_lea.vmem %s0, %s175
      %s177 = smul.u32 2, %s15
      %s178 = smul.u32 2, %s15
      %p179 = scmp.lt.s32.totalorder %s178, 3
      %s180 = scalar_select %p179, %s178, 3
      %s181 = smul.addr %s180, 4
      %s182 = scalar_lea.vmem %s2, %s181
      %s183 = smul.u32 2, %s15
      %p184 = scmp.lt.s32.totalorder %s15, 1
      %s185 = scalar_select %p184, %s15, 1
      %s186 = smul.addr %s185, 2
      %s187 = scalar_lea.vmem %s3, %s186
      %v188 = vld [vmem:[%s176] sm:$0xff]
      %v189 = vld [vmem:[%s176 + $0x8] sm:$0xff]
      %v190 = vld [vmem:[%s176 + $0x10] sm:$0xff]
      %v191 = vld [vmem:[%s176 + $0x18] sm:$0xff]
      %v192 = vld [vmem:[%s176 + $0x20] sm:$0xf]
      %v193 = vld [vmem:[%s176 + $0x24] sm:$0xff]
      %v194 = vld [vmem:[%s176 + $0x2c] sm:$0xff]
      %v195 = vld [vmem:[%s176 + $0x34] sm:$0xff]
      %v196 = vld [vmem:[%s176 + $0x3c] sm:$0xff]
      %v197 = vld [vmem:[%s176 + $0x44] sm:$0xf]
      %v198 = vld [vmem:[%s1] sm:$0xf]
      %v199 = vld [vmem:[%s1 + $0x4] sm:$0xf]
      %v200 = vld [vmem:[%s1 + $0x8] sm:$0xf]
      %v201 = vld [vmem:[%s1 + $0xc] sm:$0xf]
      %v202 = vld [vmem:[%s1 + $0x10] sm:$0xf]
      %v203 = vld [vmem:[%s1 + $0x14] sm:$0xf]
      %v204 = vld [vmem:[%s1 + $0x18] sm:$0xf]
      %v205 = vld [vmem:[%s1 + $0x1c] sm:$0xf]
      %v206 = vld [vmem:[%s1 + $0x20] sm:$0xf]
      %v207 = vld [vmem:[%s1 + $0x24] sm:$0xf]
      %v208 = vld [vmem:[%s1 + $0x28] sm:$0xf]
      %v209 = vld [vmem:[%s1 + $0x2c] sm:$0xf]
      %v210 = vld [vmem:[%s1 + $0x30] sm:$0xf]
      %v211 = vld [vmem:[%s1 + $0x34] sm:$0xf]
      %v212 = vld [vmem:[%s1 + $0x38] sm:$0xf]
      %v213 = vld [vmem:[%s1 + $0x3c] sm:$0xf]
      %v214 = vld [vmem:[%s1 + $0x40] sm:$0xf]
      %v215 = vld [vmem:[%s1 + $0x44] sm:$0xf]
      %v216 = vld [vmem:[%s1 + $0x48] sm:$0xf]
      %v217 = vld [vmem:[%s1 + $0x4c] sm:$0xf]
      %v218 = vld [vmem:[%s1 + $0x50] sm:$0xf]
      %v219 = vld [vmem:[%s1 + $0x54] sm:$0xf]
      %v220 = vld [vmem:[%s1 + $0x58] sm:$0xf]
      %v221 = vld [vmem:[%s1 + $0x5c] sm:$0xf]
      %v222 = vld [vmem:[%s1 + $0x60] sm:$0xf]
      %v223 = vld [vmem:[%s1 + $0x64] sm:$0xf]
      %v224 = vld [vmem:[%s1 + $0x68] sm:$0xf]
      %v225 = vld [vmem:[%s1 + $0x6c] sm:$0xf]
      %v226 = vld [vmem:[%s1 + $0x70] sm:$0xf]
      %v227 = vld [vmem:[%s1 + $0x74] sm:$0xf]
      %v228 = vld [vmem:[%s1 + $0x78] sm:$0xf]
      %v229 = vld [vmem:[%s1 + $0x7c] sm:$0xf]
      %v230 = vld [vmem:[%s1 + $0x80] sm:$0xf]
      %v231 = vld [vmem:[%s1 + $0x84] sm:$0xf]
      %v232 = vld [vmem:[%s1 + $0x88] sm:$0xf]
      %v233 = vld [vmem:[%s1 + $0x8c] sm:$0xf]
      %v234 = vld [vmem:[%s1 + $0x90] sm:$0xf]
      %v235 = vld [vmem:[%s1 + $0x94] sm:$0xf]
      %v236 = vld [vmem:[%s1 + $0x98] sm:$0xf]
      %v237 = vld [vmem:[%s1 + $0x9c] sm:$0xf]
      %v238 = vld [vmem:[%s1 + $0xa0] sm:$0xf]
      %v239 = vld [vmem:[%s1 + $0xa4] sm:$0xf]
      %v240 = vld [vmem:[%s1 + $0xa8] sm:$0xf]
      %v241 = vld [vmem:[%s1 + $0xac] sm:$0xf]
      %v242 = vld [vmem:[%s1 + $0xb0] sm:$0xf]
      %v243 = vld [vmem:[%s1 + $0xb4] sm:$0xf]
      %v244 = vld [vmem:[%s1 + $0xb8] sm:$0xf]
      %v245 = vld [vmem:[%s1 + $0xbc] sm:$0xf]
      %v246 = vld [vmem:[%s1 + $0xc0] sm:$0xf]
      %v247 = vld [vmem:[%s1 + $0xc4] sm:$0xf]
      %v248 = vld [vmem:[%s1 + $0xc8] sm:$0xf]
      %v249 = vld [vmem:[%s1 + $0xcc] sm:$0xf]
      %v250 = vld [vmem:[%s1 + $0xd0] sm:$0xf]
      %v251 = vld [vmem:[%s1 + $0xd4] sm:$0xf]
      %v252 = vld [vmem:[%s1 + $0xd8] sm:$0xf]
      %v253 = vld [vmem:[%s1 + $0xdc] sm:$0xf]
      %v254 = vld [vmem:[%s1 + $0xe0] sm:$0xf]
      %v255 = vld [vmem:[%s1 + $0xe4] sm:$0xf]
      %v256 = vld [vmem:[%s1 + $0xe8] sm:$0xf]
      %v257 = vld [vmem:[%s1 + $0xec] sm:$0xf]
      %v258 = vld [vmem:[%s1 + $0xf0] sm:$0xf]
      %v259 = vld [vmem:[%s1 + $0xf4] sm:$0xf]
      %v260 = vld [vmem:[%s1 + $0xf8] sm:$0xf]
      %v261 = vld [vmem:[%s1 + $0xfc] sm:$0xf]
      %v262 = vld [vmem:[%s1 + $0x100] sm:$0xf]
      %v263 = vld [vmem:[%s1 + $0x104] sm:$0xf]
      %v264 = vld [vmem:[%s1 + $0x108] sm:$0xf]
      %v265 = vld [vmem:[%s1 + $0x10c] sm:$0xf]
      %v266 = vld [vmem:[%s1 + $0x110] sm:$0xf]
      %v267 = vld [vmem:[%s1 + $0x114] sm:$0xf]
      %v268 = vld [vmem:[%s1 + $0x118] sm:$0xf]
      %v269 = vld [vmem:[%s1 + $0x11c] sm:$0xf]
      %v270 = vld [vmem:[%s1 + $0x120] sm:$0xf]
      %v271 = vld [vmem:[%s1 + $0x124] sm:$0xf]
      %v272 = vld [vmem:[%s1 + $0x128] sm:$0xf]
      %v273 = vld [vmem:[%s1 + $0x12c] sm:$0xf]
      %v274 = vld [vmem:[%s1 + $0x130] sm:$0xf]
      %v275 = vld [vmem:[%s1 + $0x134] sm:$0xf]
      %v276 = vld [vmem:[%s1 + $0x138] sm:$0xf]
      %v277 = vld [vmem:[%s1 + $0x13c] sm:$0xf]
      %v278 = vld [vmem:[%s1 + $0x140] sm:$0xf]
      %v279 = vld [vmem:[%s1 + $0x144] sm:$0xf]
      %v280 = vld [vmem:[%s1 + $0x148] sm:$0xf]
      %v281 = vld [vmem:[%s1 + $0x14c] sm:$0xf]
      %v282 = vld [vmem:[%s1 + $0x150] sm:$0xf]
      %v283 = vld [vmem:[%s1 + $0x154] sm:$0xf]
      %v284 = vld [vmem:[%s1 + $0x158] sm:$0xf]
      %v285 = vld [vmem:[%s1 + $0x15c] sm:$0xf]
      %v286 = vld [vmem:[%s1 + $0x160] sm:$0xf]
      %v287 = vld [vmem:[%s1 + $0x164] sm:$0xf]
      %v288 = vld [vmem:[%s1 + $0x168] sm:$0xf]
      %v289 = vld [vmem:[%s1 + $0x16c] sm:$0xf]
      %v290 = vld [vmem:[%s1 + $0x170] sm:$0xf]
      %v291 = vld [vmem:[%s1 + $0x174] sm:$0xf]
      %v292 = vld [vmem:[%s1 + $0x178] sm:$0xf]
      %v293 = vld [vmem:[%s1 + $0x17c] sm:$0xf]
      %v294 = vld [vmem:[%s1 + $0x180] sm:$0xf]
      %v295 = vld [vmem:[%s1 + $0x184] sm:$0xf]
      %v296 = vld [vmem:[%s1 + $0x188] sm:$0xf]
      %v297 = vld [vmem:[%s1 + $0x18c] sm:$0xf]
      %v298 = vld [vmem:[%s1 + $0x190] sm:$0xf]
      %v299 = vld [vmem:[%s1 + $0x194] sm:$0xf]
      %v300 = vld [vmem:[%s1 + $0x198] sm:$0xf]
      %v301 = vld [vmem:[%s1 + $0x19c] sm:$0xf]
      %v302 = vld [vmem:[%s1 + $0x1a0] sm:$0xf]
      %v303 = vld [vmem:[%s1 + $0x1a4] sm:$0xf]
      %v304 = vld [vmem:[%s1 + $0x1a8] sm:$0xf]
      %v305 = vld [vmem:[%s1 + $0x1ac] sm:$0xf]
      %v306 = vld [vmem:[%s1 + $0x1b0] sm:$0xf]
      %v307 = vld [vmem:[%s1 + $0x1b4] sm:$0xf]
      %v308 = vld [vmem:[%s1 + $0x1b8] sm:$0xf]
      %v309 = vld [vmem:[%s1 + $0x1bc] sm:$0xf]
      %v310 = vld [vmem:[%s1 + $0x1c0] sm:$0xf]
      %v311 = vld [vmem:[%s1 + $0x1c4] sm:$0xf]
      %v312 = vld [vmem:[%s1 + $0x1c8] sm:$0xf]
      %v313 = vld [vmem:[%s1 + $0x1cc] sm:$0xf]
      %v314 = vld [vmem:[%s1 + $0x1d0] sm:$0xf]
      %v315 = vld [vmem:[%s1 + $0x1d4] sm:$0xf]
      %v316 = vld [vmem:[%s1 + $0x1d8] sm:$0xf]
      %v317 = vld [vmem:[%s1 + $0x1dc] sm:$0xf]
      %v318 = vld [vmem:[%s1 + $0x1e0] sm:$0xf]
      %v319 = vld [vmem:[%s1 + $0x1e4] sm:$0xf]
      %v320 = vld [vmem:[%s1 + $0x1e8] sm:$0xf]
      %v321 = vld [vmem:[%s1 + $0x1ec] sm:$0xf]
      %v322 = vld [vmem:[%s1 + $0x1f0] sm:$0xf]
      %v323 = vld [vmem:[%s1 + $0x1f4] sm:$0xf]
      %v324 = vld [vmem:[%s1 + $0x1f8] sm:$0xf]
      %v325 = vld [vmem:[%s1 + $0x1fc] sm:$0xf]
      %v326 = vld [vmem:[%s1 + $0x200] sm:$0xf]
      %v327 = vld [vmem:[%s1 + $0x204] sm:$0xf]
      %v328 = vld [vmem:[%s1 + $0x208] sm:$0xf]
      %v329 = vld [vmem:[%s1 + $0x20c] sm:$0xf]
      %v330 = vld [vmem:[%s1 + $0x210] sm:$0xf]
      %v331 = vld [vmem:[%s1 + $0x214] sm:$0xf]
      %v332 = vld [vmem:[%s1 + $0x218] sm:$0xf]
      %v333 = vld [vmem:[%s1 + $0x21c] sm:$0xf]
      %v334 = vld [vmem:[%s1 + $0x220] sm:$0xf]
      %v335 = vld [vmem:[%s1 + $0x224] sm:$0xf]
      %v336 = vld [vmem:[%s1 + $0x228] sm:$0xf]
      %v337 = vld [vmem:[%s1 + $0x22c] sm:$0xf]
      %v338 = vld [vmem:[%s1 + $0x230] sm:$0xf]
      %v339 = vld [vmem:[%s1 + $0x234] sm:$0xf]
      %v340 = vld [vmem:[%s1 + $0x238] sm:$0xf]
      %v341 = vld [vmem:[%s1 + $0x23c] sm:$0xf]
      %v352 = vunpack.c.l.b16 %v188
      %v353 = vunpack.c.h.b16 %v188
      %v354 = vunpack.c.l.b16 %v189
      %v355 = vunpack.c.h.b16 %v189
      %v356 = vunpack.c.l.b16 %v190
      %v357 = vunpack.c.h.b16 %v190
      %v358 = vunpack.c.l.b16 %v191
      %v359 = vunpack.c.h.b16 %v191
      %v360 = vunpack.c.l.b16 %v192
      %v361 = vunpack.c.l.b16 %v193
      %v362 = vunpack.c.h.b16 %v193
      %v363 = vunpack.c.l.b16 %v194
      %v364 = vunpack.c.h.b16 %v194
      %v365 = vunpack.c.l.b16 %v195
      %v366 = vunpack.c.h.b16 %v195
      %v367 = vunpack.c.l.b16 %v196
      %v368 = vunpack.c.h.b16 %v196
      %v369 = vunpack.c.l.b16 %v197
      %v370 = vpack.c.b16 %v361, %v352
      %v371 = vpack.c.b16 %v362, %v353
      %v372 = vpack.c.b16 %v363, %v354
      %v373 = vpack.c.b16 %v364, %v355
      %v374 = vpack.c.b16 %v365, %v356
      %v375 = vpack.c.b16 %v366, %v357
      %v376 = vpack.c.b16 %v367, %v358
      %v377 = vpack.c.b16 %v368, %v359
      %v378 = vpack.c.b16 %v369, %v360
      %v532 = vunpack.c.l.b16 %v198
      %v533 = vunpack.c.l.b16 %v199
      %v534 = vunpack.c.l.b16 %v200
      %v535 = vunpack.c.l.b16 %v201
      %v536 = vunpack.c.l.b16 %v202
      %v537 = vunpack.c.l.b16 %v203
      %v538 = vunpack.c.l.b16 %v204
      %v539 = vunpack.c.l.b16 %v205
      %v540 = vunpack.c.l.b16 %v206
      %v541 = vunpack.c.l.b16 %v207
      %v542 = vunpack.c.l.b16 %v208
      %v543 = vunpack.c.l.b16 %v209
      %v544 = vunpack.c.l.b16 %v210
      %v545 = vunpack.c.l.b16 %v211
      %v546 = vunpack.c.l.b16 %v212
      %v547 = vunpack.c.l.b16 %v213
      %v548 = vunpack.c.l.b16 %v214
      %v549 = vunpack.c.l.b16 %v215
      %v550 = vunpack.c.l.b16 %v216
      %v551 = vunpack.c.l.b16 %v217
      %v552 = vunpack.c.l.b16 %v218
      %v553 = vunpack.c.l.b16 %v219
      %v554 = vunpack.c.l.b16 %v220
      %v555 = vunpack.c.l.b16 %v221
      %v556 = vunpack.c.l.b16 %v222
      %v557 = vunpack.c.l.b16 %v223
      %v558 = vunpack.c.l.b16 %v224
      %v559 = vunpack.c.l.b16 %v225
      %v560 = vunpack.c.l.b16 %v226
      %v561 = vunpack.c.l.b16 %v227
      %v562 = vunpack.c.l.b16 %v228
      %v563 = vunpack.c.l.b16 %v229
      %v564 = vunpack.c.l.b16 %v230
      %v565 = vunpack.c.l.b16 %v231
      %v566 = vunpack.c.l.b16 %v232
      %v567 = vunpack.c.l.b16 %v233
      %v568 = vunpack.c.l.b16 %v234
      %v569 = vunpack.c.l.b16 %v235
      %v570 = vunpack.c.l.b16 %v236
      %v571 = vunpack.c.l.b16 %v237
      %v572 = vunpack.c.l.b16 %v238
      %v573 = vunpack.c.l.b16 %v239
      %v574 = vunpack.c.l.b16 %v240
      %v575 = vunpack.c.l.b16 %v241
      %v576 = vunpack.c.l.b16 %v242
      %v577 = vunpack.c.l.b16 %v243
      %v578 = vunpack.c.l.b16 %v244
      %v579 = vunpack.c.l.b16 %v245
      %v580 = vunpack.c.l.b16 %v246
      %v581 = vunpack.c.l.b16 %v247
      %v582 = vunpack.c.l.b16 %v248
      %v583 = vunpack.c.l.b16 %v249
      %v584 = vunpack.c.l.b16 %v250
      %v585 = vunpack.c.l.b16 %v251
      %v586 = vunpack.c.l.b16 %v252
      %v587 = vunpack.c.l.b16 %v253
      %v588 = vunpack.c.l.b16 %v254
      %v589 = vunpack.c.l.b16 %v255
      %v590 = vunpack.c.l.b16 %v256
      %v591 = vunpack.c.l.b16 %v257
      %v592 = vunpack.c.l.b16 %v258
      %v593 = vunpack.c.l.b16 %v259
      %v594 = vunpack.c.l.b16 %v260
      %v595 = vunpack.c.l.b16 %v261
      %v596 = vunpack.c.l.b16 %v262
      %v597 = vunpack.c.l.b16 %v263
      %v598 = vunpack.c.l.b16 %v264
      %v599 = vunpack.c.l.b16 %v265
      %v600 = vunpack.c.l.b16 %v266
      %v601 = vunpack.c.l.b16 %v267
      %v602 = vunpack.c.l.b16 %v268
      %v603 = vunpack.c.l.b16 %v269
      %v604 = vunpack.c.l.b16 %v270
      %v605 = vunpack.c.l.b16 %v271
      %v606 = vunpack.c.l.b16 %v272
      %v607 = vunpack.c.l.b16 %v273
      %v608 = vunpack.c.l.b16 %v274
      %v609 = vunpack.c.l.b16 %v275
      %v610 = vunpack.c.l.b16 %v276
      %v611 = vunpack.c.l.b16 %v277
      %v612 = vunpack.c.l.b16 %v278
      %v613 = vunpack.c.l.b16 %v279
      %v614 = vunpack.c.l.b16 %v280
      %v615 = vunpack.c.l.b16 %v281
      %v616 = vunpack.c.l.b16 %v282
      %v617 = vunpack.c.l.b16 %v283
      %v618 = vunpack.c.l.b16 %v284
      %v619 = vunpack.c.l.b16 %v285
      %v620 = vunpack.c.l.b16 %v286
      %v621 = vunpack.c.l.b16 %v287
      %v622 = vunpack.c.l.b16 %v288
      %v623 = vunpack.c.l.b16 %v289
      %v624 = vunpack.c.l.b16 %v290
      %v625 = vunpack.c.l.b16 %v291
      %v626 = vunpack.c.l.b16 %v292
      %v627 = vunpack.c.l.b16 %v293
      %v628 = vunpack.c.l.b16 %v294
      %v629 = vunpack.c.l.b16 %v295
      %v630 = vunpack.c.l.b16 %v296
      %v631 = vunpack.c.l.b16 %v297
      %v632 = vunpack.c.l.b16 %v298
      %v633 = vunpack.c.l.b16 %v299
      %v634 = vunpack.c.l.b16 %v300
      %v635 = vunpack.c.l.b16 %v301
      %v636 = vunpack.c.l.b16 %v302
      %v637 = vunpack.c.l.b16 %v303
      %v638 = vunpack.c.l.b16 %v304
      %v639 = vunpack.c.l.b16 %v305
      %v640 = vunpack.c.l.b16 %v306
      %v641 = vunpack.c.l.b16 %v307
      %v642 = vunpack.c.l.b16 %v308
      %v643 = vunpack.c.l.b16 %v309
      %v644 = vunpack.c.l.b16 %v310
      %v645 = vunpack.c.l.b16 %v311
      %v646 = vunpack.c.l.b16 %v312
      %v647 = vunpack.c.l.b16 %v313
      %v648 = vunpack.c.l.b16 %v314
      %v649 = vunpack.c.l.b16 %v315
      %v650 = vunpack.c.l.b16 %v316
      %v651 = vunpack.c.l.b16 %v317
      %v652 = vunpack.c.l.b16 %v318
      %v653 = vunpack.c.l.b16 %v319
      %v654 = vunpack.c.l.b16 %v320
      %v655 = vunpack.c.l.b16 %v321
      %v656 = vunpack.c.l.b16 %v322
      %v657 = vunpack.c.l.b16 %v323
      %v658 = vunpack.c.l.b16 %v324
      %v659 = vunpack.c.l.b16 %v325
      %v660 = vunpack.c.l.b16 %v326
      %v661 = vunpack.c.l.b16 %v327
      %v662 = vunpack.c.l.b16 %v328
      %v663 = vunpack.c.l.b16 %v329
      %v664 = vunpack.c.l.b16 %v330
      %v665 = vunpack.c.l.b16 %v331
      %v666 = vunpack.c.l.b16 %v332
      %v667 = vunpack.c.l.b16 %v333
      %v668 = vunpack.c.l.b16 %v334
      %v669 = vunpack.c.l.b16 %v335
      %v670 = vunpack.c.l.b16 %v336
      %v671 = vunpack.c.l.b16 %v337
      %v672 = vunpack.c.l.b16 %v338
      %v673 = vunpack.c.l.b16 %v339
      %v674 = vunpack.c.l.b16 %v340
      %v675 = vunpack.c.l.b16 %v341
      %v676 = vpack.c.b16 %v533, %v532
      %v677 = vpack.c.b16 %v535, %v534
      %v678 = vpack.c.b16 %v537, %v536
      %v679 = vpack.c.b16 %v539, %v538
      %v680 = vpack.c.b16 %v541, %v540
      %v681 = vpack.c.b16 %v543, %v542
      %v682 = vpack.c.b16 %v545, %v544
      %v683 = vpack.c.b16 %v547, %v546
      %v684 = vpack.c.b16 %v549, %v548
      %v685 = vpack.c.b16 %v551, %v550
      %v686 = vpack.c.b16 %v553, %v552
      %v687 = vpack.c.b16 %v555, %v554
      %v688 = vpack.c.b16 %v557, %v556
      %v689 = vpack.c.b16 %v559, %v558
      %v690 = vpack.c.b16 %v561, %v560
      %v691 = vpack.c.b16 %v563, %v562
      %v692 = vpack.c.b16 %v565, %v564
      %v693 = vpack.c.b16 %v567, %v566
      %v694 = vpack.c.b16 %v569, %v568
      %v695 = vpack.c.b16 %v571, %v570
      %v696 = vpack.c.b16 %v573, %v572
      %v697 = vpack.c.b16 %v575, %v574
      %v698 = vpack.c.b16 %v577, %v576
      %v699 = vpack.c.b16 %v579, %v578
      %v700 = vpack.c.b16 %v581, %v580
      %v701 = vpack.c.b16 %v583, %v582
      %v702 = vpack.c.b16 %v585, %v584
      %v703 = vpack.c.b16 %v587, %v586
      %v704 = vpack.c.b16 %v589, %v588
      %v705 = vpack.c.b16 %v591, %v590
      %v706 = vpack.c.b16 %v593, %v592
      %v707 = vpack.c.b16 %v595, %v594
      %v708 = vpack.c.b16 %v597, %v596
      %v709 = vpack.c.b16 %v599, %v598
      %v710 = vpack.c.b16 %v601, %v600
      %v711 = vpack.c.b16 %v603, %v602
      %v712 = vpack.c.b16 %v605, %v604
      %v713 = vpack.c.b16 %v607, %v606
      %v714 = vpack.c.b16 %v609, %v608
      %v715 = vpack.c.b16 %v611, %v610
      %v716 = vpack.c.b16 %v613, %v612
      %v717 = vpack.c.b16 %v615, %v614
      %v718 = vpack.c.b16 %v617, %v616
      %v719 = vpack.c.b16 %v619, %v618
      %v720 = vpack.c.b16 %v621, %v620
      %v721 = vpack.c.b16 %v623, %v622
      %v722 = vpack.c.b16 %v625, %v624
      %v723 = vpack.c.b16 %v627, %v626
      %v724 = vpack.c.b16 %v629, %v628
      %v725 = vpack.c.b16 %v631, %v630
      %v726 = vpack.c.b16 %v633, %v632
      %v727 = vpack.c.b16 %v635, %v634
      %v728 = vpack.c.b16 %v637, %v636
      %v729 = vpack.c.b16 %v639, %v638
      %v730 = vpack.c.b16 %v641, %v640
      %v731 = vpack.c.b16 %v643, %v642
      %v732 = vpack.c.b16 %v645, %v644
      %v733 = vpack.c.b16 %v647, %v646
      %v734 = vpack.c.b16 %v649, %v648
      %v735 = vpack.c.b16 %v651, %v650
      %v736 = vpack.c.b16 %v653, %v652
      %v737 = vpack.c.b16 %v655, %v654
      %v738 = vpack.c.b16 %v657, %v656
      %v739 = vpack.c.b16 %v659, %v658
      %v740 = vpack.c.b16 %v661, %v660
      %v741 = vpack.c.b16 %v663, %v662
      %v742 = vpack.c.b16 %v665, %v664
      %v743 = vpack.c.b16 %v667, %v666
      %v744 = vpack.c.b16 %v669, %v668
      %v745 = vpack.c.b16 %v671, %v670
      %v746 = vpack.c.b16 %v673, %v672
      %v747 = vpack.c.b16 %v675, %v674
      %820 = vmatpush.bf16.msra.mxu0 %v683
      %821 = vmatpush.bf16.msra.mxu0 %v682
      %822 = vmatpush.bf16.msra.mxu0 %v681
      %823 = vmatpush.bf16.msra.mxu0 %v680
      %824 = vmatpush.bf16.msra.mxu0 %v679
      %825 = vmatpush.bf16.msra.mxu0 %v678
      %826 = vmatpush.bf16.msra.mxu0 %v677
      %827 = vmatpush.bf16.msra.mxu0 %v676
      %828 = vmatmul.bf16.gmra.mxu0 %v370
      %v829 = vpop.f32.mrf.mxu0
      %v830 = vadd.f32 0.0, %v829
      %v831 = vpop.f32.mrf.mxu0
      %v832 = vadd.f32 0.0, %v831
      %833 = vdwg.mxu0
      %834 = vmatpush.bf16.msra.mxu0 %v691
      %835 = vmatpush.bf16.msra.mxu0 %v690
      %836 = vmatpush.bf16.msra.mxu0 %v689
      %837 = vmatpush.bf16.msra.mxu0 %v688
      %838 = vmatpush.bf16.msra.mxu0 %v687
      %839 = vmatpush.bf16.msra.mxu0 %v686
      %840 = vmatpush.bf16.msra.mxu0 %v685
      %841 = vmatpush.bf16.msra.mxu0 %v684
      %842 = vmatmul.bf16.gmra.mxu0 %v371
      %v843 = vpop.f32.mrf.mxu0
      %v844 = vadd.f32 %v830, %v843
      %v845 = vpop.f32.mrf.mxu0
      %v846 = vadd.f32 %v832, %v845
      %847 = vdwg.mxu0
      %848 = vmatpush.bf16.msra.mxu0 %v699
      %849 = vmatpush.bf16.msra.mxu0 %v698
      %850 = vmatpush.bf16.msra.mxu0 %v697
      %851 = vmatpush.bf16.msra.mxu0 %v696
      %852 = vmatpush.bf16.msra.mxu0 %v695
      %853 = vmatpush.bf16.msra.mxu0 %v694
      %854 = vmatpush.bf16.msra.mxu0 %v693
      %855 = vmatpush.bf16.msra.mxu0 %v692
      %856 = vmatmul.bf16.gmra.mxu0 %v372
      %v857 = vpop.f32.mrf.mxu0
      %v858 = vadd.f32 %v844, %v857
      %v859 = vpop.f32.mrf.mxu0
      %v860 = vadd.f32 %v846, %v859
      %861 = vdwg.mxu0
      %862 = vmatpush.bf16.msra.mxu0 %v707
      %863 = vmatpush.bf16.msra.mxu0 %v706
      %864 = vmatpush.bf16.msra.mxu0 %v705
      %865 = vmatpush.bf16.msra.mxu0 %v704
      %866 = vmatpush.bf16.msra.mxu0 %v703
      %867 = vmatpush.bf16.msra.mxu0 %v702
      %868 = vmatpush.bf16.msra.mxu0 %v701
      %869 = vmatpush.bf16.msra.mxu0 %v700
      %870 = vmatmul.bf16.gmra.mxu0 %v373
      %v871 = vpop.f32.mrf.mxu0
      %v872 = vadd.f32 %v858, %v871
      %v873 = vpop.f32.mrf.mxu0
      %v874 = vadd.f32 %v860, %v873
      %875 = vdwg.mxu0
      %876 = vmatpush.bf16.msra.mxu0 %v715
      %877 = vmatpush.bf16.msra.mxu0 %v714
      %878 = vmatpush.bf16.msra.mxu0 %v713
      %879 = vmatpush.bf16.msra.mxu0 %v712
      %880 = vmatpush.bf16.msra.mxu0 %v711
      %881 = vmatpush.bf16.msra.mxu0 %v710
      %882 = vmatpush.bf16.msra.mxu0 %v709
      %883 = vmatpush.bf16.msra.mxu0 %v708
      %884 = vmatmul.bf16.gmra.mxu0 %v374
      %v885 = vpop.f32.mrf.mxu0
      %v886 = vadd.f32 %v872, %v885
      %v887 = vpop.f32.mrf.mxu0
      %v888 = vadd.f32 %v874, %v887
      %889 = vdwg.mxu0
      %890 = vmatpush.bf16.msra.mxu0 %v723
      %891 = vmatpush.bf16.msra.mxu0 %v722
      %892 = vmatpush.bf16.msra.mxu0 %v721
      %893 = vmatpush.bf16.msra.mxu0 %v720
      %894 = vmatpush.bf16.msra.mxu0 %v719
      %895 = vmatpush.bf16.msra.mxu0 %v718
      %896 = vmatpush.bf16.msra.mxu0 %v717
      %897 = vmatpush.bf16.msra.mxu0 %v716
      %898 = vmatmul.bf16.gmra.mxu0 %v375
      %v899 = vpop.f32.mrf.mxu0
      %v900 = vadd.f32 %v886, %v899
      %v901 = vpop.f32.mrf.mxu0
      %v902 = vadd.f32 %v888, %v901
      %903 = vdwg.mxu0
      %904 = vmatpush.bf16.msra.mxu0 %v731
      %905 = vmatpush.bf16.msra.mxu0 %v730
      %906 = vmatpush.bf16.msra.mxu0 %v729
      %907 = vmatpush.bf16.msra.mxu0 %v728
      %908 = vmatpush.bf16.msra.mxu0 %v727
      %909 = vmatpush.bf16.msra.mxu0 %v726
      %910 = vmatpush.bf16.msra.mxu0 %v725
      %911 = vmatpush.bf16.msra.mxu0 %v724
      %912 = vmatmul.bf16.gmra.mxu0 %v376
      %v913 = vpop.f32.mrf.mxu0
      %v914 = vadd.f32 %v900, %v913
      %v915 = vpop.f32.mrf.mxu0
      %v916 = vadd.f32 %v902, %v915
      %917 = vdwg.mxu0
      %918 = vmatpush.bf16.msra.mxu0 %v739
      %919 = vmatpush.bf16.msra.mxu0 %v738
      %920 = vmatpush.bf16.msra.mxu0 %v737
      %921 = vmatpush.bf16.msra.mxu0 %v736
      %922 = vmatpush.bf16.msra.mxu0 %v735
      %923 = vmatpush.bf16.msra.mxu0 %v734
      %924 = vmatpush.bf16.msra.mxu0 %v733
      %925 = vmatpush.bf16.msra.mxu0 %v732
      %926 = vmatmul.bf16.gmra.mxu0 %v377
      %v927 = vpop.f32.mrf.mxu0
      %v928 = vadd.f32 %v914, %v927
      %v929 = vpop.f32.mrf.mxu0
      %v930 = vadd.f32 %v916, %v929
      %931 = vdwg.mxu0
      %932 = vmatpush.bf16.msra.mxu0 %v747
      %933 = vmatpush.bf16.msra.mxu0 %v746
      %934 = vmatpush.bf16.msra.mxu0 %v745
      %935 = vmatpush.bf16.msra.mxu0 %v744
      %936 = vmatpush.bf16.msra.mxu0 %v743
      %937 = vmatpush.bf16.msra.mxu0 %v742
      %938 = vmatpush.bf16.msra.mxu0 %v741
      %939 = vmatpush.bf16.msra.mxu0 %v740
      %940 = vmatmul.bf16.gmra.mxu0 %v378
      %v941 = vpop.f32.mrf.mxu0
      %v942 = vadd.f32 %v928, %v941
      %v943 = vpop.f32.mrf.mxu0
      %v944 = vadd.f32 %v930, %v943
      %945 = vdwg.mxu0
      %v946 = vpack.c.bf16 %v942, %v942
      %v947 = vpack.c.bf16 %v944, %v944
      %948 = vst [vmem:[%s182] sm:$0xf] %v946
      %949 = vst [vmem:[%s182 + $0x4] sm:$0xf] %v947
      %s950 = smul.u32 %s15, 16
      %v951 = vlaneseq
      %v952 = vshrl.u32 %v951, 7
      %v953 = vadd.s32 %v952, 8
      %v954 = vstv %s950
      %v955 = vadd.s32 %v952, %v954
      %v956 = vadd.s32 %v953, %v954
      %vm957 = vcmp.lt.s32.totalorder %v955, 32
      %vm958 = vcmp.lt.s32.totalorder %v956, 32
      %s959 = ssub.s32 32, %s950
      %p960 = scmp.lt.s32.totalorder %s959, 16
      %s961 = scalar_select %p960, %s959, 16
      %p962 = scmp.gt.s32.totalorder %s961, 1
      %s963 = scalar_select %p962, %s961, 1
      %s964 = scvt.s32.f32 %s963
      %v965 = vsel %vm957, 1, 0
      %v966 = vsel %vm958, 1, 0
      %vm967 = vcmp.eq.s32.totalorder %v965, 1
      %vm968 = vcmp.eq.s32.totalorder %v966, 1
      %v969 = vsel %vm967, %v942, 0.0
      %v970 = vsel %vm968, %v944, 0.0
      %v971 = vadd.f32 %v969, %v970
      %v972 = vrot.slane %v971, 4
      %v973 = vadd.f32 %v971, %v972
      %v974 = vrot.slane %v973, 2
      %v975 = vadd.f32 %v973, %v974
      %v976 = vrot.slane %v975, 1
      %v977 = vadd.f32 %v975, %v976
      %v978 = vstv %s964
      %v979 = vrcp.pop %v978
      %v980 = vmul.f32 %v978, %v979
      %v981 = vsub.f32 1.0, %v980
      %v982 = vmul.f32 %v979, %v981
      %v983 = vadd.f32 %v979, %v982
      %vm984 = vweird.f32 %v978
      %vm985 = vweird.f32 %v979
      %vm986 = vmor %vm984, %vm985
      %v987 = vsel %vm986, %v979, %v983
      %v988 = vand.u32 2147483647, %v978
      %vm989 = vcmp.eq.f32.partialorder %v988, 8.507059e+37
      %v990 = vand.u32 %v978, 2147483648
      %v991 = vor.u32 1.1754944e-38, %v990
      %v992 = vsel %vm989, %v991, %v987
      %v993 = vmul.f32 %v977, %v992
      %v994 = vsub.f32 %v942, %v993
      %v995 = vsub.f32 %v944, %v993
      %v996 = vsel %vm967, %v994, 0.0
      %v997 = vsel %vm968, %v995, 0.0
      %998 = vst [vmem:[%s187] sm:$0x1] %v977
      %v999 = vmul.f32 %v996, %v996
      %v1000 = vmul.f32 %v997, %v997
      %v1001 = vadd.f32 %v999, %v1000
      %v1002 = vrot.slane %v1001, 4
      %v1003 = vadd.f32 %v1001, %v1002
      %v1004 = vrot.slane %v1003, 2
      %v1005 = vadd.f32 %v1003, %v1004
      %v1006 = vrot.slane %v1005, 1
      %v1007 = vadd.f32 %v1005, %v1006
      %1008 = vst [vmem:[%s187 + $0x1] sm:$0x1] %v1007
      %s1009 = smul.u32 2, %s15
      %p1010 = scmp.lt.s32.totalorder %s1009, 3
      %s1011 = scalar_select %p1010, %s1009, 3
      %s1012 = smul.addr %s1011, 4
      %s1013 = scalar_lea.vmem %s2, %s1012
      %p1014 = scmp.lt.s32.totalorder %s15, 1
      %s1015 = scalar_select %p1014, %s15, 1
      %s1016 = smul.addr %s1015, 2
      %s1017 = scalar_lea.vmem %s3, %s1016
      // Predicated region
      $region29: #{darknet10_forward.35} parent=27 // pred_check
        %p1018 = pneg %p80
      $region30: #{darknet10_forward.35} parent=27 // pred_check_branch
        %1020 = sbr.rel (%p1018) target = $region32
      $region31: #{darknet10_forward.35} parent=27 // pred_region
        %s1021 = smul.u32 2, %s15
      $region32: #{darknet10_forward.35} parent=27 // pred_fallthru
        _
      // Predicated region
      $region33: #{darknet10_forward.35} parent=27 // pred_check
        %p1022 = pneg %p106
      $region34: #{darknet10_forward.35} parent=27 // pred_check_branch
        %1024 = sbr.rel (%p1022) target = $region36
      $region35: #{darknet10_forward.35} parent=27 // pred_region
        _
      $region36: #{darknet10_forward.35} parent=27 // pred_fallthru
        _
    $region28: #{darknet10_forward.35} parent=5 // pred_fallthru
      _
    %p1025 = scmp.le.s32.totalorder 2, %s10
    // Predicated region
    $region37: #{darknet10_forward.35} parent=5 // pred_check
      %p1026 = pneg %p1025
    $region38: #{darknet10_forward.35} parent=5 // pred_check_branch
      %1028 = sbr.rel (%p1026) target = $region40
    $region39: #{darknet10_forward.35} parent=5 // pred_region
      %s1029 = ssub.s32 %s10, 2
      // Predicated region
      $region41: #{darknet10_forward.35} parent=39 // pred_check
        %p1030 = pneg %p86
      $region42: #{darknet10_forward.35} parent=39 // pred_check_branch
        %1032 = sbr.rel (%p1030) target = $region44
      $region43: #{darknet10_forward.35} parent=39 // pred_region
        %s1033 = smul.u32 2, %s16
        %p1034 = scmp.lt.s32.totalorder %s1033, 3
        %s1035 = scalar_select %p1034, %s1033, 3
        %s1036 = smul.addr %s1035, 4
        %s1037 = scalar_lea.vmem %s2, %s1036
      $region44: #{darknet10_forward.35} parent=39 // pred_fallthru
        _
      // Predicated region
      $region45: #{darknet10_forward.35} parent=39 // pred_check
        %p1038 = pneg %p112
      $region46: #{darknet10_forward.35} parent=39 // pred_check_branch
        %1040 = sbr.rel (%p1038) target = $region48
      $region47: #{darknet10_forward.35} parent=39 // pred_region
        %p1041 = scmp.lt.s32.totalorder %s16, 1
        %s1042 = scalar_select %p1041, %s16, 1
        %s1043 = smul.addr %s1042, 2
        %s1044 = scalar_lea.vmem %s3, %s1043
      $region48: #{darknet10_forward.35} parent=39 // pred_fallthru
        _
    $region40: #{darknet10_forward.35} parent=5 // pred_fallthru
      _
  $region6: #{darknet10_forward.35} parent=0 // loop_footer
    %s14 = sadd.s32 1, %s10
  $region7: #{darknet10_forward.35} parent=0 // loop_footer_branch
    %9 = sbr.rel target = $region3
  $region8: #{darknet10_forward.35} parent=0 // loop_exit
    _

</llo_original>
